<compile_context>
chip_gen: v7x
topology: tpu7x:2x2x1
jax: 0.10.0
libtpu: 0.0.40
codegen_flags: <defaults>
</compile_context>

<pallas_src>
import functools
import math

import jax
import jax.numpy as jnp
from jax.experimental import pallas as pl
from jax.experimental.pallas import tpu as pltpu


# ---------------------------------------------------------------------------
# helpers
# ---------------------------------------------------------------------------
def _layernorm(x, g, b, eps):
    mean = jnp.mean(x, axis=-1, keepdims=True)
    xc = x - mean
    var = jnp.mean(xc * xc, axis=-1, keepdims=True)
    return xc * jax.lax.rsqrt(var + eps) * g + b


# ---------------------------------------------------------------------------
# Fully fused forward kernel (one grid step per batch element)
# ---------------------------------------------------------------------------
def _fused_forward_kernel(x_ref, tw_ref, tb_ref,
                          in_w_ref, in_b_ref, op_w_ref, op_b_ref,
                          l1_w_ref, l1_b_ref, l2_w_ref, l2_b_ref,
                          ln1_g_ref, ln1_b_ref, ln2_g_ref, ln2_b_ref,
                          ow_ref, ob_ref,
                          o_ref,
                          attn_scratch,
                          *, num_layers, num_heads, eps):
    x = x_ref[0].astype(jnp.float32)                                  # (S, in_dim)
    S = x.shape[0]
    E = tw_ref.shape[1]
    Dh = E // num_heads
    scale = 1.0 / math.sqrt(Dh)

    # -------- transform Linear --------
    h = jnp.dot(x, tw_ref[...].astype(jnp.float32),
                preferred_element_type=jnp.float32)
    h = h + tb_ref[...].astype(jnp.float32)                           # (S, E)

    # -------- encoder layers (statically unrolled) --------
    for l in range(num_layers):
        # ---- self-attention block (post-norm) ----
        qkv = jnp.dot(h, in_w_ref[l].astype(jnp.float32),
                      preferred_element_type=jnp.float32)
        qkv = qkv + in_b_ref[l].astype(jnp.float32)                   # (S, 3E)
        q = qkv[:, 0:E] * scale                                       # scale folded into q
        k = qkv[:, E:2 * E]
        v = qkv[:, 2 * E:3 * E]

        for hd in range(num_heads):
            lo = hd * Dh
            qh = q[:, lo:lo + Dh]
            kh = k[:, lo:lo + Dh]
            vh = v[:, lo:lo + Dh]
            # scores = qh @ kh.T without an explicit transpose
            s = jax.lax.dot_general(qh, kh, (((1,), (1,)), ((), ())),
                                    preferred_element_type=jnp.float32)        # (S, S)
            m = jnp.max(s, axis=-1, keepdims=True)
            p = jnp.exp(s - m)
            denom = jnp.sum(p, axis=-1, keepdims=True)
            oh = jnp.dot(p, vh, preferred_element_type=jnp.float32)            # (S, Dh)
            # deferred normalization; write head output into contiguous VMEM slab
            attn_scratch[:, lo:lo + Dh] = oh * pl.reciprocal(denom, approx=True)

        attn = jnp.dot(attn_scratch[...], op_w_ref[l].astype(jnp.float32),
                       preferred_element_type=jnp.float32)
        attn = attn + op_b_ref[l].astype(jnp.float32)
        h = _layernorm(h + attn,
                       ln1_g_ref[l].astype(jnp.float32),
                       ln1_b_ref[l].astype(jnp.float32), eps)

        # ---- feed-forward block (post-norm); (S, FF) intermediate stays in VMEM ----
        ff = jnp.dot(h, l1_w_ref[l].astype(jnp.float32),
                     preferred_element_type=jnp.float32)
        ff = jnp.maximum(ff + l1_b_ref[l].astype(jnp.float32), 0.0)   # (S, FF)
        y = jnp.dot(ff, l2_w_ref[l].astype(jnp.float32),
                    preferred_element_type=jnp.float32)
        y = y + l2_b_ref[l].astype(jnp.float32)                       # (S, E)
        h = _layernorm(h + y,
                       ln2_g_ref[l].astype(jnp.float32),
                       ln2_b_ref[l].astype(jnp.float32), eps)

    # -------- last sequence position + output Linear (pure VMEM slice) --------
    last = h[S - 1:S, :]                                              # (1, E)
    out = jnp.dot(last, ow_ref[...].astype(jnp.float32),
                  preferred_element_type=jnp.float32)
    out = out + ob_ref[...].astype(jnp.float32)                       # (1, num_outputs)
    o_ref[0] = out.astype(o_ref.dtype)


def forward(params, x, num_heads, eps=1e-5):
    """x: (B, S, input_dim) -> (B, num_outputs). Whole forward = one pallas_call."""
    B, S, in_dim = x.shape
    E = params["transform_w"].shape[1]
    L = params["in_proj_w"].shape[0]
    FF = params["lin1_w"].shape[2]
    N = params["out_w"].shape[1]

    kernel = functools.partial(_fused_forward_kernel,
                               num_layers=L, num_heads=num_heads, eps=eps)

    def full(shape):
        # grid-invariant whole-array block (kept resident across grid steps)
        return pl.BlockSpec(shape, lambda b, _n=len(shape): (0,) * _n)

    out = pl.pallas_call(
        kernel,
        out_shape=jax.ShapeDtypeStruct((B, 1, N), x.dtype),
        grid=(B,),
        in_specs=[
            pl.BlockSpec((1, S, in_dim), lambda b: (b, 0, 0)),        # x: one batch per step
            full((in_dim, E)), full((1, E)),                          # transform Linear
            full((L, E, 3 * E)), full((L, 1, 3 * E)),                 # MHA in_proj
            full((L, E, E)), full((L, 1, E)),                         # MHA out_proj
            full((L, E, FF)), full((L, 1, FF)),                       # linear1
            full((L, FF, E)), full((L, 1, E)),                        # linear2
            full((L, 1, E)), full((L, 1, E)),                         # LayerNorm1 g/b
            full((L, 1, E)), full((L, 1, E)),                         # LayerNorm2 g/b
            full((E, N)), full((1, N)),                               # output Linear
        ],
        out_specs=pl.BlockSpec((1, 1, N), lambda b: (b, 0, 0)),
        scratch_shapes=[pltpu.VMEM((S, E), jnp.float32)],             # per-head output slab
        compiler_params=pltpu.CompilerParams(
            dimension_semantics=("parallel",),
            vmem_limit_bytes=32 * 1024 * 1024,
        ),
    )(x,
      params["transform_w"], params["transform_b"].reshape(1, E),
      params["in_proj_w"], params["in_proj_b"],
      params["out_proj_w"], params["out_proj_b"],
      params["lin1_w"], params["lin1_b"],
      params["lin2_w"], params["lin2_b"],
      params["ln1_g"], params["ln1_b"], params["ln2_g"], params["ln2_b"],
      params["out_w"], params["out_b"].reshape(1, N))
    return out.reshape(B, N)


# ---------------------------------------------------------------------------
# Parameters (deterministic, PyTorch-like uniform init; weights pre-transposed to (in, out);
# per-layer weights stacked on a leading num_layers axis)
# ---------------------------------------------------------------------------
def init_params(key, input_dim, num_layers, num_outputs, hidden, ff_dim):
    # TODO(synk): init does not replicate PyTorch's xavier_uniform in_proj / zeroed out_proj
    #             bias; for parity tests load real PyTorch weights instead.
    def dense(k, in_d, out_d):
        k1, k2 = jax.random.split(k)
        bound = 1.0 / math.sqrt(in_d)
        w = jax.random.uniform(k1, (in_d, out_d), jnp.float32, -bound, bound)  # (K, N)
        b = jax.random.uniform(k2, (out_d,), jnp.float32, -bound, bound)
        return w, b

    keys = jax.random.split(key, 2 + num_layers)
    tw, tb = dense(keys[0], input_dim, hidden)          # transform_layer
    ow, ob = dense(keys[1], hidden, num_outputs)        # output_layer

    in_w, in_b, op_w, op_b = [], [], [], []
    l1_w, l1_b, l2_w, l2_b = [], [], [], []
    for l in range(num_layers):
        lk = jax.random.split(keys[2 + l], 4)
        w, b = dense(lk[0], hidden, 3 * hidden); in_w.append(w); in_b.append(b.reshape(1, -1))
        w, b = dense(lk[1], hidden, hidden);     op_w.append(w); op_b.append(b.reshape(1, -1))
        w, b = dense(lk[2], hidden, ff_dim);     l1_w.append(w); l1_b.append(b.reshape(1, -1))
        w, b = dense(lk[3], ff_dim, hidden);     l2_w.append(w); l2_b.append(b.reshape(1, -1))

    ones = jnp.ones((num_layers, 1, hidden), jnp.float32)
    zeros = jnp.zeros((num_layers, 1, hidden), jnp.float32)
    return dict(
        transform_w=tw, transform_b=tb, out_w=ow, out_b=ob,
        in_proj_w=jnp.stack(in_w), in_proj_b=jnp.stack(in_b),
        out_proj_w=jnp.stack(op_w), out_proj_b=jnp.stack(op_b),
        lin1_w=jnp.stack(l1_w), lin1_b=jnp.stack(l1_b),
        lin2_w=jnp.stack(l2_w), lin2_b=jnp.stack(l2_b),
        ln1_g=ones, ln1_b=zeros, ln2_g=ones, ln2_b=zeros,
    )


# ---------------------------------------------------------------------------
if __name__ == "__main__":
    batch, seq = 2, 8
    input_dim, num_heads, num_layers, num_outputs, hidden_space = 16, 4, 2, 8, 32
    ff_dim = 2048  # nn.TransformerEncoderLayer default dim_feedforward

    key = jax.random.PRNGKey(0)
    pkey, xkey = jax.random.split(key)
    params = init_params(pkey, input_dim, num_layers, num_outputs, hidden_space, ff_dim)
    x = jax.random.normal(xkey, (batch, seq, input_dim), jnp.float32)

    out = forward(params, x, num_heads)
    out = jax.block_until_ready(out)
    assert out.shape == (batch, num_outputs), out.shape
    assert jnp.all(jnp.isfinite(out))
    print("KERNEL_OK")
</pallas_src>

<mosaic_0001>
module attributes {stable_mosaic.version = 11 : i64} {
  func.func @_fused_forward_kernel(%arg0: i32, %arg1: memref<1x8x16xf32, #tpu.memory_space<vmem>>, %arg2: memref<16x32xf32, #tpu.memory_space<vmem>>, %arg3: memref<1x32xf32, #tpu.memory_space<vmem>>, %arg4: memref<2x32x96xf32, #tpu.memory_space<vmem>>, %arg5: memref<2x1x96xf32, #tpu.memory_space<vmem>>, %arg6: memref<2x32x32xf32, #tpu.memory_space<vmem>>, %arg7: memref<2x1x32xf32, #tpu.memory_space<vmem>>, %arg8: memref<2x32x2048xf32, #tpu.memory_space<vmem>>, %arg9: memref<2x1x2048xf32, #tpu.memory_space<vmem>>, %arg10: memref<2x2048x32xf32, #tpu.memory_space<vmem>>, %arg11: memref<2x1x32xf32, #tpu.memory_space<vmem>>, %arg12: memref<2x1x32xf32, #tpu.memory_space<vmem>>, %arg13: memref<2x1x32xf32, #tpu.memory_space<vmem>>, %arg14: memref<2x1x32xf32, #tpu.memory_space<vmem>>, %arg15: memref<2x1x32xf32, #tpu.memory_space<vmem>>, %arg16: memref<32x8xf32, #tpu.memory_space<vmem>>, %arg17: memref<1x8xf32, #tpu.memory_space<vmem>>, %arg18: memref<1x1x8xf32, #tpu.memory_space<vmem>>, %arg19: memref<8x32xf32, #tpu.memory_space<vmem>>) attributes {dimension_semantics = [#tpu.dimension_semantics<parallel>], iteration_bounds = array<i64: 2>, scalar_prefetch = 0 : i64, scratch_operands = 1 : i64, tpu.core_type = #tpu.core_type<tc>, window_params = [{transform_indices = @transform_0, window_bounds = array<i64: 1, 8, 16>}, {pipeline_mode = #tpu.pipeline_mode<synchronous>, transform_indices = @transform_1, window_bounds = array<i64: 16, 32>}, {pipeline_mode = #tpu.pipeline_mode<synchronous>, transform_indices = @transform_2, window_bounds = array<i64: 1, 32>}, {pipeline_mode = #tpu.pipeline_mode<synchronous>, transform_indices = @transform_3, window_bounds = array<i64: 2, 32, 96>}, {pipeline_mode = #tpu.pipeline_mode<synchronous>, transform_indices = @transform_4, window_bounds = array<i64: 2, 1, 96>}, {pipeline_mode = #tpu.pipeline_mode<synchronous>, transform_indices = @transform_5, window_bounds = array<i64: 2, 32, 32>}, {pipeline_mode = #tpu.pipeline_mode<synchronous>, transform_indices = @transform_6, window_bounds = array<i64: 2, 1, 32>}, {pipeline_mode = #tpu.pipeline_mode<synchronous>, transform_indices = @transform_7, window_bounds = array<i64: 2, 32, 2048>}, {pipeline_mode = #tpu.pipeline_mode<synchronous>, transform_indices = @transform_8, window_bounds = array<i64: 2, 1, 2048>}, {pipeline_mode = #tpu.pipeline_mode<synchronous>, transform_indices = @transform_9, window_bounds = array<i64: 2, 2048, 32>}, {pipeline_mode = #tpu.pipeline_mode<synchronous>, transform_indices = @transform_10, window_bounds = array<i64: 2, 1, 32>}, {pipeline_mode = #tpu.pipeline_mode<synchronous>, transform_indices = @transform_11, window_bounds = array<i64: 2, 1, 32>}, {pipeline_mode = #tpu.pipeline_mode<synchronous>, transform_indices = @transform_12, window_bounds = array<i64: 2, 1, 32>}, {pipeline_mode = #tpu.pipeline_mode<synchronous>, transform_indices = @transform_13, window_bounds = array<i64: 2, 1, 32>}, {pipeline_mode = #tpu.pipeline_mode<synchronous>, transform_indices = @transform_14, window_bounds = array<i64: 2, 1, 32>}, {pipeline_mode = #tpu.pipeline_mode<synchronous>, transform_indices = @transform_15, window_bounds = array<i64: 32, 8>}, {pipeline_mode = #tpu.pipeline_mode<synchronous>, transform_indices = @transform_16, window_bounds = array<i64: 1, 8>}, {transform_indices = @transform_17, window_bounds = array<i64: 1, 1, 8>}]} {
    %c0 = arith.constant 0 : index
    %c0_0 = arith.constant 0 : index
    %c0_1 = arith.constant 0 : index
    %0 = vector.load %arg1[%c0, %c0_0, %c0_1] : memref<1x8x16xf32, #tpu.memory_space<vmem>>, vector<1x8x16xf32>
    %1 = vector.shape_cast %0 : vector<1x8x16xf32> to vector<8x16xf32>
    %c0_2 = arith.constant 0 : index
    %c0_3 = arith.constant 0 : index
    %2 = vector.load %arg2[%c0_2, %c0_3] : memref<16x32xf32, #tpu.memory_space<vmem>>, vector<16x32xf32>
    %cst = arith.constant dense<0.000000e+00> : vector<8x32xf32>
    %3 = tpu.matmul %1, %2, %cst {dimension_numbers = #tpu.dot_dimension_numbers<[1], [0], [0], [1], [0, 0, 1, 1], [], []>} : vector<8x16xf32>, vector<16x32xf32>, vector<8x32xf32> -> vector<8x32xf32>
    %c0_4 = arith.constant 0 : index
    %c0_5 = arith.constant 0 : index
    %4 = vector.load %arg3[%c0_4, %c0_5] : memref<1x32xf32, #tpu.memory_space<vmem>>, vector<1x32xf32>
    %5 = vector.broadcast %4 : vector<1x32xf32> to vector<8x32xf32>
    %6 = arith.addf %3, %5 : vector<8x32xf32>
    %c0_6 = arith.constant 0 : index
    %c0_7 = arith.constant 0 : index
    %c0_8 = arith.constant 0 : index
    %7 = vector.load %arg4[%c0_6, %c0_7, %c0_8] : memref<2x32x96xf32, #tpu.memory_space<vmem>>, vector<1x32x96xf32>
    %8 = vector.shape_cast %7 : vector<1x32x96xf32> to vector<32x96xf32>
    %cst_9 = arith.constant dense<0.000000e+00> : vector<8x96xf32>
    %9 = tpu.matmul %6, %8, %cst_9 {dimension_numbers = #tpu.dot_dimension_numbers<[1], [0], [0], [1], [0, 0, 1, 1], [], []>} : vector<8x32xf32>, vector<32x96xf32>, vector<8x96xf32> -> vector<8x96xf32>
    %c0_10 = arith.constant 0 : index
    %c0_11 = arith.constant 0 : index
    %c0_12 = arith.constant 0 : index
    %10 = vector.load %arg5[%c0_10, %c0_11, %c0_12] : memref<2x1x96xf32, #tpu.memory_space<vmem>>, vector<1x1x96xf32>
    %11 = vector.shape_cast %10 : vector<1x1x96xf32> to vector<1x96xf32>
    %12 = vector.broadcast %11 : vector<1x96xf32> to vector<8x96xf32>
    %13 = arith.addf %9, %12 : vector<8x96xf32>
    %14 = vector.extract_strided_slice %13 {offsets = [0, 0], sizes = [8, 32], strides = [1, 1]} : vector<8x96xf32> to vector<8x32xf32>
    %cst_13 = arith.constant 0.353553385 : f32
    %15 = vector.broadcast %cst_13 : f32 to vector<8x32xf32>
    %16 = arith.mulf %14, %15 : vector<8x32xf32>
    %17 = vector.extract_strided_slice %13 {offsets = [0, 32], sizes = [8, 32], strides = [1, 1]} : vector<8x96xf32> to vector<8x32xf32>
    %18 = vector.extract_strided_slice %13 {offsets = [0, 64], sizes = [8, 32], strides = [1, 1]} : vector<8x96xf32> to vector<8x32xf32>
    %19 = vector.extract_strided_slice %16 {offsets = [0, 0], sizes = [8, 8], strides = [1, 1]} : vector<8x32xf32> to vector<8x8xf32>
    %20 = vector.extract_strided_slice %17 {offsets = [0, 0], sizes = [8, 8], strides = [1, 1]} : vector<8x32xf32> to vector<8x8xf32>
    %21 = vector.extract_strided_slice %18 {offsets = [0, 0], sizes = [8, 8], strides = [1, 1]} : vector<8x32xf32> to vector<8x8xf32>
    %cst_14 = arith.constant dense<0.000000e+00> : vector<8x8xf32>
    %22 = tpu.matmul %19, %20, %cst_14 {dimension_numbers = #tpu.dot_dimension_numbers<[1], [1], [0], [0], [0, 0, 1, 0], [], []>} : vector<8x8xf32>, vector<8x8xf32>, vector<8x8xf32> -> vector<8x8xf32>
    %cst_15 = arith.constant dense<0xFF800000> : vector<8xf32>
    %23 = vector.multi_reduction <maximumf>, %22, %cst_15 [1] : vector<8x8xf32> to vector<8xf32>
    %24 = vector.shape_cast %23 : vector<8xf32> to vector<8x1xf32>
    %25 = vector.broadcast %24 : vector<8x1xf32> to vector<8x8xf32>
    %26 = arith.subf %22, %25 : vector<8x8xf32>
    %27 = math.exp %26 : vector<8x8xf32>
    %cst_16 = arith.constant dense<0.000000e+00> : vector<8xf32>
    %28 = vector.multi_reduction <add>, %27, %cst_16 [1] : vector<8x8xf32> to vector<8xf32>
    %29 = vector.shape_cast %28 : vector<8xf32> to vector<8x1xf32>
    %cst_17 = arith.constant dense<0.000000e+00> : vector<8x8xf32>
    %30 = tpu.matmul %27, %21, %cst_17 {dimension_numbers = #tpu.dot_dimension_numbers<[1], [0], [0], [1], [0, 0, 1, 1], [], []>} : vector<8x8xf32>, vector<8x8xf32>, vector<8x8xf32> -> vector<8x8xf32>
    %31 = tpu.reciprocal %29 {approx = true} : vector<8x1xf32> -> vector<8x1xf32>
    %32 = vector.broadcast %31 : vector<8x1xf32> to vector<8x8xf32>
    %33 = arith.mulf %30, %32 : vector<8x8xf32>
    %c0_18 = arith.constant 0 : index
    %c0_19 = arith.constant 0 : index
    %34 = vector.load %arg19[%c0_18, %c0_19] : memref<8x32xf32, #tpu.memory_space<vmem>>, vector<8x8xf32>
    tpu.vector_store %arg19[%c0_18, %c0_19], %33 {strides = array<i32>} : memref<8x32xf32, #tpu.memory_space<vmem>>, vector<8x8xf32>,
    %35 = vector.extract_strided_slice %16 {offsets = [0, 8], sizes = [8, 8], strides = [1, 1]} : vector<8x32xf32> to vector<8x8xf32>
    %36 = vector.extract_strided_slice %17 {offsets = [0, 8], sizes = [8, 8], strides = [1, 1]} : vector<8x32xf32> to vector<8x8xf32>
    %37 = vector.extract_strided_slice %18 {offsets = [0, 8], sizes = [8, 8], strides = [1, 1]} : vector<8x32xf32> to vector<8x8xf32>
    %cst_20 = arith.constant dense<0.000000e+00> : vector<8x8xf32>
    %38 = tpu.matmul %35, %36, %cst_20 {dimension_numbers = #tpu.dot_dimension_numbers<[1], [1], [0], [0], [0, 0, 1, 0], [], []>} : vector<8x8xf32>, vector<8x8xf32>, vector<8x8xf32> -> vector<8x8xf32>
    %cst_21 = arith.constant dense<0xFF800000> : vector<8xf32>
    %39 = vector.multi_reduction <maximumf>, %38, %cst_21 [1] : vector<8x8xf32> to vector<8xf32>
    %40 = vector.shape_cast %39 : vector<8xf32> to vector<8x1xf32>
    %41 = vector.broadcast %40 : vector<8x1xf32> to vector<8x8xf32>
    %42 = arith.subf %38, %41 : vector<8x8xf32>
    %43 = math.exp %42 : vector<8x8xf32>
    %cst_22 = arith.constant dense<0.000000e+00> : vector<8xf32>
    %44 = vector.multi_reduction <add>, %43, %cst_22 [1] : vector<8x8xf32> to vector<8xf32>
    %45 = vector.shape_cast %44 : vector<8xf32> to vector<8x1xf32>
    %cst_23 = arith.constant dense<0.000000e+00> : vector<8x8xf32>
    %46 = tpu.matmul %43, %37, %cst_23 {dimension_numbers = #tpu.dot_dimension_numbers<[1], [0], [0], [1], [0, 0, 1, 1], [], []>} : vector<8x8xf32>, vector<8x8xf32>, vector<8x8xf32> -> vector<8x8xf32>
    %47 = tpu.reciprocal %45 {approx = true} : vector<8x1xf32> -> vector<8x1xf32>
    %48 = vector.broadcast %47 : vector<8x1xf32> to vector<8x8xf32>
    %49 = arith.mulf %46, %48 : vector<8x8xf32>
    %c0_24 = arith.constant 0 : index
    %c8 = arith.constant 8 : index
    %50 = vector.load %arg19[%c0_24, %c8] : memref<8x32xf32, #tpu.memory_space<vmem>>, vector<8x8xf32>
    tpu.vector_store %arg19[%c0_24, %c8], %49 {strides = array<i32>} : memref<8x32xf32, #tpu.memory_space<vmem>>, vector<8x8xf32>,
    %51 = vector.extract_strided_slice %16 {offsets = [0, 16], sizes = [8, 8], strides = [1, 1]} : vector<8x32xf32> to vector<8x8xf32>
    %52 = vector.extract_strided_slice %17 {offsets = [0, 16], sizes = [8, 8], strides = [1, 1]} : vector<8x32xf32> to vector<8x8xf32>
    %53 = vector.extract_strided_slice %18 {offsets = [0, 16], sizes = [8, 8], strides = [1, 1]} : vector<8x32xf32> to vector<8x8xf32>
    %cst_25 = arith.constant dense<0.000000e+00> : vector<8x8xf32>
    %54 = tpu.matmul %51, %52, %cst_25 {dimension_numbers = #tpu.dot_dimension_numbers<[1], [1], [0], [0], [0, 0, 1, 0], [], []>} : vector<8x8xf32>, vector<8x8xf32>, vector<8x8xf32> -> vector<8x8xf32>
    %cst_26 = arith.constant dense<0xFF800000> : vector<8xf32>
    %55 = vector.multi_reduction <maximumf>, %54, %cst_26 [1] : vector<8x8xf32> to vector<8xf32>
    %56 = vector.shape_cast %55 : vector<8xf32> to vector<8x1xf32>
    %57 = vector.broadcast %56 : vector<8x1xf32> to vector<8x8xf32>
    %58 = arith.subf %54, %57 : vector<8x8xf32>
    %59 = math.exp %58 : vector<8x8xf32>
    %cst_27 = arith.constant dense<0.000000e+00> : vector<8xf32>
    %60 = vector.multi_reduction <add>, %59, %cst_27 [1] : vector<8x8xf32> to vector<8xf32>
    %61 = vector.shape_cast %60 : vector<8xf32> to vector<8x1xf32>
    %cst_28 = arith.constant dense<0.000000e+00> : vector<8x8xf32>
    %62 = tpu.matmul %59, %53, %cst_28 {dimension_numbers = #tpu.dot_dimension_numbers<[1], [0], [0], [1], [0, 0, 1, 1], [], []>} : vector<8x8xf32>, vector<8x8xf32>, vector<8x8xf32> -> vector<8x8xf32>
    %63 = tpu.reciprocal %61 {approx = true} : vector<8x1xf32> -> vector<8x1xf32>
    %64 = vector.broadcast %63 : vector<8x1xf32> to vector<8x8xf32>
    %65 = arith.mulf %62, %64 : vector<8x8xf32>
    %c0_29 = arith.constant 0 : index
    %c16 = arith.constant 16 : index
    %66 = vector.load %arg19[%c0_29, %c16] : memref<8x32xf32, #tpu.memory_space<vmem>>, vector<8x8xf32>
    tpu.vector_store %arg19[%c0_29, %c16], %65 {strides = array<i32>} : memref<8x32xf32, #tpu.memory_space<vmem>>, vector<8x8xf32>,
    %67 = vector.extract_strided_slice %16 {offsets = [0, 24], sizes = [8, 8], strides = [1, 1]} : vector<8x32xf32> to vector<8x8xf32>
    %68 = vector.extract_strided_slice %17 {offsets = [0, 24], sizes = [8, 8], strides = [1, 1]} : vector<8x32xf32> to vector<8x8xf32>
    %69 = vector.extract_strided_slice %18 {offsets = [0, 24], sizes = [8, 8], strides = [1, 1]} : vector<8x32xf32> to vector<8x8xf32>
    %cst_30 = arith.constant dense<0.000000e+00> : vector<8x8xf32>
    %70 = tpu.matmul %67, %68, %cst_30 {dimension_numbers = #tpu.dot_dimension_numbers<[1], [1], [0], [0], [0, 0, 1, 0], [], []>} : vector<8x8xf32>, vector<8x8xf32>, vector<8x8xf32> -> vector<8x8xf32>
    %cst_31 = arith.constant dense<0xFF800000> : vector<8xf32>
    %71 = vector.multi_reduction <maximumf>, %70, %cst_31 [1] : vector<8x8xf32> to vector<8xf32>
    %72 = vector.shape_cast %71 : vector<8xf32> to vector<8x1xf32>
    %73 = vector.broadcast %72 : vector<8x1xf32> to vector<8x8xf32>
    %74 = arith.subf %70, %73 : vector<8x8xf32>
    %75 = math.exp %74 : vector<8x8xf32>
    %cst_32 = arith.constant dense<0.000000e+00> : vector<8xf32>
    %76 = vector.multi_reduction <add>, %75, %cst_32 [1] : vector<8x8xf32> to vector<8xf32>
    %77 = vector.shape_cast %76 : vector<8xf32> to vector<8x1xf32>
    %cst_33 = arith.constant dense<0.000000e+00> : vector<8x8xf32>
    %78 = tpu.matmul %75, %69, %cst_33 {dimension_numbers = #tpu.dot_dimension_numbers<[1], [0], [0], [1], [0, 0, 1, 1], [], []>} : vector<8x8xf32>, vector<8x8xf32>, vector<8x8xf32> -> vector<8x8xf32>
    %79 = tpu.reciprocal %77 {approx = true} : vector<8x1xf32> -> vector<8x1xf32>
    %80 = vector.broadcast %79 : vector<8x1xf32> to vector<8x8xf32>
    %81 = arith.mulf %78, %80 : vector<8x8xf32>
    %c0_34 = arith.constant 0 : index
    %c24 = arith.constant 24 : index
    %82 = vector.load %arg19[%c0_34, %c24] : memref<8x32xf32, #tpu.memory_space<vmem>>, vector<8x8xf32>
    tpu.vector_store %arg19[%c0_34, %c24], %81 {strides = array<i32>} : memref<8x32xf32, #tpu.memory_space<vmem>>, vector<8x8xf32>,
    %c0_35 = arith.constant 0 : index
    %c0_36 = arith.constant 0 : index
    %83 = vector.load %arg19[%c0_35, %c0_36] : memref<8x32xf32, #tpu.memory_space<vmem>>, vector<8x32xf32>
    %c0_37 = arith.constant 0 : index
    %c0_38 = arith.constant 0 : index
    %c0_39 = arith.constant 0 : index
    %84 = vector.load %arg6[%c0_37, %c0_38, %c0_39] : memref<2x32x32xf32, #tpu.memory_space<vmem>>, vector<1x32x32xf32>
    %85 = vector.shape_cast %84 : vector<1x32x32xf32> to vector<32x32xf32>
    %cst_40 = arith.constant dense<0.000000e+00> : vector<8x32xf32>
    %86 = tpu.matmul %83, %85, %cst_40 {dimension_numbers = #tpu.dot_dimension_numbers<[1], [0], [0], [1], [0, 0, 1, 1], [], []>} : vector<8x32xf32>, vector<32x32xf32>, vector<8x32xf32> -> vector<8x32xf32>
    %c0_41 = arith.constant 0 : index
    %c0_42 = arith.constant 0 : index
    %c0_43 = arith.constant 0 : index
    %87 = vector.load %arg7[%c0_41, %c0_42, %c0_43] : memref<2x1x32xf32, #tpu.memory_space<vmem>>, vector<1x1x32xf32>
    %88 = vector.shape_cast %87 : vector<1x1x32xf32> to vector<1x32xf32>
    %89 = vector.broadcast %88 : vector<1x32xf32> to vector<8x32xf32>
    %90 = arith.addf %86, %89 : vector<8x32xf32>
    %91 = arith.addf %6, %90 : vector<8x32xf32>
    %c0_44 = arith.constant 0 : index
    %c0_45 = arith.constant 0 : index
    %c0_46 = arith.constant 0 : index
    %92 = vector.load %arg12[%c0_44, %c0_45, %c0_46] : memref<2x1x32xf32, #tpu.memory_space<vmem>>, vector<1x1x32xf32>
    %93 = vector.shape_cast %92 : vector<1x1x32xf32> to vector<1x32xf32>
    %c0_47 = arith.constant 0 : index
    %c0_48 = arith.constant 0 : index
    %c0_49 = arith.constant 0 : index
    %94 = vector.load %arg13[%c0_47, %c0_48, %c0_49] : memref<2x1x32xf32, #tpu.memory_space<vmem>>, vector<1x1x32xf32>
    %95 = vector.shape_cast %94 : vector<1x1x32xf32> to vector<1x32xf32>
    %cst_50 = arith.constant dense<0.000000e+00> : vector<8xf32>
    %96 = vector.multi_reduction <add>, %91, %cst_50 [1] : vector<8x32xf32> to vector<8xf32>
    %97 = vector.shape_cast %96 : vector<8xf32> to vector<8x1xf32>
    %cst_51 = arith.constant 3.200000e+01 : f32
    %98 = vector.broadcast %cst_51 : f32 to vector<8x1xf32>
    %99 = arith.divf %97, %98 : vector<8x1xf32>
    %100 = vector.broadcast %99 : vector<8x1xf32> to vector<8x32xf32>
    %101 = arith.subf %91, %100 : vector<8x32xf32>
    %102 = arith.mulf %101, %101 : vector<8x32xf32>
    %cst_52 = arith.constant dense<0.000000e+00> : vector<8xf32>
    %103 = vector.multi_reduction <add>, %102, %cst_52 [1] : vector<8x32xf32> to vector<8xf32>
    %104 = vector.shape_cast %103 : vector<8xf32> to vector<8x1xf32>
    %cst_53 = arith.constant 3.200000e+01 : f32
    %105 = vector.broadcast %cst_53 : f32 to vector<8x1xf32>
    %106 = arith.divf %104, %105 : vector<8x1xf32>
    %cst_54 = arith.constant 9.99999974E-6 : f32
    %107 = vector.broadcast %cst_54 : f32 to vector<8x1xf32>
    %108 = arith.addf %106, %107 : vector<8x1xf32>
    %109 = math.rsqrt %108 : vector<8x1xf32>
    %110 = vector.broadcast %109 : vector<8x1xf32> to vector<8x32xf32>
    %111 = arith.mulf %101, %110 : vector<8x32xf32>
    %112 = vector.broadcast %93 : vector<1x32xf32> to vector<8x32xf32>
    %113 = arith.mulf %111, %112 : vector<8x32xf32>
    %114 = vector.broadcast %95 : vector<1x32xf32> to vector<8x32xf32>
    %115 = arith.addf %113, %114 : vector<8x32xf32>
    %c0_55 = arith.constant 0 : index
    %c0_56 = arith.constant 0 : index
    %c0_57 = arith.constant 0 : index
    %116 = vector.load %arg8[%c0_55, %c0_56, %c0_57] : memref<2x32x2048xf32, #tpu.memory_space<vmem>>, vector<1x32x2048xf32>
    %117 = vector.shape_cast %116 : vector<1x32x2048xf32> to vector<32x2048xf32>
    %cst_58 = arith.constant dense<0.000000e+00> : vector<8x2048xf32>
    %118 = tpu.matmul %115, %117, %cst_58 {dimension_numbers = #tpu.dot_dimension_numbers<[1], [0], [0], [1], [0, 0, 1, 1], [], []>} : vector<8x32xf32>, vector<32x2048xf32>, vector<8x2048xf32> -> vector<8x2048xf32>
    %c0_59 = arith.constant 0 : index
    %c0_60 = arith.constant 0 : index
    %c0_61 = arith.constant 0 : index
    %119 = vector.load %arg9[%c0_59, %c0_60, %c0_61] : memref<2x1x2048xf32, #tpu.memory_space<vmem>>, vector<1x1x2048xf32>
    %120 = vector.shape_cast %119 : vector<1x1x2048xf32> to vector<1x2048xf32>
    %121 = vector.broadcast %120 : vector<1x2048xf32> to vector<8x2048xf32>
    %122 = arith.addf %118, %121 : vector<8x2048xf32>
    %cst_62 = arith.constant 0.000000e+00 : f32
    %123 = vector.broadcast %cst_62 : f32 to vector<8x2048xf32>
    %124 = arith.maximumf %122, %123 : vector<8x2048xf32>
    %c0_63 = arith.constant 0 : index
    %c0_64 = arith.constant 0 : index
    %c0_65 = arith.constant 0 : index
    %125 = vector.load %arg10[%c0_63, %c0_64, %c0_65] : memref<2x2048x32xf32, #tpu.memory_space<vmem>>, vector<1x2048x32xf32>
    %126 = vector.shape_cast %125 : vector<1x2048x32xf32> to vector<2048x32xf32>
    %cst_66 = arith.constant dense<0.000000e+00> : vector<8x32xf32>
    %127 = tpu.matmul %124, %126, %cst_66 {dimension_numbers = #tpu.dot_dimension_numbers<[1], [0], [0], [1], [0, 0, 1, 1], [], []>} : vector<8x2048xf32>, vector<2048x32xf32>, vector<8x32xf32> -> vector<8x32xf32>
    %c0_67 = arith.constant 0 : index
    %c0_68 = arith.constant 0 : index
    %c0_69 = arith.constant 0 : index
    %128 = vector.load %arg11[%c0_67, %c0_68, %c0_69] : memref<2x1x32xf32, #tpu.memory_space<vmem>>, vector<1x1x32xf32>
    %129 = vector.shape_cast %128 : vector<1x1x32xf32> to vector<1x32xf32>
    %130 = vector.broadcast %129 : vector<1x32xf32> to vector<8x32xf32>
    %131 = arith.addf %127, %130 : vector<8x32xf32>
    %132 = arith.addf %115, %131 : vector<8x32xf32>
    %c0_70 = arith.constant 0 : index
    %c0_71 = arith.constant 0 : index
    %c0_72 = arith.constant 0 : index
    %133 = vector.load %arg14[%c0_70, %c0_71, %c0_72] : memref<2x1x32xf32, #tpu.memory_space<vmem>>, vector<1x1x32xf32>
    %134 = vector.shape_cast %133 : vector<1x1x32xf32> to vector<1x32xf32>
    %c0_73 = arith.constant 0 : index
    %c0_74 = arith.constant 0 : index
    %c0_75 = arith.constant 0 : index
    %135 = vector.load %arg15[%c0_73, %c0_74, %c0_75] : memref<2x1x32xf32, #tpu.memory_space<vmem>>, vector<1x1x32xf32>
    %136 = vector.shape_cast %135 : vector<1x1x32xf32> to vector<1x32xf32>
    %cst_76 = arith.constant dense<0.000000e+00> : vector<8xf32>
    %137 = vector.multi_reduction <add>, %132, %cst_76 [1] : vector<8x32xf32> to vector<8xf32>
    %138 = vector.shape_cast %137 : vector<8xf32> to vector<8x1xf32>
    %cst_77 = arith.constant 3.200000e+01 : f32
    %139 = vector.broadcast %cst_77 : f32 to vector<8x1xf32>
    %140 = arith.divf %138, %139 : vector<8x1xf32>
    %141 = vector.broadcast %140 : vector<8x1xf32> to vector<8x32xf32>
    %142 = arith.subf %132, %141 : vector<8x32xf32>
    %143 = arith.mulf %142, %142 : vector<8x32xf32>
    %cst_78 = arith.constant dense<0.000000e+00> : vector<8xf32>
    %144 = vector.multi_reduction <add>, %143, %cst_78 [1] : vector<8x32xf32> to vector<8xf32>
    %145 = vector.shape_cast %144 : vector<8xf32> to vector<8x1xf32>
    %cst_79 = arith.constant 3.200000e+01 : f32
    %146 = vector.broadcast %cst_79 : f32 to vector<8x1xf32>
    %147 = arith.divf %145, %146 : vector<8x1xf32>
    %cst_80 = arith.constant 9.99999974E-6 : f32
    %148 = vector.broadcast %cst_80 : f32 to vector<8x1xf32>
    %149 = arith.addf %147, %148 : vector<8x1xf32>
    %150 = math.rsqrt %149 : vector<8x1xf32>
    %151 = vector.broadcast %150 : vector<8x1xf32> to vector<8x32xf32>
    %152 = arith.mulf %142, %151 : vector<8x32xf32>
    %153 = vector.broadcast %134 : vector<1x32xf32> to vector<8x32xf32>
    %154 = arith.mulf %152, %153 : vector<8x32xf32>
    %155 = vector.broadcast %136 : vector<1x32xf32> to vector<8x32xf32>
    %156 = arith.addf %154, %155 : vector<8x32xf32>
    %c1 = arith.constant 1 : index
    %c0_81 = arith.constant 0 : index
    %c0_82 = arith.constant 0 : index
    %157 = vector.load %arg4[%c1, %c0_81, %c0_82] : memref<2x32x96xf32, #tpu.memory_space<vmem>>, vector<1x32x96xf32>
    %158 = vector.shape_cast %157 : vector<1x32x96xf32> to vector<32x96xf32>
    %cst_83 = arith.constant dense<0.000000e+00> : vector<8x96xf32>
    %159 = tpu.matmul %156, %158, %cst_83 {dimension_numbers = #tpu.dot_dimension_numbers<[1], [0], [0], [1], [0, 0, 1, 1], [], []>} : vector<8x32xf32>, vector<32x96xf32>, vector<8x96xf32> -> vector<8x96xf32>
    %c1_84 = arith.constant 1 : index
    %c0_85 = arith.constant 0 : index
    %c0_86 = arith.constant 0 : index
    %160 = vector.load %arg5[%c1_84, %c0_85, %c0_86] : memref<2x1x96xf32, #tpu.memory_space<vmem>>, vector<1x1x96xf32>
    %161 = vector.shape_cast %160 : vector<1x1x96xf32> to vector<1x96xf32>
    %162 = vector.broadcast %161 : vector<1x96xf32> to vector<8x96xf32>
    %163 = arith.addf %159, %162 : vector<8x96xf32>
    %164 = vector.extract_strided_slice %163 {offsets = [0, 0], sizes = [8, 32], strides = [1, 1]} : vector<8x96xf32> to vector<8x32xf32>
    %cst_87 = arith.constant 0.353553385 : f32
    %165 = vector.broadcast %cst_87 : f32 to vector<8x32xf32>
    %166 = arith.mulf %164, %165 : vector<8x32xf32>
    %167 = vector.extract_strided_slice %163 {offsets = [0, 32], sizes = [8, 32], strides = [1, 1]} : vector<8x96xf32> to vector<8x32xf32>
    %168 = vector.extract_strided_slice %163 {offsets = [0, 64], sizes = [8, 32], strides = [1, 1]} : vector<8x96xf32> to vector<8x32xf32>
    %169 = vector.extract_strided_slice %166 {offsets = [0, 0], sizes = [8, 8], strides = [1, 1]} : vector<8x32xf32> to vector<8x8xf32>
    %170 = vector.extract_strided_slice %167 {offsets = [0, 0], sizes = [8, 8], strides = [1, 1]} : vector<8x32xf32> to vector<8x8xf32>
    %171 = vector.extract_strided_slice %168 {offsets = [0, 0], sizes = [8, 8], strides = [1, 1]} : vector<8x32xf32> to vector<8x8xf32>
    %cst_88 = arith.constant dense<0.000000e+00> : vector<8x8xf32>
    %172 = tpu.matmul %169, %170, %cst_88 {dimension_numbers = #tpu.dot_dimension_numbers<[1], [1], [0], [0], [0, 0, 1, 0], [], []>} : vector<8x8xf32>, vector<8x8xf32>, vector<8x8xf32> -> vector<8x8xf32>
    %cst_89 = arith.constant dense<0xFF800000> : vector<8xf32>
    %173 = vector.multi_reduction <maximumf>, %172, %cst_89 [1] : vector<8x8xf32> to vector<8xf32>
    %174 = vector.shape_cast %173 : vector<8xf32> to vector<8x1xf32>
    %175 = vector.broadcast %174 : vector<8x1xf32> to vector<8x8xf32>
    %176 = arith.subf %172, %175 : vector<8x8xf32>
    %177 = math.exp %176 : vector<8x8xf32>
    %cst_90 = arith.constant dense<0.000000e+00> : vector<8xf32>
    %178 = vector.multi_reduction <add>, %177, %cst_90 [1] : vector<8x8xf32> to vector<8xf32>
    %179 = vector.shape_cast %178 : vector<8xf32> to vector<8x1xf32>
    %cst_91 = arith.constant dense<0.000000e+00> : vector<8x8xf32>
    %180 = tpu.matmul %177, %171, %cst_91 {dimension_numbers = #tpu.dot_dimension_numbers<[1], [0], [0], [1], [0, 0, 1, 1], [], []>} : vector<8x8xf32>, vector<8x8xf32>, vector<8x8xf32> -> vector<8x8xf32>
    %181 = tpu.reciprocal %179 {approx = true} : vector<8x1xf32> -> vector<8x1xf32>
    %182 = vector.broadcast %181 : vector<8x1xf32> to vector<8x8xf32>
    %183 = arith.mulf %180, %182 : vector<8x8xf32>
    %c0_92 = arith.constant 0 : index
    %c0_93 = arith.constant 0 : index
    %184 = vector.load %arg19[%c0_92, %c0_93] : memref<8x32xf32, #tpu.memory_space<vmem>>, vector<8x8xf32>
    tpu.vector_store %arg19[%c0_92, %c0_93], %183 {strides = array<i32>} : memref<8x32xf32, #tpu.memory_space<vmem>>, vector<8x8xf32>,
    %185 = vector.extract_strided_slice %166 {offsets = [0, 8], sizes = [8, 8], strides = [1, 1]} : vector<8x32xf32> to vector<8x8xf32>
    %186 = vector.extract_strided_slice %167 {offsets = [0, 8], sizes = [8, 8], strides = [1, 1]} : vector<8x32xf32> to vector<8x8xf32>
    %187 = vector.extract_strided_slice %168 {offsets = [0, 8], sizes = [8, 8], strides = [1, 1]} : vector<8x32xf32> to vector<8x8xf32>
    %cst_94 = arith.constant dense<0.000000e+00> : vector<8x8xf32>
    %188 = tpu.matmul %185, %186, %cst_94 {dimension_numbers = #tpu.dot_dimension_numbers<[1], [1], [0], [0], [0, 0, 1, 0], [], []>} : vector<8x8xf32>, vector<8x8xf32>, vector<8x8xf32> -> vector<8x8xf32>
    %cst_95 = arith.constant dense<0xFF800000> : vector<8xf32>
    %189 = vector.multi_reduction <maximumf>, %188, %cst_95 [1] : vector<8x8xf32> to vector<8xf32>
    %190 = vector.shape_cast %189 : vector<8xf32> to vector<8x1xf32>
    %191 = vector.broadcast %190 : vector<8x1xf32> to vector<8x8xf32>
    %192 = arith.subf %188, %191 : vector<8x8xf32>
    %193 = math.exp %192 : vector<8x8xf32>
    %cst_96 = arith.constant dense<0.000000e+00> : vector<8xf32>
    %194 = vector.multi_reduction <add>, %193, %cst_96 [1] : vector<8x8xf32> to vector<8xf32>
    %195 = vector.shape_cast %194 : vector<8xf32> to vector<8x1xf32>
    %cst_97 = arith.constant dense<0.000000e+00> : vector<8x8xf32>
    %196 = tpu.matmul %193, %187, %cst_97 {dimension_numbers = #tpu.dot_dimension_numbers<[1], [0], [0], [1], [0, 0, 1, 1], [], []>} : vector<8x8xf32>, vector<8x8xf32>, vector<8x8xf32> -> vector<8x8xf32>
    %197 = tpu.reciprocal %195 {approx = true} : vector<8x1xf32> -> vector<8x1xf32>
    %198 = vector.broadcast %197 : vector<8x1xf32> to vector<8x8xf32>
    %199 = arith.mulf %196, %198 : vector<8x8xf32>
    %c0_98 = arith.constant 0 : index
    %c8_99 = arith.constant 8 : index
    %200 = vector.load %arg19[%c0_98, %c8_99] : memref<8x32xf32, #tpu.memory_space<vmem>>, vector<8x8xf32>
    tpu.vector_store %arg19[%c0_98, %c8_99], %199 {strides = array<i32>} : memref<8x32xf32, #tpu.memory_space<vmem>>, vector<8x8xf32>,
    %201 = vector.extract_strided_slice %166 {offsets = [0, 16], sizes = [8, 8], strides = [1, 1]} : vector<8x32xf32> to vector<8x8xf32>
    %202 = vector.extract_strided_slice %167 {offsets = [0, 16], sizes = [8, 8], strides = [1, 1]} : vector<8x32xf32> to vector<8x8xf32>
    %203 = vector.extract_strided_slice %168 {offsets = [0, 16], sizes = [8, 8], strides = [1, 1]} : vector<8x32xf32> to vector<8x8xf32>
    %cst_100 = arith.constant dense<0.000000e+00> : vector<8x8xf32>
    %204 = tpu.matmul %201, %202, %cst_100 {dimension_numbers = #tpu.dot_dimension_numbers<[1], [1], [0], [0], [0, 0, 1, 0], [], []>} : vector<8x8xf32>, vector<8x8xf32>, vector<8x8xf32> -> vector<8x8xf32>
    %cst_101 = arith.constant dense<0xFF800000> : vector<8xf32>
    %205 = vector.multi_reduction <maximumf>, %204, %cst_101 [1] : vector<8x8xf32> to vector<8xf32>
    %206 = vector.shape_cast %205 : vector<8xf32> to vector<8x1xf32>
    %207 = vector.broadcast %206 : vector<8x1xf32> to vector<8x8xf32>
    %208 = arith.subf %204, %207 : vector<8x8xf32>
    %209 = math.exp %208 : vector<8x8xf32>
    %cst_102 = arith.constant dense<0.000000e+00> : vector<8xf32>
    %210 = vector.multi_reduction <add>, %209, %cst_102 [1] : vector<8x8xf32> to vector<8xf32>
    %211 = vector.shape_cast %210 : vector<8xf32> to vector<8x1xf32>
    %cst_103 = arith.constant dense<0.000000e+00> : vector<8x8xf32>
    %212 = tpu.matmul %209, %203, %cst_103 {dimension_numbers = #tpu.dot_dimension_numbers<[1], [0], [0], [1], [0, 0, 1, 1], [], []>} : vector<8x8xf32>, vector<8x8xf32>, vector<8x8xf32> -> vector<8x8xf32>
    %213 = tpu.reciprocal %211 {approx = true} : vector<8x1xf32> -> vector<8x1xf32>
    %214 = vector.broadcast %213 : vector<8x1xf32> to vector<8x8xf32>
    %215 = arith.mulf %212, %214 : vector<8x8xf32>
    %c0_104 = arith.constant 0 : index
    %c16_105 = arith.constant 16 : index
    %216 = vector.load %arg19[%c0_104, %c16_105] : memref<8x32xf32, #tpu.memory_space<vmem>>, vector<8x8xf32>
    tpu.vector_store %arg19[%c0_104, %c16_105], %215 {strides = array<i32>} : memref<8x32xf32, #tpu.memory_space<vmem>>, vector<8x8xf32>,
    %217 = vector.extract_strided_slice %166 {offsets = [0, 24], sizes = [8, 8], strides = [1, 1]} : vector<8x32xf32> to vector<8x8xf32>
    %218 = vector.extract_strided_slice %167 {offsets = [0, 24], sizes = [8, 8], strides = [1, 1]} : vector<8x32xf32> to vector<8x8xf32>
    %219 = vector.extract_strided_slice %168 {offsets = [0, 24], sizes = [8, 8], strides = [1, 1]} : vector<8x32xf32> to vector<8x8xf32>
    %cst_106 = arith.constant dense<0.000000e+00> : vector<8x8xf32>
    %220 = tpu.matmul %217, %218, %cst_106 {dimension_numbers = #tpu.dot_dimension_numbers<[1], [1], [0], [0], [0, 0, 1, 0], [], []>} : vector<8x8xf32>, vector<8x8xf32>, vector<8x8xf32> -> vector<8x8xf32>
    %cst_107 = arith.constant dense<0xFF800000> : vector<8xf32>
    %221 = vector.multi_reduction <maximumf>, %220, %cst_107 [1] : vector<8x8xf32> to vector<8xf32>
    %222 = vector.shape_cast %221 : vector<8xf32> to vector<8x1xf32>
    %223 = vector.broadcast %222 : vector<8x1xf32> to vector<8x8xf32>
    %224 = arith.subf %220, %223 : vector<8x8xf32>
    %225 = math.exp %224 : vector<8x8xf32>
    %cst_108 = arith.constant dense<0.000000e+00> : vector<8xf32>
    %226 = vector.multi_reduction <add>, %225, %cst_108 [1] : vector<8x8xf32> to vector<8xf32>
    %227 = vector.shape_cast %226 : vector<8xf32> to vector<8x1xf32>
    %cst_109 = arith.constant dense<0.000000e+00> : vector<8x8xf32>
    %228 = tpu.matmul %225, %219, %cst_109 {dimension_numbers = #tpu.dot_dimension_numbers<[1], [0], [0], [1], [0, 0, 1, 1], [], []>} : vector<8x8xf32>, vector<8x8xf32>, vector<8x8xf32> -> vector<8x8xf32>
    %229 = tpu.reciprocal %227 {approx = true} : vector<8x1xf32> -> vector<8x1xf32>
    %230 = vector.broadcast %229 : vector<8x1xf32> to vector<8x8xf32>
    %231 = arith.mulf %228, %230 : vector<8x8xf32>
    %c0_110 = arith.constant 0 : index
    %c24_111 = arith.constant 24 : index
    %232 = vector.load %arg19[%c0_110, %c24_111] : memref<8x32xf32, #tpu.memory_space<vmem>>, vector<8x8xf32>
    tpu.vector_store %arg19[%c0_110, %c24_111], %231 {strides = array<i32>} : memref<8x32xf32, #tpu.memory_space<vmem>>, vector<8x8xf32>,
    %c0_112 = arith.constant 0 : index
    %c0_113 = arith.constant 0 : index
    %233 = vector.load %arg19[%c0_112, %c0_113] : memref<8x32xf32, #tpu.memory_space<vmem>>, vector<8x32xf32>
    %c1_114 = arith.constant 1 : index
    %c0_115 = arith.constant 0 : index
    %c0_116 = arith.constant 0 : index
    %234 = vector.load %arg6[%c1_114, %c0_115, %c0_116] : memref<2x32x32xf32, #tpu.memory_space<vmem>>, vector<1x32x32xf32>
    %235 = vector.shape_cast %234 : vector<1x32x32xf32> to vector<32x32xf32>
    %cst_117 = arith.constant dense<0.000000e+00> : vector<8x32xf32>
    %236 = tpu.matmul %233, %235, %cst_117 {dimension_numbers = #tpu.dot_dimension_numbers<[1], [0], [0], [1], [0, 0, 1, 1], [], []>} : vector<8x32xf32>, vector<32x32xf32>, vector<8x32xf32> -> vector<8x32xf32>
    %c1_118 = arith.constant 1 : index
    %c0_119 = arith.constant 0 : index
    %c0_120 = arith.constant 0 : index
    %237 = vector.load %arg7[%c1_118, %c0_119, %c0_120] : memref<2x1x32xf32, #tpu.memory_space<vmem>>, vector<1x1x32xf32>
    %238 = vector.shape_cast %237 : vector<1x1x32xf32> to vector<1x32xf32>
    %239 = vector.broadcast %238 : vector<1x32xf32> to vector<8x32xf32>
    %240 = arith.addf %236, %239 : vector<8x32xf32>
    %241 = arith.addf %156, %240 : vector<8x32xf32>
    %c1_121 = arith.constant 1 : index
    %c0_122 = arith.constant 0 : index
    %c0_123 = arith.constant 0 : index
    %242 = vector.load %arg12[%c1_121, %c0_122, %c0_123] : memref<2x1x32xf32, #tpu.memory_space<vmem>>, vector<1x1x32xf32>
    %243 = vector.shape_cast %242 : vector<1x1x32xf32> to vector<1x32xf32>
    %c1_124 = arith.constant 1 : index
    %c0_125 = arith.constant 0 : index
    %c0_126 = arith.constant 0 : index
    %244 = vector.load %arg13[%c1_124, %c0_125, %c0_126] : memref<2x1x32xf32, #tpu.memory_space<vmem>>, vector<1x1x32xf32>
    %245 = vector.shape_cast %244 : vector<1x1x32xf32> to vector<1x32xf32>
    %cst_127 = arith.constant dense<0.000000e+00> : vector<8xf32>
    %246 = vector.multi_reduction <add>, %241, %cst_127 [1] : vector<8x32xf32> to vector<8xf32>
    %247 = vector.shape_cast %246 : vector<8xf32> to vector<8x1xf32>
    %cst_128 = arith.constant 3.200000e+01 : f32
    %248 = vector.broadcast %cst_128 : f32 to vector<8x1xf32>
    %249 = arith.divf %247, %248 : vector<8x1xf32>
    %250 = vector.broadcast %249 : vector<8x1xf32> to vector<8x32xf32>
    %251 = arith.subf %241, %250 : vector<8x32xf32>
    %252 = arith.mulf %251, %251 : vector<8x32xf32>
    %cst_129 = arith.constant dense<0.000000e+00> : vector<8xf32>
    %253 = vector.multi_reduction <add>, %252, %cst_129 [1] : vector<8x32xf32> to vector<8xf32>
    %254 = vector.shape_cast %253 : vector<8xf32> to vector<8x1xf32>
    %cst_130 = arith.constant 3.200000e+01 : f32
    %255 = vector.broadcast %cst_130 : f32 to vector<8x1xf32>
    %256 = arith.divf %254, %255 : vector<8x1xf32>
    %cst_131 = arith.constant 9.99999974E-6 : f32
    %257 = vector.broadcast %cst_131 : f32 to vector<8x1xf32>
    %258 = arith.addf %256, %257 : vector<8x1xf32>
    %259 = math.rsqrt %258 : vector<8x1xf32>
    %260 = vector.broadcast %259 : vector<8x1xf32> to vector<8x32xf32>
    %261 = arith.mulf %251, %260 : vector<8x32xf32>
    %262 = vector.broadcast %243 : vector<1x32xf32> to vector<8x32xf32>
    %263 = arith.mulf %261, %262 : vector<8x32xf32>
    %264 = vector.broadcast %245 : vector<1x32xf32> to vector<8x32xf32>
    %265 = arith.addf %263, %264 : vector<8x32xf32>
    %c1_132 = arith.constant 1 : index
    %c0_133 = arith.constant 0 : index
    %c0_134 = arith.constant 0 : index
    %266 = vector.load %arg8[%c1_132, %c0_133, %c0_134] : memref<2x32x2048xf32, #tpu.memory_space<vmem>>, vector<1x32x2048xf32>
    %267 = vector.shape_cast %266 : vector<1x32x2048xf32> to vector<32x2048xf32>
    %cst_135 = arith.constant dense<0.000000e+00> : vector<8x2048xf32>
    %268 = tpu.matmul %265, %267, %cst_135 {dimension_numbers = #tpu.dot_dimension_numbers<[1], [0], [0], [1], [0, 0, 1, 1], [], []>} : vector<8x32xf32>, vector<32x2048xf32>, vector<8x2048xf32> -> vector<8x2048xf32>
    %c1_136 = arith.constant 1 : index
    %c0_137 = arith.constant 0 : index
    %c0_138 = arith.constant 0 : index
    %269 = vector.load %arg9[%c1_136, %c0_137, %c0_138] : memref<2x1x2048xf32, #tpu.memory_space<vmem>>, vector<1x1x2048xf32>
    %270 = vector.shape_cast %269 : vector<1x1x2048xf32> to vector<1x2048xf32>
    %271 = vector.broadcast %270 : vector<1x2048xf32> to vector<8x2048xf32>
    %272 = arith.addf %268, %271 : vector<8x2048xf32>
    %cst_139 = arith.constant 0.000000e+00 : f32
    %273 = vector.broadcast %cst_139 : f32 to vector<8x2048xf32>
    %274 = arith.maximumf %272, %273 : vector<8x2048xf32>
    %c1_140 = arith.constant 1 : index
    %c0_141 = arith.constant 0 : index
    %c0_142 = arith.constant 0 : index
    %275 = vector.load %arg10[%c1_140, %c0_141, %c0_142] : memref<2x2048x32xf32, #tpu.memory_space<vmem>>, vector<1x2048x32xf32>
    %276 = vector.shape_cast %275 : vector<1x2048x32xf32> to vector<2048x32xf32>
    %cst_143 = arith.constant dense<0.000000e+00> : vector<8x32xf32>
    %277 = tpu.matmul %274, %276, %cst_143 {dimension_numbers = #tpu.dot_dimension_numbers<[1], [0], [0], [1], [0, 0, 1, 1], [], []>} : vector<8x2048xf32>, vector<2048x32xf32>, vector<8x32xf32> -> vector<8x32xf32>
    %c1_144 = arith.constant 1 : index
    %c0_145 = arith.constant 0 : index
    %c0_146 = arith.constant 0 : index
    %278 = vector.load %arg11[%c1_144, %c0_145, %c0_146] : memref<2x1x32xf32, #tpu.memory_space<vmem>>, vector<1x1x32xf32>
    %279 = vector.shape_cast %278 : vector<1x1x32xf32> to vector<1x32xf32>
    %280 = vector.broadcast %279 : vector<1x32xf32> to vector<8x32xf32>
    %281 = arith.addf %277, %280 : vector<8x32xf32>
    %282 = arith.addf %265, %281 : vector<8x32xf32>
    %c1_147 = arith.constant 1 : index
    %c0_148 = arith.constant 0 : index
    %c0_149 = arith.constant 0 : index
    %283 = vector.load %arg14[%c1_147, %c0_148, %c0_149] : memref<2x1x32xf32, #tpu.memory_space<vmem>>, vector<1x1x32xf32>
    %284 = vector.shape_cast %283 : vector<1x1x32xf32> to vector<1x32xf32>
    %c1_150 = arith.constant 1 : index
    %c0_151 = arith.constant 0 : index
    %c0_152 = arith.constant 0 : index
    %285 = vector.load %arg15[%c1_150, %c0_151, %c0_152] : memref<2x1x32xf32, #tpu.memory_space<vmem>>, vector<1x1x32xf32>
    %286 = vector.shape_cast %285 : vector<1x1x32xf32> to vector<1x32xf32>
    %cst_153 = arith.constant dense<0.000000e+00> : vector<8xf32>
    %287 = vector.multi_reduction <add>, %282, %cst_153 [1] : vector<8x32xf32> to vector<8xf32>
    %288 = vector.shape_cast %287 : vector<8xf32> to vector<8x1xf32>
    %cst_154 = arith.constant 3.200000e+01 : f32
    %289 = vector.broadcast %cst_154 : f32 to vector<8x1xf32>
    %290 = arith.divf %288, %289 : vector<8x1xf32>
    %291 = vector.broadcast %290 : vector<8x1xf32> to vector<8x32xf32>
    %292 = arith.subf %282, %291 : vector<8x32xf32>
    %293 = arith.mulf %292, %292 : vector<8x32xf32>
    %cst_155 = arith.constant dense<0.000000e+00> : vector<8xf32>
    %294 = vector.multi_reduction <add>, %293, %cst_155 [1] : vector<8x32xf32> to vector<8xf32>
    %295 = vector.shape_cast %294 : vector<8xf32> to vector<8x1xf32>
    %cst_156 = arith.constant 3.200000e+01 : f32
    %296 = vector.broadcast %cst_156 : f32 to vector<8x1xf32>
    %297 = arith.divf %295, %296 : vector<8x1xf32>
    %cst_157 = arith.constant 9.99999974E-6 : f32
    %298 = vector.broadcast %cst_157 : f32 to vector<8x1xf32>
    %299 = arith.addf %297, %298 : vector<8x1xf32>
    %300 = math.rsqrt %299 : vector<8x1xf32>
    %301 = vector.broadcast %300 : vector<8x1xf32> to vector<8x32xf32>
    %302 = arith.mulf %292, %301 : vector<8x32xf32>
    %303 = vector.broadcast %284 : vector<1x32xf32> to vector<8x32xf32>
    %304 = arith.mulf %302, %303 : vector<8x32xf32>
    %305 = vector.broadcast %286 : vector<1x32xf32> to vector<8x32xf32>
    %306 = arith.addf %304, %305 : vector<8x32xf32>
    %307 = vector.extract_strided_slice %306 {offsets = [7, 0], sizes = [1, 32], strides = [1, 1]} : vector<8x32xf32> to vector<1x32xf32>
    %c0_158 = arith.constant 0 : index
    %c0_159 = arith.constant 0 : index
    %308 = vector.load %arg16[%c0_158, %c0_159] : memref<32x8xf32, #tpu.memory_space<vmem>>, vector<32x8xf32>
    %cst_160 = arith.constant dense<0.000000e+00> : vector<1x8xf32>
    %309 = tpu.matmul %307, %308, %cst_160 {dimension_numbers = #tpu.dot_dimension_numbers<[1], [0], [0], [1], [0, 0, 1, 1], [], []>} : vector<1x32xf32>, vector<32x8xf32>, vector<1x8xf32> -> vector<1x8xf32>
    %c0_161 = arith.constant 0 : index
    %c0_162 = arith.constant 0 : index
    %310 = vector.load %arg17[%c0_161, %c0_162] : memref<1x8xf32, #tpu.memory_space<vmem>>, vector<1x8xf32>
    %311 = arith.addf %309, %310 : vector<1x8xf32>
    %c0_163 = arith.constant 0 : index
    %c0_164 = arith.constant 0 : index
    %c0_165 = arith.constant 0 : index
    %312 = vector.load %arg18[%c0_163, %c0_164, %c0_165] : memref<1x1x8xf32, #tpu.memory_space<vmem>>, vector<1x1x8xf32>
    %313 = vector.shape_cast %312 : vector<1x1x8xf32> to vector<1x8xf32>
    %314 = vector.shape_cast %311 : vector<1x8xf32> to vector<1x1x8xf32>
    tpu.vector_store %arg18[%c0_163, %c0_164, %c0_165], %314 {strides = array<i32>} : memref<1x1x8xf32, #tpu.memory_space<vmem>>, vector<1x1x8xf32>,
    return
  }
  func.func @transform_0(%arg0: i32) -> (i32, i32, i32) {
    %c0_i32 = arith.constant 0 : i32
    %c0_i32_0 = arith.constant 0 : i32
    %c0_i32_1 = arith.constant 0 : i32
    return %arg0, %c0_i32, %c0_i32_0 : i32, i32, i32
  }
  func.func @transform_1(%arg0: i32) -> (i32, i32) {
    %c0_i32 = arith.constant 0 : i32
    %c0_i32_0 = arith.constant 0 : i32
    %c0_i32_1 = arith.constant 0 : i32
    return %c0_i32, %c0_i32_0 : i32, i32
  }
  func.func @transform_2(%arg0: i32) -> (i32, i32) {
    %c0_i32 = arith.constant 0 : i32
    %c0_i32_0 = arith.constant 0 : i32
    %c0_i32_1 = arith.constant 0 : i32
    return %c0_i32, %c0_i32_0 : i32, i32
  }
  func.func @transform_3(%arg0: i32) -> (i32, i32, i32) {
    %c0_i32 = arith.constant 0 : i32
    %c0_i32_0 = arith.constant 0 : i32
    %c0_i32_1 = arith.constant 0 : i32
    %c0_i32_2 = arith.constant 0 : i32
    return %c0_i32, %c0_i32_0, %c0_i32_1 : i32, i32, i32
  }
  func.func @transform_4(%arg0: i32) -> (i32, i32, i32) {
    %c0_i32 = arith.constant 0 : i32
    %c0_i32_0 = arith.constant 0 : i32
    %c0_i32_1 = arith.constant 0 : i32
    %c0_i32_2 = arith.constant 0 : i32
    return %c0_i32, %c0_i32_0, %c0_i32_1 : i32, i32, i32
  }
  func.func @transform_5(%arg0: i32) -> (i32, i32, i32) {
    %c0_i32 = arith.constant 0 : i32
    %c0_i32_0 = arith.constant 0 : i32
    %c0_i32_1 = arith.constant 0 : i32
    %c0_i32_2 = arith.constant 0 : i32
    return %c0_i32, %c0_i32_0, %c0_i32_1 : i32, i32, i32
  }
  func.func @transform_6(%arg0: i32) -> (i32, i32, i32) {
    %c0_i32 = arith.constant 0 : i32
    %c0_i32_0 = arith.constant 0 : i32
    %c0_i32_1 = arith.constant 0 : i32
    %c0_i32_2 = arith.constant 0 : i32
    return %c0_i32, %c0_i32_0, %c0_i32_1 : i32, i32, i32
  }
  func.func @transform_7(%arg0: i32) -> (i32, i32, i32) {
    %c0_i32 = arith.constant 0 : i32
    %c0_i32_0 = arith.constant 0 : i32
    %c0_i32_1 = arith.constant 0 : i32
    %c0_i32_2 = arith.constant 0 : i32
    return %c0_i32, %c0_i32_0, %c0_i32_1 : i32, i32, i32
  }
  func.func @transform_8(%arg0: i32) -> (i32, i32, i32) {
    %c0_i32 = arith.constant 0 : i32
    %c0_i32_0 = arith.constant 0 : i32
    %c0_i32_1 = arith.constant 0 : i32
    %c0_i32_2 = arith.constant 0 : i32
    return %c0_i32, %c0_i32_0, %c0_i32_1 : i32, i32, i32
  }
  func.func @transform_9(%arg0: i32) -> (i32, i32, i32) {
    %c0_i32 = arith.constant 0 : i32
    %c0_i32_0 = arith.constant 0 : i32
    %c0_i32_1 = arith.constant 0 : i32
    %c0_i32_2 = arith.constant 0 : i32
    return %c0_i32, %c0_i32_0, %c0_i32_1 : i32, i32, i32
  }
  func.func @transform_10(%arg0: i32) -> (i32, i32, i32) {
    %c0_i32 = arith.constant 0 : i32
    %c0_i32_0 = arith.constant 0 : i32
    %c0_i32_1 = arith.constant 0 : i32
    %c0_i32_2 = arith.constant 0 : i32
    return %c0_i32, %c0_i32_0, %c0_i32_1 : i32, i32, i32
  }
  func.func @transform_11(%arg0: i32) -> (i32, i32, i32) {
    %c0_i32 = arith.constant 0 : i32
    %c0_i32_0 = arith.constant 0 : i32
    %c0_i32_1 = arith.constant 0 : i32
    %c0_i32_2 = arith.constant 0 : i32
    return %c0_i32, %c0_i32_0, %c0_i32_1 : i32, i32, i32
  }
  func.func @transform_12(%arg0: i32) -> (i32, i32, i32) {
    %c0_i32 = arith.constant 0 : i32
    %c0_i32_0 = arith.constant 0 : i32
    %c0_i32_1 = arith.constant 0 : i32
    %c0_i32_2 = arith.constant 0 : i32
    return %c0_i32, %c0_i32_0, %c0_i32_1 : i32, i32, i32
  }
  func.func @transform_13(%arg0: i32) -> (i32, i32, i32) {
    %c0_i32 = arith.constant 0 : i32
    %c0_i32_0 = arith.constant 0 : i32
    %c0_i32_1 = arith.constant 0 : i32
    %c0_i32_2 = arith.constant 0 : i32
    return %c0_i32, %c0_i32_0, %c0_i32_1 : i32, i32, i32
  }
  func.func @transform_14(%arg0: i32) -> (i32, i32, i32) {
    %c0_i32 = arith.constant 0 : i32
    %c0_i32_0 = arith.constant 0 : i32
    %c0_i32_1 = arith.constant 0 : i32
    %c0_i32_2 = arith.constant 0 : i32
    return %c0_i32, %c0_i32_0, %c0_i32_1 : i32, i32, i32
  }
  func.func @transform_15(%arg0: i32) -> (i32, i32) {
    %c0_i32 = arith.constant 0 : i32
    %c0_i32_0 = arith.constant 0 : i32
    %c0_i32_1 = arith.constant 0 : i32
    return %c0_i32, %c0_i32_0 : i32, i32
  }
  func.func @transform_16(%arg0: i32) -> (i32, i32) {
    %c0_i32 = arith.constant 0 : i32
    %c0_i32_0 = arith.constant 0 : i32
    %c0_i32_1 = arith.constant 0 : i32
    return %c0_i32, %c0_i32_0 : i32, i32
  }
  func.func @transform_17(%arg0: i32) -> (i32, i32, i32) {
    %c0_i32 = arith.constant 0 : i32
    %c0_i32_0 = arith.constant 0 : i32
    %c0_i32_1 = arith.constant 0 : i32
    return %arg0, %c0_i32, %c0_i32_0 : i32, i32, i32
  }
}

</mosaic_0001>

<llo_original>
// kernel: tpu_custom_call.1
$region0: #{tpu_custom_call.1}
  #allocation0 [shape = 'u32[]', space=smem, size = 0x4, offset = 0x4, fixed_abs, tag = 'smem constant byte address 0x4 - core index']
  #allocation1 [shape = 'u32[144,128]{1,0:T(1,128)}', space=vmem, size = 0x12000, scoped, tag = 'internal scratch']
  #allocation2 [shape = 'f32[8,32]{1,0:T(8,128)}', space=vmem, size = 0x1000, scoped, tag = 'scratch operand']
  %s0 = inlined_call_operand.vmem [shape: f32[2,8,16], index: 0, kind: input, shape index: {}]
  %s1 = inlined_call_operand.vmem [shape: f32[16,32], index: 1, kind: input, shape index: {}]
  %s2 = inlined_call_operand.vmem [shape: f32[1,32], index: 2, kind: input, shape index: {}]
  %s3 = inlined_call_operand.vmem [shape: f32[2,32,96], index: 3, kind: input, shape index: {}]
  %s4 = inlined_call_operand.vmem [shape: f32[2,1,96], index: 4, kind: input, shape index: {}]
  %s5 = inlined_call_operand.vmem [shape: f32[2,32,32], index: 5, kind: input, shape index: {}]
  %s6 = inlined_call_operand.vmem [shape: f32[2,1,32], index: 6, kind: input, shape index: {}]
  %s7 = inlined_call_operand.vmem [shape: f32[2,32,2048], index: 7, kind: input, shape index: {}]
  %s8 = inlined_call_operand.vmem [shape: f32[2,1,2048], index: 8, kind: input, shape index: {}]
  %s9 = inlined_call_operand.vmem [shape: f32[2,2048,32], index: 9, kind: input, shape index: {}]
  %s10 = inlined_call_operand.vmem [shape: f32[2,1,32], index: 10, kind: input, shape index: {}]
  %s11 = inlined_call_operand.vmem [shape: f32[2,1,32], index: 11, kind: input, shape index: {}]
  %s12 = inlined_call_operand.vmem [shape: f32[2,1,32], index: 12, kind: input, shape index: {}]
  %s13 = inlined_call_operand.vmem [shape: f32[2,1,32], index: 13, kind: input, shape index: {}]
  %s14 = inlined_call_operand.vmem [shape: f32[2,1,32], index: 14, kind: input, shape index: {}]
  %s15 = inlined_call_operand.vmem [shape: f32[32,8], index: 15, kind: input, shape index: {}]
  %s16 = inlined_call_operand.vmem [shape: f32[1,8], index: 16, kind: input, shape index: {}]
  %s17 = inlined_call_operand.hbm [shape: f32[2,1,8], index: 17, kind: output, shape index: {}]
  %s18 = sld [smem:[#allocation0]]
  $region101: #{tpu_custom_call.1} parent=0
    _
  %s20 = ssub.s32 1, %s18
  %s21 = scalar_select 0, %s20, %s18
  $region1: #{tpu_custom_call.1} parent=0
    #allocation3 [shape = 'u8[1024]{0}', space=vmem, size = 0x400, scoped, tag = 'output window, operand 0']
    #allocation4 [shape = 's32[2]{0}', space=sflag, size = 0x8, scoped, tag = 'scoped memory for tpu_custom_call.1']
    %22 = vsyncpa [#allocation4], 0
    %s23 = scalar_lea.sflag [#allocation4], 1
    %24 = vsyncpa %s23, 0
    loop: start=0, step=1, limit=4
    $region2: #{tpu_custom_call.1} parent=1 // loop_pre_header
      _
    $region3: #{tpu_custom_call.1} parent=1 // loop_header
      %s26 = sphi 0, %s30
      %p27 = scmp.ge.s32.totalorder %s26, 4
      %s36 = sphi 0, %s38
      %s39 = sphi 0, %s36
      %s40 = sphi 0, %s39
      %s56 = sphi 0, %s40
      %s60 = sphi 0, %s60
      %s62 = sphi 0, %s60
      %s63 = sphi 0, %s62
      %s77 = sphi 0, %s63
      %s81 = sphi 0, %s81
      %s83 = sphi 0, %s81
      %s84 = sphi 0, %s83
      %s98 = sphi 0, %s84
      %s102 = sphi 0, %s102
      %s104 = sphi 0, %s102
      %s105 = sphi 0, %s104
      %s119 = sphi 0, %s105
      %s123 = sphi 0, %s123
      %s125 = sphi 0, %s123
      %s126 = sphi 0, %s125
      %s140 = sphi 0, %s126
      %s144 = sphi 0, %s144
      %s146 = sphi 0, %s144
      %s147 = sphi 0, %s146
      %s161 = sphi 0, %s147
      %s165 = sphi 0, %s165
      %s167 = sphi 0, %s165
      %s168 = sphi 0, %s167
      %s182 = sphi 0, %s168
      %s186 = sphi 0, %s186
      %s188 = sphi 0, %s186
      %s189 = sphi 0, %s188
      %s203 = sphi 0, %s189
      %s207 = sphi 0, %s207
      %s209 = sphi 0, %s207
      %s210 = sphi 0, %s209
      %s224 = sphi 0, %s210
      %s228 = sphi 0, %s228
      %s230 = sphi 0, %s228
      %s231 = sphi 0, %s230
      %s245 = sphi 0, %s231
      %s249 = sphi 0, %s249
      %s251 = sphi 0, %s249
      %s252 = sphi 0, %s251
      %s266 = sphi 0, %s252
      %s270 = sphi 0, %s270
      %s272 = sphi 0, %s270
      %s273 = sphi 0, %s272
      %s287 = sphi 0, %s273
      %s291 = sphi 0, %s291
      %s293 = sphi 0, %s291
      %s294 = sphi 0, %s293
      %s308 = sphi 0, %s294
      %s312 = sphi 0, %s312
      %s314 = sphi 0, %s312
      %s315 = sphi 0, %s314
      %s329 = sphi 0, %s315
      %s333 = sphi 0, %s333
      %s335 = sphi 0, %s333
      %s336 = sphi 0, %s335
      %s350 = sphi 0, %s336
      %s354 = sphi 0, %s354
      %s356 = sphi 0, %s354
      %s357 = sphi 0, %s356
      %s371 = sphi 0, %s357
      %s375 = sphi 0, %s375
      %s377 = sphi 0, %s375
      %s378 = sphi 0, %s377
      %s392 = sphi 0, %s378
      %s398 = sphi 0, %s400
      %s401 = sphi 0, %s398
      %s402 = sphi 0, %s401
      %s418 = sphi 0, %s402
    $region4: #{tpu_custom_call.1} parent=1 // loop_header_branch
      %29 = sbr.rel (%p27) target = $region8
    $region5: #{tpu_custom_call.1} parent=1 // loop_body
      %s31 = ssub.s32 %s26, 1
      %s32 = ssub.s32 %s26, 2
      %s33 = sadd.s32 %s26, 1
      %s34 = ssub.s32 %s26, %s33
      %p35 = scmp.eq.s32.totalorder %s34, 0
      %s37 = sadd.s32 %s36, 1
      %s38 = scalar_select %p35, %s36, %s37
      %p41 = pneg %p35
      %p42 = scmp.eq.s32.totalorder %s26, 1
      %p43 = por %p41, %p42
      %p44 = scmp.ne.s32.totalorder %s36, %s39
      %p45 = scmp.eq.s32.totalorder %s26, 0
      %p46 = por %p44, %p45
      %p47 = scmp.ne.s32.totalorder %s36, %s39
      %p48 = scmp.eq.s32.totalorder %s31, 1
      %p49 = por %p47, %p48
      %p50 = scmp.ne.s32.totalorder %s39, %s40
      %p51 = scmp.eq.s32.totalorder %s31, 0
      %p52 = por %p50, %p51
      %p53 = scmp.ne.s32.totalorder %s39, %s40
      %p54 = scmp.eq.s32.totalorder %s32, 1
      %p55 = por %p53, %p54
      %p57 = scmp.ne.s32.totalorder %s40, %s56
      %p58 = scmp.eq.s32.totalorder %s32, 0
      %p59 = por %p57, %p58
      %s61 = sadd.s32 %s60, 1
      %p64 = scmp.eq.s32.totalorder %s26, 1
      %p65 = scmp.ne.s32.totalorder %s60, %s62
      %p66 = scmp.eq.s32.totalorder %s26, 0
      %p67 = por %p65, %p66
      %p68 = scmp.ne.s32.totalorder %s60, %s62
      %p69 = scmp.eq.s32.totalorder %s31, 1
      %p70 = por %p68, %p69
      %p71 = scmp.ne.s32.totalorder %s62, %s63
      %p72 = scmp.eq.s32.totalorder %s31, 0
      %p73 = por %p71, %p72
      %p74 = scmp.ne.s32.totalorder %s62, %s63
      %p75 = scmp.eq.s32.totalorder %s32, 1
      %p76 = por %p74, %p75
      %p78 = scmp.ne.s32.totalorder %s63, %s77
      %p79 = scmp.eq.s32.totalorder %s32, 0
      %p80 = por %p78, %p79
      %s82 = sadd.s32 %s81, 1
      %p85 = scmp.eq.s32.totalorder %s26, 1
      %p86 = scmp.ne.s32.totalorder %s81, %s83
      %p87 = scmp.eq.s32.totalorder %s26, 0
      %p88 = por %p86, %p87
      %p89 = scmp.ne.s32.totalorder %s81, %s83
      %p90 = scmp.eq.s32.totalorder %s31, 1
      %p91 = por %p89, %p90
      %p92 = scmp.ne.s32.totalorder %s83, %s84
      %p93 = scmp.eq.s32.totalorder %s31, 0
      %p94 = por %p92, %p93
      %p95 = scmp.ne.s32.totalorder %s83, %s84
      %p96 = scmp.eq.s32.totalorder %s32, 1
      %p97 = por %p95, %p96
      %p99 = scmp.ne.s32.totalorder %s84, %s98
      %p100 = scmp.eq.s32.totalorder %s32, 0
      %p101 = por %p99, %p100
      %s103 = sadd.s32 %s102, 1
      %p106 = scmp.eq.s32.totalorder %s26, 1
      %p107 = scmp.ne.s32.totalorder %s102, %s104
      %p108 = scmp.eq.s32.totalorder %s26, 0
      %p109 = por %p107, %p108
      %p110 = scmp.ne.s32.totalorder %s102, %s104
      %p111 = scmp.eq.s32.totalorder %s31, 1
      %p112 = por %p110, %p111
      %p113 = scmp.ne.s32.totalorder %s104, %s105
      %p114 = scmp.eq.s32.totalorder %s31, 0
      %p115 = por %p113, %p114
      %p116 = scmp.ne.s32.totalorder %s104, %s105
      %p117 = scmp.eq.s32.totalorder %s32, 1
      %p118 = por %p116, %p117
      %p120 = scmp.ne.s32.totalorder %s105, %s119
      %p121 = scmp.eq.s32.totalorder %s32, 0
      %p122 = por %p120, %p121
      %s124 = sadd.s32 %s123, 1
      %p127 = scmp.eq.s32.totalorder %s26, 1
      %p128 = scmp.ne.s32.totalorder %s123, %s125
      %p129 = scmp.eq.s32.totalorder %s26, 0
      %p130 = por %p128, %p129
      %p131 = scmp.ne.s32.totalorder %s123, %s125
      %p132 = scmp.eq.s32.totalorder %s31, 1
      %p133 = por %p131, %p132
      %p134 = scmp.ne.s32.totalorder %s125, %s126
      %p135 = scmp.eq.s32.totalorder %s31, 0
      %p136 = por %p134, %p135
      %p137 = scmp.ne.s32.totalorder %s125, %s126
      %p138 = scmp.eq.s32.totalorder %s32, 1
      %p139 = por %p137, %p138
      %p141 = scmp.ne.s32.totalorder %s126, %s140
      %p142 = scmp.eq.s32.totalorder %s32, 0
      %p143 = por %p141, %p142
      %s145 = sadd.s32 %s144, 1
      %p148 = scmp.eq.s32.totalorder %s26, 1
      %p149 = scmp.ne.s32.totalorder %s144, %s146
      %p150 = scmp.eq.s32.totalorder %s26, 0
      %p151 = por %p149, %p150
      %p152 = scmp.ne.s32.totalorder %s144, %s146
      %p153 = scmp.eq.s32.totalorder %s31, 1
      %p154 = por %p152, %p153
      %p155 = scmp.ne.s32.totalorder %s146, %s147
      %p156 = scmp.eq.s32.totalorder %s31, 0
      %p157 = por %p155, %p156
      %p158 = scmp.ne.s32.totalorder %s146, %s147
      %p159 = scmp.eq.s32.totalorder %s32, 1
      %p160 = por %p158, %p159
      %p162 = scmp.ne.s32.totalorder %s147, %s161
      %p163 = scmp.eq.s32.totalorder %s32, 0
      %p164 = por %p162, %p163
      %s166 = sadd.s32 %s165, 1
      %p169 = scmp.eq.s32.totalorder %s26, 1
      %p170 = scmp.ne.s32.totalorder %s165, %s167
      %p171 = scmp.eq.s32.totalorder %s26, 0
      %p172 = por %p170, %p171
      %p173 = scmp.ne.s32.totalorder %s165, %s167
      %p174 = scmp.eq.s32.totalorder %s31, 1
      %p175 = por %p173, %p174
      %p176 = scmp.ne.s32.totalorder %s167, %s168
      %p177 = scmp.eq.s32.totalorder %s31, 0
      %p178 = por %p176, %p177
      %p179 = scmp.ne.s32.totalorder %s167, %s168
      %p180 = scmp.eq.s32.totalorder %s32, 1
      %p181 = por %p179, %p180
      %p183 = scmp.ne.s32.totalorder %s168, %s182
      %p184 = scmp.eq.s32.totalorder %s32, 0
      %p185 = por %p183, %p184
      %s187 = sadd.s32 %s186, 1
      %p190 = scmp.eq.s32.totalorder %s26, 1
      %p191 = scmp.ne.s32.totalorder %s186, %s188
      %p192 = scmp.eq.s32.totalorder %s26, 0
      %p193 = por %p191, %p192
      %p194 = scmp.ne.s32.totalorder %s186, %s188
      %p195 = scmp.eq.s32.totalorder %s31, 1
      %p196 = por %p194, %p195
      %p197 = scmp.ne.s32.totalorder %s188, %s189
      %p198 = scmp.eq.s32.totalorder %s31, 0
      %p199 = por %p197, %p198
      %p200 = scmp.ne.s32.totalorder %s188, %s189
      %p201 = scmp.eq.s32.totalorder %s32, 1
      %p202 = por %p200, %p201
      %p204 = scmp.ne.s32.totalorder %s189, %s203
      %p205 = scmp.eq.s32.totalorder %s32, 0
      %p206 = por %p204, %p205
      %s208 = sadd.s32 %s207, 1
      %p211 = scmp.eq.s32.totalorder %s26, 1
      %p212 = scmp.ne.s32.totalorder %s207, %s209
      %p213 = scmp.eq.s32.totalorder %s26, 0
      %p214 = por %p212, %p213
      %p215 = scmp.ne.s32.totalorder %s207, %s209
      %p216 = scmp.eq.s32.totalorder %s31, 1
      %p217 = por %p215, %p216
      %p218 = scmp.ne.s32.totalorder %s209, %s210
      %p219 = scmp.eq.s32.totalorder %s31, 0
      %p220 = por %p218, %p219
      %p221 = scmp.ne.s32.totalorder %s209, %s210
      %p222 = scmp.eq.s32.totalorder %s32, 1
      %p223 = por %p221, %p222
      %p225 = scmp.ne.s32.totalorder %s210, %s224
      %p226 = scmp.eq.s32.totalorder %s32, 0
      %p227 = por %p225, %p226
      %s229 = sadd.s32 %s228, 1
      %p232 = scmp.eq.s32.totalorder %s26, 1
      %p233 = scmp.ne.s32.totalorder %s228, %s230
      %p234 = scmp.eq.s32.totalorder %s26, 0
      %p235 = por %p233, %p234
      %p236 = scmp.ne.s32.totalorder %s228, %s230
      %p237 = scmp.eq.s32.totalorder %s31, 1
      %p238 = por %p236, %p237
      %p239 = scmp.ne.s32.totalorder %s230, %s231
      %p240 = scmp.eq.s32.totalorder %s31, 0
      %p241 = por %p239, %p240
      %p242 = scmp.ne.s32.totalorder %s230, %s231
      %p243 = scmp.eq.s32.totalorder %s32, 1
      %p244 = por %p242, %p243
      %p246 = scmp.ne.s32.totalorder %s231, %s245
      %p247 = scmp.eq.s32.totalorder %s32, 0
      %p248 = por %p246, %p247
      %s250 = sadd.s32 %s249, 1
      %p253 = scmp.eq.s32.totalorder %s26, 1
      %p254 = scmp.ne.s32.totalorder %s249, %s251
      %p255 = scmp.eq.s32.totalorder %s26, 0
      %p256 = por %p254, %p255
      %p257 = scmp.ne.s32.totalorder %s249, %s251
      %p258 = scmp.eq.s32.totalorder %s31, 1
      %p259 = por %p257, %p258
      %p260 = scmp.ne.s32.totalorder %s251, %s252
      %p261 = scmp.eq.s32.totalorder %s31, 0
      %p262 = por %p260, %p261
      %p263 = scmp.ne.s32.totalorder %s251, %s252
      %p264 = scmp.eq.s32.totalorder %s32, 1
      %p265 = por %p263, %p264
      %p267 = scmp.ne.s32.totalorder %s252, %s266
      %p268 = scmp.eq.s32.totalorder %s32, 0
      %p269 = por %p267, %p268
      %s271 = sadd.s32 %s270, 1
      %p274 = scmp.eq.s32.totalorder %s26, 1
      %p275 = scmp.ne.s32.totalorder %s270, %s272
      %p276 = scmp.eq.s32.totalorder %s26, 0
      %p277 = por %p275, %p276
      %p278 = scmp.ne.s32.totalorder %s270, %s272
      %p279 = scmp.eq.s32.totalorder %s31, 1
      %p280 = por %p278, %p279
      %p281 = scmp.ne.s32.totalorder %s272, %s273
      %p282 = scmp.eq.s32.totalorder %s31, 0
      %p283 = por %p281, %p282
      %p284 = scmp.ne.s32.totalorder %s272, %s273
      %p285 = scmp.eq.s32.totalorder %s32, 1
      %p286 = por %p284, %p285
      %p288 = scmp.ne.s32.totalorder %s273, %s287
      %p289 = scmp.eq.s32.totalorder %s32, 0
      %p290 = por %p288, %p289
      %s292 = sadd.s32 %s291, 1
      %p295 = scmp.eq.s32.totalorder %s26, 1
      %p296 = scmp.ne.s32.totalorder %s291, %s293
      %p297 = scmp.eq.s32.totalorder %s26, 0
      %p298 = por %p296, %p297
      %p299 = scmp.ne.s32.totalorder %s291, %s293
      %p300 = scmp.eq.s32.totalorder %s31, 1
      %p301 = por %p299, %p300
      %p302 = scmp.ne.s32.totalorder %s293, %s294
      %p303 = scmp.eq.s32.totalorder %s31, 0
      %p304 = por %p302, %p303
      %p305 = scmp.ne.s32.totalorder %s293, %s294
      %p306 = scmp.eq.s32.totalorder %s32, 1
      %p307 = por %p305, %p306
      %p309 = scmp.ne.s32.totalorder %s294, %s308
      %p310 = scmp.eq.s32.totalorder %s32, 0
      %p311 = por %p309, %p310
      %s313 = sadd.s32 %s312, 1
      %p316 = scmp.eq.s32.totalorder %s26, 1
      %p317 = scmp.ne.s32.totalorder %s312, %s314
      %p318 = scmp.eq.s32.totalorder %s26, 0
      %p319 = por %p317, %p318
      %p320 = scmp.ne.s32.totalorder %s312, %s314
      %p321 = scmp.eq.s32.totalorder %s31, 1
      %p322 = por %p320, %p321
      %p323 = scmp.ne.s32.totalorder %s314, %s315
      %p324 = scmp.eq.s32.totalorder %s31, 0
      %p325 = por %p323, %p324
      %p326 = scmp.ne.s32.totalorder %s314, %s315
      %p327 = scmp.eq.s32.totalorder %s32, 1
      %p328 = por %p326, %p327
      %p330 = scmp.ne.s32.totalorder %s315, %s329
      %p331 = scmp.eq.s32.totalorder %s32, 0
      %p332 = por %p330, %p331
      %s334 = sadd.s32 %s333, 1
      %p337 = scmp.eq.s32.totalorder %s26, 1
      %p338 = scmp.ne.s32.totalorder %s333, %s335
      %p339 = scmp.eq.s32.totalorder %s26, 0
      %p340 = por %p338, %p339
      %p341 = scmp.ne.s32.totalorder %s333, %s335
      %p342 = scmp.eq.s32.totalorder %s31, 1
      %p343 = por %p341, %p342
      %p344 = scmp.ne.s32.totalorder %s335, %s336
      %p345 = scmp.eq.s32.totalorder %s31, 0
      %p346 = por %p344, %p345
      %p347 = scmp.ne.s32.totalorder %s335, %s336
      %p348 = scmp.eq.s32.totalorder %s32, 1
      %p349 = por %p347, %p348
      %p351 = scmp.ne.s32.totalorder %s336, %s350
      %p352 = scmp.eq.s32.totalorder %s32, 0
      %p353 = por %p351, %p352
      %s355 = sadd.s32 %s354, 1
      %p358 = scmp.eq.s32.totalorder %s26, 1
      %p359 = scmp.ne.s32.totalorder %s354, %s356
      %p360 = scmp.eq.s32.totalorder %s26, 0
      %p361 = por %p359, %p360
      %p362 = scmp.ne.s32.totalorder %s354, %s356
      %p363 = scmp.eq.s32.totalorder %s31, 1
      %p364 = por %p362, %p363
      %p365 = scmp.ne.s32.totalorder %s356, %s357
      %p366 = scmp.eq.s32.totalorder %s31, 0
      %p367 = por %p365, %p366
      %p368 = scmp.ne.s32.totalorder %s356, %s357
      %p369 = scmp.eq.s32.totalorder %s32, 1
      %p370 = por %p368, %p369
      %p372 = scmp.ne.s32.totalorder %s357, %s371
      %p373 = scmp.eq.s32.totalorder %s32, 0
      %p374 = por %p372, %p373
      %s376 = sadd.s32 %s375, 1
      %p379 = scmp.eq.s32.totalorder %s26, 1
      %p380 = scmp.ne.s32.totalorder %s375, %s377
      %p381 = scmp.eq.s32.totalorder %s26, 0
      %p382 = por %p380, %p381
      %p383 = scmp.ne.s32.totalorder %s375, %s377
      %p384 = scmp.eq.s32.totalorder %s31, 1
      %p385 = por %p383, %p384
      %p386 = scmp.ne.s32.totalorder %s377, %s378
      %p387 = scmp.eq.s32.totalorder %s31, 0
      %p388 = por %p386, %p387
      %p389 = scmp.ne.s32.totalorder %s377, %s378
      %p390 = scmp.eq.s32.totalorder %s32, 1
      %p391 = por %p389, %p390
      %p393 = scmp.ne.s32.totalorder %s378, %s392
      %p394 = scmp.eq.s32.totalorder %s32, 0
      %p395 = por %p393, %p394
      %s396 = ssub.s32 %s26, %s33
      %p397 = scmp.eq.s32.totalorder %s396, 0
      %s399 = sadd.s32 %s398, 1
      %s400 = scalar_select %p397, %s398, %s399
      %p403 = pneg %p397
      %p404 = scmp.eq.s32.totalorder %s26, 1
      %p405 = por %p403, %p404
      %p406 = scmp.ne.s32.totalorder %s398, %s401
      %p407 = scmp.eq.s32.totalorder %s26, 0
      %p408 = por %p406, %p407
      %p409 = scmp.ne.s32.totalorder %s398, %s401
      %p410 = scmp.eq.s32.totalorder %s31, 1
      %p411 = por %p409, %p410
      %p412 = scmp.ne.s32.totalorder %s401, %s402
      %p413 = scmp.eq.s32.totalorder %s31, 0
      %p414 = por %p412, %p413
      %p415 = scmp.ne.s32.totalorder %s401, %s402
      %p416 = scmp.eq.s32.totalorder %s32, 1
      %p417 = por %p415, %p416
      %p419 = scmp.ne.s32.totalorder %s402, %s418
      %p420 = scmp.eq.s32.totalorder %s32, 0
      %p421 = por %p419, %p420
      %p422 = scmp.le.s32.totalorder 1, %s26
      %p423 = scmp.lt.s32.totalorder %s26, 3
      %p424 = pnand %p422, %p423
      %p425 = pneg %p424
      // Predicated region
      $region9: #{tpu_custom_call.1} parent=5 // pred_check
        _
      $region10: #{tpu_custom_call.1} parent=5 // pred_check_branch
        %427 = sbr.rel (%p424) target = $region12
      $region11: #{tpu_custom_call.1} parent=5 // pred_region
        %s428 = ssub.s32 %s26, 1
        // Predicated region
        $region13: #{tpu_custom_call.1} parent=11 // pred_check
          %p429 = pneg %p73
        $region14: #{tpu_custom_call.1} parent=11 // pred_check_branch
          %431 = sbr.rel (%p429) target = $region16
        $region15: #{tpu_custom_call.1} parent=11 // pred_region
          _
        $region16: #{tpu_custom_call.1} parent=11 // pred_fallthru
          _
        // Predicated region
        $region17: #{tpu_custom_call.1} parent=11 // pred_check
          %p432 = pneg %p94
        $region18: #{tpu_custom_call.1} parent=11 // pred_check_branch
          %434 = sbr.rel (%p432) target = $region20
        $region19: #{tpu_custom_call.1} parent=11 // pred_region
          _
        $region20: #{tpu_custom_call.1} parent=11 // pred_fallthru
          _
        // Predicated region
        $region21: #{tpu_custom_call.1} parent=11 // pred_check
          %p435 = pneg %p115
        $region22: #{tpu_custom_call.1} parent=11 // pred_check_branch
          %437 = sbr.rel (%p435) target = $region24
        $region23: #{tpu_custom_call.1} parent=11 // pred_region
          _
        $region24: #{tpu_custom_call.1} parent=11 // pred_fallthru
          _
        // Predicated region
        $region25: #{tpu_custom_call.1} parent=11 // pred_check
          %p438 = pneg %p136
        $region26: #{tpu_custom_call.1} parent=11 // pred_check_branch
          %440 = sbr.rel (%p438) target = $region28
        $region27: #{tpu_custom_call.1} parent=11 // pred_region
          _
        $region28: #{tpu_custom_call.1} parent=11 // pred_fallthru
          _
        // Predicated region
        $region29: #{tpu_custom_call.1} parent=11 // pred_check
          %p441 = pneg %p157
        $region30: #{tpu_custom_call.1} parent=11 // pred_check_branch
          %443 = sbr.rel (%p441) target = $region32
        $region31: #{tpu_custom_call.1} parent=11 // pred_region
          _
        $region32: #{tpu_custom_call.1} parent=11 // pred_fallthru
          _
        // Predicated region
        $region33: #{tpu_custom_call.1} parent=11 // pred_check
          %p444 = pneg %p178
        $region34: #{tpu_custom_call.1} parent=11 // pred_check_branch
          %446 = sbr.rel (%p444) target = $region36
        $region35: #{tpu_custom_call.1} parent=11 // pred_region
          _
        $region36: #{tpu_custom_call.1} parent=11 // pred_fallthru
          _
        // Predicated region
        $region37: #{tpu_custom_call.1} parent=11 // pred_check
          %p447 = pneg %p199
        $region38: #{tpu_custom_call.1} parent=11 // pred_check_branch
          %449 = sbr.rel (%p447) target = $region40
        $region39: #{tpu_custom_call.1} parent=11 // pred_region
          _
        $region40: #{tpu_custom_call.1} parent=11 // pred_fallthru
          _
        // Predicated region
        $region41: #{tpu_custom_call.1} parent=11 // pred_check
          %p450 = pneg %p220
        $region42: #{tpu_custom_call.1} parent=11 // pred_check_branch
          %452 = sbr.rel (%p450) target = $region44
        $region43: #{tpu_custom_call.1} parent=11 // pred_region
          _
        $region44: #{tpu_custom_call.1} parent=11 // pred_fallthru
          _
        // Predicated region
        $region45: #{tpu_custom_call.1} parent=11 // pred_check
          %p453 = pneg %p241
        $region46: #{tpu_custom_call.1} parent=11 // pred_check_branch
          %455 = sbr.rel (%p453) target = $region48
        $region47: #{tpu_custom_call.1} parent=11 // pred_region
          _
        $region48: #{tpu_custom_call.1} parent=11 // pred_fallthru
          _
        // Predicated region
        $region49: #{tpu_custom_call.1} parent=11 // pred_check
          %p456 = pneg %p262
        $region50: #{tpu_custom_call.1} parent=11 // pred_check_branch
          %458 = sbr.rel (%p456) target = $region52
        $region51: #{tpu_custom_call.1} parent=11 // pred_region
          _
        $region52: #{tpu_custom_call.1} parent=11 // pred_fallthru
          _
        // Predicated region
        $region53: #{tpu_custom_call.1} parent=11 // pred_check
          %p459 = pneg %p283
        $region54: #{tpu_custom_call.1} parent=11 // pred_check_branch
          %461 = sbr.rel (%p459) target = $region56
        $region55: #{tpu_custom_call.1} parent=11 // pred_region
          _
        $region56: #{tpu_custom_call.1} parent=11 // pred_fallthru
          _
        // Predicated region
        $region57: #{tpu_custom_call.1} parent=11 // pred_check
          %p462 = pneg %p304
        $region58: #{tpu_custom_call.1} parent=11 // pred_check_branch
          %464 = sbr.rel (%p462) target = $region60
        $region59: #{tpu_custom_call.1} parent=11 // pred_region
          _
        $region60: #{tpu_custom_call.1} parent=11 // pred_fallthru
          _
        // Predicated region
        $region61: #{tpu_custom_call.1} parent=11 // pred_check
          %p465 = pneg %p325
        $region62: #{tpu_custom_call.1} parent=11 // pred_check_branch
          %467 = sbr.rel (%p465) target = $region64
        $region63: #{tpu_custom_call.1} parent=11 // pred_region
          _
        $region64: #{tpu_custom_call.1} parent=11 // pred_fallthru
          _
        // Predicated region
        $region65: #{tpu_custom_call.1} parent=11 // pred_check
          %p468 = pneg %p346
        $region66: #{tpu_custom_call.1} parent=11 // pred_check_branch
          %470 = sbr.rel (%p468) target = $region68
        $region67: #{tpu_custom_call.1} parent=11 // pred_region
          _
        $region68: #{tpu_custom_call.1} parent=11 // pred_fallthru
          _
        // Predicated region
        $region69: #{tpu_custom_call.1} parent=11 // pred_check
          %p471 = pneg %p367
        $region70: #{tpu_custom_call.1} parent=11 // pred_check_branch
          %473 = sbr.rel (%p471) target = $region72
        $region71: #{tpu_custom_call.1} parent=11 // pred_region
          _
        $region72: #{tpu_custom_call.1} parent=11 // pred_fallthru
          _
        // Predicated region
        $region73: #{tpu_custom_call.1} parent=11 // pred_check
          %p474 = pneg %p388
        $region74: #{tpu_custom_call.1} parent=11 // pred_check_branch
          %476 = sbr.rel (%p474) target = $region76
        $region75: #{tpu_custom_call.1} parent=11 // pred_region
          _
        $region76: #{tpu_custom_call.1} parent=11 // pred_fallthru
          _
      $region12: #{tpu_custom_call.1} parent=5 // pred_fallthru
        _
      %p477 = scmp.lt.s32.totalorder %s26, 2
      // Predicated region
      $region77: #{tpu_custom_call.1} parent=5 // pred_check
        %p478 = pneg %p477
      $region78: #{tpu_custom_call.1} parent=5 // pred_check_branch
        %480 = sbr.rel (%p478) target = $region80
      $region79: #{tpu_custom_call.1} parent=5 // pred_region
        // Predicated region
        $region81: #{tpu_custom_call.1} parent=79 // pred_check
          %p481 = pneg %p46
        $region82: #{tpu_custom_call.1} parent=79 // pred_check_branch
          %483 = sbr.rel (%p481) target = $region84
        $region83: #{tpu_custom_call.1} parent=79 // pred_region
          %p484 = scmp.lt.s32.totalorder %s26, 1
          %s485 = scalar_select %p484, %s26, 1
          %s486 = smul.addr %s485, 8
          %s487 = scalar_lea.vmem %s0, %s486
        $region84: #{tpu_custom_call.1} parent=79 // pred_fallthru
          _
      $region80: #{tpu_custom_call.1} parent=5 // pred_fallthru
        _
      %p488 = scmp.le.s32.totalorder 1, %s26
      %p489 = scmp.lt.s32.totalorder %s26, 3
      %p490 = pnand %p488, %p489
      %p491 = pneg %p490
      // Predicated region
      $region85: #{tpu_custom_call.1} parent=5 // pred_check
        _
      $region86: #{tpu_custom_call.1} parent=5 // pred_check_branch
        %493 = sbr.rel (%p490) target = $region88
      $region87: #{tpu_custom_call.1} parent=5 // pred_region
        %s494 = ssub.s32 %s26, 1
        %p495 = scmp.lt.s32.totalorder %s31, 1
        %s496 = scalar_select %p495, %s31, 1
        %s497 = smul.addr %s496, 8
        %s498 = scalar_lea.vmem %s0, %s497
        %p499 = pneg %p52
        %p500 = pneg %p49
        %p501 = pneg %p73
        %p502 = pneg %p70
        %p503 = pneg %p94
        %p504 = pneg %p91
        %p505 = pneg %p115
        %p506 = pneg %p112
        %p507 = pneg %p136
        %p508 = pneg %p133
        %p509 = pneg %p157
        %p510 = pneg %p154
        %p511 = pneg %p178
        %p512 = pneg %p175
        %p513 = pneg %p199
        %p514 = pneg %p196
        %p515 = pneg %p220
        %p516 = pneg %p217
        %p517 = pneg %p241
        %p518 = pneg %p238
        %p519 = pneg %p262
        %p520 = pneg %p259
        %p521 = pneg %p283
        %p522 = pneg %p280
        %p523 = pneg %p304
        %p524 = pneg %p301
        %p525 = pneg %p325
        %p526 = pneg %p322
        %p527 = pneg %p346
        %p528 = pneg %p343
        %p529 = pneg %p367
        %p530 = pneg %p364
        %p531 = pneg %p388
        %p532 = pneg %p385
        %p533 = pneg %p414
        %p534 = pneg %p411
        %s535 = sand.u32 %s401, 1
        %s536 = scalar_lea.sflag [#allocation4], %s535
        %s537 = sand.u32 %s401, 1
        %s538 = scalar_lea.vmem [#allocation3], %s537
        %p539 = scmp.lt.s32.totalorder %s31, 1
        %s540 = scalar_select %p539, %s31, 1
        %s541 = smul.addr %s540, 8
        %s542 = scalar_lea.vmem %s0, %s541
        %v543 = vld [vmem:[%s542] sm:$0xff]
        %v544 = vld [vmem:[%s1] sm:$0xff]
        %v545 = vld [vmem:[%s1 + $0x8] sm:$0xff]
        %v546 = vld [vmem:[%s2] sm:$0x1]
        %v548 = vlaneseq
        %v549 = vshrl.u32 %v548, 7
        %v550 = vsub.s32 0, %v549
        %v551 = vrot.slane %v546, %v550
        %vm553 = vcmask 130048
        %v555 = vsel %vm553, %v543, 0
        %557 = vmatprep.subr.mxu0 0.0
        %558 = vmatpush1.msra.mxu0 %v544
        %559 = vmatprep.subr.mxu0 0.0
        %560 = vmatpush1.msra.mxu0 %v545
        %561 = vmatprep.subr.mxu0 0.0
        %562 = vmatpush1.msra.mxu0 0.0
        %563 = vmatprep.subr.mxu0 0.0
        %564 = vmatpush1.msra.mxu0 0.0
        %565 = vmatprep.subr.mxu0 0.0
        %566 = vmatpush1.msra.mxu0 0.0
        %567 = vmatprep.subr.mxu0 0.0
        %568 = vmatpush1.msra.mxu0 0.0
        %569 = vmatprep.subr.mxu0 0.0
        %570 = vmatpush1.msra.mxu0 0.0
        %571 = vmatprep.subr.mxu0 0.0
        %572 = vmatpush1.msra.mxu0 0.0
        %573 = vmatprep.subr.mxu0 0.0
        %574 = vmatpush1.msra.mxu0 0.0
        %575 = vmatprep.subr.mxu0 0.0
        %576 = vmatpush1.msra.mxu0 0.0
        %577 = vmatprep.subr.mxu0 0.0
        %578 = vmatpush1.msra.mxu0 0.0
        %579 = vmatprep.subr.mxu0 0.0
        %580 = vmatpush1.msra.mxu0 0.0
        %581 = vmatprep.subr.mxu0 0.0
        %582 = vmatpush1.msra.mxu0 0.0
        %583 = vmatprep.subr.mxu0 0.0
        %584 = vmatpush1.msra.mxu0 0.0
        %585 = vmatprep.subr.mxu0 0.0
        %586 = vmatpush1.msra.mxu0 0.0
        %587 = vmatprep.subr.mxu0 0.0
        %588 = vmatpush1.msra.mxu0 0.0
        %589 = vmatprep.subr.mxu0 0.0
        %590 = vmatpush1.msra.mxu0 0.0
        %591 = vmatprep.subr.mxu0 0.0
        %592 = vmatpush1.msra.mxu0 0.0
        %593 = vmatprep.subr.mxu0 0.0
        %594 = vmatpush1.msra.mxu0 0.0
        %595 = vmatprep.subr.mxu0 0.0
        %596 = vmatpush1.msra.mxu0 0.0
        %597 = vmatprep.subr.mxu0 0.0
        %598 = vmatpush1.msra.mxu0 0.0
        %599 = vmatprep.subr.mxu0 0.0
        %600 = vmatpush1.msra.mxu0 0.0
        %601 = vmatprep.subr.mxu0 0.0
        %602 = vmatpush1.msra.mxu0 0.0
        %603 = vmatprep.subr.mxu0 0.0
        %604 = vmatpush1.msra.mxu0 0.0
        %605 = vmatprep.subr.mxu0 0.0
        %606 = vmatpush1.msra.mxu0 0.0
        %607 = vmatprep.subr.mxu0 0.0
        %608 = vmatpush1.msra.mxu0 0.0
        %609 = vmatprep.subr.mxu0 0.0
        %610 = vmatpush1.msra.mxu0 0.0
        %611 = vmatprep.subr.mxu0 0.0
        %612 = vmatpush1.msra.mxu0 0.0
        %613 = vmatprep.subr.mxu0 0.0
        %614 = vmatpush1.msra.mxu0 0.0
        %615 = vmatprep.subr.mxu0 0.0
        %616 = vmatpush1.msra.mxu0 0.0
        %617 = vmatprep.subr.mxu0 0.0
        %618 = vmatpush1.msra.mxu0 0.0
        %619 = vmatprep.subr.mxu0 0.0
        %620 = vmatpush1.msra.mxu0 0.0
        %621 = vmatprep.mubr.f32.mxu0 0.0
        %622 = vmatmul.mubr.f32.gmra.mrb[0].mxu0 %v555
        %v623 = vpop.f32.mrb[0].mxu0
        %v624 = vadd.f32 %v551, %v623
        %v625 = vpop.f32.mrb[0].mxu0
        %626 = vdwg.mxu0
        %v627 = vld [vmem:[%s3] sm:$0xff]
        %v628 = vld [vmem:[%s3 + $0x8] sm:$0xff]
        %v629 = vld [vmem:[%s3 + $0x10] sm:$0xff]
        %v630 = vld [vmem:[%s3 + $0x18] sm:$0xff]
        %v631 = vld [vmem:[%s4] sm:$0x1]
        %v633 = vlaneseq
        %v634 = vshrl.u32 %v633, 7
        %v635 = vsub.s32 0, %v634
        %v636 = vrot.slane %v631, %v635
        %vm638 = vcmask 261120
        %v640 = vsel %vm638, %v624, 0
        %642 = vmatprep.subr.mxu0 0.0
        %643 = vmatpush1.msra.mxu0 %v627
        %644 = vmatprep.subr.mxu0 0.0
        %645 = vmatpush1.msra.mxu0 %v628
        %646 = vmatprep.subr.mxu0 0.0
        %647 = vmatpush1.msra.mxu0 %v629
        %648 = vmatprep.subr.mxu0 0.0
        %649 = vmatpush1.msra.mxu0 %v630
        %650 = vmatprep.subr.mxu0 0.0
        %651 = vmatpush1.msra.mxu0 0.0
        %652 = vmatprep.subr.mxu0 0.0
        %653 = vmatpush1.msra.mxu0 0.0
        %654 = vmatprep.subr.mxu0 0.0
        %655 = vmatpush1.msra.mxu0 0.0
        %656 = vmatprep.subr.mxu0 0.0
        %657 = vmatpush1.msra.mxu0 0.0
        %658 = vmatprep.subr.mxu0 0.0
        %659 = vmatpush1.msra.mxu0 0.0
        %660 = vmatprep.subr.mxu0 0.0
        %661 = vmatpush1.msra.mxu0 0.0
        %662 = vmatprep.subr.mxu0 0.0
        %663 = vmatpush1.msra.mxu0 0.0
        %664 = vmatprep.subr.mxu0 0.0
        %665 = vmatpush1.msra.mxu0 0.0
        %666 = vmatprep.subr.mxu0 0.0
        %667 = vmatpush1.msra.mxu0 0.0
        %668 = vmatprep.subr.mxu0 0.0
        %669 = vmatpush1.msra.mxu0 0.0
        %670 = vmatprep.subr.mxu0 0.0
        %671 = vmatpush1.msra.mxu0 0.0
        %672 = vmatprep.subr.mxu0 0.0
        %673 = vmatpush1.msra.mxu0 0.0
        %674 = vmatprep.subr.mxu0 0.0
        %675 = vmatpush1.msra.mxu0 0.0
        %676 = vmatprep.subr.mxu0 0.0
        %677 = vmatpush1.msra.mxu0 0.0
        %678 = vmatprep.subr.mxu0 0.0
        %679 = vmatpush1.msra.mxu0 0.0
        %680 = vmatprep.subr.mxu0 0.0
        %681 = vmatpush1.msra.mxu0 0.0
        %682 = vmatprep.subr.mxu0 0.0
        %683 = vmatpush1.msra.mxu0 0.0
        %684 = vmatprep.subr.mxu0 0.0
        %685 = vmatpush1.msra.mxu0 0.0
        %686 = vmatprep.subr.mxu0 0.0
        %687 = vmatpush1.msra.mxu0 0.0
        %688 = vmatprep.subr.mxu0 0.0
        %689 = vmatpush1.msra.mxu0 0.0
        %690 = vmatprep.subr.mxu0 0.0
        %691 = vmatpush1.msra.mxu0 0.0
        %692 = vmatprep.subr.mxu0 0.0
        %693 = vmatpush1.msra.mxu0 0.0
        %694 = vmatprep.subr.mxu0 0.0
        %695 = vmatpush1.msra.mxu0 0.0
        %696 = vmatprep.subr.mxu0 0.0
        %697 = vmatpush1.msra.mxu0 0.0
        %698 = vmatprep.subr.mxu0 0.0
        %699 = vmatpush1.msra.mxu0 0.0
        %700 = vmatprep.subr.mxu0 0.0
        %701 = vmatpush1.msra.mxu0 0.0
        %702 = vmatprep.subr.mxu0 0.0
        %703 = vmatpush1.msra.mxu0 0.0
        %704 = vmatprep.subr.mxu0 0.0
        %705 = vmatpush1.msra.mxu0 0.0
        %706 = vmatprep.mubr.f32.mxu0 0.0
        %707 = vmatmul.mubr.f32.gmra.mrb[0].mxu0 %v640
        %v708 = vpop.f32.mrb[0].mxu0
        %v709 = vadd.f32 %v636, %v708
        %v710 = vpop.f32.mrb[0].mxu0
        %711 = vdwg.mxu0
        %v712 = vmul.f32 %v709, 0.35355338
        %714 = vrot.lane.b32.xlu0 %v709, 96
        %v715 = vpop.permute.xlu0 %714
        %vm716 = vcmask 64512
        %v718 = vsel %vm716, %v712, 0
        %v720 = vsel %vm716, %v715, 0
        %722 = vmatprep.subr.mxu0 0.0
        %723 = vmatpush1.xpose.msra.mxu0 %v720
        %724 = vmatprep.subr.mxu0 0.0
        %725 = vmatpush1.xpose.msra.mxu0 0.0
        %726 = vmatprep.subr.mxu0 0.0
        %727 = vmatpush1.xpose.msra.mxu0 0.0
        %728 = vmatprep.subr.mxu0 0.0
        %729 = vmatpush1.xpose.msra.mxu0 0.0
        %730 = vmatprep.subr.mxu0 0.0
        %731 = vmatpush1.xpose.msra.mxu0 0.0
        %732 = vmatprep.subr.mxu0 0.0
        %733 = vmatpush1.xpose.msra.mxu0 0.0
        %734 = vmatprep.subr.mxu0 0.0
        %735 = vmatpush1.xpose.msra.mxu0 0.0
        %736 = vmatprep.subr.mxu0 0.0
        %737 = vmatpush1.xpose.msra.mxu0 0.0
        %738 = vmatprep.subr.mxu0 0.0
        %739 = vmatpush1.xpose.msra.mxu0 0.0
        %740 = vmatprep.subr.mxu0 0.0
        %741 = vmatpush1.xpose.msra.mxu0 0.0
        %742 = vmatprep.subr.mxu0 0.0
        %743 = vmatpush1.xpose.msra.mxu0 0.0
        %744 = vmatprep.subr.mxu0 0.0
        %745 = vmatpush1.xpose.msra.mxu0 0.0
        %746 = vmatprep.subr.mxu0 0.0
        %747 = vmatpush1.xpose.msra.mxu0 0.0
        %748 = vmatprep.subr.mxu0 0.0
        %749 = vmatpush1.xpose.msra.mxu0 0.0
        %750 = vmatprep.subr.mxu0 0.0
        %751 = vmatpush1.xpose.msra.mxu0 0.0
        %752 = vmatprep.subr.mxu0 0.0
        %753 = vmatpush1.xpose.msra.mxu0 0.0
        %754 = vmatprep.subr.mxu0 0.0
        %755 = vmatpush1.xpose.msra.mxu0 0.0
        %756 = vmatprep.subr.mxu0 0.0
        %757 = vmatpush1.xpose.msra.mxu0 0.0
        %758 = vmatprep.subr.mxu0 0.0
        %759 = vmatpush1.xpose.msra.mxu0 0.0
        %760 = vmatprep.subr.mxu0 0.0
        %761 = vmatpush1.xpose.msra.mxu0 0.0
        %762 = vmatprep.subr.mxu0 0.0
        %763 = vmatpush1.xpose.msra.mxu0 0.0
        %764 = vmatprep.subr.mxu0 0.0
        %765 = vmatpush1.xpose.msra.mxu0 0.0
        %766 = vmatprep.subr.mxu0 0.0
        %767 = vmatpush1.xpose.msra.mxu0 0.0
        %768 = vmatprep.subr.mxu0 0.0
        %769 = vmatpush1.xpose.msra.mxu0 0.0
        %770 = vmatprep.subr.mxu0 0.0
        %771 = vmatpush1.xpose.msra.mxu0 0.0
        %772 = vmatprep.subr.mxu0 0.0
        %773 = vmatpush1.xpose.msra.mxu0 0.0
        %774 = vmatprep.subr.mxu0 0.0
        %775 = vmatpush1.xpose.msra.mxu0 0.0
        %776 = vmatprep.subr.mxu0 0.0
        %777 = vmatpush1.xpose.msra.mxu0 0.0
        %778 = vmatprep.subr.mxu0 0.0
        %779 = vmatpush1.xpose.msra.mxu0 0.0
        %780 = vmatprep.subr.mxu0 0.0
        %781 = vmatpush1.xpose.msra.mxu0 0.0
        %782 = vmatprep.subr.mxu0 0.0
        %783 = vmatpush1.xpose.msra.mxu0 0.0
        %784 = vmatprep.subr.mxu0 0.0
        %785 = vmatpush1.xpose.msra.mxu0 0.0
        %786 = vmatprep.mubr.f32.mxu0 0.0
        %787 = vmatmul.mubr.f32.gmra.mrb[0].mxu0 %v718
        %v788 = vpop.f32.mrb[0].mxu0
        %v789 = vadd.f32 0.0, %v788
        %v790 = vpop.f32.mrb[0].mxu0
        %791 = vdwg.mxu0
        %v792 = vsel %vm716, %v789, -inf
        %793 = vmax.xlane.f32.xlu0 %v792
        %v794 = vpop.xlane.xlu0 %793
        %v795 = vsub.f32 %v789, %v794
        %v796 = vmul.f32 %v795, 1.442695
        %v797 = vpow.pop %v796
        %v798 = vsel %vm716, %v797, 0.0
        %799 = vadd.xlane.f32.xlu0 %v798
        %v800 = vpop.xlane.xlu0 %799
        %801 = vrot.lane.b32.xlu0 %v709, 64
        %v802 = vpop.permute.xlu0 %801
        %v805 = vsel %vm716, %v797, 0
        %807 = vmatprep.subr.mxu0 0.0
        %808 = vmatpush1.msra.mxu0 %v802
        %809 = vmatprep.subr.mxu0 0.0
        %810 = vmatpush1.msra.mxu0 0.0
        %811 = vmatprep.subr.mxu0 0.0
        %812 = vmatpush1.msra.mxu0 0.0
        %813 = vmatprep.subr.mxu0 0.0
        %814 = vmatpush1.msra.mxu0 0.0
        %815 = vmatprep.subr.mxu0 0.0
        %816 = vmatpush1.msra.mxu0 0.0
        %817 = vmatprep.subr.mxu0 0.0
        %818 = vmatpush1.msra.mxu0 0.0
        %819 = vmatprep.subr.mxu0 0.0
        %820 = vmatpush1.msra.mxu0 0.0
        %821 = vmatprep.subr.mxu0 0.0
        %822 = vmatpush1.msra.mxu0 0.0
        %823 = vmatprep.subr.mxu0 0.0
        %824 = vmatpush1.msra.mxu0 0.0
        %825 = vmatprep.subr.mxu0 0.0
        %826 = vmatpush1.msra.mxu0 0.0
        %827 = vmatprep.subr.mxu0 0.0
        %828 = vmatpush1.msra.mxu0 0.0
        %829 = vmatprep.subr.mxu0 0.0
        %830 = vmatpush1.msra.mxu0 0.0
        %831 = vmatprep.subr.mxu0 0.0
        %832 = vmatpush1.msra.mxu0 0.0
        %833 = vmatprep.subr.mxu0 0.0
        %834 = vmatpush1.msra.mxu0 0.0
        %835 = vmatprep.subr.mxu0 0.0
        %836 = vmatpush1.msra.mxu0 0.0
        %837 = vmatprep.subr.mxu0 0.0
        %838 = vmatpush1.msra.mxu0 0.0
        %839 = vmatprep.subr.mxu0 0.0
        %840 = vmatpush1.msra.mxu0 0.0
        %841 = vmatprep.subr.mxu0 0.0
        %842 = vmatpush1.msra.mxu0 0.0
        %843 = vmatprep.subr.mxu0 0.0
        %844 = vmatpush1.msra.mxu0 0.0
        %845 = vmatprep.subr.mxu0 0.0
        %846 = vmatpush1.msra.mxu0 0.0
        %847 = vmatprep.subr.mxu0 0.0
        %848 = vmatpush1.msra.mxu0 0.0
        %849 = vmatprep.subr.mxu0 0.0
        %850 = vmatpush1.msra.mxu0 0.0
        %851 = vmatprep.subr.mxu0 0.0
        %852 = vmatpush1.msra.mxu0 0.0
        %853 = vmatprep.subr.mxu0 0.0
        %854 = vmatpush1.msra.mxu0 0.0
        %855 = vmatprep.subr.mxu0 0.0
        %856 = vmatpush1.msra.mxu0 0.0
        %857 = vmatprep.subr.mxu0 0.0
        %858 = vmatpush1.msra.mxu0 0.0
        %859 = vmatprep.subr.mxu0 0.0
        %860 = vmatpush1.msra.mxu0 0.0
        %861 = vmatprep.subr.mxu0 0.0
        %862 = vmatpush1.msra.mxu0 0.0
        %863 = vmatprep.subr.mxu0 0.0
        %864 = vmatpush1.msra.mxu0 0.0
        %865 = vmatprep.subr.mxu0 0.0
        %866 = vmatpush1.msra.mxu0 0.0
        %867 = vmatprep.subr.mxu0 0.0
        %868 = vmatpush1.msra.mxu0 0.0
        %869 = vmatprep.subr.mxu0 0.0
        %870 = vmatpush1.msra.mxu0 0.0
        %871 = vmatprep.mubr.f32.mxu0 0.0
        %872 = vmatmul.mubr.f32.gmra.mrb[0].mxu0 %v805
        %v873 = vpop.f32.mrb[0].mxu0
        %v874 = vadd.f32 0.0, %v873
        %v875 = vpop.f32.mrb[0].mxu0
        %876 = vdwg.mxu0
        %v877 = vrcp.pop %v800
        %v878 = vmul.f32 %v874, %v877
        %879 = vst.msk [vmem:[#allocation2] sm:$0xff] %vm716, %v878
        %880 = vrot.lane.b32.xlu0 %v712, 120
        %v881 = vpop.permute.xlu0 %880
        %882 = vrot.lane.b32.xlu0 %v709, 88
        %v883 = vpop.permute.xlu0 %882
        %v884 = vsel %vm716, %v881, 0
        %v886 = vsel %vm716, %v883, 0
        %888 = vmatprep.subr.mxu0 0.0
        %889 = vmatpush1.xpose.msra.mxu0 %v886
        %890 = vmatprep.subr.mxu0 0.0
        %891 = vmatpush1.xpose.msra.mxu0 0.0
        %892 = vmatprep.subr.mxu0 0.0
        %893 = vmatpush1.xpose.msra.mxu0 0.0
        %894 = vmatprep.subr.mxu0 0.0
        %895 = vmatpush1.xpose.msra.mxu0 0.0
        %896 = vmatprep.subr.mxu0 0.0
        %897 = vmatpush1.xpose.msra.mxu0 0.0
        %898 = vmatprep.subr.mxu0 0.0
        %899 = vmatpush1.xpose.msra.mxu0 0.0
        %900 = vmatprep.subr.mxu0 0.0
        %901 = vmatpush1.xpose.msra.mxu0 0.0
        %902 = vmatprep.subr.mxu0 0.0
        %903 = vmatpush1.xpose.msra.mxu0 0.0
        %904 = vmatprep.subr.mxu0 0.0
        %905 = vmatpush1.xpose.msra.mxu0 0.0
        %906 = vmatprep.subr.mxu0 0.0
        %907 = vmatpush1.xpose.msra.mxu0 0.0
        %908 = vmatprep.subr.mxu0 0.0
        %909 = vmatpush1.xpose.msra.mxu0 0.0
        %910 = vmatprep.subr.mxu0 0.0
        %911 = vmatpush1.xpose.msra.mxu0 0.0
        %912 = vmatprep.subr.mxu0 0.0
        %913 = vmatpush1.xpose.msra.mxu0 0.0
        %914 = vmatprep.subr.mxu0 0.0
        %915 = vmatpush1.xpose.msra.mxu0 0.0
        %916 = vmatprep.subr.mxu0 0.0
        %917 = vmatpush1.xpose.msra.mxu0 0.0
        %918 = vmatprep.subr.mxu0 0.0
        %919 = vmatpush1.xpose.msra.mxu0 0.0
        %920 = vmatprep.subr.mxu0 0.0
        %921 = vmatpush1.xpose.msra.mxu0 0.0
        %922 = vmatprep.subr.mxu0 0.0
        %923 = vmatpush1.xpose.msra.mxu0 0.0
        %924 = vmatprep.subr.mxu0 0.0
        %925 = vmatpush1.xpose.msra.mxu0 0.0
        %926 = vmatprep.subr.mxu0 0.0
        %927 = vmatpush1.xpose.msra.mxu0 0.0
        %928 = vmatprep.subr.mxu0 0.0
        %929 = vmatpush1.xpose.msra.mxu0 0.0
        %930 = vmatprep.subr.mxu0 0.0
        %931 = vmatpush1.xpose.msra.mxu0 0.0
        %932 = vmatprep.subr.mxu0 0.0
        %933 = vmatpush1.xpose.msra.mxu0 0.0
        %934 = vmatprep.subr.mxu0 0.0
        %935 = vmatpush1.xpose.msra.mxu0 0.0
        %936 = vmatprep.subr.mxu0 0.0
        %937 = vmatpush1.xpose.msra.mxu0 0.0
        %938 = vmatprep.subr.mxu0 0.0
        %939 = vmatpush1.xpose.msra.mxu0 0.0
        %940 = vmatprep.subr.mxu0 0.0
        %941 = vmatpush1.xpose.msra.mxu0 0.0
        %942 = vmatprep.subr.mxu0 0.0
        %943 = vmatpush1.xpose.msra.mxu0 0.0
        %944 = vmatprep.subr.mxu0 0.0
        %945 = vmatpush1.xpose.msra.mxu0 0.0
        %946 = vmatprep.subr.mxu0 0.0
        %947 = vmatpush1.xpose.msra.mxu0 0.0
        %948 = vmatprep.subr.mxu0 0.0
        %949 = vmatpush1.xpose.msra.mxu0 0.0
        %950 = vmatprep.subr.mxu0 0.0
        %951 = vmatpush1.xpose.msra.mxu0 0.0
        %952 = vmatprep.mubr.f32.mxu0 0.0
        %953 = vmatmul.mubr.f32.gmra.mrb[0].mxu0 %v884
        %v954 = vpop.f32.mrb[0].mxu0
        %v955 = vadd.f32 0.0, %v954
        %v956 = vpop.f32.mrb[0].mxu0
        %957 = vdwg.mxu0
        %v958 = vsel %vm716, %v955, -inf
        %959 = vmax.xlane.f32.xlu0 %v958
        %v960 = vpop.xlane.xlu0 %959
        %v961 = vsub.f32 %v955, %v960
        %v962 = vmul.f32 %v961, 1.442695
        %v963 = vpow.pop %v962
        %v964 = vsel %vm716, %v963, 0.0
        %965 = vadd.xlane.f32.xlu0 %v964
        %v966 = vpop.xlane.xlu0 %965
        %967 = vrot.lane.b32.xlu0 %v709, 56
        %v968 = vpop.permute.xlu0 %967
        %v971 = vsel %vm716, %v963, 0
        %973 = vmatprep.subr.mxu0 0.0
        %974 = vmatpush1.msra.mxu0 %v968
        %975 = vmatprep.subr.mxu0 0.0
        %976 = vmatpush1.msra.mxu0 0.0
        %977 = vmatprep.subr.mxu0 0.0
        %978 = vmatpush1.msra.mxu0 0.0
        %979 = vmatprep.subr.mxu0 0.0
        %980 = vmatpush1.msra.mxu0 0.0
        %981 = vmatprep.subr.mxu0 0.0
        %982 = vmatpush1.msra.mxu0 0.0
        %983 = vmatprep.subr.mxu0 0.0
        %984 = vmatpush1.msra.mxu0 0.0
        %985 = vmatprep.subr.mxu0 0.0
        %986 = vmatpush1.msra.mxu0 0.0
        %987 = vmatprep.subr.mxu0 0.0
        %988 = vmatpush1.msra.mxu0 0.0
        %989 = vmatprep.subr.mxu0 0.0
        %990 = vmatpush1.msra.mxu0 0.0
        %991 = vmatprep.subr.mxu0 0.0
        %992 = vmatpush1.msra.mxu0 0.0
        %993 = vmatprep.subr.mxu0 0.0
        %994 = vmatpush1.msra.mxu0 0.0
        %995 = vmatprep.subr.mxu0 0.0
        %996 = vmatpush1.msra.mxu0 0.0
        %997 = vmatprep.subr.mxu0 0.0
        %998 = vmatpush1.msra.mxu0 0.0
        %999 = vmatprep.subr.mxu0 0.0
        %1000 = vmatpush1.msra.mxu0 0.0
        %1001 = vmatprep.subr.mxu0 0.0
        %1002 = vmatpush1.msra.mxu0 0.0
        %1003 = vmatprep.subr.mxu0 0.0
        %1004 = vmatpush1.msra.mxu0 0.0
        %1005 = vmatprep.subr.mxu0 0.0
        %1006 = vmatpush1.msra.mxu0 0.0
        %1007 = vmatprep.subr.mxu0 0.0
        %1008 = vmatpush1.msra.mxu0 0.0
        %1009 = vmatprep.subr.mxu0 0.0
        %1010 = vmatpush1.msra.mxu0 0.0
        %1011 = vmatprep.subr.mxu0 0.0
        %1012 = vmatpush1.msra.mxu0 0.0
        %1013 = vmatprep.subr.mxu0 0.0
        %1014 = vmatpush1.msra.mxu0 0.0
        %1015 = vmatprep.subr.mxu0 0.0
        %1016 = vmatpush1.msra.mxu0 0.0
        %1017 = vmatprep.subr.mxu0 0.0
        %1018 = vmatpush1.msra.mxu0 0.0
        %1019 = vmatprep.subr.mxu0 0.0
        %1020 = vmatpush1.msra.mxu0 0.0
        %1021 = vmatprep.subr.mxu0 0.0
        %1022 = vmatpush1.msra.mxu0 0.0
        %1023 = vmatprep.subr.mxu0 0.0
        %1024 = vmatpush1.msra.mxu0 0.0
        %1025 = vmatprep.subr.mxu0 0.0
        %1026 = vmatpush1.msra.mxu0 0.0
        %1027 = vmatprep.subr.mxu0 0.0
        %1028 = vmatpush1.msra.mxu0 0.0
        %1029 = vmatprep.subr.mxu0 0.0
        %1030 = vmatpush1.msra.mxu0 0.0
        %1031 = vmatprep.subr.mxu0 0.0
        %1032 = vmatpush1.msra.mxu0 0.0
        %1033 = vmatprep.subr.mxu0 0.0
        %1034 = vmatpush1.msra.mxu0 0.0
        %1035 = vmatprep.subr.mxu0 0.0
        %1036 = vmatpush1.msra.mxu0 0.0
        %1037 = vmatprep.mubr.f32.mxu0 0.0
        %1038 = vmatmul.mubr.f32.gmra.mrb[0].mxu0 %v971
        %v1039 = vpop.f32.mrb[0].mxu0
        %v1040 = vadd.f32 0.0, %v1039
        %v1041 = vpop.f32.mrb[0].mxu0
        %1042 = vdwg.mxu0
        %v1043 = vrcp.pop %v966
        %v1044 = vmul.f32 %v1040, %v1043
        %1046 = vrot.lane.b32.xlu0 %v1044, 8
        %v1047 = vpop.permute.xlu0 %1046
        %vm1049 = vcmask 130112
        %1050 = vst.msk [vmem:[#allocation2] sm:$0xff] %vm1049, %v1047
        %1051 = vrot.lane.b32.xlu0 %v712, 112
        %v1052 = vpop.permute.xlu0 %1051
        %1053 = vrot.lane.b32.xlu0 %v709, 80
        %v1054 = vpop.permute.xlu0 %1053
        %v1055 = vsel %vm716, %v1052, 0
        %v1057 = vsel %vm716, %v1054, 0
        %1059 = vmatprep.subr.mxu0 0.0
        %1060 = vmatpush1.xpose.msra.mxu0 %v1057
        %1061 = vmatprep.subr.mxu0 0.0
        %1062 = vmatpush1.xpose.msra.mxu0 0.0
        %1063 = vmatprep.subr.mxu0 0.0
        %1064 = vmatpush1.xpose.msra.mxu0 0.0
        %1065 = vmatprep.subr.mxu0 0.0
        %1066 = vmatpush1.xpose.msra.mxu0 0.0
        %1067 = vmatprep.subr.mxu0 0.0
        %1068 = vmatpush1.xpose.msra.mxu0 0.0
        %1069 = vmatprep.subr.mxu0 0.0
        %1070 = vmatpush1.xpose.msra.mxu0 0.0
        %1071 = vmatprep.subr.mxu0 0.0
        %1072 = vmatpush1.xpose.msra.mxu0 0.0
        %1073 = vmatprep.subr.mxu0 0.0
        %1074 = vmatpush1.xpose.msra.mxu0 0.0
        %1075 = vmatprep.subr.mxu0 0.0
        %1076 = vmatpush1.xpose.msra.mxu0 0.0
        %1077 = vmatprep.subr.mxu0 0.0
        %1078 = vmatpush1.xpose.msra.mxu0 0.0
        %1079 = vmatprep.subr.mxu0 0.0
        %1080 = vmatpush1.xpose.msra.mxu0 0.0
        %1081 = vmatprep.subr.mxu0 0.0
        %1082 = vmatpush1.xpose.msra.mxu0 0.0
        %1083 = vmatprep.subr.mxu0 0.0
        %1084 = vmatpush1.xpose.msra.mxu0 0.0
        %1085 = vmatprep.subr.mxu0 0.0
        %1086 = vmatpush1.xpose.msra.mxu0 0.0
        %1087 = vmatprep.subr.mxu0 0.0
        %1088 = vmatpush1.xpose.msra.mxu0 0.0
        %1089 = vmatprep.subr.mxu0 0.0
        %1090 = vmatpush1.xpose.msra.mxu0 0.0
        %1091 = vmatprep.subr.mxu0 0.0
        %1092 = vmatpush1.xpose.msra.mxu0 0.0
        %1093 = vmatprep.subr.mxu0 0.0
        %1094 = vmatpush1.xpose.msra.mxu0 0.0
        %1095 = vmatprep.subr.mxu0 0.0
        %1096 = vmatpush1.xpose.msra.mxu0 0.0
        %1097 = vmatprep.subr.mxu0 0.0
        %1098 = vmatpush1.xpose.msra.mxu0 0.0
        %1099 = vmatprep.subr.mxu0 0.0
        %1100 = vmatpush1.xpose.msra.mxu0 0.0
        %1101 = vmatprep.subr.mxu0 0.0
        %1102 = vmatpush1.xpose.msra.mxu0 0.0
        %1103 = vmatprep.subr.mxu0 0.0
        %1104 = vmatpush1.xpose.msra.mxu0 0.0
        %1105 = vmatprep.subr.mxu0 0.0
        %1106 = vmatpush1.xpose.msra.mxu0 0.0
        %1107 = vmatprep.subr.mxu0 0.0
        %1108 = vmatpush1.xpose.msra.mxu0 0.0
        %1109 = vmatprep.subr.mxu0 0.0
        %1110 = vmatpush1.xpose.msra.mxu0 0.0
        %1111 = vmatprep.subr.mxu0 0.0
        %1112 = vmatpush1.xpose.msra.mxu0 0.0
        %1113 = vmatprep.subr.mxu0 0.0
        %1114 = vmatpush1.xpose.msra.mxu0 0.0
        %1115 = vmatprep.subr.mxu0 0.0
        %1116 = vmatpush1.xpose.msra.mxu0 0.0
        %1117 = vmatprep.subr.mxu0 0.0
        %1118 = vmatpush1.xpose.msra.mxu0 0.0
        %1119 = vmatprep.subr.mxu0 0.0
        %1120 = vmatpush1.xpose.msra.mxu0 0.0
        %1121 = vmatprep.subr.mxu0 0.0
        %1122 = vmatpush1.xpose.msra.mxu0 0.0
        %1123 = vmatprep.mubr.f32.mxu0 0.0
        %1124 = vmatmul.mubr.f32.gmra.mrb[0].mxu0 %v1055
        %v1125 = vpop.f32.mrb[0].mxu0
        %v1126 = vadd.f32 0.0, %v1125
        %v1127 = vpop.f32.mrb[0].mxu0
        %1128 = vdwg.mxu0
        %v1129 = vsel %vm716, %v1126, -inf
        %1130 = vmax.xlane.f32.xlu0 %v1129
        %v1131 = vpop.xlane.xlu0 %1130
        %v1132 = vsub.f32 %v1126, %v1131
        %v1133 = vmul.f32 %v1132, 1.442695
        %v1134 = vpow.pop %v1133
        %v1135 = vsel %vm716, %v1134, 0.0
        %1136 = vadd.xlane.f32.xlu0 %v1135
        %v1137 = vpop.xlane.xlu0 %1136
        %1138 = vrot.lane.b32.xlu0 %v709, 48
        %v1139 = vpop.permute.xlu0 %1138
        %v1142 = vsel %vm716, %v1134, 0
        %1144 = vmatprep.subr.mxu0 0.0
        %1145 = vmatpush1.msra.mxu0 %v1139
        %1146 = vmatprep.subr.mxu0 0.0
        %1147 = vmatpush1.msra.mxu0 0.0
        %1148 = vmatprep.subr.mxu0 0.0
        %1149 = vmatpush1.msra.mxu0 0.0
        %1150 = vmatprep.subr.mxu0 0.0
        %1151 = vmatpush1.msra.mxu0 0.0
        %1152 = vmatprep.subr.mxu0 0.0
        %1153 = vmatpush1.msra.mxu0 0.0
        %1154 = vmatprep.subr.mxu0 0.0
        %1155 = vmatpush1.msra.mxu0 0.0
        %1156 = vmatprep.subr.mxu0 0.0
        %1157 = vmatpush1.msra.mxu0 0.0
        %1158 = vmatprep.subr.mxu0 0.0
        %1159 = vmatpush1.msra.mxu0 0.0
        %1160 = vmatprep.subr.mxu0 0.0
        %1161 = vmatpush1.msra.mxu0 0.0
        %1162 = vmatprep.subr.mxu0 0.0
        %1163 = vmatpush1.msra.mxu0 0.0
        %1164 = vmatprep.subr.mxu0 0.0
        %1165 = vmatpush1.msra.mxu0 0.0
        %1166 = vmatprep.subr.mxu0 0.0
        %1167 = vmatpush1.msra.mxu0 0.0
        %1168 = vmatprep.subr.mxu0 0.0
        %1169 = vmatpush1.msra.mxu0 0.0
        %1170 = vmatprep.subr.mxu0 0.0
        %1171 = vmatpush1.msra.mxu0 0.0
        %1172 = vmatprep.subr.mxu0 0.0
        %1173 = vmatpush1.msra.mxu0 0.0
        %1174 = vmatprep.subr.mxu0 0.0
        %1175 = vmatpush1.msra.mxu0 0.0
        %1176 = vmatprep.subr.mxu0 0.0
        %1177 = vmatpush1.msra.mxu0 0.0
        %1178 = vmatprep.subr.mxu0 0.0
        %1179 = vmatpush1.msra.mxu0 0.0
        %1180 = vmatprep.subr.mxu0 0.0
        %1181 = vmatpush1.msra.mxu0 0.0
        %1182 = vmatprep.subr.mxu0 0.0
        %1183 = vmatpush1.msra.mxu0 0.0
        %1184 = vmatprep.subr.mxu0 0.0
        %1185 = vmatpush1.msra.mxu0 0.0
        %1186 = vmatprep.subr.mxu0 0.0
        %1187 = vmatpush1.msra.mxu0 0.0
        %1188 = vmatprep.subr.mxu0 0.0
        %1189 = vmatpush1.msra.mxu0 0.0
        %1190 = vmatprep.subr.mxu0 0.0
        %1191 = vmatpush1.msra.mxu0 0.0
        %1192 = vmatprep.subr.mxu0 0.0
        %1193 = vmatpush1.msra.mxu0 0.0
        %1194 = vmatprep.subr.mxu0 0.0
        %1195 = vmatpush1.msra.mxu0 0.0
        %1196 = vmatprep.subr.mxu0 0.0
        %1197 = vmatpush1.msra.mxu0 0.0
        %1198 = vmatprep.subr.mxu0 0.0
        %1199 = vmatpush1.msra.mxu0 0.0
        %1200 = vmatprep.subr.mxu0 0.0
        %1201 = vmatpush1.msra.mxu0 0.0
        %1202 = vmatprep.subr.mxu0 0.0
        %1203 = vmatpush1.msra.mxu0 0.0
        %1204 = vmatprep.subr.mxu0 0.0
        %1205 = vmatpush1.msra.mxu0 0.0
        %1206 = vmatprep.subr.mxu0 0.0
        %1207 = vmatpush1.msra.mxu0 0.0
        %1208 = vmatprep.mubr.f32.mxu0 0.0
        %1209 = vmatmul.mubr.f32.gmra.mrb[0].mxu0 %v1142
        %v1210 = vpop.f32.mrb[0].mxu0
        %v1211 = vadd.f32 0.0, %v1210
        %v1212 = vpop.f32.mrb[0].mxu0
        %1213 = vdwg.mxu0
        %v1214 = vrcp.pop %v1137
        %v1215 = vmul.f32 %v1211, %v1214
        %1217 = vrot.lane.b32.xlu0 %v1215, 16
        %v1218 = vpop.permute.xlu0 %1217
        %vm1220 = vcmask 195712
        %1221 = vst.msk [vmem:[#allocation2] sm:$0xff] %vm1220, %v1218
        %1222 = vrot.lane.b32.xlu0 %v712, 104
        %v1223 = vpop.permute.xlu0 %1222
        %1224 = vrot.lane.b32.xlu0 %v709, 72
        %v1225 = vpop.permute.xlu0 %1224
        %v1226 = vsel %vm716, %v1223, 0
        %v1228 = vsel %vm716, %v1225, 0
        %1230 = vmatprep.subr.mxu0 0.0
        %1231 = vmatpush1.xpose.msra.mxu0 %v1228
        %1232 = vmatprep.subr.mxu0 0.0
        %1233 = vmatpush1.xpose.msra.mxu0 0.0
        %1234 = vmatprep.subr.mxu0 0.0
        %1235 = vmatpush1.xpose.msra.mxu0 0.0
        %1236 = vmatprep.subr.mxu0 0.0
        %1237 = vmatpush1.xpose.msra.mxu0 0.0
        %1238 = vmatprep.subr.mxu0 0.0
        %1239 = vmatpush1.xpose.msra.mxu0 0.0
        %1240 = vmatprep.subr.mxu0 0.0
        %1241 = vmatpush1.xpose.msra.mxu0 0.0
        %1242 = vmatprep.subr.mxu0 0.0
        %1243 = vmatpush1.xpose.msra.mxu0 0.0
        %1244 = vmatprep.subr.mxu0 0.0
        %1245 = vmatpush1.xpose.msra.mxu0 0.0
        %1246 = vmatprep.subr.mxu0 0.0
        %1247 = vmatpush1.xpose.msra.mxu0 0.0
        %1248 = vmatprep.subr.mxu0 0.0
        %1249 = vmatpush1.xpose.msra.mxu0 0.0
        %1250 = vmatprep.subr.mxu0 0.0
        %1251 = vmatpush1.xpose.msra.mxu0 0.0
        %1252 = vmatprep.subr.mxu0 0.0
        %1253 = vmatpush1.xpose.msra.mxu0 0.0
        %1254 = vmatprep.subr.mxu0 0.0
        %1255 = vmatpush1.xpose.msra.mxu0 0.0
        %1256 = vmatprep.subr.mxu0 0.0
        %1257 = vmatpush1.xpose.msra.mxu0 0.0
        %1258 = vmatprep.subr.mxu0 0.0
        %1259 = vmatpush1.xpose.msra.mxu0 0.0
        %1260 = vmatprep.subr.mxu0 0.0
        %1261 = vmatpush1.xpose.msra.mxu0 0.0
        %1262 = vmatprep.subr.mxu0 0.0
        %1263 = vmatpush1.xpose.msra.mxu0 0.0
        %1264 = vmatprep.subr.mxu0 0.0
        %1265 = vmatpush1.xpose.msra.mxu0 0.0
        %1266 = vmatprep.subr.mxu0 0.0
        %1267 = vmatpush1.xpose.msra.mxu0 0.0
        %1268 = vmatprep.subr.mxu0 0.0
        %1269 = vmatpush1.xpose.msra.mxu0 0.0
        %1270 = vmatprep.subr.mxu0 0.0
        %1271 = vmatpush1.xpose.msra.mxu0 0.0
        %1272 = vmatprep.subr.mxu0 0.0
        %1273 = vmatpush1.xpose.msra.mxu0 0.0
        %1274 = vmatprep.subr.mxu0 0.0
        %1275 = vmatpush1.xpose.msra.mxu0 0.0
        %1276 = vmatprep.subr.mxu0 0.0
        %1277 = vmatpush1.xpose.msra.mxu0 0.0
        %1278 = vmatprep.subr.mxu0 0.0
        %1279 = vmatpush1.xpose.msra.mxu0 0.0
        %1280 = vmatprep.subr.mxu0 0.0
        %1281 = vmatpush1.xpose.msra.mxu0 0.0
        %1282 = vmatprep.subr.mxu0 0.0
        %1283 = vmatpush1.xpose.msra.mxu0 0.0
        %1284 = vmatprep.subr.mxu0 0.0
        %1285 = vmatpush1.xpose.msra.mxu0 0.0
        %1286 = vmatprep.subr.mxu0 0.0
        %1287 = vmatpush1.xpose.msra.mxu0 0.0
        %1288 = vmatprep.subr.mxu0 0.0
        %1289 = vmatpush1.xpose.msra.mxu0 0.0
        %1290 = vmatprep.subr.mxu0 0.0
        %1291 = vmatpush1.xpose.msra.mxu0 0.0
        %1292 = vmatprep.subr.mxu0 0.0
        %1293 = vmatpush1.xpose.msra.mxu0 0.0
        %1294 = vmatprep.mubr.f32.mxu0 0.0
        %1295 = vmatmul.mubr.f32.gmra.mrb[0].mxu0 %v1226
        %v1296 = vpop.f32.mrb[0].mxu0
        %v1297 = vadd.f32 0.0, %v1296
        %v1298 = vpop.f32.mrb[0].mxu0
        %1299 = vdwg.mxu0
        %v1300 = vsel %vm716, %v1297, -inf
        %1301 = vmax.xlane.f32.xlu0 %v1300
        %v1302 = vpop.xlane.xlu0 %1301
        %v1303 = vsub.f32 %v1297, %v1302
        %v1304 = vmul.f32 %v1303, 1.442695
        %v1305 = vpow.pop %v1304
        %v1306 = vsel %vm716, %v1305, 0.0
        %1307 = vadd.xlane.f32.xlu0 %v1306
        %v1308 = vpop.xlane.xlu0 %1307
        %1309 = vrot.lane.b32.xlu0 %v709, 40
        %v1310 = vpop.permute.xlu0 %1309
        %v1313 = vsel %vm716, %v1305, 0
        %1315 = vmatprep.subr.mxu0 0.0
        %1316 = vmatpush1.msra.mxu0 %v1310
        %1317 = vmatprep.subr.mxu0 0.0
        %1318 = vmatpush1.msra.mxu0 0.0
        %1319 = vmatprep.subr.mxu0 0.0
        %1320 = vmatpush1.msra.mxu0 0.0
        %1321 = vmatprep.subr.mxu0 0.0
        %1322 = vmatpush1.msra.mxu0 0.0
        %1323 = vmatprep.subr.mxu0 0.0
        %1324 = vmatpush1.msra.mxu0 0.0
        %1325 = vmatprep.subr.mxu0 0.0
        %1326 = vmatpush1.msra.mxu0 0.0
        %1327 = vmatprep.subr.mxu0 0.0
        %1328 = vmatpush1.msra.mxu0 0.0
        %1329 = vmatprep.subr.mxu0 0.0
        %1330 = vmatpush1.msra.mxu0 0.0
        %1331 = vmatprep.subr.mxu0 0.0
        %1332 = vmatpush1.msra.mxu0 0.0
        %1333 = vmatprep.subr.mxu0 0.0
        %1334 = vmatpush1.msra.mxu0 0.0
        %1335 = vmatprep.subr.mxu0 0.0
        %1336 = vmatpush1.msra.mxu0 0.0
        %1337 = vmatprep.subr.mxu0 0.0
        %1338 = vmatpush1.msra.mxu0 0.0
        %1339 = vmatprep.subr.mxu0 0.0
        %1340 = vmatpush1.msra.mxu0 0.0
        %1341 = vmatprep.subr.mxu0 0.0
        %1342 = vmatpush1.msra.mxu0 0.0
        %1343 = vmatprep.subr.mxu0 0.0
        %1344 = vmatpush1.msra.mxu0 0.0
        %1345 = vmatprep.subr.mxu0 0.0
        %1346 = vmatpush1.msra.mxu0 0.0
        %1347 = vmatprep.subr.mxu0 0.0
        %1348 = vmatpush1.msra.mxu0 0.0
        %1349 = vmatprep.subr.mxu0 0.0
        %1350 = vmatpush1.msra.mxu0 0.0
        %1351 = vmatprep.subr.mxu0 0.0
        %1352 = vmatpush1.msra.mxu0 0.0
        %1353 = vmatprep.subr.mxu0 0.0
        %1354 = vmatpush1.msra.mxu0 0.0
        %1355 = vmatprep.subr.mxu0 0.0
        %1356 = vmatpush1.msra.mxu0 0.0
        %1357 = vmatprep.subr.mxu0 0.0
        %1358 = vmatpush1.msra.mxu0 0.0
        %1359 = vmatprep.subr.mxu0 0.0
        %1360 = vmatpush1.msra.mxu0 0.0
        %1361 = vmatprep.subr.mxu0 0.0
        %1362 = vmatpush1.msra.mxu0 0.0
        %1363 = vmatprep.subr.mxu0 0.0
        %1364 = vmatpush1.msra.mxu0 0.0
        %1365 = vmatprep.subr.mxu0 0.0
        %1366 = vmatpush1.msra.mxu0 0.0
        %1367 = vmatprep.subr.mxu0 0.0
        %1368 = vmatpush1.msra.mxu0 0.0
        %1369 = vmatprep.subr.mxu0 0.0
        %1370 = vmatpush1.msra.mxu0 0.0
        %1371 = vmatprep.subr.mxu0 0.0
        %1372 = vmatpush1.msra.mxu0 0.0
        %1373 = vmatprep.subr.mxu0 0.0
        %1374 = vmatpush1.msra.mxu0 0.0
        %1375 = vmatprep.subr.mxu0 0.0
        %1376 = vmatpush1.msra.mxu0 0.0
        %1377 = vmatprep.subr.mxu0 0.0
        %1378 = vmatpush1.msra.mxu0 0.0
        %1379 = vmatprep.mubr.f32.mxu0 0.0
        %1380 = vmatmul.mubr.f32.gmra.mrb[0].mxu0 %v1313
        %v1381 = vpop.f32.mrb[0].mxu0
        %v1382 = vadd.f32 0.0, %v1381
        %v1383 = vpop.f32.mrb[0].mxu0
        %1384 = vdwg.mxu0
        %v1385 = vrcp.pop %v1308
        %v1386 = vmul.f32 %v1382, %v1385
        %1388 = vrot.lane.b32.xlu0 %v1386, 24
        %v1389 = vpop.permute.xlu0 %1388
        %vm1391 = vcmask 261312
        %1392 = vst.msk [vmem:[#allocation2] sm:$0xff] %vm1391, %v1389
        %v1393 = vld [vmem:[#allocation2] sm:$0xff]
        %v1394 = vld [vmem:[%s5] sm:$0xff]
        %v1395 = vld [vmem:[%s5 + $0x8] sm:$0xff]
        %v1396 = vld [vmem:[%s5 + $0x10] sm:$0xff]
        %v1397 = vld [vmem:[%s5 + $0x18] sm:$0xff]
        %v1398 = vld [vmem:[%s6] sm:$0x1]
        %v1400 = vlaneseq
        %v1401 = vshrl.u32 %v1400, 7
        %v1402 = vsub.s32 0, %v1401
        %v1403 = vrot.slane %v1398, %v1402
        %v1406 = vsel %vm638, %v1393, 0
        %1408 = vmatprep.subr.mxu0 0.0
        %1409 = vmatpush1.msra.mxu0 %v1394
        %1410 = vmatprep.subr.mxu0 0.0
        %1411 = vmatpush1.msra.mxu0 %v1395
        %1412 = vmatprep.subr.mxu0 0.0
        %1413 = vmatpush1.msra.mxu0 %v1396
        %1414 = vmatprep.subr.mxu0 0.0
        %1415 = vmatpush1.msra.mxu0 %v1397
        %1416 = vmatprep.subr.mxu0 0.0
        %1417 = vmatpush1.msra.mxu0 0.0
        %1418 = vmatprep.subr.mxu0 0.0
        %1419 = vmatpush1.msra.mxu0 0.0
        %1420 = vmatprep.subr.mxu0 0.0
        %1421 = vmatpush1.msra.mxu0 0.0
        %1422 = vmatprep.subr.mxu0 0.0
        %1423 = vmatpush1.msra.mxu0 0.0
        %1424 = vmatprep.subr.mxu0 0.0
        %1425 = vmatpush1.msra.mxu0 0.0
        %1426 = vmatprep.subr.mxu0 0.0
        %1427 = vmatpush1.msra.mxu0 0.0
        %1428 = vmatprep.subr.mxu0 0.0
        %1429 = vmatpush1.msra.mxu0 0.0
        %1430 = vmatprep.subr.mxu0 0.0
        %1431 = vmatpush1.msra.mxu0 0.0
        %1432 = vmatprep.subr.mxu0 0.0
        %1433 = vmatpush1.msra.mxu0 0.0
        %1434 = vmatprep.subr.mxu0 0.0
        %1435 = vmatpush1.msra.mxu0 0.0
        %1436 = vmatprep.subr.mxu0 0.0
        %1437 = vmatpush1.msra.mxu0 0.0
        %1438 = vmatprep.subr.mxu0 0.0
        %1439 = vmatpush1.msra.mxu0 0.0
        %1440 = vmatprep.subr.mxu0 0.0
        %1441 = vmatpush1.msra.mxu0 0.0
        %1442 = vmatprep.subr.mxu0 0.0
        %1443 = vmatpush1.msra.mxu0 0.0
        %1444 = vmatprep.subr.mxu0 0.0
        %1445 = vmatpush1.msra.mxu0 0.0
        %1446 = vmatprep.subr.mxu0 0.0
        %1447 = vmatpush1.msra.mxu0 0.0
        %1448 = vmatprep.subr.mxu0 0.0
        %1449 = vmatpush1.msra.mxu0 0.0
        %1450 = vmatprep.subr.mxu0 0.0
        %1451 = vmatpush1.msra.mxu0 0.0
        %1452 = vmatprep.subr.mxu0 0.0
        %1453 = vmatpush1.msra.mxu0 0.0
        %1454 = vmatprep.subr.mxu0 0.0
        %1455 = vmatpush1.msra.mxu0 0.0
        %1456 = vmatprep.subr.mxu0 0.0
        %1457 = vmatpush1.msra.mxu0 0.0
        %1458 = vmatprep.subr.mxu0 0.0
        %1459 = vmatpush1.msra.mxu0 0.0
        %1460 = vmatprep.subr.mxu0 0.0
        %1461 = vmatpush1.msra.mxu0 0.0
        %1462 = vmatprep.subr.mxu0 0.0
        %1463 = vmatpush1.msra.mxu0 0.0
        %1464 = vmatprep.subr.mxu0 0.0
        %1465 = vmatpush1.msra.mxu0 0.0
        %1466 = vmatprep.subr.mxu0 0.0
        %1467 = vmatpush1.msra.mxu0 0.0
        %1468 = vmatprep.subr.mxu0 0.0
        %1469 = vmatpush1.msra.mxu0 0.0
        %1470 = vmatprep.subr.mxu0 0.0
        %1471 = vmatpush1.msra.mxu0 0.0
        %1472 = vmatprep.mubr.f32.mxu0 0.0
        %1473 = vmatmul.mubr.f32.gmra.mrb[0].mxu0 %v1406
        %v1474 = vpop.f32.mrb[0].mxu0
        %v1475 = vadd.f32 %v1403, %v1474
        %v1476 = vpop.f32.mrb[0].mxu0
        %1477 = vdwg.mxu0
        %v1478 = vadd.f32 %v624, %v1475
        %v1479 = vld [vmem:[%s11] sm:$0x1]
        %v1480 = vld [vmem:[%s12] sm:$0x1]
        %v1481 = vsel %vm638, %v1478, 0.0
        %1482 = vadd.xlane.f32.xlu0 %v1481
        %v1483 = vpop.xlane.xlu0 %1482
        %v1484 = vrcp.pop 32.0
        %v1485 = vmul.f32 %v1483, %v1484
        %v1486 = vsub.f32 %v1478, %v1485
        %v1487 = vmul.f32 %v1486, %v1486
        %v1488 = vsel %vm638, %v1487, 0.0
        %1489 = vadd.xlane.f32.xlu0 %v1488
        %v1490 = vpop.xlane.xlu0 %1489
        %v1491 = vmul.f32 %v1490, %v1484
        %v1492 = vadd.f32 %v1491, 1e-05
        %v1493 = vrsqrt.pop %v1492
        %v1494 = vmul.f32 %v1486, %v1493
        %v1496 = vlaneseq
        %v1497 = vshrl.u32 %v1496, 7
        %v1498 = vsub.s32 0, %v1497
        %v1499 = vrot.slane %v1479, %v1498
        %v1501 = vmul.f32 %v1494, %v1499
        %v1503 = vlaneseq
        %v1504 = vshrl.u32 %v1503, 7
        %v1505 = vsub.s32 0, %v1504
        %v1506 = vrot.slane %v1480, %v1505
        %v1508 = vadd.f32 %v1501, %v1506
        %v1509 = vld [vmem:[%s7] sm:$0xff]
        %v1510 = vld [vmem:[%s7 + $0x8] sm:$0xff]
        %v1511 = vld [vmem:[%s7 + $0x10] sm:$0xff]
        %v1512 = vld [vmem:[%s7 + $0x18] sm:$0xff]
        %v1513 = vld [vmem:[%s7 + $0x20] sm:$0xff]
        %v1514 = vld [vmem:[%s7 + $0x28] sm:$0xff]
        %v1515 = vld [vmem:[%s7 + $0x30] sm:$0xff]
        %v1516 = vld [vmem:[%s7 + $0x38] sm:$0xff]
        %v1517 = vld [vmem:[%s7 + $0x40] sm:$0xff]
        %v1518 = vld [vmem:[%s7 + $0x48] sm:$0xff]
        %v1519 = vld [vmem:[%s7 + $0x50] sm:$0xff]
        %v1520 = vld [vmem:[%s7 + $0x58] sm:$0xff]
        %v1521 = vld [vmem:[%s7 + $0x60] sm:$0xff]
        %v1522 = vld [vmem:[%s7 + $0x68] sm:$0xff]
        %v1523 = vld [vmem:[%s7 + $0x70] sm:$0xff]
        %v1524 = vld [vmem:[%s7 + $0x78] sm:$0xff]
        %v1525 = vld [vmem:[%s7 + $0x80] sm:$0xff]
        %v1526 = vld [vmem:[%s7 + $0x88] sm:$0xff]
        %v1527 = vld [vmem:[%s7 + $0x90] sm:$0xff]
        %v1528 = vld [vmem:[%s7 + $0x98] sm:$0xff]
        %v1529 = vld [vmem:[%s7 + $0xa0] sm:$0xff]
        %v1530 = vld [vmem:[%s7 + $0xa8] sm:$0xff]
        %v1531 = vld [vmem:[%s7 + $0xb0] sm:$0xff]
        %v1532 = vld [vmem:[%s7 + $0xb8] sm:$0xff]
        %v1533 = vld [vmem:[%s7 + $0xc0] sm:$0xff]
        %v1534 = vld [vmem:[%s7 + $0xc8] sm:$0xff]
        %v1535 = vld [vmem:[%s7 + $0xd0] sm:$0xff]
        %v1536 = vld [vmem:[%s7 + $0xd8] sm:$0xff]
        %v1537 = vld [vmem:[%s7 + $0xe0] sm:$0xff]
        %v1538 = vld [vmem:[%s7 + $0xe8] sm:$0xff]
        %v1539 = vld [vmem:[%s7 + $0xf0] sm:$0xff]
        %v1540 = vld [vmem:[%s7 + $0xf8] sm:$0xff]
        %v1541 = vld [vmem:[%s7 + $0x100] sm:$0xff]
        %v1542 = vld [vmem:[%s7 + $0x108] sm:$0xff]
        %v1543 = vld [vmem:[%s7 + $0x110] sm:$0xff]
        %v1544 = vld [vmem:[%s7 + $0x118] sm:$0xff]
        %v1545 = vld [vmem:[%s7 + $0x120] sm:$0xff]
        %v1546 = vld [vmem:[%s7 + $0x128] sm:$0xff]
        %v1547 = vld [vmem:[%s7 + $0x130] sm:$0xff]
        %v1548 = vld [vmem:[%s7 + $0x138] sm:$0xff]
        %v1549 = vld [vmem:[%s7 + $0x140] sm:$0xff]
        %v1550 = vld [vmem:[%s7 + $0x148] sm:$0xff]
        %v1551 = vld [vmem:[%s7 + $0x150] sm:$0xff]
        %v1552 = vld [vmem:[%s7 + $0x158] sm:$0xff]
        %v1553 = vld [vmem:[%s7 + $0x160] sm:$0xff]
        %v1554 = vld [vmem:[%s7 + $0x168] sm:$0xff]
        %v1555 = vld [vmem:[%s7 + $0x170] sm:$0xff]
        %v1556 = vld [vmem:[%s7 + $0x178] sm:$0xff]
        %v1557 = vld [vmem:[%s7 + $0x180] sm:$0xff]
        %v1558 = vld [vmem:[%s7 + $0x188] sm:$0xff]
        %v1559 = vld [vmem:[%s7 + $0x190] sm:$0xff]
        %v1560 = vld [vmem:[%s7 + $0x198] sm:$0xff]
        %v1561 = vld [vmem:[%s7 + $0x1a0] sm:$0xff]
        %v1562 = vld [vmem:[%s7 + $0x1a8] sm:$0xff]
        %v1563 = vld [vmem:[%s7 + $0x1b0] sm:$0xff]
        %v1564 = vld [vmem:[%s7 + $0x1b8] sm:$0xff]
        %v1565 = vld [vmem:[%s7 + $0x1c0] sm:$0xff]
        %v1566 = vld [vmem:[%s7 + $0x1c8] sm:$0xff]
        %v1567 = vld [vmem:[%s7 + $0x1d0] sm:$0xff]
        %v1568 = vld [vmem:[%s7 + $0x1d8] sm:$0xff]
        %v1569 = vld [vmem:[%s7 + $0x1e0] sm:$0xff]
        %v1570 = vld [vmem:[%s7 + $0x1e8] sm:$0xff]
        %v1571 = vld [vmem:[%s7 + $0x1f0] sm:$0xff]
        %v1572 = vld [vmem:[%s7 + $0x1f8] sm:$0xff]
        %v1573 = vld [vmem:[%s8] sm:$0xff]
        %v1574 = vld [vmem:[%s8 + $0x8] sm:$0xff]
        %v1577 = vlaneseq
        %v1578 = vshrl.u32 %v1577, 7
        %v1579 = vsub.s32 0, %v1578
        %v1580 = vrot.slane %v1573, %v1579
        %v1581 = vlaneseq
        %v1582 = vshrl.u32 %v1581, 7
        %v1583 = vsub.s32 1, %v1582
        %v1584 = vrot.slane %v1573, %v1583
        %v1585 = vlaneseq
        %v1586 = vshrl.u32 %v1585, 7
        %v1587 = vsub.s32 2, %v1586
        %v1588 = vrot.slane %v1573, %v1587
        %v1589 = vlaneseq
        %v1590 = vshrl.u32 %v1589, 7
        %v1591 = vsub.s32 3, %v1590
        %v1592 = vrot.slane %v1573, %v1591
        %v1593 = vlaneseq
        %v1594 = vshrl.u32 %v1593, 7
        %v1595 = vsub.s32 4, %v1594
        %v1596 = vrot.slane %v1573, %v1595
        %v1597 = vlaneseq
        %v1598 = vshrl.u32 %v1597, 7
        %v1599 = vsub.s32 5, %v1598
        %v1600 = vrot.slane %v1573, %v1599
        %v1601 = vlaneseq
        %v1602 = vshrl.u32 %v1601, 7
        %v1603 = vsub.s32 6, %v1602
        %v1604 = vrot.slane %v1573, %v1603
        %v1605 = vlaneseq
        %v1606 = vshrl.u32 %v1605, 7
        %v1607 = vsub.s32 7, %v1606
        %v1608 = vrot.slane %v1573, %v1607
        %v1609 = vlaneseq
        %v1610 = vshrl.u32 %v1609, 7
        %v1611 = vsub.s32 0, %v1610
        %v1612 = vrot.slane %v1574, %v1611
        %v1613 = vlaneseq
        %v1614 = vshrl.u32 %v1613, 7
        %v1615 = vsub.s32 1, %v1614
        %v1616 = vrot.slane %v1574, %v1615
        %v1617 = vlaneseq
        %v1618 = vshrl.u32 %v1617, 7
        %v1619 = vsub.s32 2, %v1618
        %v1620 = vrot.slane %v1574, %v1619
        %v1621 = vlaneseq
        %v1622 = vshrl.u32 %v1621, 7
        %v1623 = vsub.s32 3, %v1622
        %v1624 = vrot.slane %v1574, %v1623
        %v1625 = vlaneseq
        %v1626 = vshrl.u32 %v1625, 7
        %v1627 = vsub.s32 4, %v1626
        %v1628 = vrot.slane %v1574, %v1627
        %v1629 = vlaneseq
        %v1630 = vshrl.u32 %v1629, 7
        %v1631 = vsub.s32 5, %v1630
        %v1632 = vrot.slane %v1574, %v1631
        %v1633 = vlaneseq
        %v1634 = vshrl.u32 %v1633, 7
        %v1635 = vsub.s32 6, %v1634
        %v1636 = vrot.slane %v1574, %v1635
        %v1637 = vlaneseq
        %v1638 = vshrl.u32 %v1637, 7
        %v1639 = vsub.s32 7, %v1638
        %v1640 = vrot.slane %v1574, %v1639
        %v1658 = vsel %vm638, %v1508, 0
        %1660 = vmatprep.subr.mxu0 %v1510
        %1661 = vmatpush1.msra.mxu0 %v1509
        %1662 = vmatprep.subr.mxu0 %v1526
        %1663 = vmatpush1.msra.mxu0 %v1525
        %1664 = vmatprep.subr.mxu0 %v1542
        %1665 = vmatpush1.msra.mxu0 %v1541
        %1666 = vmatprep.subr.mxu0 %v1558
        %1667 = vmatpush1.msra.mxu0 %v1557
        %1668 = vmatprep.subr.mxu0 0.0
        %1669 = vmatpush1.msra.mxu0 0.0
        %1670 = vmatprep.subr.mxu0 0.0
        %1671 = vmatpush1.msra.mxu0 0.0
        %1672 = vmatprep.subr.mxu0 0.0
        %1673 = vmatpush1.msra.mxu0 0.0
        %1674 = vmatprep.subr.mxu0 0.0
        %1675 = vmatpush1.msra.mxu0 0.0
        %1676 = vmatprep.subr.mxu0 0.0
        %1677 = vmatpush1.msra.mxu0 0.0
        %1678 = vmatprep.subr.mxu0 0.0
        %1679 = vmatpush1.msra.mxu0 0.0
        %1680 = vmatprep.subr.mxu0 0.0
        %1681 = vmatpush1.msra.mxu0 0.0
        %1682 = vmatprep.subr.mxu0 0.0
        %1683 = vmatpush1.msra.mxu0 0.0
        %1684 = vmatprep.subr.mxu0 0.0
        %1685 = vmatpush1.msra.mxu0 0.0
        %1686 = vmatprep.subr.mxu0 0.0
        %1687 = vmatpush1.msra.mxu0 0.0
        %1688 = vmatprep.subr.mxu0 0.0
        %1689 = vmatpush1.msra.mxu0 0.0
        %1690 = vmatprep.subr.mxu0 0.0
        %1691 = vmatpush1.msra.mxu0 0.0
        %1692 = vmatprep.subr.mxu0 0.0
        %1693 = vmatpush1.msra.mxu0 0.0
        %1694 = vmatprep.subr.mxu0 0.0
        %1695 = vmatpush1.msra.mxu0 0.0
        %1696 = vmatprep.subr.mxu0 0.0
        %1697 = vmatpush1.msra.mxu0 0.0
        %1698 = vmatprep.subr.mxu0 0.0
        %1699 = vmatpush1.msra.mxu0 0.0
        %1700 = vmatprep.subr.mxu0 0.0
        %1701 = vmatpush1.msra.mxu0 0.0
        %1702 = vmatprep.subr.mxu0 0.0
        %1703 = vmatpush1.msra.mxu0 0.0
        %1704 = vmatprep.subr.mxu0 0.0
        %1705 = vmatpush1.msra.mxu0 0.0
        %1706 = vmatprep.subr.mxu0 0.0
        %1707 = vmatpush1.msra.mxu0 0.0
        %1708 = vmatprep.subr.mxu0 0.0
        %1709 = vmatpush1.msra.mxu0 0.0
        %1710 = vmatprep.subr.mxu0 0.0
        %1711 = vmatpush1.msra.mxu0 0.0
        %1712 = vmatprep.subr.mxu0 0.0
        %1713 = vmatpush1.msra.mxu0 0.0
        %1714 = vmatprep.subr.mxu0 0.0
        %1715 = vmatpush1.msra.mxu0 0.0
        %1716 = vmatprep.subr.mxu0 0.0
        %1717 = vmatpush1.msra.mxu0 0.0
        %1718 = vmatprep.subr.mxu0 0.0
        %1719 = vmatpush1.msra.mxu0 0.0
        %1720 = vmatprep.subr.mxu0 0.0
        %1721 = vmatpush1.msra.mxu0 0.0
        %1722 = vmatprep.subr.mxu0 0.0
        %1723 = vmatpush1.msra.mxu0 0.0
        %1724 = vmatprep.mubr.f32.mxu0 0.0
        %1725 = vmatmul.mubr.f32.gmra.mrb[0].mxu0 %v1658
        %v1726 = vpop.f32.mrb[0].mxu0
        %v1727 = vadd.f32 %v1580, %v1726
        %v1728 = vpop.f32.mrb[0].mxu0
        %v1729 = vadd.f32 %v1584, %v1728
        %1730 = vdwg.mxu0
        %1731 = vmatprep.subr.mxu0 %v1512
        %1732 = vmatpush1.msra.mxu0 %v1511
        %1733 = vmatprep.subr.mxu0 %v1528
        %1734 = vmatpush1.msra.mxu0 %v1527
        %1735 = vmatprep.subr.mxu0 %v1544
        %1736 = vmatpush1.msra.mxu0 %v1543
        %1737 = vmatprep.subr.mxu0 %v1560
        %1738 = vmatpush1.msra.mxu0 %v1559
        %1739 = vmatprep.subr.mxu0 0.0
        %1740 = vmatpush1.msra.mxu0 0.0
        %1741 = vmatprep.subr.mxu0 0.0
        %1742 = vmatpush1.msra.mxu0 0.0
        %1743 = vmatprep.subr.mxu0 0.0
        %1744 = vmatpush1.msra.mxu0 0.0
        %1745 = vmatprep.subr.mxu0 0.0
        %1746 = vmatpush1.msra.mxu0 0.0
        %1747 = vmatprep.subr.mxu0 0.0
        %1748 = vmatpush1.msra.mxu0 0.0
        %1749 = vmatprep.subr.mxu0 0.0
        %1750 = vmatpush1.msra.mxu0 0.0
        %1751 = vmatprep.subr.mxu0 0.0
        %1752 = vmatpush1.msra.mxu0 0.0
        %1753 = vmatprep.subr.mxu0 0.0
        %1754 = vmatpush1.msra.mxu0 0.0
        %1755 = vmatprep.subr.mxu0 0.0
        %1756 = vmatpush1.msra.mxu0 0.0
        %1757 = vmatprep.subr.mxu0 0.0
        %1758 = vmatpush1.msra.mxu0 0.0
        %1759 = vmatprep.subr.mxu0 0.0
        %1760 = vmatpush1.msra.mxu0 0.0
        %1761 = vmatprep.subr.mxu0 0.0
        %1762 = vmatpush1.msra.mxu0 0.0
        %1763 = vmatprep.subr.mxu0 0.0
        %1764 = vmatpush1.msra.mxu0 0.0
        %1765 = vmatprep.subr.mxu0 0.0
        %1766 = vmatpush1.msra.mxu0 0.0
        %1767 = vmatprep.subr.mxu0 0.0
        %1768 = vmatpush1.msra.mxu0 0.0
        %1769 = vmatprep.subr.mxu0 0.0
        %1770 = vmatpush1.msra.mxu0 0.0
        %1771 = vmatprep.subr.mxu0 0.0
        %1772 = vmatpush1.msra.mxu0 0.0
        %1773 = vmatprep.subr.mxu0 0.0
        %1774 = vmatpush1.msra.mxu0 0.0
        %1775 = vmatprep.subr.mxu0 0.0
        %1776 = vmatpush1.msra.mxu0 0.0
        %1777 = vmatprep.subr.mxu0 0.0
        %1778 = vmatpush1.msra.mxu0 0.0
        %1779 = vmatprep.subr.mxu0 0.0
        %1780 = vmatpush1.msra.mxu0 0.0
        %1781 = vmatprep.subr.mxu0 0.0
        %1782 = vmatpush1.msra.mxu0 0.0
        %1783 = vmatprep.subr.mxu0 0.0
        %1784 = vmatpush1.msra.mxu0 0.0
        %1785 = vmatprep.subr.mxu0 0.0
        %1786 = vmatpush1.msra.mxu0 0.0
        %1787 = vmatprep.subr.mxu0 0.0
        %1788 = vmatpush1.msra.mxu0 0.0
        %1789 = vmatprep.subr.mxu0 0.0
        %1790 = vmatpush1.msra.mxu0 0.0
        %1791 = vmatprep.subr.mxu0 0.0
        %1792 = vmatpush1.msra.mxu0 0.0
        %1793 = vmatprep.subr.mxu0 0.0
        %1794 = vmatpush1.msra.mxu0 0.0
        %1795 = vmatprep.mubr.f32.mxu0 0.0
        %1796 = vmatmul.mubr.f32.gmra.mrb[0].mxu0 %v1658
        %v1797 = vpop.f32.mrb[0].mxu0
        %v1798 = vadd.f32 %v1588, %v1797
        %v1799 = vpop.f32.mrb[0].mxu0
        %v1800 = vadd.f32 %v1592, %v1799
        %1801 = vdwg.mxu0
        %1802 = vmatprep.subr.mxu0 %v1514
        %1803 = vmatpush1.msra.mxu0 %v1513
        %1804 = vmatprep.subr.mxu0 %v1530
        %1805 = vmatpush1.msra.mxu0 %v1529
        %1806 = vmatprep.subr.mxu0 %v1546
        %1807 = vmatpush1.msra.mxu0 %v1545
        %1808 = vmatprep.subr.mxu0 %v1562
        %1809 = vmatpush1.msra.mxu0 %v1561
        %1810 = vmatprep.subr.mxu0 0.0
        %1811 = vmatpush1.msra.mxu0 0.0
        %1812 = vmatprep.subr.mxu0 0.0
        %1813 = vmatpush1.msra.mxu0 0.0
        %1814 = vmatprep.subr.mxu0 0.0
        %1815 = vmatpush1.msra.mxu0 0.0
        %1816 = vmatprep.subr.mxu0 0.0
        %1817 = vmatpush1.msra.mxu0 0.0
        %1818 = vmatprep.subr.mxu0 0.0
        %1819 = vmatpush1.msra.mxu0 0.0
        %1820 = vmatprep.subr.mxu0 0.0
        %1821 = vmatpush1.msra.mxu0 0.0
        %1822 = vmatprep.subr.mxu0 0.0
        %1823 = vmatpush1.msra.mxu0 0.0
        %1824 = vmatprep.subr.mxu0 0.0
        %1825 = vmatpush1.msra.mxu0 0.0
        %1826 = vmatprep.subr.mxu0 0.0
        %1827 = vmatpush1.msra.mxu0 0.0
        %1828 = vmatprep.subr.mxu0 0.0
        %1829 = vmatpush1.msra.mxu0 0.0
        %1830 = vmatprep.subr.mxu0 0.0
        %1831 = vmatpush1.msra.mxu0 0.0
        %1832 = vmatprep.subr.mxu0 0.0
        %1833 = vmatpush1.msra.mxu0 0.0
        %1834 = vmatprep.subr.mxu0 0.0
        %1835 = vmatpush1.msra.mxu0 0.0
        %1836 = vmatprep.subr.mxu0 0.0
        %1837 = vmatpush1.msra.mxu0 0.0
        %1838 = vmatprep.subr.mxu0 0.0
        %1839 = vmatpush1.msra.mxu0 0.0
        %1840 = vmatprep.subr.mxu0 0.0
        %1841 = vmatpush1.msra.mxu0 0.0
        %1842 = vmatprep.subr.mxu0 0.0
        %1843 = vmatpush1.msra.mxu0 0.0
        %1844 = vmatprep.subr.mxu0 0.0
        %1845 = vmatpush1.msra.mxu0 0.0
        %1846 = vmatprep.subr.mxu0 0.0
        %1847 = vmatpush1.msra.mxu0 0.0
        %1848 = vmatprep.subr.mxu0 0.0
        %1849 = vmatpush1.msra.mxu0 0.0
        %1850 = vmatprep.subr.mxu0 0.0
        %1851 = vmatpush1.msra.mxu0 0.0
        %1852 = vmatprep.subr.mxu0 0.0
        %1853 = vmatpush1.msra.mxu0 0.0
        %1854 = vmatprep.subr.mxu0 0.0
        %1855 = vmatpush1.msra.mxu0 0.0
        %1856 = vmatprep.subr.mxu0 0.0
        %1857 = vmatpush1.msra.mxu0 0.0
        %1858 = vmatprep.subr.mxu0 0.0
        %1859 = vmatpush1.msra.mxu0 0.0
        %1860 = vmatprep.subr.mxu0 0.0
        %1861 = vmatpush1.msra.mxu0 0.0
        %1862 = vmatprep.subr.mxu0 0.0
        %1863 = vmatpush1.msra.mxu0 0.0
        %1864 = vmatprep.subr.mxu0 0.0
        %1865 = vmatpush1.msra.mxu0 0.0
        %1866 = vmatprep.mubr.f32.mxu0 0.0
        %1867 = vmatmul.mubr.f32.gmra.mrb[0].mxu0 %v1658
        %v1868 = vpop.f32.mrb[0].mxu0
        %v1869 = vadd.f32 %v1596, %v1868
        %v1870 = vpop.f32.mrb[0].mxu0
        %v1871 = vadd.f32 %v1600, %v1870
        %1872 = vdwg.mxu0
        %1873 = vmatprep.subr.mxu0 %v1516
        %1874 = vmatpush1.msra.mxu0 %v1515
        %1875 = vmatprep.subr.mxu0 %v1532
        %1876 = vmatpush1.msra.mxu0 %v1531
        %1877 = vmatprep.subr.mxu0 %v1548
        %1878 = vmatpush1.msra.mxu0 %v1547
        %1879 = vmatprep.subr.mxu0 %v1564
        %1880 = vmatpush1.msra.mxu0 %v1563
        %1881 = vmatprep.subr.mxu0 0.0
        %1882 = vmatpush1.msra.mxu0 0.0
        %1883 = vmatprep.subr.mxu0 0.0
        %1884 = vmatpush1.msra.mxu0 0.0
        %1885 = vmatprep.subr.mxu0 0.0
        %1886 = vmatpush1.msra.mxu0 0.0
        %1887 = vmatprep.subr.mxu0 0.0
        %1888 = vmatpush1.msra.mxu0 0.0
        %1889 = vmatprep.subr.mxu0 0.0
        %1890 = vmatpush1.msra.mxu0 0.0
        %1891 = vmatprep.subr.mxu0 0.0
        %1892 = vmatpush1.msra.mxu0 0.0
        %1893 = vmatprep.subr.mxu0 0.0
        %1894 = vmatpush1.msra.mxu0 0.0
        %1895 = vmatprep.subr.mxu0 0.0
        %1896 = vmatpush1.msra.mxu0 0.0
        %1897 = vmatprep.subr.mxu0 0.0
        %1898 = vmatpush1.msra.mxu0 0.0
        %1899 = vmatprep.subr.mxu0 0.0
        %1900 = vmatpush1.msra.mxu0 0.0
        %1901 = vmatprep.subr.mxu0 0.0
        %1902 = vmatpush1.msra.mxu0 0.0
        %1903 = vmatprep.subr.mxu0 0.0
        %1904 = vmatpush1.msra.mxu0 0.0
        %1905 = vmatprep.subr.mxu0 0.0
        %1906 = vmatpush1.msra.mxu0 0.0
        %1907 = vmatprep.subr.mxu0 0.0
        %1908 = vmatpush1.msra.mxu0 0.0
        %1909 = vmatprep.subr.mxu0 0.0
        %1910 = vmatpush1.msra.mxu0 0.0
        %1911 = vmatprep.subr.mxu0 0.0
        %1912 = vmatpush1.msra.mxu0 0.0
        %1913 = vmatprep.subr.mxu0 0.0
        %1914 = vmatpush1.msra.mxu0 0.0
        %1915 = vmatprep.subr.mxu0 0.0
        %1916 = vmatpush1.msra.mxu0 0.0
        %1917 = vmatprep.subr.mxu0 0.0
        %1918 = vmatpush1.msra.mxu0 0.0
        %1919 = vmatprep.subr.mxu0 0.0
        %1920 = vmatpush1.msra.mxu0 0.0
        %1921 = vmatprep.subr.mxu0 0.0
        %1922 = vmatpush1.msra.mxu0 0.0
        %1923 = vmatprep.subr.mxu0 0.0
        %1924 = vmatpush1.msra.mxu0 0.0
        %1925 = vmatprep.subr.mxu0 0.0
        %1926 = vmatpush1.msra.mxu0 0.0
        %1927 = vmatprep.subr.mxu0 0.0
        %1928 = vmatpush1.msra.mxu0 0.0
        %1929 = vmatprep.subr.mxu0 0.0
        %1930 = vmatpush1.msra.mxu0 0.0
        %1931 = vmatprep.subr.mxu0 0.0
        %1932 = vmatpush1.msra.mxu0 0.0
        %1933 = vmatprep.subr.mxu0 0.0
        %1934 = vmatpush1.msra.mxu0 0.0
        %1935 = vmatprep.subr.mxu0 0.0
        %1936 = vmatpush1.msra.mxu0 0.0
        %1937 = vmatprep.mubr.f32.mxu0 0.0
        %1938 = vmatmul.mubr.f32.gmra.mrb[0].mxu0 %v1658
        %v1939 = vpop.f32.mrb[0].mxu0
        %v1940 = vadd.f32 %v1604, %v1939
        %v1941 = vpop.f32.mrb[0].mxu0
        %v1942 = vadd.f32 %v1608, %v1941
        %1943 = vdwg.mxu0
        %1944 = vmatprep.subr.mxu0 %v1518
        %1945 = vmatpush1.msra.mxu0 %v1517
        %1946 = vmatprep.subr.mxu0 %v1534
        %1947 = vmatpush1.msra.mxu0 %v1533
        %1948 = vmatprep.subr.mxu0 %v1550
        %1949 = vmatpush1.msra.mxu0 %v1549
        %1950 = vmatprep.subr.mxu0 %v1566
        %1951 = vmatpush1.msra.mxu0 %v1565
        %1952 = vmatprep.subr.mxu0 0.0
        %1953 = vmatpush1.msra.mxu0 0.0
        %1954 = vmatprep.subr.mxu0 0.0
        %1955 = vmatpush1.msra.mxu0 0.0
        %1956 = vmatprep.subr.mxu0 0.0
        %1957 = vmatpush1.msra.mxu0 0.0
        %1958 = vmatprep.subr.mxu0 0.0
        %1959 = vmatpush1.msra.mxu0 0.0
        %1960 = vmatprep.subr.mxu0 0.0
        %1961 = vmatpush1.msra.mxu0 0.0
        %1962 = vmatprep.subr.mxu0 0.0
        %1963 = vmatpush1.msra.mxu0 0.0
        %1964 = vmatprep.subr.mxu0 0.0
        %1965 = vmatpush1.msra.mxu0 0.0
        %1966 = vmatprep.subr.mxu0 0.0
        %1967 = vmatpush1.msra.mxu0 0.0
        %1968 = vmatprep.subr.mxu0 0.0
        %1969 = vmatpush1.msra.mxu0 0.0
        %1970 = vmatprep.subr.mxu0 0.0
        %1971 = vmatpush1.msra.mxu0 0.0
        %1972 = vmatprep.subr.mxu0 0.0
        %1973 = vmatpush1.msra.mxu0 0.0
        %1974 = vmatprep.subr.mxu0 0.0
        %1975 = vmatpush1.msra.mxu0 0.0
        %1976 = vmatprep.subr.mxu0 0.0
        %1977 = vmatpush1.msra.mxu0 0.0
        %1978 = vmatprep.subr.mxu0 0.0
        %1979 = vmatpush1.msra.mxu0 0.0
        %1980 = vmatprep.subr.mxu0 0.0
        %1981 = vmatpush1.msra.mxu0 0.0
        %1982 = vmatprep.subr.mxu0 0.0
        %1983 = vmatpush1.msra.mxu0 0.0
        %1984 = vmatprep.subr.mxu0 0.0
        %1985 = vmatpush1.msra.mxu0 0.0
        %1986 = vmatprep.subr.mxu0 0.0
        %1987 = vmatpush1.msra.mxu0 0.0
        %1988 = vmatprep.subr.mxu0 0.0
        %1989 = vmatpush1.msra.mxu0 0.0
        %1990 = vmatprep.subr.mxu0 0.0
        %1991 = vmatpush1.msra.mxu0 0.0
        %1992 = vmatprep.subr.mxu0 0.0
        %1993 = vmatpush1.msra.mxu0 0.0
        %1994 = vmatprep.subr.mxu0 0.0
        %1995 = vmatpush1.msra.mxu0 0.0
        %1996 = vmatprep.subr.mxu0 0.0
        %1997 = vmatpush1.msra.mxu0 0.0
        %1998 = vmatprep.subr.mxu0 0.0
        %1999 = vmatpush1.msra.mxu0 0.0
        %2000 = vmatprep.subr.mxu0 0.0
        %2001 = vmatpush1.msra.mxu0 0.0
        %2002 = vmatprep.subr.mxu0 0.0
        %2003 = vmatpush1.msra.mxu0 0.0
        %2004 = vmatprep.subr.mxu0 0.0
        %2005 = vmatpush1.msra.mxu0 0.0
        %2006 = vmatprep.subr.mxu0 0.0
        %2007 = vmatpush1.msra.mxu0 0.0
        %2008 = vmatprep.mubr.f32.mxu0 0.0
        %2009 = vmatmul.mubr.f32.gmra.mrb[0].mxu0 %v1658
        %v2010 = vpop.f32.mrb[0].mxu0
        %v2011 = vadd.f32 %v1612, %v2010
        %v2012 = vpop.f32.mrb[0].mxu0
        %v2013 = vadd.f32 %v1616, %v2012
        %2014 = vdwg.mxu0
        %2015 = vmatprep.subr.mxu0 %v1520
        %2016 = vmatpush1.msra.mxu0 %v1519
        %2017 = vmatprep.subr.mxu0 %v1536
        %2018 = vmatpush1.msra.mxu0 %v1535
        %2019 = vmatprep.subr.mxu0 %v1552
        %2020 = vmatpush1.msra.mxu0 %v1551
        %2021 = vmatprep.subr.mxu0 %v1568
        %2022 = vmatpush1.msra.mxu0 %v1567
        %2023 = vmatprep.subr.mxu0 0.0
        %2024 = vmatpush1.msra.mxu0 0.0
        %2025 = vmatprep.subr.mxu0 0.0
        %2026 = vmatpush1.msra.mxu0 0.0
        %2027 = vmatprep.subr.mxu0 0.0
        %2028 = vmatpush1.msra.mxu0 0.0
        %2029 = vmatprep.subr.mxu0 0.0
        %2030 = vmatpush1.msra.mxu0 0.0
        %2031 = vmatprep.subr.mxu0 0.0
        %2032 = vmatpush1.msra.mxu0 0.0
        %2033 = vmatprep.subr.mxu0 0.0
        %2034 = vmatpush1.msra.mxu0 0.0
        %2035 = vmatprep.subr.mxu0 0.0
        %2036 = vmatpush1.msra.mxu0 0.0
        %2037 = vmatprep.subr.mxu0 0.0
        %2038 = vmatpush1.msra.mxu0 0.0
        %2039 = vmatprep.subr.mxu0 0.0
        %2040 = vmatpush1.msra.mxu0 0.0
        %2041 = vmatprep.subr.mxu0 0.0
        %2042 = vmatpush1.msra.mxu0 0.0
        %2043 = vmatprep.subr.mxu0 0.0
        %2044 = vmatpush1.msra.mxu0 0.0
        %2045 = vmatprep.subr.mxu0 0.0
        %2046 = vmatpush1.msra.mxu0 0.0
        %2047 = vmatprep.subr.mxu0 0.0
        %2048 = vmatpush1.msra.mxu0 0.0
        %2049 = vmatprep.subr.mxu0 0.0
        %2050 = vmatpush1.msra.mxu0 0.0
        %2051 = vmatprep.subr.mxu0 0.0
        %2052 = vmatpush1.msra.mxu0 0.0
        %2053 = vmatprep.subr.mxu0 0.0
        %2054 = vmatpush1.msra.mxu0 0.0
        %2055 = vmatprep.subr.mxu0 0.0
        %2056 = vmatpush1.msra.mxu0 0.0
        %2057 = vmatprep.subr.mxu0 0.0
        %2058 = vmatpush1.msra.mxu0 0.0
        %2059 = vmatprep.subr.mxu0 0.0
        %2060 = vmatpush1.msra.mxu0 0.0
        %2061 = vmatprep.subr.mxu0 0.0
        %2062 = vmatpush1.msra.mxu0 0.0
        %2063 = vmatprep.subr.mxu0 0.0
        %2064 = vmatpush1.msra.mxu0 0.0
        %2065 = vmatprep.subr.mxu0 0.0
        %2066 = vmatpush1.msra.mxu0 0.0
        %2067 = vmatprep.subr.mxu0 0.0
        %2068 = vmatpush1.msra.mxu0 0.0
        %2069 = vmatprep.subr.mxu0 0.0
        %2070 = vmatpush1.msra.mxu0 0.0
        %2071 = vmatprep.subr.mxu0 0.0
        %2072 = vmatpush1.msra.mxu0 0.0
        %2073 = vmatprep.subr.mxu0 0.0
        %2074 = vmatpush1.msra.mxu0 0.0
        %2075 = vmatprep.subr.mxu0 0.0
        %2076 = vmatpush1.msra.mxu0 0.0
        %2077 = vmatprep.subr.mxu0 0.0
        %2078 = vmatpush1.msra.mxu0 0.0
        %2079 = vmatprep.mubr.f32.mxu0 0.0
        %2080 = vmatmul.mubr.f32.gmra.mrb[0].mxu0 %v1658
        %v2081 = vpop.f32.mrb[0].mxu0
        %v2082 = vadd.f32 %v1620, %v2081
        %v2083 = vpop.f32.mrb[0].mxu0
        %v2084 = vadd.f32 %v1624, %v2083
        %2085 = vdwg.mxu0
        %2086 = vmatprep.subr.mxu0 %v1522
        %2087 = vmatpush1.msra.mxu0 %v1521
        %2088 = vmatprep.subr.mxu0 %v1538
        %2089 = vmatpush1.msra.mxu0 %v1537
        %2090 = vmatprep.subr.mxu0 %v1554
        %2091 = vmatpush1.msra.mxu0 %v1553
        %2092 = vmatprep.subr.mxu0 %v1570
        %2093 = vmatpush1.msra.mxu0 %v1569
        %2094 = vmatprep.subr.mxu0 0.0
        %2095 = vmatpush1.msra.mxu0 0.0
        %2096 = vmatprep.subr.mxu0 0.0
        %2097 = vmatpush1.msra.mxu0 0.0
        %2098 = vmatprep.subr.mxu0 0.0
        %2099 = vmatpush1.msra.mxu0 0.0
        %2100 = vmatprep.subr.mxu0 0.0
        %2101 = vmatpush1.msra.mxu0 0.0
        %2102 = vmatprep.subr.mxu0 0.0
        %2103 = vmatpush1.msra.mxu0 0.0
        %2104 = vmatprep.subr.mxu0 0.0
        %2105 = vmatpush1.msra.mxu0 0.0
        %2106 = vmatprep.subr.mxu0 0.0
        %2107 = vmatpush1.msra.mxu0 0.0
        %2108 = vmatprep.subr.mxu0 0.0
        %2109 = vmatpush1.msra.mxu0 0.0
        %2110 = vmatprep.subr.mxu0 0.0
        %2111 = vmatpush1.msra.mxu0 0.0
        %2112 = vmatprep.subr.mxu0 0.0
        %2113 = vmatpush1.msra.mxu0 0.0
        %2114 = vmatprep.subr.mxu0 0.0
        %2115 = vmatpush1.msra.mxu0 0.0
        %2116 = vmatprep.subr.mxu0 0.0
        %2117 = vmatpush1.msra.mxu0 0.0
        %2118 = vmatprep.subr.mxu0 0.0
        %2119 = vmatpush1.msra.mxu0 0.0
        %2120 = vmatprep.subr.mxu0 0.0
        %2121 = vmatpush1.msra.mxu0 0.0
        %2122 = vmatprep.subr.mxu0 0.0
        %2123 = vmatpush1.msra.mxu0 0.0
        %2124 = vmatprep.subr.mxu0 0.0
        %2125 = vmatpush1.msra.mxu0 0.0
        %2126 = vmatprep.subr.mxu0 0.0
        %2127 = vmatpush1.msra.mxu0 0.0
        %2128 = vmatprep.subr.mxu0 0.0
        %2129 = vmatpush1.msra.mxu0 0.0
        %2130 = vmatprep.subr.mxu0 0.0
        %2131 = vmatpush1.msra.mxu0 0.0
        %2132 = vmatprep.subr.mxu0 0.0
        %2133 = vmatpush1.msra.mxu0 0.0
        %2134 = vmatprep.subr.mxu0 0.0
        %2135 = vmatpush1.msra.mxu0 0.0
        %2136 = vmatprep.subr.mxu0 0.0
        %2137 = vmatpush1.msra.mxu0 0.0
        %2138 = vmatprep.subr.mxu0 0.0
        %2139 = vmatpush1.msra.mxu0 0.0
        %2140 = vmatprep.subr.mxu0 0.0
        %2141 = vmatpush1.msra.mxu0 0.0
        %2142 = vmatprep.subr.mxu0 0.0
        %2143 = vmatpush1.msra.mxu0 0.0
        %2144 = vmatprep.subr.mxu0 0.0
        %2145 = vmatpush1.msra.mxu0 0.0
        %2146 = vmatprep.subr.mxu0 0.0
        %2147 = vmatpush1.msra.mxu0 0.0
        %2148 = vmatprep.subr.mxu0 0.0
        %2149 = vmatpush1.msra.mxu0 0.0
        %2150 = vmatprep.mubr.f32.mxu0 0.0
        %2151 = vmatmul.mubr.f32.gmra.mrb[0].mxu0 %v1658
        %v2152 = vpop.f32.mrb[0].mxu0
        %v2153 = vadd.f32 %v1628, %v2152
        %v2154 = vpop.f32.mrb[0].mxu0
        %v2155 = vadd.f32 %v1632, %v2154
        %2156 = vdwg.mxu0
        %2157 = vmatprep.subr.mxu0 %v1524
        %2158 = vmatpush1.msra.mxu0 %v1523
        %2159 = vmatprep.subr.mxu0 %v1540
        %2160 = vmatpush1.msra.mxu0 %v1539
        %2161 = vmatprep.subr.mxu0 %v1556
        %2162 = vmatpush1.msra.mxu0 %v1555
        %2163 = vmatprep.subr.mxu0 %v1572
        %2164 = vmatpush1.msra.mxu0 %v1571
        %2165 = vmatprep.subr.mxu0 0.0
        %2166 = vmatpush1.msra.mxu0 0.0
        %2167 = vmatprep.subr.mxu0 0.0
        %2168 = vmatpush1.msra.mxu0 0.0
        %2169 = vmatprep.subr.mxu0 0.0
        %2170 = vmatpush1.msra.mxu0 0.0
        %2171 = vmatprep.subr.mxu0 0.0
        %2172 = vmatpush1.msra.mxu0 0.0
        %2173 = vmatprep.subr.mxu0 0.0
        %2174 = vmatpush1.msra.mxu0 0.0
        %2175 = vmatprep.subr.mxu0 0.0
        %2176 = vmatpush1.msra.mxu0 0.0
        %2177 = vmatprep.subr.mxu0 0.0
        %2178 = vmatpush1.msra.mxu0 0.0
        %2179 = vmatprep.subr.mxu0 0.0
        %2180 = vmatpush1.msra.mxu0 0.0
        %2181 = vmatprep.subr.mxu0 0.0
        %2182 = vmatpush1.msra.mxu0 0.0
        %2183 = vmatprep.subr.mxu0 0.0
        %2184 = vmatpush1.msra.mxu0 0.0
        %2185 = vmatprep.subr.mxu0 0.0
        %2186 = vmatpush1.msra.mxu0 0.0
        %2187 = vmatprep.subr.mxu0 0.0
        %2188 = vmatpush1.msra.mxu0 0.0
        %2189 = vmatprep.subr.mxu0 0.0
        %2190 = vmatpush1.msra.mxu0 0.0
        %2191 = vmatprep.subr.mxu0 0.0
        %2192 = vmatpush1.msra.mxu0 0.0
        %2193 = vmatprep.subr.mxu0 0.0
        %2194 = vmatpush1.msra.mxu0 0.0
        %2195 = vmatprep.subr.mxu0 0.0
        %2196 = vmatpush1.msra.mxu0 0.0
        %2197 = vmatprep.subr.mxu0 0.0
        %2198 = vmatpush1.msra.mxu0 0.0
        %2199 = vmatprep.subr.mxu0 0.0
        %2200 = vmatpush1.msra.mxu0 0.0
        %2201 = vmatprep.subr.mxu0 0.0
        %2202 = vmatpush1.msra.mxu0 0.0
        %2203 = vmatprep.subr.mxu0 0.0
        %2204 = vmatpush1.msra.mxu0 0.0
        %2205 = vmatprep.subr.mxu0 0.0
        %2206 = vmatpush1.msra.mxu0 0.0
        %2207 = vmatprep.subr.mxu0 0.0
        %2208 = vmatpush1.msra.mxu0 0.0
        %2209 = vmatprep.subr.mxu0 0.0
        %2210 = vmatpush1.msra.mxu0 0.0
        %2211 = vmatprep.subr.mxu0 0.0
        %2212 = vmatpush1.msra.mxu0 0.0
        %2213 = vmatprep.subr.mxu0 0.0
        %2214 = vmatpush1.msra.mxu0 0.0
        %2215 = vmatprep.subr.mxu0 0.0
        %2216 = vmatpush1.msra.mxu0 0.0
        %2217 = vmatprep.subr.mxu0 0.0
        %2218 = vmatpush1.msra.mxu0 0.0
        %2219 = vmatprep.subr.mxu0 0.0
        %2220 = vmatpush1.msra.mxu0 0.0
        %2221 = vmatprep.mubr.f32.mxu0 0.0
        %2222 = vmatmul.mubr.f32.gmra.mrb[0].mxu0 %v1658
        %v2223 = vpop.f32.mrb[0].mxu0
        %v2224 = vadd.f32 %v1636, %v2223
        %v2225 = vpop.f32.mrb[0].mxu0
        %v2226 = vadd.f32 %v1640, %v2225
        %2227 = vdwg.mxu0
        %v2228 = vmax.f32 %v1727, 0.0
        %v2229 = vmax.f32 %v1729, 0.0
        %v2230 = vmax.f32 %v1798, 0.0
        %v2231 = vmax.f32 %v1800, 0.0
        %v2232 = vmax.f32 %v1869, 0.0
        %v2233 = vmax.f32 %v1871, 0.0
        %v2234 = vmax.f32 %v1940, 0.0
        %v2235 = vmax.f32 %v1942, 0.0
        %v2236 = vmax.f32 %v2011, 0.0
        %v2237 = vmax.f32 %v2013, 0.0
        %v2238 = vmax.f32 %v2082, 0.0
        %v2239 = vmax.f32 %v2084, 0.0
        %v2240 = vmax.f32 %v2153, 0.0
        %v2241 = vmax.f32 %v2155, 0.0
        %v2242 = vmax.f32 %v2224, 0.0
        %v2243 = vmax.f32 %v2226, 0.0
        %v2244 = vld [vmem:[%s9] sm:$0xff]
        %v2245 = vld [vmem:[%s9 + $0x8] sm:$0xff]
        %v2246 = vld [vmem:[%s9 + $0x10] sm:$0xff]
        %v2247 = vld [vmem:[%s9 + $0x18] sm:$0xff]
        %v2248 = vld [vmem:[%s9 + $0x20] sm:$0xff]
        %v2249 = vld [vmem:[%s9 + $0x28] sm:$0xff]
        %v2250 = vld [vmem:[%s9 + $0x30] sm:$0xff]
        %v2251 = vld [vmem:[%s9 + $0x38] sm:$0xff]
        %v2252 = vld [vmem:[%s9 + $0x40] sm:$0xff]
        %v2253 = vld [vmem:[%s9 + $0x48] sm:$0xff]
        %v2254 = vld [vmem:[%s9 + $0x50] sm:$0xff]
        %v2255 = vld [vmem:[%s9 + $0x58] sm:$0xff]
        %v2256 = vld [vmem:[%s9 + $0x60] sm:$0xff]
        %v2257 = vld [vmem:[%s9 + $0x68] sm:$0xff]
        %v2258 = vld [vmem:[%s9 + $0x70] sm:$0xff]
        %v2259 = vld [vmem:[%s9 + $0x78] sm:$0xff]
        %v2260 = vld [vmem:[%s9 + $0x80] sm:$0xff]
        %v2261 = vld [vmem:[%s9 + $0x88] sm:$0xff]
        %v2262 = vld [vmem:[%s9 + $0x90] sm:$0xff]
        %v2263 = vld [vmem:[%s9 + $0x98] sm:$0xff]
        %v2264 = vld [vmem:[%s9 + $0xa0] sm:$0xff]
        %v2265 = vld [vmem:[%s9 + $0xa8] sm:$0xff]
        %v2266 = vld [vmem:[%s9 + $0xb0] sm:$0xff]
        %v2267 = vld [vmem:[%s9 + $0xb8] sm:$0xff]
        %v2268 = vld [vmem:[%s9 + $0xc0] sm:$0xff]
        %v2269 = vld [vmem:[%s9 + $0xc8] sm:$0xff]
        %v2270 = vld [vmem:[%s9 + $0xd0] sm:$0xff]
        %v2271 = vld [vmem:[%s9 + $0xd8] sm:$0xff]
        %v2272 = vld [vmem:[%s9 + $0xe0] sm:$0xff]
        %v2273 = vld [vmem:[%s9 + $0xe8] sm:$0xff]
        %v2274 = vld [vmem:[%s9 + $0xf0] sm:$0xff]
        %v2275 = vld [vmem:[%s9 + $0xf8] sm:$0xff]
        %v2276 = vld [vmem:[%s9 + $0x100] sm:$0xff]
        %v2277 = vld [vmem:[%s9 + $0x108] sm:$0xff]
        %v2278 = vld [vmem:[%s9 + $0x110] sm:$0xff]
        %v2279 = vld [vmem:[%s9 + $0x118] sm:$0xff]
        %v2280 = vld [vmem:[%s9 + $0x120] sm:$0xff]
        %v2281 = vld [vmem:[%s9 + $0x128] sm:$0xff]
        %v2282 = vld [vmem:[%s9 + $0x130] sm:$0xff]
        %v2283 = vld [vmem:[%s9 + $0x138] sm:$0xff]
        %v2284 = vld [vmem:[%s9 + $0x140] sm:$0xff]
        %v2285 = vld [vmem:[%s9 + $0x148] sm:$0xff]
        %v2286 = vld [vmem:[%s9 + $0x150] sm:$0xff]
        %v2287 = vld [vmem:[%s9 + $0x158] sm:$0xff]
        %v2288 = vld [vmem:[%s9 + $0x160] sm:$0xff]
        %v2289 = vld [vmem:[%s9 + $0x168] sm:$0xff]
        %v2290 = vld [vmem:[%s9 + $0x170] sm:$0xff]
        %v2291 = vld [vmem:[%s9 + $0x178] sm:$0xff]
        %v2292 = vld [vmem:[%s9 + $0x180] sm:$0xff]
        %v2293 = vld [vmem:[%s9 + $0x188] sm:$0xff]
        %v2294 = vld [vmem:[%s9 + $0x190] sm:$0xff]
        %v2295 = vld [vmem:[%s9 + $0x198] sm:$0xff]
        %v2296 = vld [vmem:[%s9 + $0x1a0] sm:$0xff]
        %v2297 = vld [vmem:[%s9 + $0x1a8] sm:$0xff]
        %v2298 = vld [vmem:[%s9 + $0x1b0] sm:$0xff]
        %v2299 = vld [vmem:[%s9 + $0x1b8] sm:$0xff]
        %v2300 = vld [vmem:[%s9 + $0x1c0] sm:$0xff]
        %v2301 = vld [vmem:[%s9 + $0x1c8] sm:$0xff]
        %v2302 = vld [vmem:[%s9 + $0x1d0] sm:$0xff]
        %v2303 = vld [vmem:[%s9 + $0x1d8] sm:$0xff]
        %v2304 = vld [vmem:[%s9 + $0x1e0] sm:$0xff]
        %v2305 = vld [vmem:[%s9 + $0x1e8] sm:$0xff]
        %v2306 = vld [vmem:[%s9 + $0x1f0] sm:$0xff]
        %v2307 = vld [vmem:[%s9 + $0x1f8] sm:$0xff]
        %v2308 = vld [vmem:[%s9 + $0x200] sm:$0xff]
        %v2309 = vld [vmem:[%s9 + $0x208] sm:$0xff]
        %v2310 = vld [vmem:[%s9 + $0x210] sm:$0xff]
        %v2311 = vld [vmem:[%s9 + $0x218] sm:$0xff]
        %v2312 = vld [vmem:[%s9 + $0x220] sm:$0xff]
        %v2313 = vld [vmem:[%s9 + $0x228] sm:$0xff]
        %v2314 = vld [vmem:[%s9 + $0x230] sm:$0xff]
        %v2315 = vld [vmem:[%s9 + $0x238] sm:$0xff]
        %v2316 = vld [vmem:[%s9 + $0x240] sm:$0xff]
        %v2317 = vld [vmem:[%s9 + $0x248] sm:$0xff]
        %v2318 = vld [vmem:[%s9 + $0x250] sm:$0xff]
        %v2319 = vld [vmem:[%s9 + $0x258] sm:$0xff]
        %v2320 = vld [vmem:[%s9 + $0x260] sm:$0xff]
        %v2321 = vld [vmem:[%s9 + $0x268] sm:$0xff]
        %v2322 = vld [vmem:[%s9 + $0x270] sm:$0xff]
        %v2323 = vld [vmem:[%s9 + $0x278] sm:$0xff]
        %v2324 = vld [vmem:[%s9 + $0x280] sm:$0xff]
        %v2325 = vld [vmem:[%s9 + $0x288] sm:$0xff]
        %v2326 = vld [vmem:[%s9 + $0x290] sm:$0xff]
        %v2327 = vld [vmem:[%s9 + $0x298] sm:$0xff]
        %v2328 = vld [vmem:[%s9 + $0x2a0] sm:$0xff]
        %v2329 = vld [vmem:[%s9 + $0x2a8] sm:$0xff]
        %v2330 = vld [vmem:[%s9 + $0x2b0] sm:$0xff]
        %v2331 = vld [vmem:[%s9 + $0x2b8] sm:$0xff]
        %v2332 = vld [vmem:[%s9 + $0x2c0] sm:$0xff]
        %v2333 = vld [vmem:[%s9 + $0x2c8] sm:$0xff]
        %v2334 = vld [vmem:[%s9 + $0x2d0] sm:$0xff]
        %v2335 = vld [vmem:[%s9 + $0x2d8] sm:$0xff]
        %v2336 = vld [vmem:[%s9 + $0x2e0] sm:$0xff]
        %v2337 = vld [vmem:[%s9 + $0x2e8] sm:$0xff]
        %v2338 = vld [vmem:[%s9 + $0x2f0] sm:$0xff]
        %v2339 = vld [vmem:[%s9 + $0x2f8] sm:$0xff]
        %v2340 = vld [vmem:[%s9 + $0x300] sm:$0xff]
        %v2341 = vld [vmem:[%s9 + $0x308] sm:$0xff]
        %v2342 = vld [vmem:[%s9 + $0x310] sm:$0xff]
        %v2343 = vld [vmem:[%s9 + $0x318] sm:$0xff]
        %v2344 = vld [vmem:[%s9 + $0x320] sm:$0xff]
        %v2345 = vld [vmem:[%s9 + $0x328] sm:$0xff]
        %v2346 = vld [vmem:[%s9 + $0x330] sm:$0xff]
        %v2347 = vld [vmem:[%s9 + $0x338] sm:$0xff]
        %v2348 = vld [vmem:[%s9 + $0x340] sm:$0xff]
        %v2349 = vld [vmem:[%s9 + $0x348] sm:$0xff]
        %v2350 = vld [vmem:[%s9 + $0x350] sm:$0xff]
        %v2351 = vld [vmem:[%s9 + $0x358] sm:$0xff]
        %v2352 = vld [vmem:[%s9 + $0x360] sm:$0xff]
        %v2353 = vld [vmem:[%s9 + $0x368] sm:$0xff]
        %v2354 = vld [vmem:[%s9 + $0x370] sm:$0xff]
        %v2355 = vld [vmem:[%s9 + $0x378] sm:$0xff]
        %v2356 = vld [vmem:[%s9 + $0x380] sm:$0xff]
        %v2357 = vld [vmem:[%s9 + $0x388] sm:$0xff]
        %v2358 = vld [vmem:[%s9 + $0x390] sm:$0xff]
        %v2359 = vld [vmem:[%s9 + $0x398] sm:$0xff]
        %v2360 = vld [vmem:[%s9 + $0x3a0] sm:$0xff]
        %v2361 = vld [vmem:[%s9 + $0x3a8] sm:$0xff]
        %v2362 = vld [vmem:[%s9 + $0x3b0] sm:$0xff]
        %v2363 = vld [vmem:[%s9 + $0x3b8] sm:$0xff]
        %v2364 = vld [vmem:[%s9 + $0x3c0] sm:$0xff]
        %v2365 = vld [vmem:[%s9 + $0x3c8] sm:$0xff]
        %v2366 = vld [vmem:[%s9 + $0x3d0] sm:$0xff]
        %v2367 = vld [vmem:[%s9 + $0x3d8] sm:$0xff]
        %v2368 = vld [vmem:[%s9 + $0x3e0] sm:$0xff]
        %v2369 = vld [vmem:[%s9 + $0x3e8] sm:$0xff]
        %v2370 = vld [vmem:[%s9 + $0x3f0] sm:$0xff]
        %v2371 = vld [vmem:[%s9 + $0x3f8] sm:$0xff]
        %v2372 = vld [vmem:[%s9 + $0x400] sm:$0xff]
        %v2373 = vld [vmem:[%s9 + $0x408] sm:$0xff]
        %v2374 = vld [vmem:[%s9 + $0x410] sm:$0xff]
        %v2375 = vld [vmem:[%s9 + $0x418] sm:$0xff]
        %v2376 = vld [vmem:[%s9 + $0x420] sm:$0xff]
        %v2377 = vld [vmem:[%s9 + $0x428] sm:$0xff]
        %v2378 = vld [vmem:[%s9 + $0x430] sm:$0xff]
        %v2379 = vld [vmem:[%s9 + $0x438] sm:$0xff]
        %v2380 = vld [vmem:[%s9 + $0x440] sm:$0xff]
        %v2381 = vld [vmem:[%s9 + $0x448] sm:$0xff]
        %v2382 = vld [vmem:[%s9 + $0x450] sm:$0xff]
        %v2383 = vld [vmem:[%s9 + $0x458] sm:$0xff]
        %v2384 = vld [vmem:[%s9 + $0x460] sm:$0xff]
        %v2385 = vld [vmem:[%s9 + $0x468] sm:$0xff]
        %v2386 = vld [vmem:[%s9 + $0x470] sm:$0xff]
        %v2387 = vld [vmem:[%s9 + $0x478] sm:$0xff]
        %v2388 = vld [vmem:[%s9 + $0x480] sm:$0xff]
        %v2389 = vld [vmem:[%s9 + $0x488] sm:$0xff]
        %v2390 = vld [vmem:[%s9 + $0x490] sm:$0xff]
        %v2391 = vld [vmem:[%s9 + $0x498] sm:$0xff]
        %v2392 = vld [vmem:[%s9 + $0x4a0] sm:$0xff]
        %v2393 = vld [vmem:[%s9 + $0x4a8] sm:$0xff]
        %v2394 = vld [vmem:[%s9 + $0x4b0] sm:$0xff]
        %v2395 = vld [vmem:[%s9 + $0x4b8] sm:$0xff]
        %v2396 = vld [vmem:[%s9 + $0x4c0] sm:$0xff]
        %v2397 = vld [vmem:[%s9 + $0x4c8] sm:$0xff]
        %v2398 = vld [vmem:[%s9 + $0x4d0] sm:$0xff]
        %v2399 = vld [vmem:[%s9 + $0x4d8] sm:$0xff]
        %v2400 = vld [vmem:[%s9 + $0x4e0] sm:$0xff]
        %v2401 = vld [vmem:[%s9 + $0x4e8] sm:$0xff]
        %v2402 = vld [vmem:[%s9 + $0x4f0] sm:$0xff]
        %v2403 = vld [vmem:[%s9 + $0x4f8] sm:$0xff]
        %v2404 = vld [vmem:[%s9 + $0x500] sm:$0xff]
        %v2405 = vld [vmem:[%s9 + $0x508] sm:$0xff]
        %v2406 = vld [vmem:[%s9 + $0x510] sm:$0xff]
        %v2407 = vld [vmem:[%s9 + $0x518] sm:$0xff]
        %v2408 = vld [vmem:[%s9 + $0x520] sm:$0xff]
        %v2409 = vld [vmem:[%s9 + $0x528] sm:$0xff]
        %v2410 = vld [vmem:[%s9 + $0x530] sm:$0xff]
        %v2411 = vld [vmem:[%s9 + $0x538] sm:$0xff]
        %v2412 = vld [vmem:[%s9 + $0x540] sm:$0xff]
        %v2413 = vld [vmem:[%s9 + $0x548] sm:$0xff]
        %v2414 = vld [vmem:[%s9 + $0x550] sm:$0xff]
        %v2415 = vld [vmem:[%s9 + $0x558] sm:$0xff]
        %v2416 = vld [vmem:[%s9 + $0x560] sm:$0xff]
        %v2417 = vld [vmem:[%s9 + $0x568] sm:$0xff]
        %v2418 = vld [vmem:[%s9 + $0x570] sm:$0xff]
        %v2419 = vld [vmem:[%s9 + $0x578] sm:$0xff]
        %v2420 = vld [vmem:[%s9 + $0x580] sm:$0xff]
        %v2421 = vld [vmem:[%s9 + $0x588] sm:$0xff]
        %v2422 = vld [vmem:[%s9 + $0x590] sm:$0xff]
        %v2423 = vld [vmem:[%s9 + $0x598] sm:$0xff]
        %v2424 = vld [vmem:[%s9 + $0x5a0] sm:$0xff]
        %v2425 = vld [vmem:[%s9 + $0x5a8] sm:$0xff]
        %v2426 = vld [vmem:[%s9 + $0x5b0] sm:$0xff]
        %v2427 = vld [vmem:[%s9 + $0x5b8] sm:$0xff]
        %v2428 = vld [vmem:[%s9 + $0x5c0] sm:$0xff]
        %v2429 = vld [vmem:[%s9 + $0x5c8] sm:$0xff]
        %v2430 = vld [vmem:[%s9 + $0x5d0] sm:$0xff]
        %v2431 = vld [vmem:[%s9 + $0x5d8] sm:$0xff]
        %v2432 = vld [vmem:[%s9 + $0x5e0] sm:$0xff]
        %v2433 = vld [vmem:[%s9 + $0x5e8] sm:$0xff]
        %v2434 = vld [vmem:[%s9 + $0x5f0] sm:$0xff]
        %v2435 = vld [vmem:[%s9 + $0x5f8] sm:$0xff]
        %v2436 = vld [vmem:[%s9 + $0x600] sm:$0xff]
        %v2437 = vld [vmem:[%s9 + $0x608] sm:$0xff]
        %v2438 = vld [vmem:[%s9 + $0x610] sm:$0xff]
        %v2439 = vld [vmem:[%s9 + $0x618] sm:$0xff]
        %v2440 = vld [vmem:[%s9 + $0x620] sm:$0xff]
        %v2441 = vld [vmem:[%s9 + $0x628] sm:$0xff]
        %v2442 = vld [vmem:[%s9 + $0x630] sm:$0xff]
        %v2443 = vld [vmem:[%s9 + $0x638] sm:$0xff]
        %v2444 = vld [vmem:[%s9 + $0x640] sm:$0xff]
        %v2445 = vld [vmem:[%s9 + $0x648] sm:$0xff]
        %v2446 = vld [vmem:[%s9 + $0x650] sm:$0xff]
        %v2447 = vld [vmem:[%s9 + $0x658] sm:$0xff]
        %v2448 = vld [vmem:[%s9 + $0x660] sm:$0xff]
        %v2449 = vld [vmem:[%s9 + $0x668] sm:$0xff]
        %v2450 = vld [vmem:[%s9 + $0x670] sm:$0xff]
        %v2451 = vld [vmem:[%s9 + $0x678] sm:$0xff]
        %v2452 = vld [vmem:[%s9 + $0x680] sm:$0xff]
        %v2453 = vld [vmem:[%s9 + $0x688] sm:$0xff]
        %v2454 = vld [vmem:[%s9 + $0x690] sm:$0xff]
        %v2455 = vld [vmem:[%s9 + $0x698] sm:$0xff]
        %v2456 = vld [vmem:[%s9 + $0x6a0] sm:$0xff]
        %v2457 = vld [vmem:[%s9 + $0x6a8] sm:$0xff]
        %v2458 = vld [vmem:[%s9 + $0x6b0] sm:$0xff]
        %v2459 = vld [vmem:[%s9 + $0x6b8] sm:$0xff]
        %v2460 = vld [vmem:[%s9 + $0x6c0] sm:$0xff]
        %v2461 = vld [vmem:[%s9 + $0x6c8] sm:$0xff]
        %v2462 = vld [vmem:[%s9 + $0x6d0] sm:$0xff]
        %v2463 = vld [vmem:[%s9 + $0x6d8] sm:$0xff]
        %v2464 = vld [vmem:[%s9 + $0x6e0] sm:$0xff]
        %v2465 = vld [vmem:[%s9 + $0x6e8] sm:$0xff]
        %v2466 = vld [vmem:[%s9 + $0x6f0] sm:$0xff]
        %v2467 = vld [vmem:[%s9 + $0x6f8] sm:$0xff]
        %v2468 = vld [vmem:[%s9 + $0x700] sm:$0xff]
        %v2469 = vld [vmem:[%s9 + $0x708] sm:$0xff]
        %v2470 = vld [vmem:[%s9 + $0x710] sm:$0xff]
        %v2471 = vld [vmem:[%s9 + $0x718] sm:$0xff]
        %v2472 = vld [vmem:[%s9 + $0x720] sm:$0xff]
        %v2473 = vld [vmem:[%s9 + $0x728] sm:$0xff]
        %v2474 = vld [vmem:[%s9 + $0x730] sm:$0xff]
        %v2475 = vld [vmem:[%s9 + $0x738] sm:$0xff]
        %v2476 = vld [vmem:[%s9 + $0x740] sm:$0xff]
        %v2477 = vld [vmem:[%s9 + $0x748] sm:$0xff]
        %v2478 = vld [vmem:[%s9 + $0x750] sm:$0xff]
        %v2479 = vld [vmem:[%s9 + $0x758] sm:$0xff]
        %v2480 = vld [vmem:[%s9 + $0x760] sm:$0xff]
        %v2481 = vld [vmem:[%s9 + $0x768] sm:$0xff]
        %v2482 = vld [vmem:[%s9 + $0x770] sm:$0xff]
        %v2483 = vld [vmem:[%s9 + $0x778] sm:$0xff]
        %v2484 = vld [vmem:[%s9 + $0x780] sm:$0xff]
        %v2485 = vld [vmem:[%s9 + $0x788] sm:$0xff]
        %v2486 = vld [vmem:[%s9 + $0x790] sm:$0xff]
        %v2487 = vld [vmem:[%s9 + $0x798] sm:$0xff]
        %v2488 = vld [vmem:[%s9 + $0x7a0] sm:$0xff]
        %v2489 = vld [vmem:[%s9 + $0x7a8] sm:$0xff]
        %v2490 = vld [vmem:[%s9 + $0x7b0] sm:$0xff]
        %v2491 = vld [vmem:[%s9 + $0x7b8] sm:$0xff]
        %v2492 = vld [vmem:[%s9 + $0x7c0] sm:$0xff]
        %v2493 = vld [vmem:[%s9 + $0x7c8] sm:$0xff]
        %v2494 = vld [vmem:[%s9 + $0x7d0] sm:$0xff]
        %v2495 = vld [vmem:[%s9 + $0x7d8] sm:$0xff]
        %v2496 = vld [vmem:[%s9 + $0x7e0] sm:$0xff]
        %v2497 = vld [vmem:[%s9 + $0x7e8] sm:$0xff]
        %v2498 = vld [vmem:[%s9 + $0x7f0] sm:$0xff]
        %v2499 = vld [vmem:[%s9 + $0x7f8] sm:$0xff]
        %v2500 = vld [vmem:[%s10] sm:$0x1]
        %v2502 = vlaneseq
        %v2503 = vshrl.u32 %v2502, 7
        %v2504 = vsub.s32 0, %v2503
        %v2505 = vrot.slane %v2500, %v2504
        %2507 = vmatprep.subr.mxu0 0.0
        %2508 = vmatpush1.msra.mxu0 %v2244
        %2509 = vmatprep.subr.mxu0 0.0
        %2510 = vmatpush1.msra.mxu0 %v2245
        %2511 = vmatprep.subr.mxu0 0.0
        %2512 = vmatpush1.msra.mxu0 %v2246
        %2513 = vmatprep.subr.mxu0 0.0
        %2514 = vmatpush1.msra.mxu0 %v2247
        %2515 = vmatprep.subr.mxu0 0.0
        %2516 = vmatpush1.msra.mxu0 %v2248
        %2517 = vmatprep.subr.mxu0 0.0
        %2518 = vmatpush1.msra.mxu0 %v2249
        %2519 = vmatprep.subr.mxu0 0.0
        %2520 = vmatpush1.msra.mxu0 %v2250
        %2521 = vmatprep.subr.mxu0 0.0
        %2522 = vmatpush1.msra.mxu0 %v2251
        %2523 = vmatprep.subr.mxu0 0.0
        %2524 = vmatpush1.msra.mxu0 %v2252
        %2525 = vmatprep.subr.mxu0 0.0
        %2526 = vmatpush1.msra.mxu0 %v2253
        %2527 = vmatprep.subr.mxu0 0.0
        %2528 = vmatpush1.msra.mxu0 %v2254
        %2529 = vmatprep.subr.mxu0 0.0
        %2530 = vmatpush1.msra.mxu0 %v2255
        %2531 = vmatprep.subr.mxu0 0.0
        %2532 = vmatpush1.msra.mxu0 %v2256
        %2533 = vmatprep.subr.mxu0 0.0
        %2534 = vmatpush1.msra.mxu0 %v2257
        %2535 = vmatprep.subr.mxu0 0.0
        %2536 = vmatpush1.msra.mxu0 %v2258
        %2537 = vmatprep.subr.mxu0 0.0
        %2538 = vmatpush1.msra.mxu0 %v2259
        %2539 = vmatprep.subr.mxu0 0.0
        %2540 = vmatpush1.msra.mxu0 %v2260
        %2541 = vmatprep.subr.mxu0 0.0
        %2542 = vmatpush1.msra.mxu0 %v2261
        %2543 = vmatprep.subr.mxu0 0.0
        %2544 = vmatpush1.msra.mxu0 %v2262
        %2545 = vmatprep.subr.mxu0 0.0
        %2546 = vmatpush1.msra.mxu0 %v2263
        %2547 = vmatprep.subr.mxu0 0.0
        %2548 = vmatpush1.msra.mxu0 %v2264
        %2549 = vmatprep.subr.mxu0 0.0
        %2550 = vmatpush1.msra.mxu0 %v2265
        %2551 = vmatprep.subr.mxu0 0.0
        %2552 = vmatpush1.msra.mxu0 %v2266
        %2553 = vmatprep.subr.mxu0 0.0
        %2554 = vmatpush1.msra.mxu0 %v2267
        %2555 = vmatprep.subr.mxu0 0.0
        %2556 = vmatpush1.msra.mxu0 %v2268
        %2557 = vmatprep.subr.mxu0 0.0
        %2558 = vmatpush1.msra.mxu0 %v2269
        %2559 = vmatprep.subr.mxu0 0.0
        %2560 = vmatpush1.msra.mxu0 %v2270
        %2561 = vmatprep.subr.mxu0 0.0
        %2562 = vmatpush1.msra.mxu0 %v2271
        %2563 = vmatprep.subr.mxu0 0.0
        %2564 = vmatpush1.msra.mxu0 %v2272
        %2565 = vmatprep.subr.mxu0 0.0
        %2566 = vmatpush1.msra.mxu0 %v2273
        %2567 = vmatprep.subr.mxu0 0.0
        %2568 = vmatpush1.msra.mxu0 %v2274
        %2569 = vmatprep.subr.mxu0 0.0
        %2570 = vmatpush1.msra.mxu0 %v2275
        %2571 = vmatprep.mubr.f32.mxu0 %v2229
        %2572 = vmatmul.mubr.f32.gmra.mrb[0].mxu0 %v2228
        %v2573 = vpop.f32.mrb[0].mxu0
        %v2574 = vadd.f32 %v2505, %v2573
        %v2575 = vpop.f32.mrb[0].mxu0
        %2576 = vdwg.mxu0
        %2577 = vmatprep.subr.mxu0 0.0
        %2578 = vmatpush1.msra.mxu0 %v2276
        %2579 = vmatprep.subr.mxu0 0.0
        %2580 = vmatpush1.msra.mxu0 %v2277
        %2581 = vmatprep.subr.mxu0 0.0
        %2582 = vmatpush1.msra.mxu0 %v2278
        %2583 = vmatprep.subr.mxu0 0.0
        %2584 = vmatpush1.msra.mxu0 %v2279
        %2585 = vmatprep.subr.mxu0 0.0
        %2586 = vmatpush1.msra.mxu0 %v2280
        %2587 = vmatprep.subr.mxu0 0.0
        %2588 = vmatpush1.msra.mxu0 %v2281
        %2589 = vmatprep.subr.mxu0 0.0
        %2590 = vmatpush1.msra.mxu0 %v2282
        %2591 = vmatprep.subr.mxu0 0.0
        %2592 = vmatpush1.msra.mxu0 %v2283
        %2593 = vmatprep.subr.mxu0 0.0
        %2594 = vmatpush1.msra.mxu0 %v2284
        %2595 = vmatprep.subr.mxu0 0.0
        %2596 = vmatpush1.msra.mxu0 %v2285
        %2597 = vmatprep.subr.mxu0 0.0
        %2598 = vmatpush1.msra.mxu0 %v2286
        %2599 = vmatprep.subr.mxu0 0.0
        %2600 = vmatpush1.msra.mxu0 %v2287
        %2601 = vmatprep.subr.mxu0 0.0
        %2602 = vmatpush1.msra.mxu0 %v2288
        %2603 = vmatprep.subr.mxu0 0.0
        %2604 = vmatpush1.msra.mxu0 %v2289
        %2605 = vmatprep.subr.mxu0 0.0
        %2606 = vmatpush1.msra.mxu0 %v2290
        %2607 = vmatprep.subr.mxu0 0.0
        %2608 = vmatpush1.msra.mxu0 %v2291
        %2609 = vmatprep.subr.mxu0 0.0
        %2610 = vmatpush1.msra.mxu0 %v2292
        %2611 = vmatprep.subr.mxu0 0.0
        %2612 = vmatpush1.msra.mxu0 %v2293
        %2613 = vmatprep.subr.mxu0 0.0
        %2614 = vmatpush1.msra.mxu0 %v2294
        %2615 = vmatprep.subr.mxu0 0.0
        %2616 = vmatpush1.msra.mxu0 %v2295
        %2617 = vmatprep.subr.mxu0 0.0
        %2618 = vmatpush1.msra.mxu0 %v2296
        %2619 = vmatprep.subr.mxu0 0.0
        %2620 = vmatpush1.msra.mxu0 %v2297
        %2621 = vmatprep.subr.mxu0 0.0
        %2622 = vmatpush1.msra.mxu0 %v2298
        %2623 = vmatprep.subr.mxu0 0.0
        %2624 = vmatpush1.msra.mxu0 %v2299
        %2625 = vmatprep.subr.mxu0 0.0
        %2626 = vmatpush1.msra.mxu0 %v2300
        %2627 = vmatprep.subr.mxu0 0.0
        %2628 = vmatpush1.msra.mxu0 %v2301
        %2629 = vmatprep.subr.mxu0 0.0
        %2630 = vmatpush1.msra.mxu0 %v2302
        %2631 = vmatprep.subr.mxu0 0.0
        %2632 = vmatpush1.msra.mxu0 %v2303
        %2633 = vmatprep.subr.mxu0 0.0
        %2634 = vmatpush1.msra.mxu0 %v2304
        %2635 = vmatprep.subr.mxu0 0.0
        %2636 = vmatpush1.msra.mxu0 %v2305
        %2637 = vmatprep.subr.mxu0 0.0
        %2638 = vmatpush1.msra.mxu0 %v2306
        %2639 = vmatprep.subr.mxu0 0.0
        %2640 = vmatpush1.msra.mxu0 %v2307
        %2641 = vmatprep.mubr.f32.mxu0 %v2231
        %2642 = vmatmul.mubr.f32.gmra.mrb[0].mxu0 %v2230
        %v2643 = vpop.f32.mrb[0].mxu0
        %v2644 = vadd.f32 %v2574, %v2643
        %v2645 = vpop.f32.mrb[0].mxu0
        %2646 = vdwg.mxu0
        %2647 = vmatprep.subr.mxu0 0.0
        %2648 = vmatpush1.msra.mxu0 %v2308
        %2649 = vmatprep.subr.mxu0 0.0
        %2650 = vmatpush1.msra.mxu0 %v2309
        %2651 = vmatprep.subr.mxu0 0.0
        %2652 = vmatpush1.msra.mxu0 %v2310
        %2653 = vmatprep.subr.mxu0 0.0
        %2654 = vmatpush1.msra.mxu0 %v2311
        %2655 = vmatprep.subr.mxu0 0.0
        %2656 = vmatpush1.msra.mxu0 %v2312
        %2657 = vmatprep.subr.mxu0 0.0
        %2658 = vmatpush1.msra.mxu0 %v2313
        %2659 = vmatprep.subr.mxu0 0.0
        %2660 = vmatpush1.msra.mxu0 %v2314
        %2661 = vmatprep.subr.mxu0 0.0
        %2662 = vmatpush1.msra.mxu0 %v2315
        %2663 = vmatprep.subr.mxu0 0.0
        %2664 = vmatpush1.msra.mxu0 %v2316
        %2665 = vmatprep.subr.mxu0 0.0
        %2666 = vmatpush1.msra.mxu0 %v2317
        %2667 = vmatprep.subr.mxu0 0.0
        %2668 = vmatpush1.msra.mxu0 %v2318
        %2669 = vmatprep.subr.mxu0 0.0
        %2670 = vmatpush1.msra.mxu0 %v2319
        %2671 = vmatprep.subr.mxu0 0.0
        %2672 = vmatpush1.msra.mxu0 %v2320
        %2673 = vmatprep.subr.mxu0 0.0
        %2674 = vmatpush1.msra.mxu0 %v2321
        %2675 = vmatprep.subr.mxu0 0.0
        %2676 = vmatpush1.msra.mxu0 %v2322
        %2677 = vmatprep.subr.mxu0 0.0
        %2678 = vmatpush1.msra.mxu0 %v2323
        %2679 = vmatprep.subr.mxu0 0.0
        %2680 = vmatpush1.msra.mxu0 %v2324
        %2681 = vmatprep.subr.mxu0 0.0
        %2682 = vmatpush1.msra.mxu0 %v2325
        %2683 = vmatprep.subr.mxu0 0.0
        %2684 = vmatpush1.msra.mxu0 %v2326
        %2685 = vmatprep.subr.mxu0 0.0
        %2686 = vmatpush1.msra.mxu0 %v2327
        %2687 = vmatprep.subr.mxu0 0.0
        %2688 = vmatpush1.msra.mxu0 %v2328
        %2689 = vmatprep.subr.mxu0 0.0
        %2690 = vmatpush1.msra.mxu0 %v2329
        %2691 = vmatprep.subr.mxu0 0.0
        %2692 = vmatpush1.msra.mxu0 %v2330
        %2693 = vmatprep.subr.mxu0 0.0
        %2694 = vmatpush1.msra.mxu0 %v2331
        %2695 = vmatprep.subr.mxu0 0.0
        %2696 = vmatpush1.msra.mxu0 %v2332
        %2697 = vmatprep.subr.mxu0 0.0
        %2698 = vmatpush1.msra.mxu0 %v2333
        %2699 = vmatprep.subr.mxu0 0.0
        %2700 = vmatpush1.msra.mxu0 %v2334
        %2701 = vmatprep.subr.mxu0 0.0
        %2702 = vmatpush1.msra.mxu0 %v2335
        %2703 = vmatprep.subr.mxu0 0.0
        %2704 = vmatpush1.msra.mxu0 %v2336
        %2705 = vmatprep.subr.mxu0 0.0
        %2706 = vmatpush1.msra.mxu0 %v2337
        %2707 = vmatprep.subr.mxu0 0.0
        %2708 = vmatpush1.msra.mxu0 %v2338
        %2709 = vmatprep.subr.mxu0 0.0
        %2710 = vmatpush1.msra.mxu0 %v2339
        %2711 = vmatprep.mubr.f32.mxu0 %v2233
        %2712 = vmatmul.mubr.f32.gmra.mrb[0].mxu0 %v2232
        %v2713 = vpop.f32.mrb[0].mxu0
        %v2714 = vadd.f32 %v2644, %v2713
        %v2715 = vpop.f32.mrb[0].mxu0
        %2716 = vdwg.mxu0
        %2717 = vmatprep.subr.mxu0 0.0
        %2718 = vmatpush1.msra.mxu0 %v2340
        %2719 = vmatprep.subr.mxu0 0.0
        %2720 = vmatpush1.msra.mxu0 %v2341
        %2721 = vmatprep.subr.mxu0 0.0
        %2722 = vmatpush1.msra.mxu0 %v2342
        %2723 = vmatprep.subr.mxu0 0.0
        %2724 = vmatpush1.msra.mxu0 %v2343
        %2725 = vmatprep.subr.mxu0 0.0
        %2726 = vmatpush1.msra.mxu0 %v2344
        %2727 = vmatprep.subr.mxu0 0.0
        %2728 = vmatpush1.msra.mxu0 %v2345
        %2729 = vmatprep.subr.mxu0 0.0
        %2730 = vmatpush1.msra.mxu0 %v2346
        %2731 = vmatprep.subr.mxu0 0.0
        %2732 = vmatpush1.msra.mxu0 %v2347
        %2733 = vmatprep.subr.mxu0 0.0
        %2734 = vmatpush1.msra.mxu0 %v2348
        %2735 = vmatprep.subr.mxu0 0.0
        %2736 = vmatpush1.msra.mxu0 %v2349
        %2737 = vmatprep.subr.mxu0 0.0
        %2738 = vmatpush1.msra.mxu0 %v2350
        %2739 = vmatprep.subr.mxu0 0.0
        %2740 = vmatpush1.msra.mxu0 %v2351
        %2741 = vmatprep.subr.mxu0 0.0
        %2742 = vmatpush1.msra.mxu0 %v2352
        %2743 = vmatprep.subr.mxu0 0.0
        %2744 = vmatpush1.msra.mxu0 %v2353
        %2745 = vmatprep.subr.mxu0 0.0
        %2746 = vmatpush1.msra.mxu0 %v2354
        %2747 = vmatprep.subr.mxu0 0.0
        %2748 = vmatpush1.msra.mxu0 %v2355
        %2749 = vmatprep.subr.mxu0 0.0
        %2750 = vmatpush1.msra.mxu0 %v2356
        %2751 = vmatprep.subr.mxu0 0.0
        %2752 = vmatpush1.msra.mxu0 %v2357
        %2753 = vmatprep.subr.mxu0 0.0
        %2754 = vmatpush1.msra.mxu0 %v2358
        %2755 = vmatprep.subr.mxu0 0.0
        %2756 = vmatpush1.msra.mxu0 %v2359
        %2757 = vmatprep.subr.mxu0 0.0
        %2758 = vmatpush1.msra.mxu0 %v2360
        %2759 = vmatprep.subr.mxu0 0.0
        %2760 = vmatpush1.msra.mxu0 %v2361
        %2761 = vmatprep.subr.mxu0 0.0
        %2762 = vmatpush1.msra.mxu0 %v2362
        %2763 = vmatprep.subr.mxu0 0.0
        %2764 = vmatpush1.msra.mxu0 %v2363
        %2765 = vmatprep.subr.mxu0 0.0
        %2766 = vmatpush1.msra.mxu0 %v2364
        %2767 = vmatprep.subr.mxu0 0.0
        %2768 = vmatpush1.msra.mxu0 %v2365
        %2769 = vmatprep.subr.mxu0 0.0
        %2770 = vmatpush1.msra.mxu0 %v2366
        %2771 = vmatprep.subr.mxu0 0.0
        %2772 = vmatpush1.msra.mxu0 %v2367
        %2773 = vmatprep.subr.mxu0 0.0
        %2774 = vmatpush1.msra.mxu0 %v2368
        %2775 = vmatprep.subr.mxu0 0.0
        %2776 = vmatpush1.msra.mxu0 %v2369
        %2777 = vmatprep.subr.mxu0 0.0
        %2778 = vmatpush1.msra.mxu0 %v2370
        %2779 = vmatprep.subr.mxu0 0.0
        %2780 = vmatpush1.msra.mxu0 %v2371
        %2781 = vmatprep.mubr.f32.mxu0 %v2235
        %2782 = vmatmul.mubr.f32.gmra.mrb[0].mxu0 %v2234
        %v2783 = vpop.f32.mrb[0].mxu0
        %v2784 = vadd.f32 %v2714, %v2783
        %v2785 = vpop.f32.mrb[0].mxu0
        %2786 = vdwg.mxu0
        %2787 = vmatprep.subr.mxu0 0.0
        %2788 = vmatpush1.msra.mxu0 %v2372
        %2789 = vmatprep.subr.mxu0 0.0
        %2790 = vmatpush1.msra.mxu0 %v2373
        %2791 = vmatprep.subr.mxu0 0.0
        %2792 = vmatpush1.msra.mxu0 %v2374
        %2793 = vmatprep.subr.mxu0 0.0
        %2794 = vmatpush1.msra.mxu0 %v2375
        %2795 = vmatprep.subr.mxu0 0.0
        %2796 = vmatpush1.msra.mxu0 %v2376
        %2797 = vmatprep.subr.mxu0 0.0
        %2798 = vmatpush1.msra.mxu0 %v2377
        %2799 = vmatprep.subr.mxu0 0.0
        %2800 = vmatpush1.msra.mxu0 %v2378
        %2801 = vmatprep.subr.mxu0 0.0
        %2802 = vmatpush1.msra.mxu0 %v2379
        %2803 = vmatprep.subr.mxu0 0.0
        %2804 = vmatpush1.msra.mxu0 %v2380
        %2805 = vmatprep.subr.mxu0 0.0
        %2806 = vmatpush1.msra.mxu0 %v2381
        %2807 = vmatprep.subr.mxu0 0.0
        %2808 = vmatpush1.msra.mxu0 %v2382
        %2809 = vmatprep.subr.mxu0 0.0
        %2810 = vmatpush1.msra.mxu0 %v2383
        %2811 = vmatprep.subr.mxu0 0.0
        %2812 = vmatpush1.msra.mxu0 %v2384
        %2813 = vmatprep.subr.mxu0 0.0
        %2814 = vmatpush1.msra.mxu0 %v2385
        %2815 = vmatprep.subr.mxu0 0.0
        %2816 = vmatpush1.msra.mxu0 %v2386
        %2817 = vmatprep.subr.mxu0 0.0
        %2818 = vmatpush1.msra.mxu0 %v2387
        %2819 = vmatprep.subr.mxu0 0.0
        %2820 = vmatpush1.msra.mxu0 %v2388
        %2821 = vmatprep.subr.mxu0 0.0
        %2822 = vmatpush1.msra.mxu0 %v2389
        %2823 = vmatprep.subr.mxu0 0.0
        %2824 = vmatpush1.msra.mxu0 %v2390
        %2825 = vmatprep.subr.mxu0 0.0
        %2826 = vmatpush1.msra.mxu0 %v2391
        %2827 = vmatprep.subr.mxu0 0.0
        %2828 = vmatpush1.msra.mxu0 %v2392
        %2829 = vmatprep.subr.mxu0 0.0
        %2830 = vmatpush1.msra.mxu0 %v2393
        %2831 = vmatprep.subr.mxu0 0.0
        %2832 = vmatpush1.msra.mxu0 %v2394
        %2833 = vmatprep.subr.mxu0 0.0
        %2834 = vmatpush1.msra.mxu0 %v2395
        %2835 = vmatprep.subr.mxu0 0.0
        %2836 = vmatpush1.msra.mxu0 %v2396
        %2837 = vmatprep.subr.mxu0 0.0
        %2838 = vmatpush1.msra.mxu0 %v2397
        %2839 = vmatprep.subr.mxu0 0.0
        %2840 = vmatpush1.msra.mxu0 %v2398
        %2841 = vmatprep.subr.mxu0 0.0
        %2842 = vmatpush1.msra.mxu0 %v2399
        %2843 = vmatprep.subr.mxu0 0.0
        %2844 = vmatpush1.msra.mxu0 %v2400
        %2845 = vmatprep.subr.mxu0 0.0
        %2846 = vmatpush1.msra.mxu0 %v2401
        %2847 = vmatprep.subr.mxu0 0.0
        %2848 = vmatpush1.msra.mxu0 %v2402
        %2849 = vmatprep.subr.mxu0 0.0
        %2850 = vmatpush1.msra.mxu0 %v2403
        %2851 = vmatprep.mubr.f32.mxu0 %v2237
        %2852 = vmatmul.mubr.f32.gmra.mrb[0].mxu0 %v2236
        %v2853 = vpop.f32.mrb[0].mxu0
        %v2854 = vadd.f32 %v2784, %v2853
        %v2855 = vpop.f32.mrb[0].mxu0
        %2856 = vdwg.mxu0
        %2857 = vmatprep.subr.mxu0 0.0
        %2858 = vmatpush1.msra.mxu0 %v2404
        %2859 = vmatprep.subr.mxu0 0.0
        %2860 = vmatpush1.msra.mxu0 %v2405
        %2861 = vmatprep.subr.mxu0 0.0
        %2862 = vmatpush1.msra.mxu0 %v2406
        %2863 = vmatprep.subr.mxu0 0.0
        %2864 = vmatpush1.msra.mxu0 %v2407
        %2865 = vmatprep.subr.mxu0 0.0
        %2866 = vmatpush1.msra.mxu0 %v2408
        %2867 = vmatprep.subr.mxu0 0.0
        %2868 = vmatpush1.msra.mxu0 %v2409
        %2869 = vmatprep.subr.mxu0 0.0
        %2870 = vmatpush1.msra.mxu0 %v2410
        %2871 = vmatprep.subr.mxu0 0.0
        %2872 = vmatpush1.msra.mxu0 %v2411
        %2873 = vmatprep.subr.mxu0 0.0
        %2874 = vmatpush1.msra.mxu0 %v2412
        %2875 = vmatprep.subr.mxu0 0.0
        %2876 = vmatpush1.msra.mxu0 %v2413
        %2877 = vmatprep.subr.mxu0 0.0
        %2878 = vmatpush1.msra.mxu0 %v2414
        %2879 = vmatprep.subr.mxu0 0.0
        %2880 = vmatpush1.msra.mxu0 %v2415
        %2881 = vmatprep.subr.mxu0 0.0
        %2882 = vmatpush1.msra.mxu0 %v2416
        %2883 = vmatprep.subr.mxu0 0.0
        %2884 = vmatpush1.msra.mxu0 %v2417
        %2885 = vmatprep.subr.mxu0 0.0
        %2886 = vmatpush1.msra.mxu0 %v2418
        %2887 = vmatprep.subr.mxu0 0.0
        %2888 = vmatpush1.msra.mxu0 %v2419
        %2889 = vmatprep.subr.mxu0 0.0
        %2890 = vmatpush1.msra.mxu0 %v2420
        %2891 = vmatprep.subr.mxu0 0.0
        %2892 = vmatpush1.msra.mxu0 %v2421
        %2893 = vmatprep.subr.mxu0 0.0
        %2894 = vmatpush1.msra.mxu0 %v2422
        %2895 = vmatprep.subr.mxu0 0.0
        %2896 = vmatpush1.msra.mxu0 %v2423
        %2897 = vmatprep.subr.mxu0 0.0
        %2898 = vmatpush1.msra.mxu0 %v2424
        %2899 = vmatprep.subr.mxu0 0.0
        %2900 = vmatpush1.msra.mxu0 %v2425
        %2901 = vmatprep.subr.mxu0 0.0
        %2902 = vmatpush1.msra.mxu0 %v2426
        %2903 = vmatprep.subr.mxu0 0.0
        %2904 = vmatpush1.msra.mxu0 %v2427
        %2905 = vmatprep.subr.mxu0 0.0
        %2906 = vmatpush1.msra.mxu0 %v2428
        %2907 = vmatprep.subr.mxu0 0.0
        %2908 = vmatpush1.msra.mxu0 %v2429
        %2909 = vmatprep.subr.mxu0 0.0
        %2910 = vmatpush1.msra.mxu0 %v2430
        %2911 = vmatprep.subr.mxu0 0.0
        %2912 = vmatpush1.msra.mxu0 %v2431
        %2913 = vmatprep.subr.mxu0 0.0
        %2914 = vmatpush1.msra.mxu0 %v2432
        %2915 = vmatprep.subr.mxu0 0.0
        %2916 = vmatpush1.msra.mxu0 %v2433
        %2917 = vmatprep.subr.mxu0 0.0
        %2918 = vmatpush1.msra.mxu0 %v2434
        %2919 = vmatprep.subr.mxu0 0.0
        %2920 = vmatpush1.msra.mxu0 %v2435
        %2921 = vmatprep.mubr.f32.mxu0 %v2239
        %2922 = vmatmul.mubr.f32.gmra.mrb[0].mxu0 %v2238
        %v2923 = vpop.f32.mrb[0].mxu0
        %v2924 = vadd.f32 %v2854, %v2923
        %v2925 = vpop.f32.mrb[0].mxu0
        %2926 = vdwg.mxu0
        %2927 = vmatprep.subr.mxu0 0.0
        %2928 = vmatpush1.msra.mxu0 %v2436
        %2929 = vmatprep.subr.mxu0 0.0
        %2930 = vmatpush1.msra.mxu0 %v2437
        %2931 = vmatprep.subr.mxu0 0.0
        %2932 = vmatpush1.msra.mxu0 %v2438
        %2933 = vmatprep.subr.mxu0 0.0
        %2934 = vmatpush1.msra.mxu0 %v2439
        %2935 = vmatprep.subr.mxu0 0.0
        %2936 = vmatpush1.msra.mxu0 %v2440
        %2937 = vmatprep.subr.mxu0 0.0
        %2938 = vmatpush1.msra.mxu0 %v2441
        %2939 = vmatprep.subr.mxu0 0.0
        %2940 = vmatpush1.msra.mxu0 %v2442
        %2941 = vmatprep.subr.mxu0 0.0
        %2942 = vmatpush1.msra.mxu0 %v2443
        %2943 = vmatprep.subr.mxu0 0.0
        %2944 = vmatpush1.msra.mxu0 %v2444
        %2945 = vmatprep.subr.mxu0 0.0
        %2946 = vmatpush1.msra.mxu0 %v2445
        %2947 = vmatprep.subr.mxu0 0.0
        %2948 = vmatpush1.msra.mxu0 %v2446
        %2949 = vmatprep.subr.mxu0 0.0
        %2950 = vmatpush1.msra.mxu0 %v2447
        %2951 = vmatprep.subr.mxu0 0.0
        %2952 = vmatpush1.msra.mxu0 %v2448
        %2953 = vmatprep.subr.mxu0 0.0
        %2954 = vmatpush1.msra.mxu0 %v2449
        %2955 = vmatprep.subr.mxu0 0.0
        %2956 = vmatpush1.msra.mxu0 %v2450
        %2957 = vmatprep.subr.mxu0 0.0
        %2958 = vmatpush1.msra.mxu0 %v2451
        %2959 = vmatprep.subr.mxu0 0.0
        %2960 = vmatpush1.msra.mxu0 %v2452
        %2961 = vmatprep.subr.mxu0 0.0
        %2962 = vmatpush1.msra.mxu0 %v2453
        %2963 = vmatprep.subr.mxu0 0.0
        %2964 = vmatpush1.msra.mxu0 %v2454
        %2965 = vmatprep.subr.mxu0 0.0
        %2966 = vmatpush1.msra.mxu0 %v2455
        %2967 = vmatprep.subr.mxu0 0.0
        %2968 = vmatpush1.msra.mxu0 %v2456
        %2969 = vmatprep.subr.mxu0 0.0
        %2970 = vmatpush1.msra.mxu0 %v2457
        %2971 = vmatprep.subr.mxu0 0.0
        %2972 = vmatpush1.msra.mxu0 %v2458
        %2973 = vmatprep.subr.mxu0 0.0
        %2974 = vmatpush1.msra.mxu0 %v2459
        %2975 = vmatprep.subr.mxu0 0.0
        %2976 = vmatpush1.msra.mxu0 %v2460
        %2977 = vmatprep.subr.mxu0 0.0
        %2978 = vmatpush1.msra.mxu0 %v2461
        %2979 = vmatprep.subr.mxu0 0.0
        %2980 = vmatpush1.msra.mxu0 %v2462
        %2981 = vmatprep.subr.mxu0 0.0
        %2982 = vmatpush1.msra.mxu0 %v2463
        %2983 = vmatprep.subr.mxu0 0.0
        %2984 = vmatpush1.msra.mxu0 %v2464
        %2985 = vmatprep.subr.mxu0 0.0
        %2986 = vmatpush1.msra.mxu0 %v2465
        %2987 = vmatprep.subr.mxu0 0.0
        %2988 = vmatpush1.msra.mxu0 %v2466
        %2989 = vmatprep.subr.mxu0 0.0
        %2990 = vmatpush1.msra.mxu0 %v2467
        %2991 = vmatprep.mubr.f32.mxu0 %v2241
        %2992 = vmatmul.mubr.f32.gmra.mrb[0].mxu0 %v2240
        %v2993 = vpop.f32.mrb[0].mxu0
        %v2994 = vadd.f32 %v2924, %v2993
        %v2995 = vpop.f32.mrb[0].mxu0
        %2996 = vdwg.mxu0
        %2997 = vmatprep.subr.mxu0 0.0
        %2998 = vmatpush1.msra.mxu0 %v2468
        %2999 = vmatprep.subr.mxu0 0.0
        %3000 = vmatpush1.msra.mxu0 %v2469
        %3001 = vmatprep.subr.mxu0 0.0
        %3002 = vmatpush1.msra.mxu0 %v2470
        %3003 = vmatprep.subr.mxu0 0.0
        %3004 = vmatpush1.msra.mxu0 %v2471
        %3005 = vmatprep.subr.mxu0 0.0
        %3006 = vmatpush1.msra.mxu0 %v2472
        %3007 = vmatprep.subr.mxu0 0.0
        %3008 = vmatpush1.msra.mxu0 %v2473
        %3009 = vmatprep.subr.mxu0 0.0
        %3010 = vmatpush1.msra.mxu0 %v2474
        %3011 = vmatprep.subr.mxu0 0.0
        %3012 = vmatpush1.msra.mxu0 %v2475
        %3013 = vmatprep.subr.mxu0 0.0
        %3014 = vmatpush1.msra.mxu0 %v2476
        %3015 = vmatprep.subr.mxu0 0.0
        %3016 = vmatpush1.msra.mxu0 %v2477
        %3017 = vmatprep.subr.mxu0 0.0
        %3018 = vmatpush1.msra.mxu0 %v2478
        %3019 = vmatprep.subr.mxu0 0.0
        %3020 = vmatpush1.msra.mxu0 %v2479
        %3021 = vmatprep.subr.mxu0 0.0
        %3022 = vmatpush1.msra.mxu0 %v2480
        %3023 = vmatprep.subr.mxu0 0.0
        %3024 = vmatpush1.msra.mxu0 %v2481
        %3025 = vmatprep.subr.mxu0 0.0
        %3026 = vmatpush1.msra.mxu0 %v2482
        %3027 = vmatprep.subr.mxu0 0.0
        %3028 = vmatpush1.msra.mxu0 %v2483
        %3029 = vmatprep.subr.mxu0 0.0
        %3030 = vmatpush1.msra.mxu0 %v2484
        %3031 = vmatprep.subr.mxu0 0.0
        %3032 = vmatpush1.msra.mxu0 %v2485
        %3033 = vmatprep.subr.mxu0 0.0
        %3034 = vmatpush1.msra.mxu0 %v2486
        %3035 = vmatprep.subr.mxu0 0.0
        %3036 = vmatpush1.msra.mxu0 %v2487
        %3037 = vmatprep.subr.mxu0 0.0
        %3038 = vmatpush1.msra.mxu0 %v2488
        %3039 = vmatprep.subr.mxu0 0.0
        %3040 = vmatpush1.msra.mxu0 %v2489
        %3041 = vmatprep.subr.mxu0 0.0
        %3042 = vmatpush1.msra.mxu0 %v2490
        %3043 = vmatprep.subr.mxu0 0.0
        %3044 = vmatpush1.msra.mxu0 %v2491
        %3045 = vmatprep.subr.mxu0 0.0
        %3046 = vmatpush1.msra.mxu0 %v2492
        %3047 = vmatprep.subr.mxu0 0.0
        %3048 = vmatpush1.msra.mxu0 %v2493
        %3049 = vmatprep.subr.mxu0 0.0
        %3050 = vmatpush1.msra.mxu0 %v2494
        %3051 = vmatprep.subr.mxu0 0.0
        %3052 = vmatpush1.msra.mxu0 %v2495
        %3053 = vmatprep.subr.mxu0 0.0
        %3054 = vmatpush1.msra.mxu0 %v2496
        %3055 = vmatprep.subr.mxu0 0.0
        %3056 = vmatpush1.msra.mxu0 %v2497
        %3057 = vmatprep.subr.mxu0 0.0
        %3058 = vmatpush1.msra.mxu0 %v2498
        %3059 = vmatprep.subr.mxu0 0.0
        %3060 = vmatpush1.msra.mxu0 %v2499
        %3061 = vmatprep.mubr.f32.mxu0 %v2243
        %3062 = vmatmul.mubr.f32.gmra.mrb[0].mxu0 %v2242
        %v3063 = vpop.f32.mrb[0].mxu0
        %v3064 = vadd.f32 %v2994, %v3063
        %v3065 = vpop.f32.mrb[0].mxu0
        %3066 = vdwg.mxu0
        %v3067 = vadd.f32 %v1508, %v3064
        %v3068 = vld [vmem:[%s13] sm:$0x1]
        %v3069 = vld [vmem:[%s14] sm:$0x1]
        %v3070 = vsel %vm638, %v3067, 0.0
        %3071 = vadd.xlane.f32.xlu0 %v3070
        %v3072 = vpop.xlane.xlu0 %3071
        %v3073 = vmul.f32 %v3072, %v1484
        %v3074 = vsub.f32 %v3067, %v3073
        %v3075 = vmul.f32 %v3074, %v3074
        %v3076 = vsel %vm638, %v3075, 0.0
        %3077 = vadd.xlane.f32.xlu0 %v3076
        %v3078 = vpop.xlane.xlu0 %3077
        %v3079 = vmul.f32 %v3078, %v1484
        %v3080 = vadd.f32 %v3079, 1e-05
        %v3081 = vrsqrt.pop %v3080
        %v3082 = vmul.f32 %v3074, %v3081
        %v3084 = vlaneseq
        %v3085 = vshrl.u32 %v3084, 7
        %v3086 = vsub.s32 0, %v3085
        %v3087 = vrot.slane %v3068, %v3086
        %v3089 = vmul.f32 %v3082, %v3087
        %v3091 = vlaneseq
        %v3092 = vshrl.u32 %v3091, 7
        %v3093 = vsub.s32 0, %v3092
        %v3094 = vrot.slane %v3069, %v3093
        %v3096 = vadd.f32 %v3089, %v3094
        %s3097 = scalar_lea.vmem %s3, 32
        %v3098 = vld [vmem:[%s3097] sm:$0xff]
        %v3099 = vld [vmem:[%s3097 + $0x8] sm:$0xff]
        %v3100 = vld [vmem:[%s3097 + $0x10] sm:$0xff]
        %v3101 = vld [vmem:[%s3097 + $0x18] sm:$0xff]
        %s3102 = scalar_lea.vmem %s4, 1
        %v3103 = vld [vmem:[%s3102] sm:$0x1]
        %v3105 = vlaneseq
        %v3106 = vshrl.u32 %v3105, 7
        %v3107 = vsub.s32 0, %v3106
        %v3108 = vrot.slane %v3103, %v3107
        %v3111 = vsel %vm638, %v3096, 0
        %3113 = vmatprep.subr.mxu0 0.0
        %3114 = vmatpush1.msra.mxu0 %v3098
        %3115 = vmatprep.subr.mxu0 0.0
        %3116 = vmatpush1.msra.mxu0 %v3099
        %3117 = vmatprep.subr.mxu0 0.0
        %3118 = vmatpush1.msra.mxu0 %v3100
        %3119 = vmatprep.subr.mxu0 0.0
        %3120 = vmatpush1.msra.mxu0 %v3101
        %3121 = vmatprep.subr.mxu0 0.0
        %3122 = vmatpush1.msra.mxu0 0.0
        %3123 = vmatprep.subr.mxu0 0.0
        %3124 = vmatpush1.msra.mxu0 0.0
        %3125 = vmatprep.subr.mxu0 0.0
        %3126 = vmatpush1.msra.mxu0 0.0
        %3127 = vmatprep.subr.mxu0 0.0
        %3128 = vmatpush1.msra.mxu0 0.0
        %3129 = vmatprep.subr.mxu0 0.0
        %3130 = vmatpush1.msra.mxu0 0.0
        %3131 = vmatprep.subr.mxu0 0.0
        %3132 = vmatpush1.msra.mxu0 0.0
        %3133 = vmatprep.subr.mxu0 0.0
        %3134 = vmatpush1.msra.mxu0 0.0
        %3135 = vmatprep.subr.mxu0 0.0
        %3136 = vmatpush1.msra.mxu0 0.0
        %3137 = vmatprep.subr.mxu0 0.0
        %3138 = vmatpush1.msra.mxu0 0.0
        %3139 = vmatprep.subr.mxu0 0.0
        %3140 = vmatpush1.msra.mxu0 0.0
        %3141 = vmatprep.subr.mxu0 0.0
        %3142 = vmatpush1.msra.mxu0 0.0
        %3143 = vmatprep.subr.mxu0 0.0
        %3144 = vmatpush1.msra.mxu0 0.0
        %3145 = vmatprep.subr.mxu0 0.0
        %3146 = vmatpush1.msra.mxu0 0.0
        %3147 = vmatprep.subr.mxu0 0.0
        %3148 = vmatpush1.msra.mxu0 0.0
        %3149 = vmatprep.subr.mxu0 0.0
        %3150 = vmatpush1.msra.mxu0 0.0
        %3151 = vmatprep.subr.mxu0 0.0
        %3152 = vmatpush1.msra.mxu0 0.0
        %3153 = vmatprep.subr.mxu0 0.0
        %3154 = vmatpush1.msra.mxu0 0.0
        %3155 = vmatprep.subr.mxu0 0.0
        %3156 = vmatpush1.msra.mxu0 0.0
        %3157 = vmatprep.subr.mxu0 0.0
        %3158 = vmatpush1.msra.mxu0 0.0
        %3159 = vmatprep.subr.mxu0 0.0
        %3160 = vmatpush1.msra.mxu0 0.0
        %3161 = vmatprep.subr.mxu0 0.0
        %3162 = vmatpush1.msra.mxu0 0.0
        %3163 = vmatprep.subr.mxu0 0.0
        %3164 = vmatpush1.msra.mxu0 0.0
        %3165 = vmatprep.subr.mxu0 0.0
        %3166 = vmatpush1.msra.mxu0 0.0
        %3167 = vmatprep.subr.mxu0 0.0
        %3168 = vmatpush1.msra.mxu0 0.0
        %3169 = vmatprep.subr.mxu0 0.0
        %3170 = vmatpush1.msra.mxu0 0.0
        %3171 = vmatprep.subr.mxu0 0.0
        %3172 = vmatpush1.msra.mxu0 0.0
        %3173 = vmatprep.subr.mxu0 0.0
        %3174 = vmatpush1.msra.mxu0 0.0
        %3175 = vmatprep.subr.mxu0 0.0
        %3176 = vmatpush1.msra.mxu0 0.0
        %3177 = vmatprep.mubr.f32.mxu0 0.0
        %3178 = vmatmul.mubr.f32.gmra.mrb[0].mxu0 %v3111
        %v3179 = vpop.f32.mrb[0].mxu0
        %v3180 = vadd.f32 %v3108, %v3179
        %v3181 = vpop.f32.mrb[0].mxu0
        %3182 = vdwg.mxu0
        %v3183 = vmul.f32 %v3180, 0.35355338
        %3185 = vrot.lane.b32.xlu0 %v3180, 96
        %v3186 = vpop.permute.xlu0 %3185
        %v3188 = vsel %vm716, %v3183, 0
        %v3190 = vsel %vm716, %v3186, 0
        %3192 = vmatprep.subr.mxu0 0.0
        %3193 = vmatpush1.xpose.msra.mxu0 %v3190
        %3194 = vmatprep.subr.mxu0 0.0
        %3195 = vmatpush1.xpose.msra.mxu0 0.0
        %3196 = vmatprep.subr.mxu0 0.0
        %3197 = vmatpush1.xpose.msra.mxu0 0.0
        %3198 = vmatprep.subr.mxu0 0.0
        %3199 = vmatpush1.xpose.msra.mxu0 0.0
        %3200 = vmatprep.subr.mxu0 0.0
        %3201 = vmatpush1.xpose.msra.mxu0 0.0
        %3202 = vmatprep.subr.mxu0 0.0
        %3203 = vmatpush1.xpose.msra.mxu0 0.0
        %3204 = vmatprep.subr.mxu0 0.0
        %3205 = vmatpush1.xpose.msra.mxu0 0.0
        %3206 = vmatprep.subr.mxu0 0.0
        %3207 = vmatpush1.xpose.msra.mxu0 0.0
        %3208 = vmatprep.subr.mxu0 0.0
        %3209 = vmatpush1.xpose.msra.mxu0 0.0
        %3210 = vmatprep.subr.mxu0 0.0
        %3211 = vmatpush1.xpose.msra.mxu0 0.0
        %3212 = vmatprep.subr.mxu0 0.0
        %3213 = vmatpush1.xpose.msra.mxu0 0.0
        %3214 = vmatprep.subr.mxu0 0.0
        %3215 = vmatpush1.xpose.msra.mxu0 0.0
        %3216 = vmatprep.subr.mxu0 0.0
        %3217 = vmatpush1.xpose.msra.mxu0 0.0
        %3218 = vmatprep.subr.mxu0 0.0
        %3219 = vmatpush1.xpose.msra.mxu0 0.0
        %3220 = vmatprep.subr.mxu0 0.0
        %3221 = vmatpush1.xpose.msra.mxu0 0.0
        %3222 = vmatprep.subr.mxu0 0.0
        %3223 = vmatpush1.xpose.msra.mxu0 0.0
        %3224 = vmatprep.subr.mxu0 0.0
        %3225 = vmatpush1.xpose.msra.mxu0 0.0
        %3226 = vmatprep.subr.mxu0 0.0
        %3227 = vmatpush1.xpose.msra.mxu0 0.0
        %3228 = vmatprep.subr.mxu0 0.0
        %3229 = vmatpush1.xpose.msra.mxu0 0.0
        %3230 = vmatprep.subr.mxu0 0.0
        %3231 = vmatpush1.xpose.msra.mxu0 0.0
        %3232 = vmatprep.subr.mxu0 0.0
        %3233 = vmatpush1.xpose.msra.mxu0 0.0
        %3234 = vmatprep.subr.mxu0 0.0
        %3235 = vmatpush1.xpose.msra.mxu0 0.0
        %3236 = vmatprep.subr.mxu0 0.0
        %3237 = vmatpush1.xpose.msra.mxu0 0.0
        %3238 = vmatprep.subr.mxu0 0.0
        %3239 = vmatpush1.xpose.msra.mxu0 0.0
        %3240 = vmatprep.subr.mxu0 0.0
        %3241 = vmatpush1.xpose.msra.mxu0 0.0
        %3242 = vmatprep.subr.mxu0 0.0
        %3243 = vmatpush1.xpose.msra.mxu0 0.0
        %3244 = vmatprep.subr.mxu0 0.0
        %3245 = vmatpush1.xpose.msra.mxu0 0.0
        %3246 = vmatprep.subr.mxu0 0.0
        %3247 = vmatpush1.xpose.msra.mxu0 0.0
        %3248 = vmatprep.subr.mxu0 0.0
        %3249 = vmatpush1.xpose.msra.mxu0 0.0
        %3250 = vmatprep.subr.mxu0 0.0
        %3251 = vmatpush1.xpose.msra.mxu0 0.0
        %3252 = vmatprep.subr.mxu0 0.0
        %3253 = vmatpush1.xpose.msra.mxu0 0.0
        %3254 = vmatprep.subr.mxu0 0.0
        %3255 = vmatpush1.xpose.msra.mxu0 0.0
        %3256 = vmatprep.mubr.f32.mxu0 0.0
        %3257 = vmatmul.mubr.f32.gmra.mrb[0].mxu0 %v3188
        %v3258 = vpop.f32.mrb[0].mxu0
        %v3259 = vadd.f32 0.0, %v3258
        %v3260 = vpop.f32.mrb[0].mxu0
        %3261 = vdwg.mxu0
        %v3262 = vsel %vm716, %v3259, -inf
        %3263 = vmax.xlane.f32.xlu0 %v3262
        %v3264 = vpop.xlane.xlu0 %3263
        %v3265 = vsub.f32 %v3259, %v3264
        %v3266 = vmul.f32 %v3265, 1.442695
        %v3267 = vpow.pop %v3266
        %v3268 = vsel %vm716, %v3267, 0.0
        %3269 = vadd.xlane.f32.xlu0 %v3268
        %v3270 = vpop.xlane.xlu0 %3269
        %3271 = vrot.lane.b32.xlu0 %v3180, 64
        %v3272 = vpop.permute.xlu0 %3271
        %v3275 = vsel %vm716, %v3267, 0
        %3277 = vmatprep.subr.mxu0 0.0
        %3278 = vmatpush1.msra.mxu0 %v3272
        %3279 = vmatprep.subr.mxu0 0.0
        %3280 = vmatpush1.msra.mxu0 0.0
        %3281 = vmatprep.subr.mxu0 0.0
        %3282 = vmatpush1.msra.mxu0 0.0
        %3283 = vmatprep.subr.mxu0 0.0
        %3284 = vmatpush1.msra.mxu0 0.0
        %3285 = vmatprep.subr.mxu0 0.0
        %3286 = vmatpush1.msra.mxu0 0.0
        %3287 = vmatprep.subr.mxu0 0.0
        %3288 = vmatpush1.msra.mxu0 0.0
        %3289 = vmatprep.subr.mxu0 0.0
        %3290 = vmatpush1.msra.mxu0 0.0
        %3291 = vmatprep.subr.mxu0 0.0
        %3292 = vmatpush1.msra.mxu0 0.0
        %3293 = vmatprep.subr.mxu0 0.0
        %3294 = vmatpush1.msra.mxu0 0.0
        %3295 = vmatprep.subr.mxu0 0.0
        %3296 = vmatpush1.msra.mxu0 0.0
        %3297 = vmatprep.subr.mxu0 0.0
        %3298 = vmatpush1.msra.mxu0 0.0
        %3299 = vmatprep.subr.mxu0 0.0
        %3300 = vmatpush1.msra.mxu0 0.0
        %3301 = vmatprep.subr.mxu0 0.0
        %3302 = vmatpush1.msra.mxu0 0.0
        %3303 = vmatprep.subr.mxu0 0.0
        %3304 = vmatpush1.msra.mxu0 0.0
        %3305 = vmatprep.subr.mxu0 0.0
        %3306 = vmatpush1.msra.mxu0 0.0
        %3307 = vmatprep.subr.mxu0 0.0
        %3308 = vmatpush1.msra.mxu0 0.0
        %3309 = vmatprep.subr.mxu0 0.0
        %3310 = vmatpush1.msra.mxu0 0.0
        %3311 = vmatprep.subr.mxu0 0.0
        %3312 = vmatpush1.msra.mxu0 0.0
        %3313 = vmatprep.subr.mxu0 0.0
        %3314 = vmatpush1.msra.mxu0 0.0
        %3315 = vmatprep.subr.mxu0 0.0
        %3316 = vmatpush1.msra.mxu0 0.0
        %3317 = vmatprep.subr.mxu0 0.0
        %3318 = vmatpush1.msra.mxu0 0.0
        %3319 = vmatprep.subr.mxu0 0.0
        %3320 = vmatpush1.msra.mxu0 0.0
        %3321 = vmatprep.subr.mxu0 0.0
        %3322 = vmatpush1.msra.mxu0 0.0
        %3323 = vmatprep.subr.mxu0 0.0
        %3324 = vmatpush1.msra.mxu0 0.0
        %3325 = vmatprep.subr.mxu0 0.0
        %3326 = vmatpush1.msra.mxu0 0.0
        %3327 = vmatprep.subr.mxu0 0.0
        %3328 = vmatpush1.msra.mxu0 0.0
        %3329 = vmatprep.subr.mxu0 0.0
        %3330 = vmatpush1.msra.mxu0 0.0
        %3331 = vmatprep.subr.mxu0 0.0
        %3332 = vmatpush1.msra.mxu0 0.0
        %3333 = vmatprep.subr.mxu0 0.0
        %3334 = vmatpush1.msra.mxu0 0.0
        %3335 = vmatprep.subr.mxu0 0.0
        %3336 = vmatpush1.msra.mxu0 0.0
        %3337 = vmatprep.subr.mxu0 0.0
        %3338 = vmatpush1.msra.mxu0 0.0
        %3339 = vmatprep.subr.mxu0 0.0
        %3340 = vmatpush1.msra.mxu0 0.0
        %3341 = vmatprep.mubr.f32.mxu0 0.0
        %3342 = vmatmul.mubr.f32.gmra.mrb[0].mxu0 %v3275
        %v3343 = vpop.f32.mrb[0].mxu0
        %v3344 = vadd.f32 0.0, %v3343
        %v3345 = vpop.f32.mrb[0].mxu0
        %3346 = vdwg.mxu0
        %v3347 = vrcp.pop %v3270
        %v3348 = vmul.f32 %v3344, %v3347
        %3349 = vst.msk [vmem:[#allocation2] sm:$0xff] %vm716, %v3348
        %3350 = vrot.lane.b32.xlu0 %v3183, 120
        %v3351 = vpop.permute.xlu0 %3350
        %3352 = vrot.lane.b32.xlu0 %v3180, 88
        %v3353 = vpop.permute.xlu0 %3352
        %v3354 = vsel %vm716, %v3351, 0
        %v3356 = vsel %vm716, %v3353, 0
        %3358 = vmatprep.subr.mxu0 0.0
        %3359 = vmatpush1.xpose.msra.mxu0 %v3356
        %3360 = vmatprep.subr.mxu0 0.0
        %3361 = vmatpush1.xpose.msra.mxu0 0.0
        %3362 = vmatprep.subr.mxu0 0.0
        %3363 = vmatpush1.xpose.msra.mxu0 0.0
        %3364 = vmatprep.subr.mxu0 0.0
        %3365 = vmatpush1.xpose.msra.mxu0 0.0
        %3366 = vmatprep.subr.mxu0 0.0
        %3367 = vmatpush1.xpose.msra.mxu0 0.0
        %3368 = vmatprep.subr.mxu0 0.0
        %3369 = vmatpush1.xpose.msra.mxu0 0.0
        %3370 = vmatprep.subr.mxu0 0.0
        %3371 = vmatpush1.xpose.msra.mxu0 0.0
        %3372 = vmatprep.subr.mxu0 0.0
        %3373 = vmatpush1.xpose.msra.mxu0 0.0
        %3374 = vmatprep.subr.mxu0 0.0
        %3375 = vmatpush1.xpose.msra.mxu0 0.0
        %3376 = vmatprep.subr.mxu0 0.0
        %3377 = vmatpush1.xpose.msra.mxu0 0.0
        %3378 = vmatprep.subr.mxu0 0.0
        %3379 = vmatpush1.xpose.msra.mxu0 0.0
        %3380 = vmatprep.subr.mxu0 0.0
        %3381 = vmatpush1.xpose.msra.mxu0 0.0
        %3382 = vmatprep.subr.mxu0 0.0
        %3383 = vmatpush1.xpose.msra.mxu0 0.0
        %3384 = vmatprep.subr.mxu0 0.0
        %3385 = vmatpush1.xpose.msra.mxu0 0.0
        %3386 = vmatprep.subr.mxu0 0.0
        %3387 = vmatpush1.xpose.msra.mxu0 0.0
        %3388 = vmatprep.subr.mxu0 0.0
        %3389 = vmatpush1.xpose.msra.mxu0 0.0
        %3390 = vmatprep.subr.mxu0 0.0
        %3391 = vmatpush1.xpose.msra.mxu0 0.0
        %3392 = vmatprep.subr.mxu0 0.0
        %3393 = vmatpush1.xpose.msra.mxu0 0.0
        %3394 = vmatprep.subr.mxu0 0.0
        %3395 = vmatpush1.xpose.msra.mxu0 0.0
        %3396 = vmatprep.subr.mxu0 0.0
        %3397 = vmatpush1.xpose.msra.mxu0 0.0
        %3398 = vmatprep.subr.mxu0 0.0
        %3399 = vmatpush1.xpose.msra.mxu0 0.0
        %3400 = vmatprep.subr.mxu0 0.0
        %3401 = vmatpush1.xpose.msra.mxu0 0.0
        %3402 = vmatprep.subr.mxu0 0.0
        %3403 = vmatpush1.xpose.msra.mxu0 0.0
        %3404 = vmatprep.subr.mxu0 0.0
        %3405 = vmatpush1.xpose.msra.mxu0 0.0
        %3406 = vmatprep.subr.mxu0 0.0
        %3407 = vmatpush1.xpose.msra.mxu0 0.0
        %3408 = vmatprep.subr.mxu0 0.0
        %3409 = vmatpush1.xpose.msra.mxu0 0.0
        %3410 = vmatprep.subr.mxu0 0.0
        %3411 = vmatpush1.xpose.msra.mxu0 0.0
        %3412 = vmatprep.subr.mxu0 0.0
        %3413 = vmatpush1.xpose.msra.mxu0 0.0
        %3414 = vmatprep.subr.mxu0 0.0
        %3415 = vmatpush1.xpose.msra.mxu0 0.0
        %3416 = vmatprep.subr.mxu0 0.0
        %3417 = vmatpush1.xpose.msra.mxu0 0.0
        %3418 = vmatprep.subr.mxu0 0.0
        %3419 = vmatpush1.xpose.msra.mxu0 0.0
        %3420 = vmatprep.subr.mxu0 0.0
        %3421 = vmatpush1.xpose.msra.mxu0 0.0
        %3422 = vmatprep.mubr.f32.mxu0 0.0
        %3423 = vmatmul.mubr.f32.gmra.mrb[0].mxu0 %v3354
        %v3424 = vpop.f32.mrb[0].mxu0
        %v3425 = vadd.f32 0.0, %v3424
        %v3426 = vpop.f32.mrb[0].mxu0
        %3427 = vdwg.mxu0
        %v3428 = vsel %vm716, %v3425, -inf
        %3429 = vmax.xlane.f32.xlu0 %v3428
        %v3430 = vpop.xlane.xlu0 %3429
        %v3431 = vsub.f32 %v3425, %v3430
        %v3432 = vmul.f32 %v3431, 1.442695
        %v3433 = vpow.pop %v3432
        %v3434 = vsel %vm716, %v3433, 0.0
        %3435 = vadd.xlane.f32.xlu0 %v3434
        %v3436 = vpop.xlane.xlu0 %3435
        %3437 = vrot.lane.b32.xlu0 %v3180, 56
        %v3438 = vpop.permute.xlu0 %3437
        %v3441 = vsel %vm716, %v3433, 0
        %3443 = vmatprep.subr.mxu0 0.0
        %3444 = vmatpush1.msra.mxu0 %v3438
        %3445 = vmatprep.subr.mxu0 0.0
        %3446 = vmatpush1.msra.mxu0 0.0
        %3447 = vmatprep.subr.mxu0 0.0
        %3448 = vmatpush1.msra.mxu0 0.0
        %3449 = vmatprep.subr.mxu0 0.0
        %3450 = vmatpush1.msra.mxu0 0.0
        %3451 = vmatprep.subr.mxu0 0.0
        %3452 = vmatpush1.msra.mxu0 0.0
        %3453 = vmatprep.subr.mxu0 0.0
        %3454 = vmatpush1.msra.mxu0 0.0
        %3455 = vmatprep.subr.mxu0 0.0
        %3456 = vmatpush1.msra.mxu0 0.0
        %3457 = vmatprep.subr.mxu0 0.0
        %3458 = vmatpush1.msra.mxu0 0.0
        %3459 = vmatprep.subr.mxu0 0.0
        %3460 = vmatpush1.msra.mxu0 0.0
        %3461 = vmatprep.subr.mxu0 0.0
        %3462 = vmatpush1.msra.mxu0 0.0
        %3463 = vmatprep.subr.mxu0 0.0
        %3464 = vmatpush1.msra.mxu0 0.0
        %3465 = vmatprep.subr.mxu0 0.0
        %3466 = vmatpush1.msra.mxu0 0.0
        %3467 = vmatprep.subr.mxu0 0.0
        %3468 = vmatpush1.msra.mxu0 0.0
        %3469 = vmatprep.subr.mxu0 0.0
        %3470 = vmatpush1.msra.mxu0 0.0
        %3471 = vmatprep.subr.mxu0 0.0
        %3472 = vmatpush1.msra.mxu0 0.0
        %3473 = vmatprep.subr.mxu0 0.0
        %3474 = vmatpush1.msra.mxu0 0.0
        %3475 = vmatprep.subr.mxu0 0.0
        %3476 = vmatpush1.msra.mxu0 0.0
        %3477 = vmatprep.subr.mxu0 0.0
        %3478 = vmatpush1.msra.mxu0 0.0
        %3479 = vmatprep.subr.mxu0 0.0
        %3480 = vmatpush1.msra.mxu0 0.0
        %3481 = vmatprep.subr.mxu0 0.0
        %3482 = vmatpush1.msra.mxu0 0.0
        %3483 = vmatprep.subr.mxu0 0.0
        %3484 = vmatpush1.msra.mxu0 0.0
        %3485 = vmatprep.subr.mxu0 0.0
        %3486 = vmatpush1.msra.mxu0 0.0
        %3487 = vmatprep.subr.mxu0 0.0
        %3488 = vmatpush1.msra.mxu0 0.0
        %3489 = vmatprep.subr.mxu0 0.0
        %3490 = vmatpush1.msra.mxu0 0.0
        %3491 = vmatprep.subr.mxu0 0.0
        %3492 = vmatpush1.msra.mxu0 0.0
        %3493 = vmatprep.subr.mxu0 0.0
        %3494 = vmatpush1.msra.mxu0 0.0
        %3495 = vmatprep.subr.mxu0 0.0
        %3496 = vmatpush1.msra.mxu0 0.0
        %3497 = vmatprep.subr.mxu0 0.0
        %3498 = vmatpush1.msra.mxu0 0.0
        %3499 = vmatprep.subr.mxu0 0.0
        %3500 = vmatpush1.msra.mxu0 0.0
        %3501 = vmatprep.subr.mxu0 0.0
        %3502 = vmatpush1.msra.mxu0 0.0
        %3503 = vmatprep.subr.mxu0 0.0
        %3504 = vmatpush1.msra.mxu0 0.0
        %3505 = vmatprep.subr.mxu0 0.0
        %3506 = vmatpush1.msra.mxu0 0.0
        %3507 = vmatprep.mubr.f32.mxu0 0.0
        %3508 = vmatmul.mubr.f32.gmra.mrb[0].mxu0 %v3441
        %v3509 = vpop.f32.mrb[0].mxu0
        %v3510 = vadd.f32 0.0, %v3509
        %v3511 = vpop.f32.mrb[0].mxu0
        %3512 = vdwg.mxu0
        %v3513 = vrcp.pop %v3436
        %v3514 = vmul.f32 %v3510, %v3513
        %3516 = vrot.lane.b32.xlu0 %v3514, 8
        %v3517 = vpop.permute.xlu0 %3516
        %3519 = vst.msk [vmem:[#allocation2] sm:$0xff] %vm1049, %v3517
        %3520 = vrot.lane.b32.xlu0 %v3183, 112
        %v3521 = vpop.permute.xlu0 %3520
        %3522 = vrot.lane.b32.xlu0 %v3180, 80
        %v3523 = vpop.permute.xlu0 %3522
        %v3524 = vsel %vm716, %v3521, 0
        %v3526 = vsel %vm716, %v3523, 0
        %3528 = vmatprep.subr.mxu0 0.0
        %3529 = vmatpush1.xpose.msra.mxu0 %v3526
        %3530 = vmatprep.subr.mxu0 0.0
        %3531 = vmatpush1.xpose.msra.mxu0 0.0
        %3532 = vmatprep.subr.mxu0 0.0
        %3533 = vmatpush1.xpose.msra.mxu0 0.0
        %3534 = vmatprep.subr.mxu0 0.0
        %3535 = vmatpush1.xpose.msra.mxu0 0.0
        %3536 = vmatprep.subr.mxu0 0.0
        %3537 = vmatpush1.xpose.msra.mxu0 0.0
        %3538 = vmatprep.subr.mxu0 0.0
        %3539 = vmatpush1.xpose.msra.mxu0 0.0
        %3540 = vmatprep.subr.mxu0 0.0
        %3541 = vmatpush1.xpose.msra.mxu0 0.0
        %3542 = vmatprep.subr.mxu0 0.0
        %3543 = vmatpush1.xpose.msra.mxu0 0.0
        %3544 = vmatprep.subr.mxu0 0.0
        %3545 = vmatpush1.xpose.msra.mxu0 0.0
        %3546 = vmatprep.subr.mxu0 0.0
        %3547 = vmatpush1.xpose.msra.mxu0 0.0
        %3548 = vmatprep.subr.mxu0 0.0
        %3549 = vmatpush1.xpose.msra.mxu0 0.0
        %3550 = vmatprep.subr.mxu0 0.0
        %3551 = vmatpush1.xpose.msra.mxu0 0.0
        %3552 = vmatprep.subr.mxu0 0.0
        %3553 = vmatpush1.xpose.msra.mxu0 0.0
        %3554 = vmatprep.subr.mxu0 0.0
        %3555 = vmatpush1.xpose.msra.mxu0 0.0
        %3556 = vmatprep.subr.mxu0 0.0
        %3557 = vmatpush1.xpose.msra.mxu0 0.0
        %3558 = vmatprep.subr.mxu0 0.0
        %3559 = vmatpush1.xpose.msra.mxu0 0.0
        %3560 = vmatprep.subr.mxu0 0.0
        %3561 = vmatpush1.xpose.msra.mxu0 0.0
        %3562 = vmatprep.subr.mxu0 0.0
        %3563 = vmatpush1.xpose.msra.mxu0 0.0
        %3564 = vmatprep.subr.mxu0 0.0
        %3565 = vmatpush1.xpose.msra.mxu0 0.0
        %3566 = vmatprep.subr.mxu0 0.0
        %3567 = vmatpush1.xpose.msra.mxu0 0.0
        %3568 = vmatprep.subr.mxu0 0.0
        %3569 = vmatpush1.xpose.msra.mxu0 0.0
        %3570 = vmatprep.subr.mxu0 0.0
        %3571 = vmatpush1.xpose.msra.mxu0 0.0
        %3572 = vmatprep.subr.mxu0 0.0
        %3573 = vmatpush1.xpose.msra.mxu0 0.0
        %3574 = vmatprep.subr.mxu0 0.0
        %3575 = vmatpush1.xpose.msra.mxu0 0.0
        %3576 = vmatprep.subr.mxu0 0.0
        %3577 = vmatpush1.xpose.msra.mxu0 0.0
        %3578 = vmatprep.subr.mxu0 0.0
        %3579 = vmatpush1.xpose.msra.mxu0 0.0
        %3580 = vmatprep.subr.mxu0 0.0
        %3581 = vmatpush1.xpose.msra.mxu0 0.0
        %3582 = vmatprep.subr.mxu0 0.0
        %3583 = vmatpush1.xpose.msra.mxu0 0.0
        %3584 = vmatprep.subr.mxu0 0.0
        %3585 = vmatpush1.xpose.msra.mxu0 0.0
        %3586 = vmatprep.subr.mxu0 0.0
        %3587 = vmatpush1.xpose.msra.mxu0 0.0
        %3588 = vmatprep.subr.mxu0 0.0
        %3589 = vmatpush1.xpose.msra.mxu0 0.0
        %3590 = vmatprep.subr.mxu0 0.0
        %3591 = vmatpush1.xpose.msra.mxu0 0.0
        %3592 = vmatprep.mubr.f32.mxu0 0.0
        %3593 = vmatmul.mubr.f32.gmra.mrb[0].mxu0 %v3524
        %v3594 = vpop.f32.mrb[0].mxu0
        %v3595 = vadd.f32 0.0, %v3594
        %v3596 = vpop.f32.mrb[0].mxu0
        %3597 = vdwg.mxu0
        %v3598 = vsel %vm716, %v3595, -inf
        %3599 = vmax.xlane.f32.xlu0 %v3598
        %v3600 = vpop.xlane.xlu0 %3599
        %v3601 = vsub.f32 %v3595, %v3600
        %v3602 = vmul.f32 %v3601, 1.442695
        %v3603 = vpow.pop %v3602
        %v3604 = vsel %vm716, %v3603, 0.0
        %3605 = vadd.xlane.f32.xlu0 %v3604
        %v3606 = vpop.xlane.xlu0 %3605
        %3607 = vrot.lane.b32.xlu0 %v3180, 48
        %v3608 = vpop.permute.xlu0 %3607
        %v3611 = vsel %vm716, %v3603, 0
        %3613 = vmatprep.subr.mxu0 0.0
        %3614 = vmatpush1.msra.mxu0 %v3608
        %3615 = vmatprep.subr.mxu0 0.0
        %3616 = vmatpush1.msra.mxu0 0.0
        %3617 = vmatprep.subr.mxu0 0.0
        %3618 = vmatpush1.msra.mxu0 0.0
        %3619 = vmatprep.subr.mxu0 0.0
        %3620 = vmatpush1.msra.mxu0 0.0
        %3621 = vmatprep.subr.mxu0 0.0
        %3622 = vmatpush1.msra.mxu0 0.0
        %3623 = vmatprep.subr.mxu0 0.0
        %3624 = vmatpush1.msra.mxu0 0.0
        %3625 = vmatprep.subr.mxu0 0.0
        %3626 = vmatpush1.msra.mxu0 0.0
        %3627 = vmatprep.subr.mxu0 0.0
        %3628 = vmatpush1.msra.mxu0 0.0
        %3629 = vmatprep.subr.mxu0 0.0
        %3630 = vmatpush1.msra.mxu0 0.0
        %3631 = vmatprep.subr.mxu0 0.0
        %3632 = vmatpush1.msra.mxu0 0.0
        %3633 = vmatprep.subr.mxu0 0.0
        %3634 = vmatpush1.msra.mxu0 0.0
        %3635 = vmatprep.subr.mxu0 0.0
        %3636 = vmatpush1.msra.mxu0 0.0
        %3637 = vmatprep.subr.mxu0 0.0
        %3638 = vmatpush1.msra.mxu0 0.0
        %3639 = vmatprep.subr.mxu0 0.0
        %3640 = vmatpush1.msra.mxu0 0.0
        %3641 = vmatprep.subr.mxu0 0.0
        %3642 = vmatpush1.msra.mxu0 0.0
        %3643 = vmatprep.subr.mxu0 0.0
        %3644 = vmatpush1.msra.mxu0 0.0
        %3645 = vmatprep.subr.mxu0 0.0
        %3646 = vmatpush1.msra.mxu0 0.0
        %3647 = vmatprep.subr.mxu0 0.0
        %3648 = vmatpush1.msra.mxu0 0.0
        %3649 = vmatprep.subr.mxu0 0.0
        %3650 = vmatpush1.msra.mxu0 0.0
        %3651 = vmatprep.subr.mxu0 0.0
        %3652 = vmatpush1.msra.mxu0 0.0
        %3653 = vmatprep.subr.mxu0 0.0
        %3654 = vmatpush1.msra.mxu0 0.0
        %3655 = vmatprep.subr.mxu0 0.0
        %3656 = vmatpush1.msra.mxu0 0.0
        %3657 = vmatprep.subr.mxu0 0.0
        %3658 = vmatpush1.msra.mxu0 0.0
        %3659 = vmatprep.subr.mxu0 0.0
        %3660 = vmatpush1.msra.mxu0 0.0
        %3661 = vmatprep.subr.mxu0 0.0
        %3662 = vmatpush1.msra.mxu0 0.0
        %3663 = vmatprep.subr.mxu0 0.0
        %3664 = vmatpush1.msra.mxu0 0.0
        %3665 = vmatprep.subr.mxu0 0.0
        %3666 = vmatpush1.msra.mxu0 0.0
        %3667 = vmatprep.subr.mxu0 0.0
        %3668 = vmatpush1.msra.mxu0 0.0
        %3669 = vmatprep.subr.mxu0 0.0
        %3670 = vmatpush1.msra.mxu0 0.0
        %3671 = vmatprep.subr.mxu0 0.0
        %3672 = vmatpush1.msra.mxu0 0.0
        %3673 = vmatprep.subr.mxu0 0.0
        %3674 = vmatpush1.msra.mxu0 0.0
        %3675 = vmatprep.subr.mxu0 0.0
        %3676 = vmatpush1.msra.mxu0 0.0
        %3677 = vmatprep.mubr.f32.mxu0 0.0
        %3678 = vmatmul.mubr.f32.gmra.mrb[0].mxu0 %v3611
        %v3679 = vpop.f32.mrb[0].mxu0
        %v3680 = vadd.f32 0.0, %v3679
        %v3681 = vpop.f32.mrb[0].mxu0
        %3682 = vdwg.mxu0
        %v3683 = vrcp.pop %v3606
        %v3684 = vmul.f32 %v3680, %v3683
        %3686 = vrot.lane.b32.xlu0 %v3684, 16
        %v3687 = vpop.permute.xlu0 %3686
        %3689 = vst.msk [vmem:[#allocation2] sm:$0xff] %vm1220, %v3687
        %3690 = vrot.lane.b32.xlu0 %v3183, 104
        %v3691 = vpop.permute.xlu0 %3690
        %3692 = vrot.lane.b32.xlu0 %v3180, 72
        %v3693 = vpop.permute.xlu0 %3692
        %v3694 = vsel %vm716, %v3691, 0
        %v3696 = vsel %vm716, %v3693, 0
        %3698 = vmatprep.subr.mxu0 0.0
        %3699 = vmatpush1.xpose.msra.mxu0 %v3696
        %3700 = vmatprep.subr.mxu0 0.0
        %3701 = vmatpush1.xpose.msra.mxu0 0.0
        %3702 = vmatprep.subr.mxu0 0.0
        %3703 = vmatpush1.xpose.msra.mxu0 0.0
        %3704 = vmatprep.subr.mxu0 0.0
        %3705 = vmatpush1.xpose.msra.mxu0 0.0
        %3706 = vmatprep.subr.mxu0 0.0
        %3707 = vmatpush1.xpose.msra.mxu0 0.0
        %3708 = vmatprep.subr.mxu0 0.0
        %3709 = vmatpush1.xpose.msra.mxu0 0.0
        %3710 = vmatprep.subr.mxu0 0.0
        %3711 = vmatpush1.xpose.msra.mxu0 0.0
        %3712 = vmatprep.subr.mxu0 0.0
        %3713 = vmatpush1.xpose.msra.mxu0 0.0
        %3714 = vmatprep.subr.mxu0 0.0
        %3715 = vmatpush1.xpose.msra.mxu0 0.0
        %3716 = vmatprep.subr.mxu0 0.0
        %3717 = vmatpush1.xpose.msra.mxu0 0.0
        %3718 = vmatprep.subr.mxu0 0.0
        %3719 = vmatpush1.xpose.msra.mxu0 0.0
        %3720 = vmatprep.subr.mxu0 0.0
        %3721 = vmatpush1.xpose.msra.mxu0 0.0
        %3722 = vmatprep.subr.mxu0 0.0
        %3723 = vmatpush1.xpose.msra.mxu0 0.0
        %3724 = vmatprep.subr.mxu0 0.0
        %3725 = vmatpush1.xpose.msra.mxu0 0.0
        %3726 = vmatprep.subr.mxu0 0.0
        %3727 = vmatpush1.xpose.msra.mxu0 0.0
        %3728 = vmatprep.subr.mxu0 0.0
        %3729 = vmatpush1.xpose.msra.mxu0 0.0
        %3730 = vmatprep.subr.mxu0 0.0
        %3731 = vmatpush1.xpose.msra.mxu0 0.0
        %3732 = vmatprep.subr.mxu0 0.0
        %3733 = vmatpush1.xpose.msra.mxu0 0.0
        %3734 = vmatprep.subr.mxu0 0.0
        %3735 = vmatpush1.xpose.msra.mxu0 0.0
        %3736 = vmatprep.subr.mxu0 0.0
        %3737 = vmatpush1.xpose.msra.mxu0 0.0
        %3738 = vmatprep.subr.mxu0 0.0
        %3739 = vmatpush1.xpose.msra.mxu0 0.0
        %3740 = vmatprep.subr.mxu0 0.0
        %3741 = vmatpush1.xpose.msra.mxu0 0.0
        %3742 = vmatprep.subr.mxu0 0.0
        %3743 = vmatpush1.xpose.msra.mxu0 0.0
        %3744 = vmatprep.subr.mxu0 0.0
        %3745 = vmatpush1.xpose.msra.mxu0 0.0
        %3746 = vmatprep.subr.mxu0 0.0
        %3747 = vmatpush1.xpose.msra.mxu0 0.0
        %3748 = vmatprep.subr.mxu0 0.0
        %3749 = vmatpush1.xpose.msra.mxu0 0.0
        %3750 = vmatprep.subr.mxu0 0.0
        %3751 = vmatpush1.xpose.msra.mxu0 0.0
        %3752 = vmatprep.subr.mxu0 0.0
        %3753 = vmatpush1.xpose.msra.mxu0 0.0
        %3754 = vmatprep.subr.mxu0 0.0
        %3755 = vmatpush1.xpose.msra.mxu0 0.0
        %3756 = vmatprep.subr.mxu0 0.0
        %3757 = vmatpush1.xpose.msra.mxu0 0.0
        %3758 = vmatprep.subr.mxu0 0.0
        %3759 = vmatpush1.xpose.msra.mxu0 0.0
        %3760 = vmatprep.subr.mxu0 0.0
        %3761 = vmatpush1.xpose.msra.mxu0 0.0
        %3762 = vmatprep.mubr.f32.mxu0 0.0
        %3763 = vmatmul.mubr.f32.gmra.mrb[0].mxu0 %v3694
        %v3764 = vpop.f32.mrb[0].mxu0
        %v3765 = vadd.f32 0.0, %v3764
        %v3766 = vpop.f32.mrb[0].mxu0
        %3767 = vdwg.mxu0
        %v3768 = vsel %vm716, %v3765, -inf
        %3769 = vmax.xlane.f32.xlu0 %v3768
        %v3770 = vpop.xlane.xlu0 %3769
        %v3771 = vsub.f32 %v3765, %v3770
        %v3772 = vmul.f32 %v3771, 1.442695
        %v3773 = vpow.pop %v3772
        %v3774 = vsel %vm716, %v3773, 0.0
        %3775 = vadd.xlane.f32.xlu0 %v3774
        %v3776 = vpop.xlane.xlu0 %3775
        %3777 = vrot.lane.b32.xlu0 %v3180, 40
        %v3778 = vpop.permute.xlu0 %3777
        %v3781 = vsel %vm716, %v3773, 0
        %3783 = vmatprep.subr.mxu0 0.0
        %3784 = vmatpush1.msra.mxu0 %v3778
        %3785 = vmatprep.subr.mxu0 0.0
        %3786 = vmatpush1.msra.mxu0 0.0
        %3787 = vmatprep.subr.mxu0 0.0
        %3788 = vmatpush1.msra.mxu0 0.0
        %3789 = vmatprep.subr.mxu0 0.0
        %3790 = vmatpush1.msra.mxu0 0.0
        %3791 = vmatprep.subr.mxu0 0.0
        %3792 = vmatpush1.msra.mxu0 0.0
        %3793 = vmatprep.subr.mxu0 0.0
        %3794 = vmatpush1.msra.mxu0 0.0
        %3795 = vmatprep.subr.mxu0 0.0
        %3796 = vmatpush1.msra.mxu0 0.0
        %3797 = vmatprep.subr.mxu0 0.0
        %3798 = vmatpush1.msra.mxu0 0.0
        %3799 = vmatprep.subr.mxu0 0.0
        %3800 = vmatpush1.msra.mxu0 0.0
        %3801 = vmatprep.subr.mxu0 0.0
        %3802 = vmatpush1.msra.mxu0 0.0
        %3803 = vmatprep.subr.mxu0 0.0
        %3804 = vmatpush1.msra.mxu0 0.0
        %3805 = vmatprep.subr.mxu0 0.0
        %3806 = vmatpush1.msra.mxu0 0.0
        %3807 = vmatprep.subr.mxu0 0.0
        %3808 = vmatpush1.msra.mxu0 0.0
        %3809 = vmatprep.subr.mxu0 0.0
        %3810 = vmatpush1.msra.mxu0 0.0
        %3811 = vmatprep.subr.mxu0 0.0
        %3812 = vmatpush1.msra.mxu0 0.0
        %3813 = vmatprep.subr.mxu0 0.0
        %3814 = vmatpush1.msra.mxu0 0.0
        %3815 = vmatprep.subr.mxu0 0.0
        %3816 = vmatpush1.msra.mxu0 0.0
        %3817 = vmatprep.subr.mxu0 0.0
        %3818 = vmatpush1.msra.mxu0 0.0
        %3819 = vmatprep.subr.mxu0 0.0
        %3820 = vmatpush1.msra.mxu0 0.0
        %3821 = vmatprep.subr.mxu0 0.0
        %3822 = vmatpush1.msra.mxu0 0.0
        %3823 = vmatprep.subr.mxu0 0.0
        %3824 = vmatpush1.msra.mxu0 0.0
        %3825 = vmatprep.subr.mxu0 0.0
        %3826 = vmatpush1.msra.mxu0 0.0
        %3827 = vmatprep.subr.mxu0 0.0
        %3828 = vmatpush1.msra.mxu0 0.0
        %3829 = vmatprep.subr.mxu0 0.0
        %3830 = vmatpush1.msra.mxu0 0.0
        %3831 = vmatprep.subr.mxu0 0.0
        %3832 = vmatpush1.msra.mxu0 0.0
        %3833 = vmatprep.subr.mxu0 0.0
        %3834 = vmatpush1.msra.mxu0 0.0
        %3835 = vmatprep.subr.mxu0 0.0
        %3836 = vmatpush1.msra.mxu0 0.0
        %3837 = vmatprep.subr.mxu0 0.0
        %3838 = vmatpush1.msra.mxu0 0.0
        %3839 = vmatprep.subr.mxu0 0.0
        %3840 = vmatpush1.msra.mxu0 0.0
        %3841 = vmatprep.subr.mxu0 0.0
        %3842 = vmatpush1.msra.mxu0 0.0
        %3843 = vmatprep.subr.mxu0 0.0
        %3844 = vmatpush1.msra.mxu0 0.0
        %3845 = vmatprep.subr.mxu0 0.0
        %3846 = vmatpush1.msra.mxu0 0.0
        %3847 = vmatprep.mubr.f32.mxu0 0.0
        %3848 = vmatmul.mubr.f32.gmra.mrb[0].mxu0 %v3781
        %v3849 = vpop.f32.mrb[0].mxu0
        %v3850 = vadd.f32 0.0, %v3849
        %v3851 = vpop.f32.mrb[0].mxu0
        %3852 = vdwg.mxu0
        %v3853 = vrcp.pop %v3776
        %v3854 = vmul.f32 %v3850, %v3853
        %3856 = vrot.lane.b32.xlu0 %v3854, 24
        %v3857 = vpop.permute.xlu0 %3856
        %3859 = vst.msk [vmem:[#allocation2] sm:$0xff] %vm1391, %v3857
        %v3860 = vld [vmem:[#allocation2] sm:$0xff]
        %s3861 = scalar_lea.vmem %s5, 32
        %v3862 = vld [vmem:[%s3861] sm:$0xff]
        %v3863 = vld [vmem:[%s3861 + $0x8] sm:$0xff]
        %v3864 = vld [vmem:[%s3861 + $0x10] sm:$0xff]
        %v3865 = vld [vmem:[%s3861 + $0x18] sm:$0xff]
        %s3866 = scalar_lea.vmem %s6, 1
        %v3867 = vld [vmem:[%s3866] sm:$0x1]
        %v3869 = vlaneseq
        %v3870 = vshrl.u32 %v3869, 7
        %v3871 = vsub.s32 0, %v3870
        %v3872 = vrot.slane %v3867, %v3871
        %v3875 = vsel %vm638, %v3860, 0
        %3877 = vmatprep.subr.mxu0 0.0
        %3878 = vmatpush1.msra.mxu0 %v3862
        %3879 = vmatprep.subr.mxu0 0.0
        %3880 = vmatpush1.msra.mxu0 %v3863
        %3881 = vmatprep.subr.mxu0 0.0
        %3882 = vmatpush1.msra.mxu0 %v3864
        %3883 = vmatprep.subr.mxu0 0.0
        %3884 = vmatpush1.msra.mxu0 %v3865
        %3885 = vmatprep.subr.mxu0 0.0
        %3886 = vmatpush1.msra.mxu0 0.0
        %3887 = vmatprep.subr.mxu0 0.0
        %3888 = vmatpush1.msra.mxu0 0.0
        %3889 = vmatprep.subr.mxu0 0.0
        %3890 = vmatpush1.msra.mxu0 0.0
        %3891 = vmatprep.subr.mxu0 0.0
        %3892 = vmatpush1.msra.mxu0 0.0
        %3893 = vmatprep.subr.mxu0 0.0
        %3894 = vmatpush1.msra.mxu0 0.0
        %3895 = vmatprep.subr.mxu0 0.0
        %3896 = vmatpush1.msra.mxu0 0.0
        %3897 = vmatprep.subr.mxu0 0.0
        %3898 = vmatpush1.msra.mxu0 0.0
        %3899 = vmatprep.subr.mxu0 0.0
        %3900 = vmatpush1.msra.mxu0 0.0
        %3901 = vmatprep.subr.mxu0 0.0
        %3902 = vmatpush1.msra.mxu0 0.0
        %3903 = vmatprep.subr.mxu0 0.0
        %3904 = vmatpush1.msra.mxu0 0.0
        %3905 = vmatprep.subr.mxu0 0.0
        %3906 = vmatpush1.msra.mxu0 0.0
        %3907 = vmatprep.subr.mxu0 0.0
        %3908 = vmatpush1.msra.mxu0 0.0
        %3909 = vmatprep.subr.mxu0 0.0
        %3910 = vmatpush1.msra.mxu0 0.0
        %3911 = vmatprep.subr.mxu0 0.0
        %3912 = vmatpush1.msra.mxu0 0.0
        %3913 = vmatprep.subr.mxu0 0.0
        %3914 = vmatpush1.msra.mxu0 0.0
        %3915 = vmatprep.subr.mxu0 0.0
        %3916 = vmatpush1.msra.mxu0 0.0
        %3917 = vmatprep.subr.mxu0 0.0
        %3918 = vmatpush1.msra.mxu0 0.0
        %3919 = vmatprep.subr.mxu0 0.0
        %3920 = vmatpush1.msra.mxu0 0.0
        %3921 = vmatprep.subr.mxu0 0.0
        %3922 = vmatpush1.msra.mxu0 0.0
        %3923 = vmatprep.subr.mxu0 0.0
        %3924 = vmatpush1.msra.mxu0 0.0
        %3925 = vmatprep.subr.mxu0 0.0
        %3926 = vmatpush1.msra.mxu0 0.0
        %3927 = vmatprep.subr.mxu0 0.0
        %3928 = vmatpush1.msra.mxu0 0.0
        %3929 = vmatprep.subr.mxu0 0.0
        %3930 = vmatpush1.msra.mxu0 0.0
        %3931 = vmatprep.subr.mxu0 0.0
        %3932 = vmatpush1.msra.mxu0 0.0
        %3933 = vmatprep.subr.mxu0 0.0
        %3934 = vmatpush1.msra.mxu0 0.0
        %3935 = vmatprep.subr.mxu0 0.0
        %3936 = vmatpush1.msra.mxu0 0.0
        %3937 = vmatprep.subr.mxu0 0.0
        %3938 = vmatpush1.msra.mxu0 0.0
        %3939 = vmatprep.subr.mxu0 0.0
        %3940 = vmatpush1.msra.mxu0 0.0
        %3941 = vmatprep.mubr.f32.mxu0 0.0
        %3942 = vmatmul.mubr.f32.gmra.mrb[0].mxu0 %v3875
        %v3943 = vpop.f32.mrb[0].mxu0
        %v3944 = vadd.f32 %v3872, %v3943
        %v3945 = vpop.f32.mrb[0].mxu0
        %3946 = vdwg.mxu0
        %v3947 = vadd.f32 %v3096, %v3944
        %s3948 = scalar_lea.vmem %s11, 1
        %v3949 = vld [vmem:[%s3948] sm:$0x1]
        %s3950 = scalar_lea.vmem %s12, 1
        %v3951 = vld [vmem:[%s3950] sm:$0x1]
        %v3952 = vsel %vm638, %v3947, 0.0
        %3953 = vadd.xlane.f32.xlu0 %v3952
        %v3954 = vpop.xlane.xlu0 %3953
        %v3955 = vmul.f32 %v3954, %v1484
        %v3956 = vsub.f32 %v3947, %v3955
        %v3957 = vmul.f32 %v3956, %v3956
        %v3958 = vsel %vm638, %v3957, 0.0
        %3959 = vadd.xlane.f32.xlu0 %v3958
        %v3960 = vpop.xlane.xlu0 %3959
        %v3961 = vmul.f32 %v3960, %v1484
        %v3962 = vadd.f32 %v3961, 1e-05
        %v3963 = vrsqrt.pop %v3962
        %v3964 = vmul.f32 %v3956, %v3963
        %v3966 = vlaneseq
        %v3967 = vshrl.u32 %v3966, 7
        %v3968 = vsub.s32 0, %v3967
        %v3969 = vrot.slane %v3949, %v3968
        %v3971 = vmul.f32 %v3964, %v3969
        %v3973 = vlaneseq
        %v3974 = vshrl.u32 %v3973, 7
        %v3975 = vsub.s32 0, %v3974
        %v3976 = vrot.slane %v3951, %v3975
        %v3978 = vadd.f32 %v3971, %v3976
        %s3979 = scalar_lea.vmem %s7, 512
        %v3980 = vld [vmem:[%s3979] sm:$0xff]
        %v3981 = vld [vmem:[%s3979 + $0x8] sm:$0xff]
        %v3982 = vld [vmem:[%s3979 + $0x10] sm:$0xff]
        %v3983 = vld [vmem:[%s3979 + $0x18] sm:$0xff]
        %v3984 = vld [vmem:[%s3979 + $0x20] sm:$0xff]
        %v3985 = vld [vmem:[%s3979 + $0x28] sm:$0xff]
        %v3986 = vld [vmem:[%s3979 + $0x30] sm:$0xff]
        %v3987 = vld [vmem:[%s3979 + $0x38] sm:$0xff]
        %v3988 = vld [vmem:[%s3979 + $0x40] sm:$0xff]
        %v3989 = vld [vmem:[%s3979 + $0x48] sm:$0xff]
        %v3990 = vld [vmem:[%s3979 + $0x50] sm:$0xff]
        %v3991 = vld [vmem:[%s3979 + $0x58] sm:$0xff]
        %v3992 = vld [vmem:[%s3979 + $0x60] sm:$0xff]
        %v3993 = vld [vmem:[%s3979 + $0x68] sm:$0xff]
        %v3994 = vld [vmem:[%s3979 + $0x70] sm:$0xff]
        %v3995 = vld [vmem:[%s3979 + $0x78] sm:$0xff]
        %v3996 = vld [vmem:[%s3979 + $0x80] sm:$0xff]
        %v3997 = vld [vmem:[%s3979 + $0x88] sm:$0xff]
        %v3998 = vld [vmem:[%s3979 + $0x90] sm:$0xff]
        %v3999 = vld [vmem:[%s3979 + $0x98] sm:$0xff]
        %v4000 = vld [vmem:[%s3979 + $0xa0] sm:$0xff]
        %v4001 = vld [vmem:[%s3979 + $0xa8] sm:$0xff]
        %v4002 = vld [vmem:[%s3979 + $0xb0] sm:$0xff]
        %v4003 = vld [vmem:[%s3979 + $0xb8] sm:$0xff]
        %v4004 = vld [vmem:[%s3979 + $0xc0] sm:$0xff]
        %v4005 = vld [vmem:[%s3979 + $0xc8] sm:$0xff]
        %v4006 = vld [vmem:[%s3979 + $0xd0] sm:$0xff]
        %v4007 = vld [vmem:[%s3979 + $0xd8] sm:$0xff]
        %v4008 = vld [vmem:[%s3979 + $0xe0] sm:$0xff]
        %v4009 = vld [vmem:[%s3979 + $0xe8] sm:$0xff]
        %v4010 = vld [vmem:[%s3979 + $0xf0] sm:$0xff]
        %v4011 = vld [vmem:[%s3979 + $0xf8] sm:$0xff]
        %v4012 = vld [vmem:[%s3979 + $0x100] sm:$0xff]
        %v4013 = vld [vmem:[%s3979 + $0x108] sm:$0xff]
        %v4014 = vld [vmem:[%s3979 + $0x110] sm:$0xff]
        %v4015 = vld [vmem:[%s3979 + $0x118] sm:$0xff]
        %v4016 = vld [vmem:[%s3979 + $0x120] sm:$0xff]
        %v4017 = vld [vmem:[%s3979 + $0x128] sm:$0xff]
        %v4018 = vld [vmem:[%s3979 + $0x130] sm:$0xff]
        %v4019 = vld [vmem:[%s3979 + $0x138] sm:$0xff]
        %v4020 = vld [vmem:[%s3979 + $0x140] sm:$0xff]
        %v4021 = vld [vmem:[%s3979 + $0x148] sm:$0xff]
        %v4022 = vld [vmem:[%s3979 + $0x150] sm:$0xff]
        %v4023 = vld [vmem:[%s3979 + $0x158] sm:$0xff]
        %v4024 = vld [vmem:[%s3979 + $0x160] sm:$0xff]
        %v4025 = vld [vmem:[%s3979 + $0x168] sm:$0xff]
        %v4026 = vld [vmem:[%s3979 + $0x170] sm:$0xff]
        %v4027 = vld [vmem:[%s3979 + $0x178] sm:$0xff]
        %v4028 = vld [vmem:[%s3979 + $0x180] sm:$0xff]
        %v4029 = vld [vmem:[%s3979 + $0x188] sm:$0xff]
        %v4030 = vld [vmem:[%s3979 + $0x190] sm:$0xff]
        %v4031 = vld [vmem:[%s3979 + $0x198] sm:$0xff]
        %v4032 = vld [vmem:[%s3979 + $0x1a0] sm:$0xff]
        %v4033 = vld [vmem:[%s3979 + $0x1a8] sm:$0xff]
        %v4034 = vld [vmem:[%s3979 + $0x1b0] sm:$0xff]
        %v4035 = vld [vmem:[%s3979 + $0x1b8] sm:$0xff]
        %v4036 = vld [vmem:[%s3979 + $0x1c0] sm:$0xff]
        %v4037 = vld [vmem:[%s3979 + $0x1c8] sm:$0xff]
        %v4038 = vld [vmem:[%s3979 + $0x1d0] sm:$0xff]
        %v4039 = vld [vmem:[%s3979 + $0x1d8] sm:$0xff]
        %v4040 = vld [vmem:[%s3979 + $0x1e0] sm:$0xff]
        %v4041 = vld [vmem:[%s3979 + $0x1e8] sm:$0xff]
        %v4042 = vld [vmem:[%s3979 + $0x1f0] sm:$0xff]
        %v4043 = vld [vmem:[%s3979 + $0x1f8] sm:$0xff]
        %s4044 = scalar_lea.vmem %s8, 16
        %v4045 = vld [vmem:[%s4044] sm:$0xff]
        %v4046 = vld [vmem:[%s4044 + $0x8] sm:$0xff]
        %v4049 = vlaneseq
        %v4050 = vshrl.u32 %v4049, 7
        %v4051 = vsub.s32 0, %v4050
        %v4052 = vrot.slane %v4045, %v4051
        %v4053 = vlaneseq
        %v4054 = vshrl.u32 %v4053, 7
        %v4055 = vsub.s32 1, %v4054
        %v4056 = vrot.slane %v4045, %v4055
        %v4057 = vlaneseq
        %v4058 = vshrl.u32 %v4057, 7
        %v4059 = vsub.s32 2, %v4058
        %v4060 = vrot.slane %v4045, %v4059
        %v4061 = vlaneseq
        %v4062 = vshrl.u32 %v4061, 7
        %v4063 = vsub.s32 3, %v4062
        %v4064 = vrot.slane %v4045, %v4063
        %v4065 = vlaneseq
        %v4066 = vshrl.u32 %v4065, 7
        %v4067 = vsub.s32 4, %v4066
        %v4068 = vrot.slane %v4045, %v4067
        %v4069 = vlaneseq
        %v4070 = vshrl.u32 %v4069, 7
        %v4071 = vsub.s32 5, %v4070
        %v4072 = vrot.slane %v4045, %v4071
        %v4073 = vlaneseq
        %v4074 = vshrl.u32 %v4073, 7
        %v4075 = vsub.s32 6, %v4074
        %v4076 = vrot.slane %v4045, %v4075
        %v4077 = vlaneseq
        %v4078 = vshrl.u32 %v4077, 7
        %v4079 = vsub.s32 7, %v4078
        %v4080 = vrot.slane %v4045, %v4079
        %v4081 = vlaneseq
        %v4082 = vshrl.u32 %v4081, 7
        %v4083 = vsub.s32 0, %v4082
        %v4084 = vrot.slane %v4046, %v4083
        %v4085 = vlaneseq
        %v4086 = vshrl.u32 %v4085, 7
        %v4087 = vsub.s32 1, %v4086
        %v4088 = vrot.slane %v4046, %v4087
        %v4089 = vlaneseq
        %v4090 = vshrl.u32 %v4089, 7
        %v4091 = vsub.s32 2, %v4090
        %v4092 = vrot.slane %v4046, %v4091
        %v4093 = vlaneseq
        %v4094 = vshrl.u32 %v4093, 7
        %v4095 = vsub.s32 3, %v4094
        %v4096 = vrot.slane %v4046, %v4095
        %v4097 = vlaneseq
        %v4098 = vshrl.u32 %v4097, 7
        %v4099 = vsub.s32 4, %v4098
        %v4100 = vrot.slane %v4046, %v4099
        %v4101 = vlaneseq
        %v4102 = vshrl.u32 %v4101, 7
        %v4103 = vsub.s32 5, %v4102
        %v4104 = vrot.slane %v4046, %v4103
        %v4105 = vlaneseq
        %v4106 = vshrl.u32 %v4105, 7
        %v4107 = vsub.s32 6, %v4106
        %v4108 = vrot.slane %v4046, %v4107
        %v4109 = vlaneseq
        %v4110 = vshrl.u32 %v4109, 7
        %v4111 = vsub.s32 7, %v4110
        %v4112 = vrot.slane %v4046, %v4111
        %v4130 = vsel %vm638, %v3978, 0
        %4132 = vmatprep.subr.mxu0 %v3981
        %4133 = vmatpush1.msra.mxu0 %v3980
        %4134 = vmatprep.subr.mxu0 %v3997
        %4135 = vmatpush1.msra.mxu0 %v3996
        %4136 = vmatprep.subr.mxu0 %v4013
        %4137 = vmatpush1.msra.mxu0 %v4012
        %4138 = vmatprep.subr.mxu0 %v4029
        %4139 = vmatpush1.msra.mxu0 %v4028
        %4140 = vmatprep.subr.mxu0 0.0
        %4141 = vmatpush1.msra.mxu0 0.0
        %4142 = vmatprep.subr.mxu0 0.0
        %4143 = vmatpush1.msra.mxu0 0.0
        %4144 = vmatprep.subr.mxu0 0.0
        %4145 = vmatpush1.msra.mxu0 0.0
        %4146 = vmatprep.subr.mxu0 0.0
        %4147 = vmatpush1.msra.mxu0 0.0
        %4148 = vmatprep.subr.mxu0 0.0
        %4149 = vmatpush1.msra.mxu0 0.0
        %4150 = vmatprep.subr.mxu0 0.0
        %4151 = vmatpush1.msra.mxu0 0.0
        %4152 = vmatprep.subr.mxu0 0.0
        %4153 = vmatpush1.msra.mxu0 0.0
        %4154 = vmatprep.subr.mxu0 0.0
        %4155 = vmatpush1.msra.mxu0 0.0
        %4156 = vmatprep.subr.mxu0 0.0
        %4157 = vmatpush1.msra.mxu0 0.0
        %4158 = vmatprep.subr.mxu0 0.0
        %4159 = vmatpush1.msra.mxu0 0.0
        %4160 = vmatprep.subr.mxu0 0.0
        %4161 = vmatpush1.msra.mxu0 0.0
        %4162 = vmatprep.subr.mxu0 0.0
        %4163 = vmatpush1.msra.mxu0 0.0
        %4164 = vmatprep.subr.mxu0 0.0
        %4165 = vmatpush1.msra.mxu0 0.0
        %4166 = vmatprep.subr.mxu0 0.0
        %4167 = vmatpush1.msra.mxu0 0.0
        %4168 = vmatprep.subr.mxu0 0.0
        %4169 = vmatpush1.msra.mxu0 0.0
        %4170 = vmatprep.subr.mxu0 0.0
        %4171 = vmatpush1.msra.mxu0 0.0
        %4172 = vmatprep.subr.mxu0 0.0
        %4173 = vmatpush1.msra.mxu0 0.0
        %4174 = vmatprep.subr.mxu0 0.0
        %4175 = vmatpush1.msra.mxu0 0.0
        %4176 = vmatprep.subr.mxu0 0.0
        %4177 = vmatpush1.msra.mxu0 0.0
        %4178 = vmatprep.subr.mxu0 0.0
        %4179 = vmatpush1.msra.mxu0 0.0
        %4180 = vmatprep.subr.mxu0 0.0
        %4181 = vmatpush1.msra.mxu0 0.0
        %4182 = vmatprep.subr.mxu0 0.0
        %4183 = vmatpush1.msra.mxu0 0.0
        %4184 = vmatprep.subr.mxu0 0.0
        %4185 = vmatpush1.msra.mxu0 0.0
        %4186 = vmatprep.subr.mxu0 0.0
        %4187 = vmatpush1.msra.mxu0 0.0
        %4188 = vmatprep.subr.mxu0 0.0
        %4189 = vmatpush1.msra.mxu0 0.0
        %4190 = vmatprep.subr.mxu0 0.0
        %4191 = vmatpush1.msra.mxu0 0.0
        %4192 = vmatprep.subr.mxu0 0.0
        %4193 = vmatpush1.msra.mxu0 0.0
        %4194 = vmatprep.subr.mxu0 0.0
        %4195 = vmatpush1.msra.mxu0 0.0
        %4196 = vmatprep.mubr.f32.mxu0 0.0
        %4197 = vmatmul.mubr.f32.gmra.mrb[0].mxu0 %v4130
        %v4198 = vpop.f32.mrb[0].mxu0
        %v4199 = vadd.f32 %v4052, %v4198
        %v4200 = vpop.f32.mrb[0].mxu0
        %v4201 = vadd.f32 %v4056, %v4200
        %4202 = vdwg.mxu0
        %4203 = vmatprep.subr.mxu0 %v3983
        %4204 = vmatpush1.msra.mxu0 %v3982
        %4205 = vmatprep.subr.mxu0 %v3999
        %4206 = vmatpush1.msra.mxu0 %v3998
        %4207 = vmatprep.subr.mxu0 %v4015
        %4208 = vmatpush1.msra.mxu0 %v4014
        %4209 = vmatprep.subr.mxu0 %v4031
        %4210 = vmatpush1.msra.mxu0 %v4030
        %4211 = vmatprep.subr.mxu0 0.0
        %4212 = vmatpush1.msra.mxu0 0.0
        %4213 = vmatprep.subr.mxu0 0.0
        %4214 = vmatpush1.msra.mxu0 0.0
        %4215 = vmatprep.subr.mxu0 0.0
        %4216 = vmatpush1.msra.mxu0 0.0
        %4217 = vmatprep.subr.mxu0 0.0
        %4218 = vmatpush1.msra.mxu0 0.0
        %4219 = vmatprep.subr.mxu0 0.0
        %4220 = vmatpush1.msra.mxu0 0.0
        %4221 = vmatprep.subr.mxu0 0.0
        %4222 = vmatpush1.msra.mxu0 0.0
        %4223 = vmatprep.subr.mxu0 0.0
        %4224 = vmatpush1.msra.mxu0 0.0
        %4225 = vmatprep.subr.mxu0 0.0
        %4226 = vmatpush1.msra.mxu0 0.0
        %4227 = vmatprep.subr.mxu0 0.0
        %4228 = vmatpush1.msra.mxu0 0.0
        %4229 = vmatprep.subr.mxu0 0.0
        %4230 = vmatpush1.msra.mxu0 0.0
        %4231 = vmatprep.subr.mxu0 0.0
        %4232 = vmatpush1.msra.mxu0 0.0
        %4233 = vmatprep.subr.mxu0 0.0
        %4234 = vmatpush1.msra.mxu0 0.0
        %4235 = vmatprep.subr.mxu0 0.0
        %4236 = vmatpush1.msra.mxu0 0.0
        %4237 = vmatprep.subr.mxu0 0.0
        %4238 = vmatpush1.msra.mxu0 0.0
        %4239 = vmatprep.subr.mxu0 0.0
        %4240 = vmatpush1.msra.mxu0 0.0
        %4241 = vmatprep.subr.mxu0 0.0
        %4242 = vmatpush1.msra.mxu0 0.0
        %4243 = vmatprep.subr.mxu0 0.0
        %4244 = vmatpush1.msra.mxu0 0.0
        %4245 = vmatprep.subr.mxu0 0.0
        %4246 = vmatpush1.msra.mxu0 0.0
        %4247 = vmatprep.subr.mxu0 0.0
        %4248 = vmatpush1.msra.mxu0 0.0
        %4249 = vmatprep.subr.mxu0 0.0
        %4250 = vmatpush1.msra.mxu0 0.0
        %4251 = vmatprep.subr.mxu0 0.0
        %4252 = vmatpush1.msra.mxu0 0.0
        %4253 = vmatprep.subr.mxu0 0.0
        %4254 = vmatpush1.msra.mxu0 0.0
        %4255 = vmatprep.subr.mxu0 0.0
        %4256 = vmatpush1.msra.mxu0 0.0
        %4257 = vmatprep.subr.mxu0 0.0
        %4258 = vmatpush1.msra.mxu0 0.0
        %4259 = vmatprep.subr.mxu0 0.0
        %4260 = vmatpush1.msra.mxu0 0.0
        %4261 = vmatprep.subr.mxu0 0.0
        %4262 = vmatpush1.msra.mxu0 0.0
        %4263 = vmatprep.subr.mxu0 0.0
        %4264 = vmatpush1.msra.mxu0 0.0
        %4265 = vmatprep.subr.mxu0 0.0
        %4266 = vmatpush1.msra.mxu0 0.0
        %4267 = vmatprep.mubr.f32.mxu0 0.0
        %4268 = vmatmul.mubr.f32.gmra.mrb[0].mxu0 %v4130
        %v4269 = vpop.f32.mrb[0].mxu0
        %v4270 = vadd.f32 %v4060, %v4269
        %v4271 = vpop.f32.mrb[0].mxu0
        %v4272 = vadd.f32 %v4064, %v4271
        %4273 = vdwg.mxu0
        %4274 = vmatprep.subr.mxu0 %v3985
        %4275 = vmatpush1.msra.mxu0 %v3984
        %4276 = vmatprep.subr.mxu0 %v4001
        %4277 = vmatpush1.msra.mxu0 %v4000
        %4278 = vmatprep.subr.mxu0 %v4017
        %4279 = vmatpush1.msra.mxu0 %v4016
        %4280 = vmatprep.subr.mxu0 %v4033
        %4281 = vmatpush1.msra.mxu0 %v4032
        %4282 = vmatprep.subr.mxu0 0.0
        %4283 = vmatpush1.msra.mxu0 0.0
        %4284 = vmatprep.subr.mxu0 0.0
        %4285 = vmatpush1.msra.mxu0 0.0
        %4286 = vmatprep.subr.mxu0 0.0
        %4287 = vmatpush1.msra.mxu0 0.0
        %4288 = vmatprep.subr.mxu0 0.0
        %4289 = vmatpush1.msra.mxu0 0.0
        %4290 = vmatprep.subr.mxu0 0.0
        %4291 = vmatpush1.msra.mxu0 0.0
        %4292 = vmatprep.subr.mxu0 0.0
        %4293 = vmatpush1.msra.mxu0 0.0
        %4294 = vmatprep.subr.mxu0 0.0
        %4295 = vmatpush1.msra.mxu0 0.0
        %4296 = vmatprep.subr.mxu0 0.0
        %4297 = vmatpush1.msra.mxu0 0.0
        %4298 = vmatprep.subr.mxu0 0.0
        %4299 = vmatpush1.msra.mxu0 0.0
        %4300 = vmatprep.subr.mxu0 0.0
        %4301 = vmatpush1.msra.mxu0 0.0
        %4302 = vmatprep.subr.mxu0 0.0
        %4303 = vmatpush1.msra.mxu0 0.0
        %4304 = vmatprep.subr.mxu0 0.0
        %4305 = vmatpush1.msra.mxu0 0.0
        %4306 = vmatprep.subr.mxu0 0.0
        %4307 = vmatpush1.msra.mxu0 0.0
        %4308 = vmatprep.subr.mxu0 0.0
        %4309 = vmatpush1.msra.mxu0 0.0
        %4310 = vmatprep.subr.mxu0 0.0
        %4311 = vmatpush1.msra.mxu0 0.0
        %4312 = vmatprep.subr.mxu0 0.0
        %4313 = vmatpush1.msra.mxu0 0.0
        %4314 = vmatprep.subr.mxu0 0.0
        %4315 = vmatpush1.msra.mxu0 0.0
        %4316 = vmatprep.subr.mxu0 0.0
        %4317 = vmatpush1.msra.mxu0 0.0
        %4318 = vmatprep.subr.mxu0 0.0
        %4319 = vmatpush1.msra.mxu0 0.0
        %4320 = vmatprep.subr.mxu0 0.0
        %4321 = vmatpush1.msra.mxu0 0.0
        %4322 = vmatprep.subr.mxu0 0.0
        %4323 = vmatpush1.msra.mxu0 0.0
        %4324 = vmatprep.subr.mxu0 0.0
        %4325 = vmatpush1.msra.mxu0 0.0
        %4326 = vmatprep.subr.mxu0 0.0
        %4327 = vmatpush1.msra.mxu0 0.0
        %4328 = vmatprep.subr.mxu0 0.0
        %4329 = vmatpush1.msra.mxu0 0.0
        %4330 = vmatprep.subr.mxu0 0.0
        %4331 = vmatpush1.msra.mxu0 0.0
        %4332 = vmatprep.subr.mxu0 0.0
        %4333 = vmatpush1.msra.mxu0 0.0
        %4334 = vmatprep.subr.mxu0 0.0
        %4335 = vmatpush1.msra.mxu0 0.0
        %4336 = vmatprep.subr.mxu0 0.0
        %4337 = vmatpush1.msra.mxu0 0.0
        %4338 = vmatprep.mubr.f32.mxu0 0.0
        %4339 = vmatmul.mubr.f32.gmra.mrb[0].mxu0 %v4130
        %v4340 = vpop.f32.mrb[0].mxu0
        %v4341 = vadd.f32 %v4068, %v4340
        %v4342 = vpop.f32.mrb[0].mxu0
        %v4343 = vadd.f32 %v4072, %v4342
        %4344 = vdwg.mxu0
        %4345 = vmatprep.subr.mxu0 %v3987
        %4346 = vmatpush1.msra.mxu0 %v3986
        %4347 = vmatprep.subr.mxu0 %v4003
        %4348 = vmatpush1.msra.mxu0 %v4002
        %4349 = vmatprep.subr.mxu0 %v4019
        %4350 = vmatpush1.msra.mxu0 %v4018
        %4351 = vmatprep.subr.mxu0 %v4035
        %4352 = vmatpush1.msra.mxu0 %v4034
        %4353 = vmatprep.subr.mxu0 0.0
        %4354 = vmatpush1.msra.mxu0 0.0
        %4355 = vmatprep.subr.mxu0 0.0
        %4356 = vmatpush1.msra.mxu0 0.0
        %4357 = vmatprep.subr.mxu0 0.0
        %4358 = vmatpush1.msra.mxu0 0.0
        %4359 = vmatprep.subr.mxu0 0.0
        %4360 = vmatpush1.msra.mxu0 0.0
        %4361 = vmatprep.subr.mxu0 0.0
        %4362 = vmatpush1.msra.mxu0 0.0
        %4363 = vmatprep.subr.mxu0 0.0
        %4364 = vmatpush1.msra.mxu0 0.0
        %4365 = vmatprep.subr.mxu0 0.0
        %4366 = vmatpush1.msra.mxu0 0.0
        %4367 = vmatprep.subr.mxu0 0.0
        %4368 = vmatpush1.msra.mxu0 0.0
        %4369 = vmatprep.subr.mxu0 0.0
        %4370 = vmatpush1.msra.mxu0 0.0
        %4371 = vmatprep.subr.mxu0 0.0
        %4372 = vmatpush1.msra.mxu0 0.0
        %4373 = vmatprep.subr.mxu0 0.0
        %4374 = vmatpush1.msra.mxu0 0.0
        %4375 = vmatprep.subr.mxu0 0.0
        %4376 = vmatpush1.msra.mxu0 0.0
        %4377 = vmatprep.subr.mxu0 0.0
        %4378 = vmatpush1.msra.mxu0 0.0
        %4379 = vmatprep.subr.mxu0 0.0
        %4380 = vmatpush1.msra.mxu0 0.0
        %4381 = vmatprep.subr.mxu0 0.0
        %4382 = vmatpush1.msra.mxu0 0.0
        %4383 = vmatprep.subr.mxu0 0.0
        %4384 = vmatpush1.msra.mxu0 0.0
        %4385 = vmatprep.subr.mxu0 0.0
        %4386 = vmatpush1.msra.mxu0 0.0
        %4387 = vmatprep.subr.mxu0 0.0
        %4388 = vmatpush1.msra.mxu0 0.0
        %4389 = vmatprep.subr.mxu0 0.0
        %4390 = vmatpush1.msra.mxu0 0.0
        %4391 = vmatprep.subr.mxu0 0.0
        %4392 = vmatpush1.msra.mxu0 0.0
        %4393 = vmatprep.subr.mxu0 0.0
        %4394 = vmatpush1.msra.mxu0 0.0
        %4395 = vmatprep.subr.mxu0 0.0
        %4396 = vmatpush1.msra.mxu0 0.0
        %4397 = vmatprep.subr.mxu0 0.0
        %4398 = vmatpush1.msra.mxu0 0.0
        %4399 = vmatprep.subr.mxu0 0.0
        %4400 = vmatpush1.msra.mxu0 0.0
        %4401 = vmatprep.subr.mxu0 0.0
        %4402 = vmatpush1.msra.mxu0 0.0
        %4403 = vmatprep.subr.mxu0 0.0
        %4404 = vmatpush1.msra.mxu0 0.0
        %4405 = vmatprep.subr.mxu0 0.0
        %4406 = vmatpush1.msra.mxu0 0.0
        %4407 = vmatprep.subr.mxu0 0.0
        %4408 = vmatpush1.msra.mxu0 0.0
        %4409 = vmatprep.mubr.f32.mxu0 0.0
        %4410 = vmatmul.mubr.f32.gmra.mrb[0].mxu0 %v4130
        %v4411 = vpop.f32.mrb[0].mxu0
        %v4412 = vadd.f32 %v4076, %v4411
        %v4413 = vpop.f32.mrb[0].mxu0
        %v4414 = vadd.f32 %v4080, %v4413
        %4415 = vdwg.mxu0
        %4416 = vmatprep.subr.mxu0 %v3989
        %4417 = vmatpush1.msra.mxu0 %v3988
        %4418 = vmatprep.subr.mxu0 %v4005
        %4419 = vmatpush1.msra.mxu0 %v4004
        %4420 = vmatprep.subr.mxu0 %v4021
        %4421 = vmatpush1.msra.mxu0 %v4020
        %4422 = vmatprep.subr.mxu0 %v4037
        %4423 = vmatpush1.msra.mxu0 %v4036
        %4424 = vmatprep.subr.mxu0 0.0
        %4425 = vmatpush1.msra.mxu0 0.0
        %4426 = vmatprep.subr.mxu0 0.0
        %4427 = vmatpush1.msra.mxu0 0.0
        %4428 = vmatprep.subr.mxu0 0.0
        %4429 = vmatpush1.msra.mxu0 0.0
        %4430 = vmatprep.subr.mxu0 0.0
        %4431 = vmatpush1.msra.mxu0 0.0
        %4432 = vmatprep.subr.mxu0 0.0
        %4433 = vmatpush1.msra.mxu0 0.0
        %4434 = vmatprep.subr.mxu0 0.0
        %4435 = vmatpush1.msra.mxu0 0.0
        %4436 = vmatprep.subr.mxu0 0.0
        %4437 = vmatpush1.msra.mxu0 0.0
        %4438 = vmatprep.subr.mxu0 0.0
        %4439 = vmatpush1.msra.mxu0 0.0
        %4440 = vmatprep.subr.mxu0 0.0
        %4441 = vmatpush1.msra.mxu0 0.0
        %4442 = vmatprep.subr.mxu0 0.0
        %4443 = vmatpush1.msra.mxu0 0.0
        %4444 = vmatprep.subr.mxu0 0.0
        %4445 = vmatpush1.msra.mxu0 0.0
        %4446 = vmatprep.subr.mxu0 0.0
        %4447 = vmatpush1.msra.mxu0 0.0
        %4448 = vmatprep.subr.mxu0 0.0
        %4449 = vmatpush1.msra.mxu0 0.0
        %4450 = vmatprep.subr.mxu0 0.0
        %4451 = vmatpush1.msra.mxu0 0.0
        %4452 = vmatprep.subr.mxu0 0.0
        %4453 = vmatpush1.msra.mxu0 0.0
        %4454 = vmatprep.subr.mxu0 0.0
        %4455 = vmatpush1.msra.mxu0 0.0
        %4456 = vmatprep.subr.mxu0 0.0
        %4457 = vmatpush1.msra.mxu0 0.0
        %4458 = vmatprep.subr.mxu0 0.0
        %4459 = vmatpush1.msra.mxu0 0.0
        %4460 = vmatprep.subr.mxu0 0.0
        %4461 = vmatpush1.msra.mxu0 0.0
        %4462 = vmatprep.subr.mxu0 0.0
        %4463 = vmatpush1.msra.mxu0 0.0
        %4464 = vmatprep.subr.mxu0 0.0
        %4465 = vmatpush1.msra.mxu0 0.0
        %4466 = vmatprep.subr.mxu0 0.0
        %4467 = vmatpush1.msra.mxu0 0.0
        %4468 = vmatprep.subr.mxu0 0.0
        %4469 = vmatpush1.msra.mxu0 0.0
        %4470 = vmatprep.subr.mxu0 0.0
        %4471 = vmatpush1.msra.mxu0 0.0
        %4472 = vmatprep.subr.mxu0 0.0
        %4473 = vmatpush1.msra.mxu0 0.0
        %4474 = vmatprep.subr.mxu0 0.0
        %4475 = vmatpush1.msra.mxu0 0.0
        %4476 = vmatprep.subr.mxu0 0.0
        %4477 = vmatpush1.msra.mxu0 0.0
        %4478 = vmatprep.subr.mxu0 0.0
        %4479 = vmatpush1.msra.mxu0 0.0
        %4480 = vmatprep.mubr.f32.mxu0 0.0
        %4481 = vmatmul.mubr.f32.gmra.mrb[0].mxu0 %v4130
        %v4482 = vpop.f32.mrb[0].mxu0
        %v4483 = vadd.f32 %v4084, %v4482
        %v4484 = vpop.f32.mrb[0].mxu0
        %v4485 = vadd.f32 %v4088, %v4484
        %4486 = vdwg.mxu0
        %4487 = vmatprep.subr.mxu0 %v3991
        %4488 = vmatpush1.msra.mxu0 %v3990
        %4489 = vmatprep.subr.mxu0 %v4007
        %4490 = vmatpush1.msra.mxu0 %v4006
        %4491 = vmatprep.subr.mxu0 %v4023
        %4492 = vmatpush1.msra.mxu0 %v4022
        %4493 = vmatprep.subr.mxu0 %v4039
        %4494 = vmatpush1.msra.mxu0 %v4038
        %4495 = vmatprep.subr.mxu0 0.0
        %4496 = vmatpush1.msra.mxu0 0.0
        %4497 = vmatprep.subr.mxu0 0.0
        %4498 = vmatpush1.msra.mxu0 0.0
        %4499 = vmatprep.subr.mxu0 0.0
        %4500 = vmatpush1.msra.mxu0 0.0
        %4501 = vmatprep.subr.mxu0 0.0
        %4502 = vmatpush1.msra.mxu0 0.0
        %4503 = vmatprep.subr.mxu0 0.0
        %4504 = vmatpush1.msra.mxu0 0.0
        %4505 = vmatprep.subr.mxu0 0.0
        %4506 = vmatpush1.msra.mxu0 0.0
        %4507 = vmatprep.subr.mxu0 0.0
        %4508 = vmatpush1.msra.mxu0 0.0
        %4509 = vmatprep.subr.mxu0 0.0
        %4510 = vmatpush1.msra.mxu0 0.0
        %4511 = vmatprep.subr.mxu0 0.0
        %4512 = vmatpush1.msra.mxu0 0.0
        %4513 = vmatprep.subr.mxu0 0.0
        %4514 = vmatpush1.msra.mxu0 0.0
        %4515 = vmatprep.subr.mxu0 0.0
        %4516 = vmatpush1.msra.mxu0 0.0
        %4517 = vmatprep.subr.mxu0 0.0
        %4518 = vmatpush1.msra.mxu0 0.0
        %4519 = vmatprep.subr.mxu0 0.0
        %4520 = vmatpush1.msra.mxu0 0.0
        %4521 = vmatprep.subr.mxu0 0.0
        %4522 = vmatpush1.msra.mxu0 0.0
        %4523 = vmatprep.subr.mxu0 0.0
        %4524 = vmatpush1.msra.mxu0 0.0
        %4525 = vmatprep.subr.mxu0 0.0
        %4526 = vmatpush1.msra.mxu0 0.0
        %4527 = vmatprep.subr.mxu0 0.0
        %4528 = vmatpush1.msra.mxu0 0.0
        %4529 = vmatprep.subr.mxu0 0.0
        %4530 = vmatpush1.msra.mxu0 0.0
        %4531 = vmatprep.subr.mxu0 0.0
        %4532 = vmatpush1.msra.mxu0 0.0
        %4533 = vmatprep.subr.mxu0 0.0
        %4534 = vmatpush1.msra.mxu0 0.0
        %4535 = vmatprep.subr.mxu0 0.0
        %4536 = vmatpush1.msra.mxu0 0.0
        %4537 = vmatprep.subr.mxu0 0.0
        %4538 = vmatpush1.msra.mxu0 0.0
        %4539 = vmatprep.subr.mxu0 0.0
        %4540 = vmatpush1.msra.mxu0 0.0
        %4541 = vmatprep.subr.mxu0 0.0
        %4542 = vmatpush1.msra.mxu0 0.0
        %4543 = vmatprep.subr.mxu0 0.0
        %4544 = vmatpush1.msra.mxu0 0.0
        %4545 = vmatprep.subr.mxu0 0.0
        %4546 = vmatpush1.msra.mxu0 0.0
        %4547 = vmatprep.subr.mxu0 0.0
        %4548 = vmatpush1.msra.mxu0 0.0
        %4549 = vmatprep.subr.mxu0 0.0
        %4550 = vmatpush1.msra.mxu0 0.0
        %4551 = vmatprep.mubr.f32.mxu0 0.0
        %4552 = vmatmul.mubr.f32.gmra.mrb[0].mxu0 %v4130
        %v4553 = vpop.f32.mrb[0].mxu0
        %v4554 = vadd.f32 %v4092, %v4553
        %v4555 = vpop.f32.mrb[0].mxu0
        %v4556 = vadd.f32 %v4096, %v4555
        %4557 = vdwg.mxu0
        %4558 = vmatprep.subr.mxu0 %v3993
        %4559 = vmatpush1.msra.mxu0 %v3992
        %4560 = vmatprep.subr.mxu0 %v4009
        %4561 = vmatpush1.msra.mxu0 %v4008
        %4562 = vmatprep.subr.mxu0 %v4025
        %4563 = vmatpush1.msra.mxu0 %v4024
        %4564 = vmatprep.subr.mxu0 %v4041
        %4565 = vmatpush1.msra.mxu0 %v4040
        %4566 = vmatprep.subr.mxu0 0.0
        %4567 = vmatpush1.msra.mxu0 0.0
        %4568 = vmatprep.subr.mxu0 0.0
        %4569 = vmatpush1.msra.mxu0 0.0
        %4570 = vmatprep.subr.mxu0 0.0
        %4571 = vmatpush1.msra.mxu0 0.0
        %4572 = vmatprep.subr.mxu0 0.0
        %4573 = vmatpush1.msra.mxu0 0.0
        %4574 = vmatprep.subr.mxu0 0.0
        %4575 = vmatpush1.msra.mxu0 0.0
        %4576 = vmatprep.subr.mxu0 0.0
        %4577 = vmatpush1.msra.mxu0 0.0
        %4578 = vmatprep.subr.mxu0 0.0
        %4579 = vmatpush1.msra.mxu0 0.0
        %4580 = vmatprep.subr.mxu0 0.0
        %4581 = vmatpush1.msra.mxu0 0.0
        %4582 = vmatprep.subr.mxu0 0.0
        %4583 = vmatpush1.msra.mxu0 0.0
        %4584 = vmatprep.subr.mxu0 0.0
        %4585 = vmatpush1.msra.mxu0 0.0
        %4586 = vmatprep.subr.mxu0 0.0
        %4587 = vmatpush1.msra.mxu0 0.0
        %4588 = vmatprep.subr.mxu0 0.0
        %4589 = vmatpush1.msra.mxu0 0.0
        %4590 = vmatprep.subr.mxu0 0.0
        %4591 = vmatpush1.msra.mxu0 0.0
        %4592 = vmatprep.subr.mxu0 0.0
        %4593 = vmatpush1.msra.mxu0 0.0
        %4594 = vmatprep.subr.mxu0 0.0
        %4595 = vmatpush1.msra.mxu0 0.0
        %4596 = vmatprep.subr.mxu0 0.0
        %4597 = vmatpush1.msra.mxu0 0.0
        %4598 = vmatprep.subr.mxu0 0.0
        %4599 = vmatpush1.msra.mxu0 0.0
        %4600 = vmatprep.subr.mxu0 0.0
        %4601 = vmatpush1.msra.mxu0 0.0
        %4602 = vmatprep.subr.mxu0 0.0
        %4603 = vmatpush1.msra.mxu0 0.0
        %4604 = vmatprep.subr.mxu0 0.0
        %4605 = vmatpush1.msra.mxu0 0.0
        %4606 = vmatprep.subr.mxu0 0.0
        %4607 = vmatpush1.msra.mxu0 0.0
        %4608 = vmatprep.subr.mxu0 0.0
        %4609 = vmatpush1.msra.mxu0 0.0
        %4610 = vmatprep.subr.mxu0 0.0
        %4611 = vmatpush1.msra.mxu0 0.0
        %4612 = vmatprep.subr.mxu0 0.0
        %4613 = vmatpush1.msra.mxu0 0.0
        %4614 = vmatprep.subr.mxu0 0.0
        %4615 = vmatpush1.msra.mxu0 0.0
        %4616 = vmatprep.subr.mxu0 0.0
        %4617 = vmatpush1.msra.mxu0 0.0
        %4618 = vmatprep.subr.mxu0 0.0
        %4619 = vmatpush1.msra.mxu0 0.0
        %4620 = vmatprep.subr.mxu0 0.0
        %4621 = vmatpush1.msra.mxu0 0.0
        %4622 = vmatprep.mubr.f32.mxu0 0.0
        %4623 = vmatmul.mubr.f32.gmra.mrb[0].mxu0 %v4130
        %v4624 = vpop.f32.mrb[0].mxu0
        %v4625 = vadd.f32 %v4100, %v4624
        %v4626 = vpop.f32.mrb[0].mxu0
        %v4627 = vadd.f32 %v4104, %v4626
        %4628 = vdwg.mxu0
        %4629 = vmatprep.subr.mxu0 %v3995
        %4630 = vmatpush1.msra.mxu0 %v3994
        %4631 = vmatprep.subr.mxu0 %v4011
        %4632 = vmatpush1.msra.mxu0 %v4010
        %4633 = vmatprep.subr.mxu0 %v4027
        %4634 = vmatpush1.msra.mxu0 %v4026
        %4635 = vmatprep.subr.mxu0 %v4043
        %4636 = vmatpush1.msra.mxu0 %v4042
        %4637 = vmatprep.subr.mxu0 0.0
        %4638 = vmatpush1.msra.mxu0 0.0
        %4639 = vmatprep.subr.mxu0 0.0
        %4640 = vmatpush1.msra.mxu0 0.0
        %4641 = vmatprep.subr.mxu0 0.0
        %4642 = vmatpush1.msra.mxu0 0.0
        %4643 = vmatprep.subr.mxu0 0.0
        %4644 = vmatpush1.msra.mxu0 0.0
        %4645 = vmatprep.subr.mxu0 0.0
        %4646 = vmatpush1.msra.mxu0 0.0
        %4647 = vmatprep.subr.mxu0 0.0
        %4648 = vmatpush1.msra.mxu0 0.0
        %4649 = vmatprep.subr.mxu0 0.0
        %4650 = vmatpush1.msra.mxu0 0.0
        %4651 = vmatprep.subr.mxu0 0.0
        %4652 = vmatpush1.msra.mxu0 0.0
        %4653 = vmatprep.subr.mxu0 0.0
        %4654 = vmatpush1.msra.mxu0 0.0
        %4655 = vmatprep.subr.mxu0 0.0
        %4656 = vmatpush1.msra.mxu0 0.0
        %4657 = vmatprep.subr.mxu0 0.0
        %4658 = vmatpush1.msra.mxu0 0.0
        %4659 = vmatprep.subr.mxu0 0.0
        %4660 = vmatpush1.msra.mxu0 0.0
        %4661 = vmatprep.subr.mxu0 0.0
        %4662 = vmatpush1.msra.mxu0 0.0
        %4663 = vmatprep.subr.mxu0 0.0
        %4664 = vmatpush1.msra.mxu0 0.0
        %4665 = vmatprep.subr.mxu0 0.0
        %4666 = vmatpush1.msra.mxu0 0.0
        %4667 = vmatprep.subr.mxu0 0.0
        %4668 = vmatpush1.msra.mxu0 0.0
        %4669 = vmatprep.subr.mxu0 0.0
        %4670 = vmatpush1.msra.mxu0 0.0
        %4671 = vmatprep.subr.mxu0 0.0
        %4672 = vmatpush1.msra.mxu0 0.0
        %4673 = vmatprep.subr.mxu0 0.0
        %4674 = vmatpush1.msra.mxu0 0.0
        %4675 = vmatprep.subr.mxu0 0.0
        %4676 = vmatpush1.msra.mxu0 0.0
        %4677 = vmatprep.subr.mxu0 0.0
        %4678 = vmatpush1.msra.mxu0 0.0
        %4679 = vmatprep.subr.mxu0 0.0
        %4680 = vmatpush1.msra.mxu0 0.0
        %4681 = vmatprep.subr.mxu0 0.0
        %4682 = vmatpush1.msra.mxu0 0.0
        %4683 = vmatprep.subr.mxu0 0.0
        %4684 = vmatpush1.msra.mxu0 0.0
        %4685 = vmatprep.subr.mxu0 0.0
        %4686 = vmatpush1.msra.mxu0 0.0
        %4687 = vmatprep.subr.mxu0 0.0
        %4688 = vmatpush1.msra.mxu0 0.0
        %4689 = vmatprep.subr.mxu0 0.0
        %4690 = vmatpush1.msra.mxu0 0.0
        %4691 = vmatprep.subr.mxu0 0.0
        %4692 = vmatpush1.msra.mxu0 0.0
        %4693 = vmatprep.mubr.f32.mxu0 0.0
        %4694 = vmatmul.mubr.f32.gmra.mrb[0].mxu0 %v4130
        %v4695 = vpop.f32.mrb[0].mxu0
        %v4696 = vadd.f32 %v4108, %v4695
        %v4697 = vpop.f32.mrb[0].mxu0
        %v4698 = vadd.f32 %v4112, %v4697
        %4699 = vdwg.mxu0
        %v4700 = vmax.f32 %v4199, 0.0
        %v4701 = vmax.f32 %v4201, 0.0
        %v4702 = vmax.f32 %v4270, 0.0
        %v4703 = vmax.f32 %v4272, 0.0
        %v4704 = vmax.f32 %v4341, 0.0
        %v4705 = vmax.f32 %v4343, 0.0
        %v4706 = vmax.f32 %v4412, 0.0
        %v4707 = vmax.f32 %v4414, 0.0
        %v4708 = vmax.f32 %v4483, 0.0
        %v4709 = vmax.f32 %v4485, 0.0
        %v4710 = vmax.f32 %v4554, 0.0
        %v4711 = vmax.f32 %v4556, 0.0
        %v4712 = vmax.f32 %v4625, 0.0
        %v4713 = vmax.f32 %v4627, 0.0
        %v4714 = vmax.f32 %v4696, 0.0
        %v4715 = vmax.f32 %v4698, 0.0
        %s4716 = scalar_lea.vmem %s9, 2048
        %v4717 = vld [vmem:[%s4716] sm:$0xff]
        %v4718 = vld [vmem:[%s4716 + $0x8] sm:$0xff]
        %v4719 = vld [vmem:[%s4716 + $0x10] sm:$0xff]
        %v4720 = vld [vmem:[%s4716 + $0x18] sm:$0xff]
        %v4721 = vld [vmem:[%s4716 + $0x20] sm:$0xff]
        %v4722 = vld [vmem:[%s4716 + $0x28] sm:$0xff]
        %v4723 = vld [vmem:[%s4716 + $0x30] sm:$0xff]
        %v4724 = vld [vmem:[%s4716 + $0x38] sm:$0xff]
        %v4725 = vld [vmem:[%s4716 + $0x40] sm:$0xff]
        %v4726 = vld [vmem:[%s4716 + $0x48] sm:$0xff]
        %v4727 = vld [vmem:[%s4716 + $0x50] sm:$0xff]
        %v4728 = vld [vmem:[%s4716 + $0x58] sm:$0xff]
        %v4729 = vld [vmem:[%s4716 + $0x60] sm:$0xff]
        %v4730 = vld [vmem:[%s4716 + $0x68] sm:$0xff]
        %v4731 = vld [vmem:[%s4716 + $0x70] sm:$0xff]
        %v4732 = vld [vmem:[%s4716 + $0x78] sm:$0xff]
        %v4733 = vld [vmem:[%s4716 + $0x80] sm:$0xff]
        %v4734 = vld [vmem:[%s4716 + $0x88] sm:$0xff]
        %v4735 = vld [vmem:[%s4716 + $0x90] sm:$0xff]
        %v4736 = vld [vmem:[%s4716 + $0x98] sm:$0xff]
        %v4737 = vld [vmem:[%s4716 + $0xa0] sm:$0xff]
        %v4738 = vld [vmem:[%s4716 + $0xa8] sm:$0xff]
        %v4739 = vld [vmem:[%s4716 + $0xb0] sm:$0xff]
        %v4740 = vld [vmem:[%s4716 + $0xb8] sm:$0xff]
        %v4741 = vld [vmem:[%s4716 + $0xc0] sm:$0xff]
        %v4742 = vld [vmem:[%s4716 + $0xc8] sm:$0xff]
        %v4743 = vld [vmem:[%s4716 + $0xd0] sm:$0xff]
        %v4744 = vld [vmem:[%s4716 + $0xd8] sm:$0xff]
        %v4745 = vld [vmem:[%s4716 + $0xe0] sm:$0xff]
        %v4746 = vld [vmem:[%s4716 + $0xe8] sm:$0xff]
        %v4747 = vld [vmem:[%s4716 + $0xf0] sm:$0xff]
        %v4748 = vld [vmem:[%s4716 + $0xf8] sm:$0xff]
        %v4749 = vld [vmem:[%s4716 + $0x100] sm:$0xff]
        %v4750 = vld [vmem:[%s4716 + $0x108] sm:$0xff]
        %v4751 = vld [vmem:[%s4716 + $0x110] sm:$0xff]
        %v4752 = vld [vmem:[%s4716 + $0x118] sm:$0xff]
        %v4753 = vld [vmem:[%s4716 + $0x120] sm:$0xff]
        %v4754 = vld [vmem:[%s4716 + $0x128] sm:$0xff]
        %v4755 = vld [vmem:[%s4716 + $0x130] sm:$0xff]
        %v4756 = vld [vmem:[%s4716 + $0x138] sm:$0xff]
        %v4757 = vld [vmem:[%s4716 + $0x140] sm:$0xff]
        %v4758 = vld [vmem:[%s4716 + $0x148] sm:$0xff]
        %v4759 = vld [vmem:[%s4716 + $0x150] sm:$0xff]
        %v4760 = vld [vmem:[%s4716 + $0x158] sm:$0xff]
        %v4761 = vld [vmem:[%s4716 + $0x160] sm:$0xff]
        %v4762 = vld [vmem:[%s4716 + $0x168] sm:$0xff]
        %v4763 = vld [vmem:[%s4716 + $0x170] sm:$0xff]
        %v4764 = vld [vmem:[%s4716 + $0x178] sm:$0xff]
        %v4765 = vld [vmem:[%s4716 + $0x180] sm:$0xff]
        %v4766 = vld [vmem:[%s4716 + $0x188] sm:$0xff]
        %v4767 = vld [vmem:[%s4716 + $0x190] sm:$0xff]
        %v4768 = vld [vmem:[%s4716 + $0x198] sm:$0xff]
        %v4769 = vld [vmem:[%s4716 + $0x1a0] sm:$0xff]
        %v4770 = vld [vmem:[%s4716 + $0x1a8] sm:$0xff]
        %v4771 = vld [vmem:[%s4716 + $0x1b0] sm:$0xff]
        %v4772 = vld [vmem:[%s4716 + $0x1b8] sm:$0xff]
        %v4773 = vld [vmem:[%s4716 + $0x1c0] sm:$0xff]
        %v4774 = vld [vmem:[%s4716 + $0x1c8] sm:$0xff]
        %v4775 = vld [vmem:[%s4716 + $0x1d0] sm:$0xff]
        %v4776 = vld [vmem:[%s4716 + $0x1d8] sm:$0xff]
        %v4777 = vld [vmem:[%s4716 + $0x1e0] sm:$0xff]
        %v4778 = vld [vmem:[%s4716 + $0x1e8] sm:$0xff]
        %v4779 = vld [vmem:[%s4716 + $0x1f0] sm:$0xff]
        %v4780 = vld [vmem:[%s4716 + $0x1f8] sm:$0xff]
        %v4781 = vld [vmem:[%s4716 + $0x200] sm:$0xff]
        %v4782 = vld [vmem:[%s4716 + $0x208] sm:$0xff]
        %v4783 = vld [vmem:[%s4716 + $0x210] sm:$0xff]
        %v4784 = vld [vmem:[%s4716 + $0x218] sm:$0xff]
        %v4785 = vld [vmem:[%s4716 + $0x220] sm:$0xff]
        %v4786 = vld [vmem:[%s4716 + $0x228] sm:$0xff]
        %v4787 = vld [vmem:[%s4716 + $0x230] sm:$0xff]
        %v4788 = vld [vmem:[%s4716 + $0x238] sm:$0xff]
        %v4789 = vld [vmem:[%s4716 + $0x240] sm:$0xff]
        %v4790 = vld [vmem:[%s4716 + $0x248] sm:$0xff]
        %v4791 = vld [vmem:[%s4716 + $0x250] sm:$0xff]
        %v4792 = vld [vmem:[%s4716 + $0x258] sm:$0xff]
        %v4793 = vld [vmem:[%s4716 + $0x260] sm:$0xff]
        %v4794 = vld [vmem:[%s4716 + $0x268] sm:$0xff]
        %v4795 = vld [vmem:[%s4716 + $0x270] sm:$0xff]
        %v4796 = vld [vmem:[%s4716 + $0x278] sm:$0xff]
        %v4797 = vld [vmem:[%s4716 + $0x280] sm:$0xff]
        %v4798 = vld [vmem:[%s4716 + $0x288] sm:$0xff]
        %v4799 = vld [vmem:[%s4716 + $0x290] sm:$0xff]
        %v4800 = vld [vmem:[%s4716 + $0x298] sm:$0xff]
        %v4801 = vld [vmem:[%s4716 + $0x2a0] sm:$0xff]
        %v4802 = vld [vmem:[%s4716 + $0x2a8] sm:$0xff]
        %v4803 = vld [vmem:[%s4716 + $0x2b0] sm:$0xff]
        %v4804 = vld [vmem:[%s4716 + $0x2b8] sm:$0xff]
        %v4805 = vld [vmem:[%s4716 + $0x2c0] sm:$0xff]
        %v4806 = vld [vmem:[%s4716 + $0x2c8] sm:$0xff]
        %v4807 = vld [vmem:[%s4716 + $0x2d0] sm:$0xff]
        %v4808 = vld [vmem:[%s4716 + $0x2d8] sm:$0xff]
        %v4809 = vld [vmem:[%s4716 + $0x2e0] sm:$0xff]
        %v4810 = vld [vmem:[%s4716 + $0x2e8] sm:$0xff]
        %v4811 = vld [vmem:[%s4716 + $0x2f0] sm:$0xff]
        %v4812 = vld [vmem:[%s4716 + $0x2f8] sm:$0xff]
        %v4813 = vld [vmem:[%s4716 + $0x300] sm:$0xff]
        %v4814 = vld [vmem:[%s4716 + $0x308] sm:$0xff]
        %v4815 = vld [vmem:[%s4716 + $0x310] sm:$0xff]
        %v4816 = vld [vmem:[%s4716 + $0x318] sm:$0xff]
        %v4817 = vld [vmem:[%s4716 + $0x320] sm:$0xff]
        %v4818 = vld [vmem:[%s4716 + $0x328] sm:$0xff]
        %v4819 = vld [vmem:[%s4716 + $0x330] sm:$0xff]
        %v4820 = vld [vmem:[%s4716 + $0x338] sm:$0xff]
        %v4821 = vld [vmem:[%s4716 + $0x340] sm:$0xff]
        %v4822 = vld [vmem:[%s4716 + $0x348] sm:$0xff]
        %v4823 = vld [vmem:[%s4716 + $0x350] sm:$0xff]
        %v4824 = vld [vmem:[%s4716 + $0x358] sm:$0xff]
        %v4825 = vld [vmem:[%s4716 + $0x360] sm:$0xff]
        %v4826 = vld [vmem:[%s4716 + $0x368] sm:$0xff]
        %v4827 = vld [vmem:[%s4716 + $0x370] sm:$0xff]
        %v4828 = vld [vmem:[%s4716 + $0x378] sm:$0xff]
        %v4829 = vld [vmem:[%s4716 + $0x380] sm:$0xff]
        %v4830 = vld [vmem:[%s4716 + $0x388] sm:$0xff]
        %v4831 = vld [vmem:[%s4716 + $0x390] sm:$0xff]
        %v4832 = vld [vmem:[%s4716 + $0x398] sm:$0xff]
        %v4833 = vld [vmem:[%s4716 + $0x3a0] sm:$0xff]
        %v4834 = vld [vmem:[%s4716 + $0x3a8] sm:$0xff]
        %v4835 = vld [vmem:[%s4716 + $0x3b0] sm:$0xff]
        %v4836 = vld [vmem:[%s4716 + $0x3b8] sm:$0xff]
        %v4837 = vld [vmem:[%s4716 + $0x3c0] sm:$0xff]
        %v4838 = vld [vmem:[%s4716 + $0x3c8] sm:$0xff]
        %v4839 = vld [vmem:[%s4716 + $0x3d0] sm:$0xff]
        %v4840 = vld [vmem:[%s4716 + $0x3d8] sm:$0xff]
        %v4841 = vld [vmem:[%s4716 + $0x3e0] sm:$0xff]
        %v4842 = vld [vmem:[%s4716 + $0x3e8] sm:$0xff]
        %v4843 = vld [vmem:[%s4716 + $0x3f0] sm:$0xff]
        %v4844 = vld [vmem:[%s4716 + $0x3f8] sm:$0xff]
        %v4845 = vld [vmem:[%s4716 + $0x400] sm:$0xff]
        %v4846 = vld [vmem:[%s4716 + $0x408] sm:$0xff]
        %v4847 = vld [vmem:[%s4716 + $0x410] sm:$0xff]
        %v4848 = vld [vmem:[%s4716 + $0x418] sm:$0xff]
        %v4849 = vld [vmem:[%s4716 + $0x420] sm:$0xff]
        %v4850 = vld [vmem:[%s4716 + $0x428] sm:$0xff]
        %v4851 = vld [vmem:[%s4716 + $0x430] sm:$0xff]
        %v4852 = vld [vmem:[%s4716 + $0x438] sm:$0xff]
        %v4853 = vld [vmem:[%s4716 + $0x440] sm:$0xff]
        %v4854 = vld [vmem:[%s4716 + $0x448] sm:$0xff]
        %v4855 = vld [vmem:[%s4716 + $0x450] sm:$0xff]
        %v4856 = vld [vmem:[%s4716 + $0x458] sm:$0xff]
        %v4857 = vld [vmem:[%s4716 + $0x460] sm:$0xff]
        %v4858 = vld [vmem:[%s4716 + $0x468] sm:$0xff]
        %v4859 = vld [vmem:[%s4716 + $0x470] sm:$0xff]
        %v4860 = vld [vmem:[%s4716 + $0x478] sm:$0xff]
        %v4861 = vld [vmem:[%s4716 + $0x480] sm:$0xff]
        %v4862 = vld [vmem:[%s4716 + $0x488] sm:$0xff]
        %v4863 = vld [vmem:[%s4716 + $0x490] sm:$0xff]
        %v4864 = vld [vmem:[%s4716 + $0x498] sm:$0xff]
        %v4865 = vld [vmem:[%s4716 + $0x4a0] sm:$0xff]
        %v4866 = vld [vmem:[%s4716 + $0x4a8] sm:$0xff]
        %v4867 = vld [vmem:[%s4716 + $0x4b0] sm:$0xff]
        %v4868 = vld [vmem:[%s4716 + $0x4b8] sm:$0xff]
        %v4869 = vld [vmem:[%s4716 + $0x4c0] sm:$0xff]
        %v4870 = vld [vmem:[%s4716 + $0x4c8] sm:$0xff]
        %v4871 = vld [vmem:[%s4716 + $0x4d0] sm:$0xff]
        %v4872 = vld [vmem:[%s4716 + $0x4d8] sm:$0xff]
        %v4873 = vld [vmem:[%s4716 + $0x4e0] sm:$0xff]
        %v4874 = vld [vmem:[%s4716 + $0x4e8] sm:$0xff]
        %v4875 = vld [vmem:[%s4716 + $0x4f0] sm:$0xff]
        %v4876 = vld [vmem:[%s4716 + $0x4f8] sm:$0xff]
        %v4877 = vld [vmem:[%s4716 + $0x500] sm:$0xff]
        %v4878 = vld [vmem:[%s4716 + $0x508] sm:$0xff]
        %v4879 = vld [vmem:[%s4716 + $0x510] sm:$0xff]
        %v4880 = vld [vmem:[%s4716 + $0x518] sm:$0xff]
        %v4881 = vld [vmem:[%s4716 + $0x520] sm:$0xff]
        %v4882 = vld [vmem:[%s4716 + $0x528] sm:$0xff]
        %v4883 = vld [vmem:[%s4716 + $0x530] sm:$0xff]
        %v4884 = vld [vmem:[%s4716 + $0x538] sm:$0xff]
        %v4885 = vld [vmem:[%s4716 + $0x540] sm:$0xff]
        %v4886 = vld [vmem:[%s4716 + $0x548] sm:$0xff]
        %v4887 = vld [vmem:[%s4716 + $0x550] sm:$0xff]
        %v4888 = vld [vmem:[%s4716 + $0x558] sm:$0xff]
        %v4889 = vld [vmem:[%s4716 + $0x560] sm:$0xff]
        %v4890 = vld [vmem:[%s4716 + $0x568] sm:$0xff]
        %v4891 = vld [vmem:[%s4716 + $0x570] sm:$0xff]
        %v4892 = vld [vmem:[%s4716 + $0x578] sm:$0xff]
        %v4893 = vld [vmem:[%s4716 + $0x580] sm:$0xff]
        %v4894 = vld [vmem:[%s4716 + $0x588] sm:$0xff]
        %v4895 = vld [vmem:[%s4716 + $0x590] sm:$0xff]
        %v4896 = vld [vmem:[%s4716 + $0x598] sm:$0xff]
        %v4897 = vld [vmem:[%s4716 + $0x5a0] sm:$0xff]
        %v4898 = vld [vmem:[%s4716 + $0x5a8] sm:$0xff]
        %v4899 = vld [vmem:[%s4716 + $0x5b0] sm:$0xff]
        %v4900 = vld [vmem:[%s4716 + $0x5b8] sm:$0xff]
        %v4901 = vld [vmem:[%s4716 + $0x5c0] sm:$0xff]
        %v4902 = vld [vmem:[%s4716 + $0x5c8] sm:$0xff]
        %v4903 = vld [vmem:[%s4716 + $0x5d0] sm:$0xff]
        %v4904 = vld [vmem:[%s4716 + $0x5d8] sm:$0xff]
        %v4905 = vld [vmem:[%s4716 + $0x5e0] sm:$0xff]
        %v4906 = vld [vmem:[%s4716 + $0x5e8] sm:$0xff]
        %v4907 = vld [vmem:[%s4716 + $0x5f0] sm:$0xff]
        %v4908 = vld [vmem:[%s4716 + $0x5f8] sm:$0xff]
        %v4909 = vld [vmem:[%s4716 + $0x600] sm:$0xff]
        %v4910 = vld [vmem:[%s4716 + $0x608] sm:$0xff]
        %v4911 = vld [vmem:[%s4716 + $0x610] sm:$0xff]
        %v4912 = vld [vmem:[%s4716 + $0x618] sm:$0xff]
        %v4913 = vld [vmem:[%s4716 + $0x620] sm:$0xff]
        %v4914 = vld [vmem:[%s4716 + $0x628] sm:$0xff]
        %v4915 = vld [vmem:[%s4716 + $0x630] sm:$0xff]
        %v4916 = vld [vmem:[%s4716 + $0x638] sm:$0xff]
        %v4917 = vld [vmem:[%s4716 + $0x640] sm:$0xff]
        %v4918 = vld [vmem:[%s4716 + $0x648] sm:$0xff]
        %v4919 = vld [vmem:[%s4716 + $0x650] sm:$0xff]
        %v4920 = vld [vmem:[%s4716 + $0x658] sm:$0xff]
        %v4921 = vld [vmem:[%s4716 + $0x660] sm:$0xff]
        %v4922 = vld [vmem:[%s4716 + $0x668] sm:$0xff]
        %v4923 = vld [vmem:[%s4716 + $0x670] sm:$0xff]
        %v4924 = vld [vmem:[%s4716 + $0x678] sm:$0xff]
        %v4925 = vld [vmem:[%s4716 + $0x680] sm:$0xff]
        %v4926 = vld [vmem:[%s4716 + $0x688] sm:$0xff]
        %v4927 = vld [vmem:[%s4716 + $0x690] sm:$0xff]
        %v4928 = vld [vmem:[%s4716 + $0x698] sm:$0xff]
        %v4929 = vld [vmem:[%s4716 + $0x6a0] sm:$0xff]
        %v4930 = vld [vmem:[%s4716 + $0x6a8] sm:$0xff]
        %v4931 = vld [vmem:[%s4716 + $0x6b0] sm:$0xff]
        %v4932 = vld [vmem:[%s4716 + $0x6b8] sm:$0xff]
        %v4933 = vld [vmem:[%s4716 + $0x6c0] sm:$0xff]
        %v4934 = vld [vmem:[%s4716 + $0x6c8] sm:$0xff]
        %v4935 = vld [vmem:[%s4716 + $0x6d0] sm:$0xff]
        %v4936 = vld [vmem:[%s4716 + $0x6d8] sm:$0xff]
        %v4937 = vld [vmem:[%s4716 + $0x6e0] sm:$0xff]
        %v4938 = vld [vmem:[%s4716 + $0x6e8] sm:$0xff]
        %v4939 = vld [vmem:[%s4716 + $0x6f0] sm:$0xff]
        %v4940 = vld [vmem:[%s4716 + $0x6f8] sm:$0xff]
        %v4941 = vld [vmem:[%s4716 + $0x700] sm:$0xff]
        %v4942 = vld [vmem:[%s4716 + $0x708] sm:$0xff]
        %v4943 = vld [vmem:[%s4716 + $0x710] sm:$0xff]
        %v4944 = vld [vmem:[%s4716 + $0x718] sm:$0xff]
        %v4945 = vld [vmem:[%s4716 + $0x720] sm:$0xff]
        %v4946 = vld [vmem:[%s4716 + $0x728] sm:$0xff]
        %v4947 = vld [vmem:[%s4716 + $0x730] sm:$0xff]
        %v4948 = vld [vmem:[%s4716 + $0x738] sm:$0xff]
        %v4949 = vld [vmem:[%s4716 + $0x740] sm:$0xff]
        %v4950 = vld [vmem:[%s4716 + $0x748] sm:$0xff]
        %v4951 = vld [vmem:[%s4716 + $0x750] sm:$0xff]
        %v4952 = vld [vmem:[%s4716 + $0x758] sm:$0xff]
        %v4953 = vld [vmem:[%s4716 + $0x760] sm:$0xff]
        %v4954 = vld [vmem:[%s4716 + $0x768] sm:$0xff]
        %v4955 = vld [vmem:[%s4716 + $0x770] sm:$0xff]
        %v4956 = vld [vmem:[%s4716 + $0x778] sm:$0xff]
        %v4957 = vld [vmem:[%s4716 + $0x780] sm:$0xff]
        %v4958 = vld [vmem:[%s4716 + $0x788] sm:$0xff]
        %v4959 = vld [vmem:[%s4716 + $0x790] sm:$0xff]
        %v4960 = vld [vmem:[%s4716 + $0x798] sm:$0xff]
        %v4961 = vld [vmem:[%s4716 + $0x7a0] sm:$0xff]
        %v4962 = vld [vmem:[%s4716 + $0x7a8] sm:$0xff]
        %v4963 = vld [vmem:[%s4716 + $0x7b0] sm:$0xff]
        %v4964 = vld [vmem:[%s4716 + $0x7b8] sm:$0xff]
        %v4965 = vld [vmem:[%s4716 + $0x7c0] sm:$0xff]
        %v4966 = vld [vmem:[%s4716 + $0x7c8] sm:$0xff]
        %v4967 = vld [vmem:[%s4716 + $0x7d0] sm:$0xff]
        %v4968 = vld [vmem:[%s4716 + $0x7d8] sm:$0xff]
        %v4969 = vld [vmem:[%s4716 + $0x7e0] sm:$0xff]
        %v4970 = vld [vmem:[%s4716 + $0x7e8] sm:$0xff]
        %v4971 = vld [vmem:[%s4716 + $0x7f0] sm:$0xff]
        %v4972 = vld [vmem:[%s4716 + $0x7f8] sm:$0xff]
        %s4973 = scalar_lea.vmem %s10, 1
        %v4974 = vld [vmem:[%s4973] sm:$0x1]
        %v4976 = vlaneseq
        %v4977 = vshrl.u32 %v4976, 7
        %v4978 = vsub.s32 0, %v4977
        %v4979 = vrot.slane %v4974, %v4978
        %4981 = vmatprep.subr.mxu0 0.0
        %4982 = vmatpush1.msra.mxu0 %v4717
        %4983 = vmatprep.subr.mxu0 0.0
        %4984 = vmatpush1.msra.mxu0 %v4718
        %4985 = vmatprep.subr.mxu0 0.0
        %4986 = vmatpush1.msra.mxu0 %v4719
        %4987 = vmatprep.subr.mxu0 0.0
        %4988 = vmatpush1.msra.mxu0 %v4720
        %4989 = vmatprep.subr.mxu0 0.0
        %4990 = vmatpush1.msra.mxu0 %v4721
        %4991 = vmatprep.subr.mxu0 0.0
        %4992 = vmatpush1.msra.mxu0 %v4722
        %4993 = vmatprep.subr.mxu0 0.0
        %4994 = vmatpush1.msra.mxu0 %v4723
        %4995 = vmatprep.subr.mxu0 0.0
        %4996 = vmatpush1.msra.mxu0 %v4724
        %4997 = vmatprep.subr.mxu0 0.0
        %4998 = vmatpush1.msra.mxu0 %v4725
        %4999 = vmatprep.subr.mxu0 0.0
        %5000 = vmatpush1.msra.mxu0 %v4726
        %5001 = vmatprep.subr.mxu0 0.0
        %5002 = vmatpush1.msra.mxu0 %v4727
        %5003 = vmatprep.subr.mxu0 0.0
        %5004 = vmatpush1.msra.mxu0 %v4728
        %5005 = vmatprep.subr.mxu0 0.0
        %5006 = vmatpush1.msra.mxu0 %v4729
        %5007 = vmatprep.subr.mxu0 0.0
        %5008 = vmatpush1.msra.mxu0 %v4730
        %5009 = vmatprep.subr.mxu0 0.0
        %5010 = vmatpush1.msra.mxu0 %v4731
        %5011 = vmatprep.subr.mxu0 0.0
        %5012 = vmatpush1.msra.mxu0 %v4732
        %5013 = vmatprep.subr.mxu0 0.0
        %5014 = vmatpush1.msra.mxu0 %v4733
        %5015 = vmatprep.subr.mxu0 0.0
        %5016 = vmatpush1.msra.mxu0 %v4734
        %5017 = vmatprep.subr.mxu0 0.0
        %5018 = vmatpush1.msra.mxu0 %v4735
        %5019 = vmatprep.subr.mxu0 0.0
        %5020 = vmatpush1.msra.mxu0 %v4736
        %5021 = vmatprep.subr.mxu0 0.0
        %5022 = vmatpush1.msra.mxu0 %v4737
        %5023 = vmatprep.subr.mxu0 0.0
        %5024 = vmatpush1.msra.mxu0 %v4738
        %5025 = vmatprep.subr.mxu0 0.0
        %5026 = vmatpush1.msra.mxu0 %v4739
        %5027 = vmatprep.subr.mxu0 0.0
        %5028 = vmatpush1.msra.mxu0 %v4740
        %5029 = vmatprep.subr.mxu0 0.0
        %5030 = vmatpush1.msra.mxu0 %v4741
        %5031 = vmatprep.subr.mxu0 0.0
        %5032 = vmatpush1.msra.mxu0 %v4742
        %5033 = vmatprep.subr.mxu0 0.0
        %5034 = vmatpush1.msra.mxu0 %v4743
        %5035 = vmatprep.subr.mxu0 0.0
        %5036 = vmatpush1.msra.mxu0 %v4744
        %5037 = vmatprep.subr.mxu0 0.0
        %5038 = vmatpush1.msra.mxu0 %v4745
        %5039 = vmatprep.subr.mxu0 0.0
        %5040 = vmatpush1.msra.mxu0 %v4746
        %5041 = vmatprep.subr.mxu0 0.0
        %5042 = vmatpush1.msra.mxu0 %v4747
        %5043 = vmatprep.subr.mxu0 0.0
        %5044 = vmatpush1.msra.mxu0 %v4748
        %5045 = vmatprep.mubr.f32.mxu0 %v4701
        %5046 = vmatmul.mubr.f32.gmra.mrb[0].mxu0 %v4700
        %v5047 = vpop.f32.mrb[0].mxu0
        %v5048 = vadd.f32 %v4979, %v5047
        %v5049 = vpop.f32.mrb[0].mxu0
        %5050 = vdwg.mxu0
        %5051 = vmatprep.subr.mxu0 0.0
        %5052 = vmatpush1.msra.mxu0 %v4749
        %5053 = vmatprep.subr.mxu0 0.0
        %5054 = vmatpush1.msra.mxu0 %v4750
        %5055 = vmatprep.subr.mxu0 0.0
        %5056 = vmatpush1.msra.mxu0 %v4751
        %5057 = vmatprep.subr.mxu0 0.0
        %5058 = vmatpush1.msra.mxu0 %v4752
        %5059 = vmatprep.subr.mxu0 0.0
        %5060 = vmatpush1.msra.mxu0 %v4753
        %5061 = vmatprep.subr.mxu0 0.0
        %5062 = vmatpush1.msra.mxu0 %v4754
        %5063 = vmatprep.subr.mxu0 0.0
        %5064 = vmatpush1.msra.mxu0 %v4755
        %5065 = vmatprep.subr.mxu0 0.0
        %5066 = vmatpush1.msra.mxu0 %v4756
        %5067 = vmatprep.subr.mxu0 0.0
        %5068 = vmatpush1.msra.mxu0 %v4757
        %5069 = vmatprep.subr.mxu0 0.0
        %5070 = vmatpush1.msra.mxu0 %v4758
        %5071 = vmatprep.subr.mxu0 0.0
        %5072 = vmatpush1.msra.mxu0 %v4759
        %5073 = vmatprep.subr.mxu0 0.0
        %5074 = vmatpush1.msra.mxu0 %v4760
        %5075 = vmatprep.subr.mxu0 0.0
        %5076 = vmatpush1.msra.mxu0 %v4761
        %5077 = vmatprep.subr.mxu0 0.0
        %5078 = vmatpush1.msra.mxu0 %v4762
        %5079 = vmatprep.subr.mxu0 0.0
        %5080 = vmatpush1.msra.mxu0 %v4763
        %5081 = vmatprep.subr.mxu0 0.0
        %5082 = vmatpush1.msra.mxu0 %v4764
        %5083 = vmatprep.subr.mxu0 0.0
        %5084 = vmatpush1.msra.mxu0 %v4765
        %5085 = vmatprep.subr.mxu0 0.0
        %5086 = vmatpush1.msra.mxu0 %v4766
        %5087 = vmatprep.subr.mxu0 0.0
        %5088 = vmatpush1.msra.mxu0 %v4767
        %5089 = vmatprep.subr.mxu0 0.0
        %5090 = vmatpush1.msra.mxu0 %v4768
        %5091 = vmatprep.subr.mxu0 0.0
        %5092 = vmatpush1.msra.mxu0 %v4769
        %5093 = vmatprep.subr.mxu0 0.0
        %5094 = vmatpush1.msra.mxu0 %v4770
        %5095 = vmatprep.subr.mxu0 0.0
        %5096 = vmatpush1.msra.mxu0 %v4771
        %5097 = vmatprep.subr.mxu0 0.0
        %5098 = vmatpush1.msra.mxu0 %v4772
        %5099 = vmatprep.subr.mxu0 0.0
        %5100 = vmatpush1.msra.mxu0 %v4773
        %5101 = vmatprep.subr.mxu0 0.0
        %5102 = vmatpush1.msra.mxu0 %v4774
        %5103 = vmatprep.subr.mxu0 0.0
        %5104 = vmatpush1.msra.mxu0 %v4775
        %5105 = vmatprep.subr.mxu0 0.0
        %5106 = vmatpush1.msra.mxu0 %v4776
        %5107 = vmatprep.subr.mxu0 0.0
        %5108 = vmatpush1.msra.mxu0 %v4777
        %5109 = vmatprep.subr.mxu0 0.0
        %5110 = vmatpush1.msra.mxu0 %v4778
        %5111 = vmatprep.subr.mxu0 0.0
        %5112 = vmatpush1.msra.mxu0 %v4779
        %5113 = vmatprep.subr.mxu0 0.0
        %5114 = vmatpush1.msra.mxu0 %v4780
        %5115 = vmatprep.mubr.f32.mxu0 %v4703
        %5116 = vmatmul.mubr.f32.gmra.mrb[0].mxu0 %v4702
        %v5117 = vpop.f32.mrb[0].mxu0
        %v5118 = vadd.f32 %v5048, %v5117
        %v5119 = vpop.f32.mrb[0].mxu0
        %5120 = vdwg.mxu0
        %5121 = vmatprep.subr.mxu0 0.0
        %5122 = vmatpush1.msra.mxu0 %v4781
        %5123 = vmatprep.subr.mxu0 0.0
        %5124 = vmatpush1.msra.mxu0 %v4782
        %5125 = vmatprep.subr.mxu0 0.0
        %5126 = vmatpush1.msra.mxu0 %v4783
        %5127 = vmatprep.subr.mxu0 0.0
        %5128 = vmatpush1.msra.mxu0 %v4784
        %5129 = vmatprep.subr.mxu0 0.0
        %5130 = vmatpush1.msra.mxu0 %v4785
        %5131 = vmatprep.subr.mxu0 0.0
        %5132 = vmatpush1.msra.mxu0 %v4786
        %5133 = vmatprep.subr.mxu0 0.0
        %5134 = vmatpush1.msra.mxu0 %v4787
        %5135 = vmatprep.subr.mxu0 0.0
        %5136 = vmatpush1.msra.mxu0 %v4788
        %5137 = vmatprep.subr.mxu0 0.0
        %5138 = vmatpush1.msra.mxu0 %v4789
        %5139 = vmatprep.subr.mxu0 0.0
        %5140 = vmatpush1.msra.mxu0 %v4790
        %5141 = vmatprep.subr.mxu0 0.0
        %5142 = vmatpush1.msra.mxu0 %v4791
        %5143 = vmatprep.subr.mxu0 0.0
        %5144 = vmatpush1.msra.mxu0 %v4792
        %5145 = vmatprep.subr.mxu0 0.0
        %5146 = vmatpush1.msra.mxu0 %v4793
        %5147 = vmatprep.subr.mxu0 0.0
        %5148 = vmatpush1.msra.mxu0 %v4794
        %5149 = vmatprep.subr.mxu0 0.0
        %5150 = vmatpush1.msra.mxu0 %v4795
        %5151 = vmatprep.subr.mxu0 0.0
        %5152 = vmatpush1.msra.mxu0 %v4796
        %5153 = vmatprep.subr.mxu0 0.0
        %5154 = vmatpush1.msra.mxu0 %v4797
        %5155 = vmatprep.subr.mxu0 0.0
        %5156 = vmatpush1.msra.mxu0 %v4798
        %5157 = vmatprep.subr.mxu0 0.0
        %5158 = vmatpush1.msra.mxu0 %v4799
        %5159 = vmatprep.subr.mxu0 0.0
        %5160 = vmatpush1.msra.mxu0 %v4800
        %5161 = vmatprep.subr.mxu0 0.0
        %5162 = vmatpush1.msra.mxu0 %v4801
        %5163 = vmatprep.subr.mxu0 0.0
        %5164 = vmatpush1.msra.mxu0 %v4802
        %5165 = vmatprep.subr.mxu0 0.0
        %5166 = vmatpush1.msra.mxu0 %v4803
        %5167 = vmatprep.subr.mxu0 0.0
        %5168 = vmatpush1.msra.mxu0 %v4804
        %5169 = vmatprep.subr.mxu0 0.0
        %5170 = vmatpush1.msra.mxu0 %v4805
        %5171 = vmatprep.subr.mxu0 0.0
        %5172 = vmatpush1.msra.mxu0 %v4806
        %5173 = vmatprep.subr.mxu0 0.0
        %5174 = vmatpush1.msra.mxu0 %v4807
        %5175 = vmatprep.subr.mxu0 0.0
        %5176 = vmatpush1.msra.mxu0 %v4808
        %5177 = vmatprep.subr.mxu0 0.0
        %5178 = vmatpush1.msra.mxu0 %v4809
        %5179 = vmatprep.subr.mxu0 0.0
        %5180 = vmatpush1.msra.mxu0 %v4810
        %5181 = vmatprep.subr.mxu0 0.0
        %5182 = vmatpush1.msra.mxu0 %v4811
        %5183 = vmatprep.subr.mxu0 0.0
        %5184 = vmatpush1.msra.mxu0 %v4812
        %5185 = vmatprep.mubr.f32.mxu0 %v4705
        %5186 = vmatmul.mubr.f32.gmra.mrb[0].mxu0 %v4704
        %v5187 = vpop.f32.mrb[0].mxu0
        %v5188 = vadd.f32 %v5118, %v5187
        %v5189 = vpop.f32.mrb[0].mxu0
        %5190 = vdwg.mxu0
        %5191 = vmatprep.subr.mxu0 0.0
        %5192 = vmatpush1.msra.mxu0 %v4813
        %5193 = vmatprep.subr.mxu0 0.0
        %5194 = vmatpush1.msra.mxu0 %v4814
        %5195 = vmatprep.subr.mxu0 0.0
        %5196 = vmatpush1.msra.mxu0 %v4815
        %5197 = vmatprep.subr.mxu0 0.0
        %5198 = vmatpush1.msra.mxu0 %v4816
        %5199 = vmatprep.subr.mxu0 0.0
        %5200 = vmatpush1.msra.mxu0 %v4817
        %5201 = vmatprep.subr.mxu0 0.0
        %5202 = vmatpush1.msra.mxu0 %v4818
        %5203 = vmatprep.subr.mxu0 0.0
        %5204 = vmatpush1.msra.mxu0 %v4819
        %5205 = vmatprep.subr.mxu0 0.0
        %5206 = vmatpush1.msra.mxu0 %v4820
        %5207 = vmatprep.subr.mxu0 0.0
        %5208 = vmatpush1.msra.mxu0 %v4821
        %5209 = vmatprep.subr.mxu0 0.0
        %5210 = vmatpush1.msra.mxu0 %v4822
        %5211 = vmatprep.subr.mxu0 0.0
        %5212 = vmatpush1.msra.mxu0 %v4823
        %5213 = vmatprep.subr.mxu0 0.0
        %5214 = vmatpush1.msra.mxu0 %v4824
        %5215 = vmatprep.subr.mxu0 0.0
        %5216 = vmatpush1.msra.mxu0 %v4825
        %5217 = vmatprep.subr.mxu0 0.0
        %5218 = vmatpush1.msra.mxu0 %v4826
        %5219 = vmatprep.subr.mxu0 0.0
        %5220 = vmatpush1.msra.mxu0 %v4827
        %5221 = vmatprep.subr.mxu0 0.0
        %5222 = vmatpush1.msra.mxu0 %v4828
        %5223 = vmatprep.subr.mxu0 0.0
        %5224 = vmatpush1.msra.mxu0 %v4829
        %5225 = vmatprep.subr.mxu0 0.0
        %5226 = vmatpush1.msra.mxu0 %v4830
        %5227 = vmatprep.subr.mxu0 0.0
        %5228 = vmatpush1.msra.mxu0 %v4831
        %5229 = vmatprep.subr.mxu0 0.0
        %5230 = vmatpush1.msra.mxu0 %v4832
        %5231 = vmatprep.subr.mxu0 0.0
        %5232 = vmatpush1.msra.mxu0 %v4833
        %5233 = vmatprep.subr.mxu0 0.0
        %5234 = vmatpush1.msra.mxu0 %v4834
        %5235 = vmatprep.subr.mxu0 0.0
        %5236 = vmatpush1.msra.mxu0 %v4835
        %5237 = vmatprep.subr.mxu0 0.0
        %5238 = vmatpush1.msra.mxu0 %v4836
        %5239 = vmatprep.subr.mxu0 0.0
        %5240 = vmatpush1.msra.mxu0 %v4837
        %5241 = vmatprep.subr.mxu0 0.0
        %5242 = vmatpush1.msra.mxu0 %v4838
        %5243 = vmatprep.subr.mxu0 0.0
        %5244 = vmatpush1.msra.mxu0 %v4839
        %5245 = vmatprep.subr.mxu0 0.0
        %5246 = vmatpush1.msra.mxu0 %v4840
        %5247 = vmatprep.subr.mxu0 0.0
        %5248 = vmatpush1.msra.mxu0 %v4841
        %5249 = vmatprep.subr.mxu0 0.0
        %5250 = vmatpush1.msra.mxu0 %v4842
        %5251 = vmatprep.subr.mxu0 0.0
        %5252 = vmatpush1.msra.mxu0 %v4843
        %5253 = vmatprep.subr.mxu0 0.0
        %5254 = vmatpush1.msra.mxu0 %v4844
        %5255 = vmatprep.mubr.f32.mxu0 %v4707
        %5256 = vmatmul.mubr.f32.gmra.mrb[0].mxu0 %v4706
        %v5257 = vpop.f32.mrb[0].mxu0
        %v5258 = vadd.f32 %v5188, %v5257
        %v5259 = vpop.f32.mrb[0].mxu0
        %5260 = vdwg.mxu0
        %5261 = vmatprep.subr.mxu0 0.0
        %5262 = vmatpush1.msra.mxu0 %v4845
        %5263 = vmatprep.subr.mxu0 0.0
        %5264 = vmatpush1.msra.mxu0 %v4846
        %5265 = vmatprep.subr.mxu0 0.0
        %5266 = vmatpush1.msra.mxu0 %v4847
        %5267 = vmatprep.subr.mxu0 0.0
        %5268 = vmatpush1.msra.mxu0 %v4848
        %5269 = vmatprep.subr.mxu0 0.0
        %5270 = vmatpush1.msra.mxu0 %v4849
        %5271 = vmatprep.subr.mxu0 0.0
        %5272 = vmatpush1.msra.mxu0 %v4850
        %5273 = vmatprep.subr.mxu0 0.0
        %5274 = vmatpush1.msra.mxu0 %v4851
        %5275 = vmatprep.subr.mxu0 0.0
        %5276 = vmatpush1.msra.mxu0 %v4852
        %5277 = vmatprep.subr.mxu0 0.0
        %5278 = vmatpush1.msra.mxu0 %v4853
        %5279 = vmatprep.subr.mxu0 0.0
        %5280 = vmatpush1.msra.mxu0 %v4854
        %5281 = vmatprep.subr.mxu0 0.0
        %5282 = vmatpush1.msra.mxu0 %v4855
        %5283 = vmatprep.subr.mxu0 0.0
        %5284 = vmatpush1.msra.mxu0 %v4856
        %5285 = vmatprep.subr.mxu0 0.0
        %5286 = vmatpush1.msra.mxu0 %v4857
        %5287 = vmatprep.subr.mxu0 0.0
        %5288 = vmatpush1.msra.mxu0 %v4858
        %5289 = vmatprep.subr.mxu0 0.0
        %5290 = vmatpush1.msra.mxu0 %v4859
        %5291 = vmatprep.subr.mxu0 0.0
        %5292 = vmatpush1.msra.mxu0 %v4860
        %5293 = vmatprep.subr.mxu0 0.0
        %5294 = vmatpush1.msra.mxu0 %v4861
        %5295 = vmatprep.subr.mxu0 0.0
        %5296 = vmatpush1.msra.mxu0 %v4862
        %5297 = vmatprep.subr.mxu0 0.0
        %5298 = vmatpush1.msra.mxu0 %v4863
        %5299 = vmatprep.subr.mxu0 0.0
        %5300 = vmatpush1.msra.mxu0 %v4864
        %5301 = vmatprep.subr.mxu0 0.0
        %5302 = vmatpush1.msra.mxu0 %v4865
        %5303 = vmatprep.subr.mxu0 0.0
        %5304 = vmatpush1.msra.mxu0 %v4866
        %5305 = vmatprep.subr.mxu0 0.0
        %5306 = vmatpush1.msra.mxu0 %v4867
        %5307 = vmatprep.subr.mxu0 0.0
        %5308 = vmatpush1.msra.mxu0 %v4868
        %5309 = vmatprep.subr.mxu0 0.0
        %5310 = vmatpush1.msra.mxu0 %v4869
        %5311 = vmatprep.subr.mxu0 0.0
        %5312 = vmatpush1.msra.mxu0 %v4870
        %5313 = vmatprep.subr.mxu0 0.0
        %5314 = vmatpush1.msra.mxu0 %v4871
        %5315 = vmatprep.subr.mxu0 0.0
        %5316 = vmatpush1.msra.mxu0 %v4872
        %5317 = vmatprep.subr.mxu0 0.0
        %5318 = vmatpush1.msra.mxu0 %v4873
        %5319 = vmatprep.subr.mxu0 0.0
        %5320 = vmatpush1.msra.mxu0 %v4874
        %5321 = vmatprep.subr.mxu0 0.0
        %5322 = vmatpush1.msra.mxu0 %v4875
        %5323 = vmatprep.subr.mxu0 0.0
        %5324 = vmatpush1.msra.mxu0 %v4876
        %5325 = vmatprep.mubr.f32.mxu0 %v4709
        %5326 = vmatmul.mubr.f32.gmra.mrb[0].mxu0 %v4708
        %v5327 = vpop.f32.mrb[0].mxu0
        %v5328 = vadd.f32 %v5258, %v5327
        %v5329 = vpop.f32.mrb[0].mxu0
        %5330 = vdwg.mxu0
        %5331 = vmatprep.subr.mxu0 0.0
        %5332 = vmatpush1.msra.mxu0 %v4877
        %5333 = vmatprep.subr.mxu0 0.0
        %5334 = vmatpush1.msra.mxu0 %v4878
        %5335 = vmatprep.subr.mxu0 0.0
        %5336 = vmatpush1.msra.mxu0 %v4879
        %5337 = vmatprep.subr.mxu0 0.0
        %5338 = vmatpush1.msra.mxu0 %v4880
        %5339 = vmatprep.subr.mxu0 0.0
        %5340 = vmatpush1.msra.mxu0 %v4881
        %5341 = vmatprep.subr.mxu0 0.0
        %5342 = vmatpush1.msra.mxu0 %v4882
        %5343 = vmatprep.subr.mxu0 0.0
        %5344 = vmatpush1.msra.mxu0 %v4883
        %5345 = vmatprep.subr.mxu0 0.0
        %5346 = vmatpush1.msra.mxu0 %v4884
        %5347 = vmatprep.subr.mxu0 0.0
        %5348 = vmatpush1.msra.mxu0 %v4885
        %5349 = vmatprep.subr.mxu0 0.0
        %5350 = vmatpush1.msra.mxu0 %v4886
        %5351 = vmatprep.subr.mxu0 0.0
        %5352 = vmatpush1.msra.mxu0 %v4887
        %5353 = vmatprep.subr.mxu0 0.0
        %5354 = vmatpush1.msra.mxu0 %v4888
        %5355 = vmatprep.subr.mxu0 0.0
        %5356 = vmatpush1.msra.mxu0 %v4889
        %5357 = vmatprep.subr.mxu0 0.0
        %5358 = vmatpush1.msra.mxu0 %v4890
        %5359 = vmatprep.subr.mxu0 0.0
        %5360 = vmatpush1.msra.mxu0 %v4891
        %5361 = vmatprep.subr.mxu0 0.0
        %5362 = vmatpush1.msra.mxu0 %v4892
        %5363 = vmatprep.subr.mxu0 0.0
        %5364 = vmatpush1.msra.mxu0 %v4893
        %5365 = vmatprep.subr.mxu0 0.0
        %5366 = vmatpush1.msra.mxu0 %v4894
        %5367 = vmatprep.subr.mxu0 0.0
        %5368 = vmatpush1.msra.mxu0 %v4895
        %5369 = vmatprep.subr.mxu0 0.0
        %5370 = vmatpush1.msra.mxu0 %v4896
        %5371 = vmatprep.subr.mxu0 0.0
        %5372 = vmatpush1.msra.mxu0 %v4897
        %5373 = vmatprep.subr.mxu0 0.0
        %5374 = vmatpush1.msra.mxu0 %v4898
        %5375 = vmatprep.subr.mxu0 0.0
        %5376 = vmatpush1.msra.mxu0 %v4899
        %5377 = vmatprep.subr.mxu0 0.0
        %5378 = vmatpush1.msra.mxu0 %v4900
        %5379 = vmatprep.subr.mxu0 0.0
        %5380 = vmatpush1.msra.mxu0 %v4901
        %5381 = vmatprep.subr.mxu0 0.0
        %5382 = vmatpush1.msra.mxu0 %v4902
        %5383 = vmatprep.subr.mxu0 0.0
        %5384 = vmatpush1.msra.mxu0 %v4903
        %5385 = vmatprep.subr.mxu0 0.0
        %5386 = vmatpush1.msra.mxu0 %v4904
        %5387 = vmatprep.subr.mxu0 0.0
        %5388 = vmatpush1.msra.mxu0 %v4905
        %5389 = vmatprep.subr.mxu0 0.0
        %5390 = vmatpush1.msra.mxu0 %v4906
        %5391 = vmatprep.subr.mxu0 0.0
        %5392 = vmatpush1.msra.mxu0 %v4907
        %5393 = vmatprep.subr.mxu0 0.0
        %5394 = vmatpush1.msra.mxu0 %v4908
        %5395 = vmatprep.mubr.f32.mxu0 %v4711
        %5396 = vmatmul.mubr.f32.gmra.mrb[0].mxu0 %v4710
        %v5397 = vpop.f32.mrb[0].mxu0
        %v5398 = vadd.f32 %v5328, %v5397
        %v5399 = vpop.f32.mrb[0].mxu0
        %5400 = vdwg.mxu0
        %5401 = vmatprep.subr.mxu0 0.0
        %5402 = vmatpush1.msra.mxu0 %v4909
        %5403 = vmatprep.subr.mxu0 0.0
        %5404 = vmatpush1.msra.mxu0 %v4910
        %5405 = vmatprep.subr.mxu0 0.0
        %5406 = vmatpush1.msra.mxu0 %v4911
        %5407 = vmatprep.subr.mxu0 0.0
        %5408 = vmatpush1.msra.mxu0 %v4912
        %5409 = vmatprep.subr.mxu0 0.0
        %5410 = vmatpush1.msra.mxu0 %v4913
        %5411 = vmatprep.subr.mxu0 0.0
        %5412 = vmatpush1.msra.mxu0 %v4914
        %5413 = vmatprep.subr.mxu0 0.0
        %5414 = vmatpush1.msra.mxu0 %v4915
        %5415 = vmatprep.subr.mxu0 0.0
        %5416 = vmatpush1.msra.mxu0 %v4916
        %5417 = vmatprep.subr.mxu0 0.0
        %5418 = vmatpush1.msra.mxu0 %v4917
        %5419 = vmatprep.subr.mxu0 0.0
        %5420 = vmatpush1.msra.mxu0 %v4918
        %5421 = vmatprep.subr.mxu0 0.0
        %5422 = vmatpush1.msra.mxu0 %v4919
        %5423 = vmatprep.subr.mxu0 0.0
        %5424 = vmatpush1.msra.mxu0 %v4920
        %5425 = vmatprep.subr.mxu0 0.0
        %5426 = vmatpush1.msra.mxu0 %v4921
        %5427 = vmatprep.subr.mxu0 0.0
        %5428 = vmatpush1.msra.mxu0 %v4922
        %5429 = vmatprep.subr.mxu0 0.0
        %5430 = vmatpush1.msra.mxu0 %v4923
        %5431 = vmatprep.subr.mxu0 0.0
        %5432 = vmatpush1.msra.mxu0 %v4924
        %5433 = vmatprep.subr.mxu0 0.0
        %5434 = vmatpush1.msra.mxu0 %v4925
        %5435 = vmatprep.subr.mxu0 0.0
        %5436 = vmatpush1.msra.mxu0 %v4926
        %5437 = vmatprep.subr.mxu0 0.0
        %5438 = vmatpush1.msra.mxu0 %v4927
        %5439 = vmatprep.subr.mxu0 0.0
        %5440 = vmatpush1.msra.mxu0 %v4928
        %5441 = vmatprep.subr.mxu0 0.0
        %5442 = vmatpush1.msra.mxu0 %v4929
        %5443 = vmatprep.subr.mxu0 0.0
        %5444 = vmatpush1.msra.mxu0 %v4930
        %5445 = vmatprep.subr.mxu0 0.0
        %5446 = vmatpush1.msra.mxu0 %v4931
        %5447 = vmatprep.subr.mxu0 0.0
        %5448 = vmatpush1.msra.mxu0 %v4932
        %5449 = vmatprep.subr.mxu0 0.0
        %5450 = vmatpush1.msra.mxu0 %v4933
        %5451 = vmatprep.subr.mxu0 0.0
        %5452 = vmatpush1.msra.mxu0 %v4934
        %5453 = vmatprep.subr.mxu0 0.0
        %5454 = vmatpush1.msra.mxu0 %v4935
        %5455 = vmatprep.subr.mxu0 0.0
        %5456 = vmatpush1.msra.mxu0 %v4936
        %5457 = vmatprep.subr.mxu0 0.0
        %5458 = vmatpush1.msra.mxu0 %v4937
        %5459 = vmatprep.subr.mxu0 0.0
        %5460 = vmatpush1.msra.mxu0 %v4938
        %5461 = vmatprep.subr.mxu0 0.0
        %5462 = vmatpush1.msra.mxu0 %v4939
        %5463 = vmatprep.subr.mxu0 0.0
        %5464 = vmatpush1.msra.mxu0 %v4940
        %5465 = vmatprep.mubr.f32.mxu0 %v4713
        %5466 = vmatmul.mubr.f32.gmra.mrb[0].mxu0 %v4712
        %v5467 = vpop.f32.mrb[0].mxu0
        %v5468 = vadd.f32 %v5398, %v5467
        %v5469 = vpop.f32.mrb[0].mxu0
        %5470 = vdwg.mxu0
        %5471 = vmatprep.subr.mxu0 0.0
        %5472 = vmatpush1.msra.mxu0 %v4941
        %5473 = vmatprep.subr.mxu0 0.0
        %5474 = vmatpush1.msra.mxu0 %v4942
        %5475 = vmatprep.subr.mxu0 0.0
        %5476 = vmatpush1.msra.mxu0 %v4943
        %5477 = vmatprep.subr.mxu0 0.0
        %5478 = vmatpush1.msra.mxu0 %v4944
        %5479 = vmatprep.subr.mxu0 0.0
        %5480 = vmatpush1.msra.mxu0 %v4945
        %5481 = vmatprep.subr.mxu0 0.0
        %5482 = vmatpush1.msra.mxu0 %v4946
        %5483 = vmatprep.subr.mxu0 0.0
        %5484 = vmatpush1.msra.mxu0 %v4947
        %5485 = vmatprep.subr.mxu0 0.0
        %5486 = vmatpush1.msra.mxu0 %v4948
        %5487 = vmatprep.subr.mxu0 0.0
        %5488 = vmatpush1.msra.mxu0 %v4949
        %5489 = vmatprep.subr.mxu0 0.0
        %5490 = vmatpush1.msra.mxu0 %v4950
        %5491 = vmatprep.subr.mxu0 0.0
        %5492 = vmatpush1.msra.mxu0 %v4951
        %5493 = vmatprep.subr.mxu0 0.0
        %5494 = vmatpush1.msra.mxu0 %v4952
        %5495 = vmatprep.subr.mxu0 0.0
        %5496 = vmatpush1.msra.mxu0 %v4953
        %5497 = vmatprep.subr.mxu0 0.0
        %5498 = vmatpush1.msra.mxu0 %v4954
        %5499 = vmatprep.subr.mxu0 0.0
        %5500 = vmatpush1.msra.mxu0 %v4955
        %5501 = vmatprep.subr.mxu0 0.0
        %5502 = vmatpush1.msra.mxu0 %v4956
        %5503 = vmatprep.subr.mxu0 0.0
        %5504 = vmatpush1.msra.mxu0 %v4957
        %5505 = vmatprep.subr.mxu0 0.0
        %5506 = vmatpush1.msra.mxu0 %v4958
        %5507 = vmatprep.subr.mxu0 0.0
        %5508 = vmatpush1.msra.mxu0 %v4959
        %5509 = vmatprep.subr.mxu0 0.0
        %5510 = vmatpush1.msra.mxu0 %v4960
        %5511 = vmatprep.subr.mxu0 0.0
        %5512 = vmatpush1.msra.mxu0 %v4961
        %5513 = vmatprep.subr.mxu0 0.0
        %5514 = vmatpush1.msra.mxu0 %v4962
        %5515 = vmatprep.subr.mxu0 0.0
        %5516 = vmatpush1.msra.mxu0 %v4963
        %5517 = vmatprep.subr.mxu0 0.0
        %5518 = vmatpush1.msra.mxu0 %v4964
        %5519 = vmatprep.subr.mxu0 0.0
        %5520 = vmatpush1.msra.mxu0 %v4965
        %5521 = vmatprep.subr.mxu0 0.0
        %5522 = vmatpush1.msra.mxu0 %v4966
        %5523 = vmatprep.subr.mxu0 0.0
        %5524 = vmatpush1.msra.mxu0 %v4967
        %5525 = vmatprep.subr.mxu0 0.0
        %5526 = vmatpush1.msra.mxu0 %v4968
        %5527 = vmatprep.subr.mxu0 0.0
        %5528 = vmatpush1.msra.mxu0 %v4969
        %5529 = vmatprep.subr.mxu0 0.0
        %5530 = vmatpush1.msra.mxu0 %v4970
        %5531 = vmatprep.subr.mxu0 0.0
        %5532 = vmatpush1.msra.mxu0 %v4971
        %5533 = vmatprep.subr.mxu0 0.0
        %5534 = vmatpush1.msra.mxu0 %v4972
        %5535 = vmatprep.mubr.f32.mxu0 %v4715
        %5536 = vmatmul.mubr.f32.gmra.mrb[0].mxu0 %v4714
        %v5537 = vpop.f32.mrb[0].mxu0
        %v5538 = vadd.f32 %v5468, %v5537
        %v5539 = vpop.f32.mrb[0].mxu0
        %5540 = vdwg.mxu0
        %v5541 = vadd.f32 %v3978, %v5538
        %s5542 = scalar_lea.vmem %s13, 1
        %v5543 = vld [vmem:[%s5542] sm:$0x1]
        %s5544 = scalar_lea.vmem %s14, 1
        %v5545 = vld [vmem:[%s5544] sm:$0x1]
        %v5546 = vsel %vm638, %v5541, 0.0
        %5547 = vadd.xlane.f32.xlu0 %v5546
        %v5548 = vpop.xlane.xlu0 %5547
        %v5549 = vmul.f32 %v5548, %v1484
        %v5550 = vsub.f32 %v5541, %v5549
        %v5551 = vmul.f32 %v5550, %v5550
        %v5552 = vsel %vm638, %v5551, 0.0
        %5553 = vadd.xlane.f32.xlu0 %v5552
        %v5554 = vpop.xlane.xlu0 %5553
        %v5555 = vmul.f32 %v5554, %v1484
        %v5556 = vadd.f32 %v5555, 1e-05
        %v5557 = vrsqrt.pop %v5556
        %v5558 = vmul.f32 %v5550, %v5557
        %v5560 = vlaneseq
        %v5561 = vshrl.u32 %v5560, 7
        %v5562 = vsub.s32 0, %v5561
        %v5563 = vrot.slane %v5543, %v5562
        %v5565 = vmul.f32 %v5558, %v5563
        %v5567 = vlaneseq
        %v5568 = vshrl.u32 %v5567, 7
        %v5569 = vsub.s32 0, %v5568
        %v5570 = vrot.slane %v5545, %v5569
        %v5572 = vadd.f32 %v5565, %v5570
        %v5573 = vld [vmem:[%s15] sm:$0xff]
        %v5574 = vld [vmem:[%s15 + $0x8] sm:$0xff]
        %v5575 = vld [vmem:[%s15 + $0x10] sm:$0xff]
        %v5576 = vld [vmem:[%s15 + $0x18] sm:$0xff]
        %v5577 = vld [vmem:[%s16] sm:$0x1]
        %v5579 = vrot.slane %v5572, 7
        %v5580 = vsel %vm638, %v5579, 0
        %5582 = vmatprep.subr.mxu0 0.0
        %5583 = vmatpush1.msra.mxu0 %v5573
        %5584 = vmatprep.subr.mxu0 0.0
        %5585 = vmatpush1.msra.mxu0 %v5574
        %5586 = vmatprep.subr.mxu0 0.0
        %5587 = vmatpush1.msra.mxu0 %v5575
        %5588 = vmatprep.subr.mxu0 0.0
        %5589 = vmatpush1.msra.mxu0 %v5576
        %5590 = vmatprep.subr.mxu0 0.0
        %5591 = vmatpush1.msra.mxu0 0.0
        %5592 = vmatprep.subr.mxu0 0.0
        %5593 = vmatpush1.msra.mxu0 0.0
        %5594 = vmatprep.subr.mxu0 0.0
        %5595 = vmatpush1.msra.mxu0 0.0
        %5596 = vmatprep.subr.mxu0 0.0
        %5597 = vmatpush1.msra.mxu0 0.0
        %5598 = vmatprep.subr.mxu0 0.0
        %5599 = vmatpush1.msra.mxu0 0.0
        %5600 = vmatprep.subr.mxu0 0.0
        %5601 = vmatpush1.msra.mxu0 0.0
        %5602 = vmatprep.subr.mxu0 0.0
        %5603 = vmatpush1.msra.mxu0 0.0
        %5604 = vmatprep.subr.mxu0 0.0
        %5605 = vmatpush1.msra.mxu0 0.0
        %5606 = vmatprep.subr.mxu0 0.0
        %5607 = vmatpush1.msra.mxu0 0.0
        %5608 = vmatprep.subr.mxu0 0.0
        %5609 = vmatpush1.msra.mxu0 0.0
        %5610 = vmatprep.subr.mxu0 0.0
        %5611 = vmatpush1.msra.mxu0 0.0
        %5612 = vmatprep.subr.mxu0 0.0
        %5613 = vmatpush1.msra.mxu0 0.0
        %5614 = vmatprep.subr.mxu0 0.0
        %5615 = vmatpush1.msra.mxu0 0.0
        %5616 = vmatprep.subr.mxu0 0.0
        %5617 = vmatpush1.msra.mxu0 0.0
        %5618 = vmatprep.subr.mxu0 0.0
        %5619 = vmatpush1.msra.mxu0 0.0
        %5620 = vmatprep.subr.mxu0 0.0
        %5621 = vmatpush1.msra.mxu0 0.0
        %5622 = vmatprep.subr.mxu0 0.0
        %5623 = vmatpush1.msra.mxu0 0.0
        %5624 = vmatprep.subr.mxu0 0.0
        %5625 = vmatpush1.msra.mxu0 0.0
        %5626 = vmatprep.subr.mxu0 0.0
        %5627 = vmatpush1.msra.mxu0 0.0
        %5628 = vmatprep.subr.mxu0 0.0
        %5629 = vmatpush1.msra.mxu0 0.0
        %5630 = vmatprep.subr.mxu0 0.0
        %5631 = vmatpush1.msra.mxu0 0.0
        %5632 = vmatprep.subr.mxu0 0.0
        %5633 = vmatpush1.msra.mxu0 0.0
        %5634 = vmatprep.subr.mxu0 0.0
        %5635 = vmatpush1.msra.mxu0 0.0
        %5636 = vmatprep.subr.mxu0 0.0
        %5637 = vmatpush1.msra.mxu0 0.0
        %5638 = vmatprep.subr.mxu0 0.0
        %5639 = vmatpush1.msra.mxu0 0.0
        %5640 = vmatprep.subr.mxu0 0.0
        %5641 = vmatpush1.msra.mxu0 0.0
        %5642 = vmatprep.subr.mxu0 0.0
        %5643 = vmatpush1.msra.mxu0 0.0
        %5644 = vmatprep.subr.mxu0 0.0
        %5645 = vmatpush1.msra.mxu0 0.0
        %5646 = vmatprep.mubr.f32.mxu0 0.0
        %5647 = vmatmul.mubr.f32.gmra.mrb[0].mxu0 %v5580
        %v5648 = vpop.f32.mrb[0].mxu0
        %v5649 = vadd.f32 %v5577, %v5648
        %v5650 = vpop.f32.mrb[0].mxu0
        %5651 = vdwg.mxu0
        %vm5652 = vcmask 57344
        %5653 = vst.msk [vmem:[%s538] sm:$0x1] %vm5652, %v5649
        %s5654 = sand.u32 %s401, 1
        %s5655 = scalar_lea.sflag [#allocation4], %s5654
        %s5656 = sand.u32 %s401, 1
        %s5657 = scalar_lea.vmem [#allocation3], %s5656
        // Predicated region
        $region89: #{tpu_custom_call.1} parent=87 // pred_check
          %p5658 = pneg %p411
        $region90: #{tpu_custom_call.1} parent=87 // pred_check_branch
          %5660 = sbr.rel (%p5658) target = $region92
        $region91: #{tpu_custom_call.1} parent=87 // pred_region
          %s5662 = ssub.s32 16, 16
          %5663 = vsyncadd %s5655, %s5662
          %s5664 = smul.addr %s31, 16
          %s5665 = scalar_lea.hbm %s17, %s5664
          %s5667 = sshll.u32 %s5657, 4
          %s5668 = int_to_ptr.vmem [resolvable:$true] %s5667
          %5670 = dma.vmem_to_hbm [thread:$0]  %s5668, 16, %s5665, %s5655
        $region92: #{tpu_custom_call.1} parent=87 // pred_fallthru
          _
      $region88: #{tpu_custom_call.1} parent=5 // pred_fallthru
        _
      %p5671 = scmp.le.s32.totalorder 2, %s26
      // Predicated region
      $region93: #{tpu_custom_call.1} parent=5 // pred_check
        %p5672 = pneg %p5671
      $region94: #{tpu_custom_call.1} parent=5 // pred_check_branch
        %5674 = sbr.rel (%p5672) target = $region96
      $region95: #{tpu_custom_call.1} parent=5 // pred_region
        %s5675 = ssub.s32 %s26, 2
        // Predicated region
        $region97: #{tpu_custom_call.1} parent=95 // pred_check
          %p5676 = pneg %p417
        $region98: #{tpu_custom_call.1} parent=95 // pred_check_branch
          %5678 = sbr.rel (%p5676) target = $region100
        $region99: #{tpu_custom_call.1} parent=95 // pred_region
          %s5679 = sand.u32 %s402, 1
          %s5680 = scalar_lea.sflag [#allocation4], %s5679
          %s5681 = sand.u32 %s402, 1
          %s5682 = scalar_lea.vmem [#allocation3], %s5681
          %5683 = dma.done %s5680, 16
        $region100: #{tpu_custom_call.1} parent=95 // pred_fallthru
          _
      $region96: #{tpu_custom_call.1} parent=5 // pred_fallthru
        _
    $region6: #{tpu_custom_call.1} parent=1 // loop_footer
      %s30 = sadd.s32 1, %s26
    $region7: #{tpu_custom_call.1} parent=1 // loop_footer_branch
      %25 = sbr.rel target = $region3
    $region8: #{tpu_custom_call.1} parent=1 // loop_exit
      _
    %5684 = vsyncpa [#allocation4], 1
    %s5685 = scalar_lea.sflag [#allocation4], 1
    %5686 = vsyncpa %s5685, 1

</llo_original>
